<compile_context>
chip_gen: v7x
topology: tpu7x:2x2x1
jax: 0.10.0
libtpu: 0.0.40
codegen_flags: <defaults>
</compile_context>

<pallas_src>
import math

import numpy as np
import jax
import jax.numpy as jnp
from jax.experimental import pallas as pl
from jax.experimental.pallas import tpu as pltpu


# ----------------------------------------------------------------------------
# Static (trace-time) constants: spherical Bessel zeros + normalizers.
# Replaces the sympy/scipy machinery of the reference with plain numpy.
# ----------------------------------------------------------------------------
def _spherical_jn(n, r):
    """Spherical Bessel function j_n(r) via the upward recurrence (float64)."""
    r = np.asarray(r, dtype=np.float64)
    j0 = np.sin(r) / r
    if n == 0:
        return j0
    j1 = np.sin(r) / (r * r) - np.cos(r) / r
    jm1, jl = j0, j1
    for l in range(2, n + 1):
        jm1, jl = jl, (2 * l - 1) / r * jl - jm1
    return jl


def _bisect(f, a, b, iters=200):
    fa = f(a)
    for _ in range(iters):
        m = 0.5 * (a + b)
        fm = f(m)
        if fa * fm <= 0.0:
            b = m
        else:
            a, fa = m, fm
    return 0.5 * (a + b)


def _jn_zeros(n, k):
    """First k zeros of spherical Bessel functions of order 0..n-1 (as in Jn_zeros)."""
    zerosj = np.zeros((n, k), dtype=np.float64)
    zerosj[0] = np.arange(1, k + 1) * np.pi
    points = np.arange(1, k + n) * np.pi
    racines = np.zeros(k + n - 1, dtype=np.float64)
    for i in range(1, n):
        for j in range(k + n - 1 - i):
            racines[j] = _bisect(lambda r: _spherical_jn(i, r), points[j], points[j + 1])
        points = racines.copy()
        zerosj[i][:k] = racines[:k]
    return zerosj


def bessel_constants(num_spherical, num_radial):
    """Zeros z[l, j] and normalizers 1/sqrt(0.5*j_{l+1}(z)^2), cast to float32."""
    zeros = _jn_zeros(num_spherical, num_radial)
    norm = np.zeros_like(zeros)
    for l in range(num_spherical):
        for j in range(num_radial):
            norm[l, j] = 1.0 / math.sqrt(0.5 * _spherical_jn(l + 1, zeros[l, j]) ** 2)
    return zeros.astype(np.float32), norm.astype(np.float32)


def _sph_prefactor(l, m):
    return math.sqrt(
        (2 * l + 1) / (4 * math.pi)
        * math.factorial(l - abs(m)) / math.factorial(l + abs(m))
    )


# ----------------------------------------------------------------------------
# Pallas kernel: samples on the lane axis, features on the sublane axis.
# ----------------------------------------------------------------------------
def _make_kernel(num_spherical, num_radial, cutoff, out_dtype):
    L, K = num_spherical, num_radial
    SQRT2 = math.sqrt(2.0)
    inv_cutoff = 1.0 / float(cutoff)

    def kernel(b_ref, x_ref, out_ref):
        # b_ref: (L*K, 2) Bessel constants (zeros, norms) -> passed as an input
        #        so the kernel captures no array constants.
        # x_ref: (3, tile) packed [dist; theta; phi], samples lane-dense.
        d = x_ref[0:1, :] * inv_cutoff        # (1, tile) normalized distance
        theta = x_ref[1:2, :]                 # (1, tile)
        phi = x_ref[2:3, :]                   # (1, tile)

        ct = jnp.cos(theta)
        st = jnp.sin(theta)                   # theta in [0, pi] -> sin(theta) >= 0

        # Hoisted azimuthal trig: one fused slab for all m = 1..L-1.
        if L > 1:
            mphi = jnp.concatenate([phi * float(m) for m in range(1, L)], axis=0)
            cos_m = jnp.cos(mphi)             # (L-1, tile)
            sin_m = jnp.sin(mphi)             # (L-1, tile)

        # Associated Legendre P_l^m(cos theta), m >= 0 (same recurrences as ref).
        P = {(0, 0): jnp.ones_like(ct)}
        for l in range(1, L):
            P[(l, l)] = float(1 - 2 * l) * st * P[(l - 1, l - 1)]
        for m in range(0, L - 1):
            P[(m + 1, m)] = float(2 * m + 1) * ct * P[(m, m)]
        for l in range(2, L):
            for m in range(l - 1):
                P[(l, m)] = (
                    float(2 * l - 1) * ct * P[(l - 1, m)]
                    - float(l + m - 1) * P[(l - 2, m)]
                ) / float(l - m)

        # Radial Bessel basis: fuse all L*K arguments into one (L*K, tile) slab so
        # sin/cos each run as a single dense EUP dispatch.
        # NOTE: no guard for t -> 0 (matches the reference; dist=0 would also nan
        # in the PyTorch module).
        z_col = b_ref[:, 0:1]                 # (L*K, 1)
        n_col = b_ref[:, 1:2]                 # (L*K, 1)
        t = z_col * d                         # (L*K, tile)
        inv_t = 1.0 / t
        sin_t = jnp.sin(t)
        cos_t = jnp.cos(t)

        blocks = []
        for l in range(L):
            lo, hi = l * K, (l + 1) * K
            it = inv_t[lo:hi, :]              # (K, tile)
            jl = sin_t[lo:hi, :] * it         # j_0
            if l >= 1:
                jlm1, jl = jl, (jl - cos_t[lo:hi, :]) * it        # j_1
                for ll in range(2, l + 1):
                    # TODO(synk): upward recurrence in f32 is unstable for t < l
                    # (large num_spherical at small normalized distances).
                    jlm1, jl = jl, float(2 * ll - 1) * it * jl - jlm1
            R = n_col[lo:hi, :] * jl          # (K, tile) radial basis of degree l

            # Spherical harmonics of degree l, order: m=0, +1..+l, -l..-1.
            y_rows = [_sph_prefactor(l, 0) * P[(l, 0)]]
            for m in range(1, l + 1):
                c = SQRT2 * ((-1.0) ** m) * _sph_prefactor(l, m)
                y_rows.append(c * P[(l, m)] * cos_m[m - 1:m, :])
            for m in range(l, 0, -1):
                c = SQRT2 * ((-1.0) ** m) * _sph_prefactor(l, m)
                y_rows.append(c * P[(l, m)] * sin_m[m - 1:m, :])

            # Per-degree outer product (m major, j minor), lane-dense rows.
            for y in y_rows:                  # y: (1, tile) broadcast over K rows
                blocks.append(y * R)          # (K, tile)

        # Single dense, lane-aligned store of the whole (F, tile) slab.
        slab = jnp.concatenate(blocks, axis=0)
        out_ref[...] = slab.astype(out_dtype)

    return kernel


def d_theta_phi_emb_forward(dist, theta, phi, *, num_radial, num_spherical,
                            cutoff=8.0, tile=1024, out_dtype=jnp.float32):
    assert num_radial <= 64
    N = dist.shape[0]
    L, K = num_spherical, num_radial
    F = L * L * K

    zeros_np, norm_np = bessel_constants(L, K)
    bconsts = jnp.asarray(
        np.stack([zeros_np.reshape(-1), norm_np.reshape(-1)], axis=1).astype(np.float32)
    )                                          # (L*K, 2)

    kernel = _make_kernel(L, K, cutoff, out_dtype)

    # Samples on the lane axis -> one contiguous (3, tile) DMA per grid step.
    packed = jnp.stack(
        [dist.astype(jnp.float32), theta.astype(jnp.float32), phi.astype(jnp.float32)],
        axis=0,
    )                                          # (3, N)

    # Lane-aligned tile; keep >= 2 grid steps when there is enough work so a
    # dual-TensorCore chip (v7x) can shard the parallel grid axis.
    tile = max(128, (int(tile) // 128) * 128)
    if N > 256:
        half = (N + 1) // 2
        tile = min(tile, ((half + 127) // 128) * 128)
    else:
        tile = 128

    Np = ((N + tile - 1) // tile) * tile
    if Np != N:
        # Pad samples with benign values (dist/theta/phi = 1.0 -> no nan/inf).
        packed = jnp.pad(packed, ((0, 0), (0, Np - N)), constant_values=1.0)

    cost = pl.CostEstimate(
        flops=int(Np) * (6 * F + 10 * L * K),
        transcendentals=int(Np) * (2 * L * K + 2 * (L - 1) + 2),
        bytes_accessed=int(Np) * (3 + F) * 4,
    )

    out = pl.pallas_call(
        kernel,
        out_shape=jax.ShapeDtypeStruct((F, Np), out_dtype),
        grid=(Np // tile,),
        in_specs=[
            pl.BlockSpec((L * K, 2), lambda i: (0, 0)),   # tiny constants, same block
            pl.BlockSpec((3, tile), lambda i: (0, i)),
        ],
        out_specs=pl.BlockSpec((F, tile), lambda i: (0, i)),
        compiler_params=pltpu.CompilerParams(dimension_semantics=("parallel",)),
        cost_estimate=cost,
    )(bconsts, packed)

    if Np != N:
        out = out[:, :N]
    # Return (N, F) to match the PyTorch module's output layout.
    return jnp.transpose(out)


# ----------------------------------------------------------------------------
# Pure-JAX reference (same math, no Pallas) for correctness check.
# ----------------------------------------------------------------------------
def ref_forward(dist, theta, phi, *, num_radial, num_spherical, cutoff=8.0):
    L, K = num_spherical, num_radial
    zeros_np, norm_np = bessel_constants(L, K)
    d = dist * (1.0 / cutoff)
    ct = jnp.cos(theta)
    st = jnp.sin(theta)

    P = {(0, 0): jnp.ones_like(ct)}
    for l in range(1, L):
        P[(l, l)] = float(1 - 2 * l) * st * P[(l - 1, l - 1)]
    for m in range(0, L - 1):
        P[(m + 1, m)] = float(2 * m + 1) * ct * P[(m, m)]
    for l in range(2, L):
        for m in range(l - 1):
            P[(l, m)] = (float(2 * l - 1) * ct * P[(l - 1, m)]
                         - float(l + m - 1) * P[(l - 2, m)]) / float(l - m)

    cols = []
    for l in range(L):
        Y = [_sph_prefactor(l, 0) * P[(l, 0)]]
        for m in range(1, l + 1):
            Y.append(math.sqrt(2.0) * ((-1.0) ** m) * _sph_prefactor(l, m)
                     * P[(l, m)] * jnp.cos(float(m) * phi))
        for m in range(l, 0, -1):
            Y.append(math.sqrt(2.0) * ((-1.0) ** m) * _sph_prefactor(l, m)
                     * P[(l, m)] * jnp.sin(float(m) * phi))
        R = []
        for j in range(K):
            t = float(zeros_np[l, j]) * d
            inv_t = 1.0 / t
            jl = jnp.sin(t) * inv_t
            if l >= 1:
                jlm1, jl = jl, (jl - jnp.cos(t)) * inv_t
                for ll in range(2, l + 1):
                    jlm1, jl = jl, float(2 * ll - 1) * inv_t * jl - jlm1
            R.append(float(norm_np[l, j]) * jl)
        for y in Y:
            for r in R:
                cols.append(y * r)
    return jnp.stack(cols, axis=1)


if __name__ == "__main__":
    num_radial = 6
    num_spherical = 3
    cutoff = 8.0
    N = 2048          # tile=1024 -> 2 grid steps (keeps both TCs busy on dual-TC chips)

    key = jax.random.PRNGKey(0)
    k1, k2, k3 = jax.random.split(key, 3)
    dist = jax.random.uniform(k1, (N,), jnp.float32, 0.5, cutoff)
    theta = jax.random.uniform(k2, (N,), jnp.float32, 1e-3, math.pi - 1e-3)
    phi = jax.random.uniform(k3, (N,), jnp.float32, 0.0, 2.0 * math.pi)

    out = d_theta_phi_emb_forward(
        dist, theta, phi,
        num_radial=num_radial, num_spherical=num_spherical, cutoff=cutoff, tile=1024)
    out = jax.block_until_ready(out)

    ref = ref_forward(dist, theta, phi,
                      num_radial=num_radial, num_spherical=num_spherical,
                      cutoff=cutoff)
    assert out.shape == (N, num_spherical ** 2 * num_radial)
    err = float(jnp.max(jnp.abs(out - ref)))
    assert jnp.allclose(out, ref, rtol=3e-4, atol=1e-4), err

    print("KERNEL_OK")
</pallas_src>

<mosaic_0001>
module attributes {stable_mosaic.version = 11 : i64} {
  func.func @kernel(%arg0: i32, %arg1: memref<18x2xf32, #tpu.memory_space<vmem>>, %arg2: memref<3x1024xf32, #tpu.memory_space<vmem>>, %arg3: memref<54x1024xf32, #tpu.memory_space<vmem>>) attributes {dimension_semantics = [#tpu.dimension_semantics<parallel>], iteration_bounds = array<i64: 2>, scalar_prefetch = 0 : i64, scratch_operands = 0 : i64, tpu.core_type = #tpu.core_type<tc>, window_params = [{pipeline_mode = #tpu.pipeline_mode<synchronous>, transform_indices = @transform_0, window_bounds = array<i64: 18, 2>}, {transform_indices = @transform_1, window_bounds = array<i64: 3, 1024>}, {transform_indices = @transform_2, window_bounds = array<i64: 54, 1024>}]} {
    %c0 = arith.constant 0 : index
    %c0_0 = arith.constant 0 : index
    %0 = vector.load %arg2[%c0, %c0_0] : memref<3x1024xf32, #tpu.memory_space<vmem>>, vector<1x1024xf32>
    %cst = arith.constant 1.250000e-01 : f32
    %1 = vector.broadcast %cst : f32 to vector<1x1024xf32>
    %2 = arith.mulf %0, %1 : vector<1x1024xf32>
    %c1 = arith.constant 1 : index
    %c0_1 = arith.constant 0 : index
    %3 = vector.load %arg2[%c1, %c0_1] : memref<3x1024xf32, #tpu.memory_space<vmem>>, vector<1x1024xf32>
    %c2 = arith.constant 2 : index
    %c0_2 = arith.constant 0 : index
    %4 = vector.load %arg2[%c2, %c0_2] : memref<3x1024xf32, #tpu.memory_space<vmem>>, vector<1x1024xf32>
    %5 = math.cos %3 : vector<1x1024xf32>
    %6 = math.sin %3 : vector<1x1024xf32>
    %cst_3 = arith.constant 1.000000e+00 : f32
    %7 = vector.broadcast %cst_3 : f32 to vector<1x1024xf32>
    %8 = arith.mulf %4, %7 : vector<1x1024xf32>
    %cst_4 = arith.constant 2.000000e+00 : f32
    %9 = vector.broadcast %cst_4 : f32 to vector<1x1024xf32>
    %10 = arith.mulf %4, %9 : vector<1x1024xf32>
    %11 = tpu.concatenate %8, %10 in 0 : vector<1x1024xf32>, vector<1x1024xf32> -> vector<2x1024xf32>
    %12 = math.cos %11 : vector<2x1024xf32>
    %13 = math.sin %11 : vector<2x1024xf32>
    %cst_5 = arith.constant 1.000000e+00 : f32
    %14 = vector.broadcast %cst_5 : f32 to vector<1x1024xf32>
    %cst_6 = arith.constant -1.000000e+00 : f32
    %15 = vector.broadcast %cst_6 : f32 to vector<1x1024xf32>
    %16 = arith.mulf %15, %6 : vector<1x1024xf32>
    %17 = arith.mulf %16, %14 : vector<1x1024xf32>
    %cst_7 = arith.constant -3.000000e+00 : f32
    %18 = vector.broadcast %cst_7 : f32 to vector<1x1024xf32>
    %19 = arith.mulf %18, %6 : vector<1x1024xf32>
    %20 = arith.mulf %19, %17 : vector<1x1024xf32>
    %cst_8 = arith.constant 1.000000e+00 : f32
    %21 = vector.broadcast %cst_8 : f32 to vector<1x1024xf32>
    %22 = arith.mulf %21, %5 : vector<1x1024xf32>
    %23 = arith.mulf %22, %14 : vector<1x1024xf32>
    %cst_9 = arith.constant 3.000000e+00 : f32
    %24 = vector.broadcast %cst_9 : f32 to vector<1x1024xf32>
    %25 = arith.mulf %24, %5 : vector<1x1024xf32>
    %26 = arith.mulf %25, %17 : vector<1x1024xf32>
    %cst_10 = arith.constant 3.000000e+00 : f32
    %27 = vector.broadcast %cst_10 : f32 to vector<1x1024xf32>
    %28 = arith.mulf %27, %5 : vector<1x1024xf32>
    %29 = arith.mulf %28, %23 : vector<1x1024xf32>
    %cst_11 = arith.constant 1.000000e+00 : f32
    %30 = vector.broadcast %cst_11 : f32 to vector<1x1024xf32>
    %31 = arith.mulf %30, %14 : vector<1x1024xf32>
    %32 = arith.subf %29, %31 : vector<1x1024xf32>
    %cst_12 = arith.constant 2.000000e+00 : f32
    %33 = vector.broadcast %cst_12 : f32 to vector<1x1024xf32>
    %34 = arith.divf %32, %33 : vector<1x1024xf32>
    %c0_13 = arith.constant 0 : index
    %c0_14 = arith.constant 0 : index
    %35 = vector.load %arg1[%c0_13, %c0_14] : memref<18x2xf32, #tpu.memory_space<vmem>>, vector<18x1xf32>
    %c0_15 = arith.constant 0 : index
    %c1_16 = arith.constant 1 : index
    %36 = vector.load %arg1[%c0_15, %c1_16] : memref<18x2xf32, #tpu.memory_space<vmem>>, vector<18x1xf32>
    %37 = vector.broadcast %35 : vector<18x1xf32> to vector<18x1024xf32>
    %38 = vector.broadcast %2 : vector<1x1024xf32> to vector<18x1024xf32>
    %39 = arith.mulf %37, %38 : vector<18x1024xf32>
    %cst_17 = arith.constant 1.000000e+00 : f32
    %40 = vector.broadcast %cst_17 : f32 to vector<18x1024xf32>
    %41 = arith.divf %40, %39 : vector<18x1024xf32>
    %42 = math.sin %39 : vector<18x1024xf32>
    %43 = math.cos %39 : vector<18x1024xf32>
    %44 = vector.extract_strided_slice %41 {offsets = [0, 0], sizes = [6, 1024], strides = [1, 1]} : vector<18x1024xf32> to vector<6x1024xf32>
    %45 = vector.extract_strided_slice %42 {offsets = [0, 0], sizes = [6, 1024], strides = [1, 1]} : vector<18x1024xf32> to vector<6x1024xf32>
    %46 = arith.mulf %45, %44 : vector<6x1024xf32>
    %47 = vector.extract_strided_slice %36 {offsets = [0, 0], sizes = [6, 1], strides = [1, 1]} : vector<18x1xf32> to vector<6x1xf32>
    %48 = vector.broadcast %47 : vector<6x1xf32> to vector<6x1024xf32>
    %49 = arith.mulf %48, %46 : vector<6x1024xf32>
    %cst_18 = arith.constant 0.282094806 : f32
    %50 = vector.broadcast %cst_18 : f32 to vector<1x1024xf32>
    %51 = arith.mulf %50, %14 : vector<1x1024xf32>
    %52 = vector.broadcast %51 : vector<1x1024xf32> to vector<6x1024xf32>
    %53 = arith.mulf %52, %49 : vector<6x1024xf32>
    %54 = vector.extract_strided_slice %41 {offsets = [6, 0], sizes = [6, 1024], strides = [1, 1]} : vector<18x1024xf32> to vector<6x1024xf32>
    %55 = vector.extract_strided_slice %42 {offsets = [6, 0], sizes = [6, 1024], strides = [1, 1]} : vector<18x1024xf32> to vector<6x1024xf32>
    %56 = arith.mulf %55, %54 : vector<6x1024xf32>
    %57 = vector.extract_strided_slice %43 {offsets = [6, 0], sizes = [6, 1024], strides = [1, 1]} : vector<18x1024xf32> to vector<6x1024xf32>
    %58 = arith.subf %56, %57 : vector<6x1024xf32>
    %59 = arith.mulf %58, %54 : vector<6x1024xf32>
    %60 = vector.extract_strided_slice %36 {offsets = [6, 0], sizes = [6, 1], strides = [1, 1]} : vector<18x1xf32> to vector<6x1xf32>
    %61 = vector.broadcast %60 : vector<6x1xf32> to vector<6x1024xf32>
    %62 = arith.mulf %61, %59 : vector<6x1024xf32>
    %cst_19 = arith.constant 0.488602519 : f32
    %63 = vector.broadcast %cst_19 : f32 to vector<1x1024xf32>
    %64 = arith.mulf %63, %23 : vector<1x1024xf32>
    %cst_20 = arith.constant -0.488602519 : f32
    %65 = vector.broadcast %cst_20 : f32 to vector<1x1024xf32>
    %66 = arith.mulf %65, %17 : vector<1x1024xf32>
    %67 = vector.extract_strided_slice %12 {offsets = [0, 0], sizes = [1, 1024], strides = [1, 1]} : vector<2x1024xf32> to vector<1x1024xf32>
    %68 = arith.mulf %66, %67 : vector<1x1024xf32>
    %cst_21 = arith.constant -0.488602519 : f32
    %69 = vector.broadcast %cst_21 : f32 to vector<1x1024xf32>
    %70 = arith.mulf %69, %17 : vector<1x1024xf32>
    %71 = vector.extract_strided_slice %13 {offsets = [0, 0], sizes = [1, 1024], strides = [1, 1]} : vector<2x1024xf32> to vector<1x1024xf32>
    %72 = arith.mulf %70, %71 : vector<1x1024xf32>
    %73 = vector.broadcast %64 : vector<1x1024xf32> to vector<6x1024xf32>
    %74 = arith.mulf %73, %62 : vector<6x1024xf32>
    %75 = vector.broadcast %68 : vector<1x1024xf32> to vector<6x1024xf32>
    %76 = arith.mulf %75, %62 : vector<6x1024xf32>
    %77 = vector.broadcast %72 : vector<1x1024xf32> to vector<6x1024xf32>
    %78 = arith.mulf %77, %62 : vector<6x1024xf32>
    %79 = vector.extract_strided_slice %41 {offsets = [12, 0], sizes = [6, 1024], strides = [1, 1]} : vector<18x1024xf32> to vector<6x1024xf32>
    %80 = vector.extract_strided_slice %42 {offsets = [12, 0], sizes = [6, 1024], strides = [1, 1]} : vector<18x1024xf32> to vector<6x1024xf32>
    %81 = arith.mulf %80, %79 : vector<6x1024xf32>
    %82 = vector.extract_strided_slice %43 {offsets = [12, 0], sizes = [6, 1024], strides = [1, 1]} : vector<18x1024xf32> to vector<6x1024xf32>
    %83 = arith.subf %81, %82 : vector<6x1024xf32>
    %84 = arith.mulf %83, %79 : vector<6x1024xf32>
    %cst_22 = arith.constant 3.000000e+00 : f32
    %85 = vector.broadcast %cst_22 : f32 to vector<6x1024xf32>
    %86 = arith.mulf %85, %79 : vector<6x1024xf32>
    %87 = arith.mulf %86, %84 : vector<6x1024xf32>
    %88 = arith.subf %87, %81 : vector<6x1024xf32>
    %89 = vector.extract_strided_slice %36 {offsets = [12, 0], sizes = [6, 1], strides = [1, 1]} : vector<18x1xf32> to vector<6x1xf32>
    %90 = vector.broadcast %89 : vector<6x1xf32> to vector<6x1024xf32>
    %91 = arith.mulf %90, %88 : vector<6x1024xf32>
    %cst_23 = arith.constant 0.63078314 : f32
    %92 = vector.broadcast %cst_23 : f32 to vector<1x1024xf32>
    %93 = arith.mulf %92, %34 : vector<1x1024xf32>
    %cst_24 = arith.constant -0.3641828 : f32
    %94 = vector.broadcast %cst_24 : f32 to vector<1x1024xf32>
    %95 = arith.mulf %94, %26 : vector<1x1024xf32>
    %96 = vector.extract_strided_slice %12 {offsets = [0, 0], sizes = [1, 1024], strides = [1, 1]} : vector<2x1024xf32> to vector<1x1024xf32>
    %97 = arith.mulf %95, %96 : vector<1x1024xf32>
    %cst_25 = arith.constant 0.1820914 : f32
    %98 = vector.broadcast %cst_25 : f32 to vector<1x1024xf32>
    %99 = arith.mulf %98, %20 : vector<1x1024xf32>
    %100 = vector.extract_strided_slice %12 {offsets = [1, 0], sizes = [1, 1024], strides = [1, 1]} : vector<2x1024xf32> to vector<1x1024xf32>
    %101 = arith.mulf %99, %100 : vector<1x1024xf32>
    %cst_26 = arith.constant 0.1820914 : f32
    %102 = vector.broadcast %cst_26 : f32 to vector<1x1024xf32>
    %103 = arith.mulf %102, %20 : vector<1x1024xf32>
    %104 = vector.extract_strided_slice %13 {offsets = [1, 0], sizes = [1, 1024], strides = [1, 1]} : vector<2x1024xf32> to vector<1x1024xf32>
    %105 = arith.mulf %103, %104 : vector<1x1024xf32>
    %cst_27 = arith.constant -0.3641828 : f32
    %106 = vector.broadcast %cst_27 : f32 to vector<1x1024xf32>
    %107 = arith.mulf %106, %26 : vector<1x1024xf32>
    %108 = vector.extract_strided_slice %13 {offsets = [0, 0], sizes = [1, 1024], strides = [1, 1]} : vector<2x1024xf32> to vector<1x1024xf32>
    %109 = arith.mulf %107, %108 : vector<1x1024xf32>
    %110 = vector.broadcast %93 : vector<1x1024xf32> to vector<6x1024xf32>
    %111 = arith.mulf %110, %91 : vector<6x1024xf32>
    %112 = vector.broadcast %97 : vector<1x1024xf32> to vector<6x1024xf32>
    %113 = arith.mulf %112, %91 : vector<6x1024xf32>
    %114 = vector.broadcast %101 : vector<1x1024xf32> to vector<6x1024xf32>
    %115 = arith.mulf %114, %91 : vector<6x1024xf32>
    %116 = vector.broadcast %105 : vector<1x1024xf32> to vector<6x1024xf32>
    %117 = arith.mulf %116, %91 : vector<6x1024xf32>
    %118 = vector.broadcast %109 : vector<1x1024xf32> to vector<6x1024xf32>
    %119 = arith.mulf %118, %91 : vector<6x1024xf32>
    %120 = tpu.concatenate %53, %74, %76, %78, %111, %113, %115, %117, %119 in 0 : vector<6x1024xf32>, vector<6x1024xf32>, vector<6x1024xf32>, vector<6x1024xf32>, vector<6x1024xf32>, vector<6x1024xf32>, vector<6x1024xf32>, vector<6x1024xf32>, vector<6x1024xf32> -> vector<54x1024xf32>
    %c0_28 = arith.constant 0 : index
    %c0_29 = arith.constant 0 : index
    %121 = vector.load %arg3[%c0_28, %c0_29] : memref<54x1024xf32, #tpu.memory_space<vmem>>, vector<54x1024xf32>
    tpu.vector_store %arg3[%c0_28, %c0_29], %120 {strides = array<i32>} : memref<54x1024xf32, #tpu.memory_space<vmem>>, vector<54x1024xf32>,
    return
  }
  func.func @transform_0(%arg0: i32) -> (i32, i32) {
    %c0_i32 = arith.constant 0 : i32
    %c0_i32_0 = arith.constant 0 : i32
    %c0_i32_1 = arith.constant 0 : i32
    return %c0_i32, %c0_i32_0 : i32, i32
  }
  func.func @transform_1(%arg0: i32) -> (i32, i32) {
    %c0_i32 = arith.constant 0 : i32
    %c0_i32_0 = arith.constant 0 : i32
    return %c0_i32, %arg0 : i32, i32
  }
  func.func @transform_2(%arg0: i32) -> (i32, i32) {
    %c0_i32 = arith.constant 0 : i32
    %c0_i32_0 = arith.constant 0 : i32
    return %c0_i32, %arg0 : i32, i32
  }
}

</mosaic_0001>

<llo_original>
// kernel: tpu_custom_call.1
$region0: #{tpu_custom_call.1}
  #allocation0 [shape = 'u32[]', space=smem, size = 0x4, offset = 0x4, fixed_abs, tag = 'smem constant byte address 0x4 - core index']
  #allocation1 [shape = 'u32[144,128]{1,0:T(1,128)}', space=vmem, size = 0x12000, scoped, tag = 'internal scratch']
  %s0 = inlined_call_operand.vmem [shape: f32[18,2], index: 0, kind: input, shape index: {}]
  %s1 = inlined_call_operand.hbm [shape: f32[3,2048], index: 1, kind: input, shape index: {}]
  %s2 = inlined_call_operand.hbm [shape: f32[54,2048], index: 2, kind: output, shape index: {}]
  %s3 = sld [smem:[#allocation0]]
  $region45: #{tpu_custom_call.1} parent=0
    _
  %s5 = ssub.s32 1, %s3
  %s6 = scalar_select 0, %s5, %s3
  $region1: #{tpu_custom_call.1} parent=0
    #allocation2 [shape = 'u8[32768]{0}', space=vmem, size = 0x8000, scoped, tag = 'input window, operand 1']
    #allocation3 [shape = 's32[2]{0}', space=sflag, size = 0x8, scoped, tag = 'scoped memory for tpu_custom_call.1']
    #allocation4 [shape = 's32[2]{0}', space=sflag, size = 0x8, scoped, tag = 'scoped memory for tpu_custom_call.1']
    #allocation5 [shape = 'u8[458752]{0}', space=vmem, size = 0x70000, scoped, tag = 'output window, operand 0']
    %7 = vsyncpa [#allocation3], 0
    %s8 = scalar_lea.sflag [#allocation3], 1
    %9 = vsyncpa %s8, 0
    %10 = vsyncpa [#allocation4], 0
    %s11 = scalar_lea.sflag [#allocation4], 1
    %12 = vsyncpa %s11, 0
    loop: start=0, step=1, limit=4
    $region2: #{tpu_custom_call.1} parent=1 // loop_pre_header
      _
    $region3: #{tpu_custom_call.1} parent=1 // loop_header
      %s14 = sphi 0, %s18
      %p15 = scmp.ge.s32.totalorder %s14, 4
      %s22 = sphi 0, %s22
      %s24 = sphi 0, %s22
      %s25 = sphi 0, %s24
      %s39 = sphi 0, %s25
      %s45 = sphi 0, %s47
      %s48 = sphi 0, %s45
      %s49 = sphi 0, %s48
      %s65 = sphi 0, %s49
      %s71 = sphi 0, %s73
      %s74 = sphi 0, %s71
      %s75 = sphi 0, %s74
      %s91 = sphi 0, %s75
    $region4: #{tpu_custom_call.1} parent=1 // loop_header_branch
      %17 = sbr.rel (%p15) target = $region8
    $region5: #{tpu_custom_call.1} parent=1 // loop_body
      %s19 = ssub.s32 %s14, 1
      %s20 = ssub.s32 %s14, 2
      %s21 = sadd.s32 %s14, 1
      %s23 = sadd.s32 %s22, 1
      %p26 = scmp.eq.s32.totalorder %s14, 1
      %p27 = scmp.ne.s32.totalorder %s22, %s24
      %p28 = scmp.eq.s32.totalorder %s14, 0
      %p29 = por %p27, %p28
      %p30 = scmp.ne.s32.totalorder %s22, %s24
      %p31 = scmp.eq.s32.totalorder %s19, 1
      %p32 = por %p30, %p31
      %p33 = scmp.ne.s32.totalorder %s24, %s25
      %p34 = scmp.eq.s32.totalorder %s19, 0
      %p35 = por %p33, %p34
      %p36 = scmp.ne.s32.totalorder %s24, %s25
      %p37 = scmp.eq.s32.totalorder %s20, 1
      %p38 = por %p36, %p37
      %p40 = scmp.ne.s32.totalorder %s25, %s39
      %p41 = scmp.eq.s32.totalorder %s20, 0
      %p42 = por %p40, %p41
      %s43 = ssub.s32 %s14, %s21
      %p44 = scmp.eq.s32.totalorder %s43, 0
      %s46 = sadd.s32 %s45, 1
      %s47 = scalar_select %p44, %s45, %s46
      %p50 = pneg %p44
      %p51 = scmp.eq.s32.totalorder %s14, 1
      %p52 = por %p50, %p51
      %p53 = scmp.ne.s32.totalorder %s45, %s48
      %p54 = scmp.eq.s32.totalorder %s14, 0
      %p55 = por %p53, %p54
      %p56 = scmp.ne.s32.totalorder %s45, %s48
      %p57 = scmp.eq.s32.totalorder %s19, 1
      %p58 = por %p56, %p57
      %p59 = scmp.ne.s32.totalorder %s48, %s49
      %p60 = scmp.eq.s32.totalorder %s19, 0
      %p61 = por %p59, %p60
      %p62 = scmp.ne.s32.totalorder %s48, %s49
      %p63 = scmp.eq.s32.totalorder %s20, 1
      %p64 = por %p62, %p63
      %p66 = scmp.ne.s32.totalorder %s49, %s65
      %p67 = scmp.eq.s32.totalorder %s20, 0
      %p68 = por %p66, %p67
      %s69 = ssub.s32 %s14, %s21
      %p70 = scmp.eq.s32.totalorder %s69, 0
      %s72 = sadd.s32 %s71, 1
      %s73 = scalar_select %p70, %s71, %s72
      %p76 = pneg %p70
      %p77 = scmp.eq.s32.totalorder %s14, 1
      %p78 = por %p76, %p77
      %p79 = scmp.ne.s32.totalorder %s71, %s74
      %p80 = scmp.eq.s32.totalorder %s14, 0
      %p81 = por %p79, %p80
      %p82 = scmp.ne.s32.totalorder %s71, %s74
      %p83 = scmp.eq.s32.totalorder %s19, 1
      %p84 = por %p82, %p83
      %p85 = scmp.ne.s32.totalorder %s74, %s75
      %p86 = scmp.eq.s32.totalorder %s19, 0
      %p87 = por %p85, %p86
      %p88 = scmp.ne.s32.totalorder %s74, %s75
      %p89 = scmp.eq.s32.totalorder %s20, 1
      %p90 = por %p88, %p89
      %p92 = scmp.ne.s32.totalorder %s75, %s91
      %p93 = scmp.eq.s32.totalorder %s20, 0
      %p94 = por %p92, %p93
      %p95 = scmp.le.s32.totalorder 1, %s14
      %p96 = scmp.lt.s32.totalorder %s14, 3
      %p97 = pnand %p95, %p96
      %p98 = pneg %p97
      // Predicated region
      $region9: #{tpu_custom_call.1} parent=5 // pred_check
        _
      $region10: #{tpu_custom_call.1} parent=5 // pred_check_branch
        %100 = sbr.rel (%p97) target = $region12
      $region11: #{tpu_custom_call.1} parent=5 // pred_region
        %s101 = ssub.s32 %s14, 1
        // Predicated region
        $region13: #{tpu_custom_call.1} parent=11 // pred_check
          %p102 = pneg %p35
        $region14: #{tpu_custom_call.1} parent=11 // pred_check_branch
          %104 = sbr.rel (%p102) target = $region16
        $region15: #{tpu_custom_call.1} parent=11 // pred_region
          _
        $region16: #{tpu_custom_call.1} parent=11 // pred_fallthru
          _
      $region12: #{tpu_custom_call.1} parent=5 // pred_fallthru
        _
      %p105 = scmp.lt.s32.totalorder %s14, 2
      // Predicated region
      $region17: #{tpu_custom_call.1} parent=5 // pred_check
        %p106 = pneg %p105
      $region18: #{tpu_custom_call.1} parent=5 // pred_check_branch
        %108 = sbr.rel (%p106) target = $region20
      $region19: #{tpu_custom_call.1} parent=5 // pred_region
        // Predicated region
        $region21: #{tpu_custom_call.1} parent=19 // pred_check
          %p109 = pneg %p55
        $region22: #{tpu_custom_call.1} parent=19 // pred_check_branch
          %111 = sbr.rel (%p109) target = $region24
        $region23: #{tpu_custom_call.1} parent=19 // pred_region
          %s112 = sand.u32 %s45, 1
          %s113 = scalar_lea.sflag [#allocation3], %s112
          %s114 = sand.u32 %s45, 1
          %s115 = smul.addr %s114, 32
          %s116 = scalar_lea.vmem [#allocation2], %s115
          %s117 = smul.u32 8, %s14
          %s119 = ssub.s32 512, 512
          %120 = vsyncadd %s113, %s119
          %s121 = smul.addr %s117, 64
          %s122 = scalar_lea.hbm %s1, %s121
          %s124 = sshll.u32 %s116, 4
          %s125 = int_to_ptr.vmem [resolvable:$true] %s124
          %127 = dma.hbm_to_vmem [thread:$0]  %s122, 512, %s125, %s113
        $region24: #{tpu_custom_call.1} parent=19 // pred_fallthru
          _
      $region20: #{tpu_custom_call.1} parent=5 // pred_fallthru
        _
      %p128 = scmp.le.s32.totalorder 1, %s14
      %p129 = scmp.lt.s32.totalorder %s14, 3
      %p130 = pnand %p128, %p129
      %p131 = pneg %p130
      // Predicated region
      $region25: #{tpu_custom_call.1} parent=5 // pred_check
        _
      $region26: #{tpu_custom_call.1} parent=5 // pred_check_branch
        %133 = sbr.rel (%p130) target = $region28
      $region27: #{tpu_custom_call.1} parent=5 // pred_region
        %s134 = ssub.s32 %s14, 1
        %s135 = sand.u32 %s48, 1
        %s136 = scalar_lea.sflag [#allocation3], %s135
        %s137 = sand.u32 %s48, 1
        %s138 = smul.addr %s137, 32
        %s139 = scalar_lea.vmem [#allocation2], %s138
        // Predicated region
        $region29: #{tpu_custom_call.1} parent=27 // pred_check
          %p140 = pneg %p61
        $region30: #{tpu_custom_call.1} parent=27 // pred_check_branch
          %142 = sbr.rel (%p140) target = $region32
        $region31: #{tpu_custom_call.1} parent=27 // pred_region
          %143 = dma.done %s136, 512
        $region32: #{tpu_custom_call.1} parent=27 // pred_fallthru
          _
        %p144 = pneg %p35
        %p145 = pneg %p32
        %s146 = sand.u32 %s48, 1
        %s147 = scalar_lea.sflag [#allocation3], %s146
        %s148 = sand.u32 %s48, 1
        %s149 = smul.addr %s148, 32
        %s150 = scalar_lea.vmem [#allocation2], %s149
        %p151 = pneg %p61
        %p152 = pneg %p58
        %p153 = pneg %p87
        %p154 = pneg %p84
        %s155 = sand.u32 %s74, 1
        %s156 = scalar_lea.sflag [#allocation4], %s155
        %s157 = sand.u32 %s74, 1
        %s158 = smul.addr %s157, 448
        %s159 = scalar_lea.vmem [#allocation5], %s158
        %s160 = smul.u32 8, %s19
        %s161 = smul.u32 8, %s19
        %v162 = vld [vmem:[%s139] ss:$4 sm:$0xff]
        %v163 = vmul.f32 %v162, 0.125
        %s164 = scalar_lea.vmem %s139, 1 [#allocation2]
        %v165 = vld [vmem:[%s164] ss:$4 sm:$0xff]
        %s166 = scalar_lea.vmem %s139, 2 [#allocation2]
        %v167 = vld [vmem:[%s166] ss:$4 sm:$0xff]
        %v168 = vand.u32 2147483647, %v165
        %vm169 = vcmp.le.f32.partialorder %v168, 0.7853982
        %vm170 = vcmp.lt.s32.totalorder %v165, 0
        %v171 = vand.u32 %v165, 2139095040
        %v172 = vshrl.u32 %v171, 23
        %v173 = vsub.s32 %v172, 127
        %v174 = vand.u32 2147483647, %v165
        %v175 = vand.u32 %v174, 8388607
        %v176 = vor.u32 %v175, 8388608
        %v177 = vsub.s32 0, %v176
        %v178 = vadd.s32 %v173, 1
        %vm179 = vcmp.gt.s32.totalorder %v178, 0
        %v180 = vsel %vm179, %v178, 0
        %v181 = vshrl.u32 %v180, 5
        %v182 = vand.u32 %v180, 31
        %v183 = vsub.s32 32, %v182
        %v184 = vshrl.u32 683565275, %v183
        %v185 = vshll.u32 683565275, %v182
        %v186 = vshrl.u32 2475754826, %v183
        %v187 = vor.u32 %v185, %v186
        %v188 = vshll.u32 2475754826, %v182
        %v189 = vshrl.u32 2131351028, %v183
        %v190 = vor.u32 %v188, %v189
        %v191 = vshll.u32 2131351028, %v182
        %v192 = vshrl.u32 2102212464, %v183
        %v193 = vor.u32 %v191, %v192
        %v194 = vshll.u32 2102212464, %v182
        %v195 = vshrl.u32 920167782, %v183
        %v196 = vor.u32 %v194, %v195
        %v197 = vshll.u32 920167782, %v182
        %v198 = vshrl.u32 1326507024, %v183
        %v199 = vor.u32 %v197, %v198
        %vm200 = vcmp.lt.s32.totalorder %v181, 1
        %vm201 = vcmp.lt.s32.totalorder %v181, 2
        %vm202 = vcmp.lt.s32.totalorder %v181, 3
        %vm203 = vcmp.lt.s32.totalorder %v181, 4
        %v204 = vsel %vm200, %v184, %v187
        %v205 = vsel %vm203, %v193, 2102212464
        %v206 = vsel %vm202, %v190, %v205
        %v207 = vsel %vm201, %v204, %v206
        %v208 = vsel %vm200, %v187, %v190
        %v209 = vsel %vm203, %v196, 920167782
        %v210 = vsel %vm202, %v193, %v209
        %v211 = vsel %vm201, %v208, %v210
        %v212 = vsel %vm200, %v190, %v193
        %v213 = vsel %vm203, %v199, 1326507024
        %v214 = vsel %vm202, %v196, %v213
        %v215 = vsel %vm201, %v212, %v214
        %v216 = vshll.u32 %v176, 8
        %v217 = vmul.u32.u64.compose %v216, %v215
        %v218 = vextract.low.u32 %v217
        %v219 = vextract.high.u32 %v217
        %v220 = vmul.u32.u64.compose %v216, %v211
        %v221 = vextract.low.u32 %v220
        %v222 = vextract.high.u32 %v220
        %v223 = vmul.u32 %v216, %v207
        %v224 = vadd.s32 %v219, %v221
        %vm225 = vc.u32 %v219, %v221
        %v226 = vadd.s32 %v222, 1
        %v227 = vsel %vm225, %v226, %v222
        %v228 = vadd.s32 %v223, %v227
        %v229 = vadd.s32 %v228, 536870912
        %v230 = vshrl.u32 %v229, 30
        %v231 = vshll.u32 %v230, 30
        %v232 = vsub.s32 %v228, %v231
        %vm233 = vcmp.lt.s32.totalorder %v232, 0
        %v234 = vsub.s32 0, %v232
        %v235 = vsel %vm233, %v234, %v232
        %v236 = vclz %v235
        %v237 = vsub.s32 %v236, 2
        %vm238 = vcmp.gt.s32.totalorder 0, %v237
        %v239 = vsel %vm238, 0, %v237
        %v240 = vsub.s32 32, %v239
        %v241 = vshll.u32 %v232, %v239
        %v242 = vshrl.u32 %v224, %v240
        %v243 = vor.u32 %v241, %v242
        %v244 = vsub.s32 4294967266, %v239
        %v245 = vadd.s32 %v244, 127
        %v246 = vshll.u32 %v245, 23
        %v247 = vor.u32 4788187, %v246
        %v248 = vand.u32 2147483647, %v247
        %v250 = vcvt.s32.f32 %v243
        %v251 = vmul.f32 %v250, %v248
        %v252 = vxor.u32 %v251, 2147483648
        %v253 = vsel %vm170, %v252, %v251
        %v254 = vsub.s32 4, %v230
        %v255 = vsel %vm170, %v254, %v230
        %v256 = vsel %vm169, %v165, %v253
        %v257 = vsel %vm169, 0, %v255
        %v258 = vcosq.f32.pop %v256
        %v259 = vsinq.f32.pop %v256
        %vm260 = vweird.f32 %v165
        %v261 = vand.u32 %v257, 3
        %vm262 = vcmp.lt.s32.totalorder %v261, 2
        %vm263 = vcmp.eq.s32.totalorder %v261, 0
        %v264 = vxor.u32 %v259, 2147483648
        %v265 = vsel %vm263, %v258, %v264
        %vm266 = vcmp.eq.s32.totalorder %v261, 2
        %v267 = vxor.u32 %v258, 2147483648
        %v268 = vsel %vm266, %v267, %v259
        %v269 = vsel %vm262, %v265, %v268
        %v270 = vsel %vm260, nan, %v269
        %v271 = vand.u32 2147483647, %v165
        %vm272 = vcmp.le.f32.partialorder %v271, 0.7853982
        %vm273 = vcmp.lt.s32.totalorder %v165, 0
        %v274 = vand.u32 %v165, 2139095040
        %v275 = vshrl.u32 %v274, 23
        %v276 = vsub.s32 %v275, 127
        %v277 = vand.u32 2147483647, %v165
        %v278 = vand.u32 %v277, 8388607
        %v279 = vor.u32 %v278, 8388608
        %v280 = vsub.s32 0, %v279
        %v281 = vadd.s32 %v276, 1
        %vm282 = vcmp.gt.s32.totalorder %v281, 0
        %v283 = vsel %vm282, %v281, 0
        %v284 = vshrl.u32 %v283, 5
        %v285 = vand.u32 %v283, 31
        %v286 = vsub.s32 32, %v285
        %v287 = vshrl.u32 683565275, %v286
        %v288 = vshll.u32 683565275, %v285
        %v289 = vshrl.u32 2475754826, %v286
        %v290 = vor.u32 %v288, %v289
        %v291 = vshll.u32 2475754826, %v285
        %v292 = vshrl.u32 2131351028, %v286
        %v293 = vor.u32 %v291, %v292
        %v294 = vshll.u32 2131351028, %v285
        %v295 = vshrl.u32 2102212464, %v286
        %v296 = vor.u32 %v294, %v295
        %v297 = vshll.u32 2102212464, %v285
        %v298 = vshrl.u32 920167782, %v286
        %v299 = vor.u32 %v297, %v298
        %v300 = vshll.u32 920167782, %v285
        %v301 = vshrl.u32 1326507024, %v286
        %v302 = vor.u32 %v300, %v301
        %vm303 = vcmp.lt.s32.totalorder %v284, 1
        %vm304 = vcmp.lt.s32.totalorder %v284, 2
        %vm305 = vcmp.lt.s32.totalorder %v284, 3
        %vm306 = vcmp.lt.s32.totalorder %v284, 4
        %v307 = vsel %vm303, %v287, %v290
        %v308 = vsel %vm306, %v296, 2102212464
        %v309 = vsel %vm305, %v293, %v308
        %v310 = vsel %vm304, %v307, %v309
        %v311 = vsel %vm303, %v290, %v293
        %v312 = vsel %vm306, %v299, 920167782
        %v313 = vsel %vm305, %v296, %v312
        %v314 = vsel %vm304, %v311, %v313
        %v315 = vsel %vm303, %v293, %v296
        %v316 = vsel %vm306, %v302, 1326507024
        %v317 = vsel %vm305, %v299, %v316
        %v318 = vsel %vm304, %v315, %v317
        %v319 = vshll.u32 %v279, 8
        %v320 = vmul.u32.u64.compose %v319, %v318
        %v321 = vextract.low.u32 %v320
        %v322 = vextract.high.u32 %v320
        %v323 = vmul.u32.u64.compose %v319, %v314
        %v324 = vextract.low.u32 %v323
        %v325 = vextract.high.u32 %v323
        %v326 = vmul.u32 %v319, %v310
        %v327 = vadd.s32 %v322, %v324
        %vm328 = vc.u32 %v322, %v324
        %v329 = vadd.s32 %v325, 1
        %v330 = vsel %vm328, %v329, %v325
        %v331 = vadd.s32 %v326, %v330
        %v332 = vadd.s32 %v331, 536870912
        %v333 = vshrl.u32 %v332, 30
        %v334 = vshll.u32 %v333, 30
        %v335 = vsub.s32 %v331, %v334
        %vm336 = vcmp.lt.s32.totalorder %v335, 0
        %v337 = vsub.s32 0, %v335
        %v338 = vsel %vm336, %v337, %v335
        %v339 = vclz %v338
        %v340 = vsub.s32 %v339, 2
        %vm341 = vcmp.gt.s32.totalorder 0, %v340
        %v342 = vsel %vm341, 0, %v340
        %v343 = vsub.s32 32, %v342
        %v344 = vshll.u32 %v335, %v342
        %v345 = vshrl.u32 %v327, %v343
        %v346 = vor.u32 %v344, %v345
        %v347 = vsub.s32 4294967266, %v342
        %v348 = vadd.s32 %v347, 127
        %v349 = vshll.u32 %v348, 23
        %v350 = vor.u32 4788187, %v349
        %v351 = vand.u32 2147483647, %v350
        %v353 = vcvt.s32.f32 %v346
        %v354 = vmul.f32 %v353, %v351
        %v355 = vxor.u32 %v354, 2147483648
        %v356 = vsel %vm273, %v355, %v354
        %v357 = vsub.s32 4, %v333
        %v358 = vsel %vm273, %v357, %v333
        %v359 = vsel %vm272, %v165, %v356
        %v360 = vsel %vm272, 0, %v358
        %v361 = vcosq.f32.pop %v359
        %v362 = vsinq.f32.pop %v359
        %vm363 = vweird.f32 %v165
        %v364 = vadd.s32 %v360, 3
        %v365 = vand.u32 %v364, 3
        %vm366 = vcmp.lt.s32.totalorder %v365, 2
        %vm367 = vcmp.eq.s32.totalorder %v365, 0
        %v368 = vxor.u32 %v362, 2147483648
        %v369 = vsel %vm367, %v361, %v368
        %vm370 = vcmp.eq.s32.totalorder %v365, 2
        %v371 = vxor.u32 %v361, 2147483648
        %v372 = vsel %vm370, %v371, %v362
        %v373 = vsel %vm366, %v369, %v372
        %v374 = vsel %vm363, nan, %v373
        %v375 = vmul.f32 %v167, 2.0
        %v377 = vlaneseq
        %v378 = vshrl.u32 %v377, 7
        %v379 = vsub.s32 0, %v378
        %v380 = vrot.slane %v167, %v379
        %v381 = vlaneseq
        %v382 = vshrl.u32 %v381, 7
        %v383 = vsub.s32 1, %v382
        %v384 = vrot.slane %v167, %v383
        %v385 = vlaneseq
        %v386 = vshrl.u32 %v385, 7
        %v387 = vsub.s32 2, %v386
        %v388 = vrot.slane %v167, %v387
        %v389 = vlaneseq
        %v390 = vshrl.u32 %v389, 7
        %v391 = vsub.s32 3, %v390
        %v392 = vrot.slane %v167, %v391
        %v393 = vlaneseq
        %v394 = vshrl.u32 %v393, 7
        %v395 = vsub.s32 4, %v394
        %v396 = vrot.slane %v167, %v395
        %v397 = vlaneseq
        %v398 = vshrl.u32 %v397, 7
        %v399 = vsub.s32 5, %v398
        %v400 = vrot.slane %v167, %v399
        %v401 = vlaneseq
        %v402 = vshrl.u32 %v401, 7
        %v403 = vsub.s32 6, %v402
        %v404 = vrot.slane %v167, %v403
        %v405 = vlaneseq
        %v406 = vshrl.u32 %v405, 7
        %v407 = vsub.s32 7, %v406
        %v408 = vrot.slane %v167, %v407
        %v418 = vlaneseq
        %v419 = vshrl.u32 %v418, 7
        %v420 = vsub.s32 0, %v419
        %v421 = vrot.slane %v375, %v420
        %v422 = vlaneseq
        %v423 = vshrl.u32 %v422, 7
        %v424 = vsub.s32 1, %v423
        %v425 = vrot.slane %v375, %v424
        %v426 = vlaneseq
        %v427 = vshrl.u32 %v426, 7
        %v428 = vsub.s32 2, %v427
        %v429 = vrot.slane %v375, %v428
        %v430 = vlaneseq
        %v431 = vshrl.u32 %v430, 7
        %v432 = vsub.s32 3, %v431
        %v433 = vrot.slane %v375, %v432
        %v434 = vlaneseq
        %v435 = vshrl.u32 %v434, 7
        %v436 = vsub.s32 4, %v435
        %v437 = vrot.slane %v375, %v436
        %v438 = vlaneseq
        %v439 = vshrl.u32 %v438, 7
        %v440 = vsub.s32 5, %v439
        %v441 = vrot.slane %v375, %v440
        %v442 = vlaneseq
        %v443 = vshrl.u32 %v442, 7
        %v444 = vsub.s32 6, %v443
        %v445 = vrot.slane %v375, %v444
        %v446 = vlaneseq
        %v447 = vshrl.u32 %v446, 7
        %v448 = vsub.s32 7, %v447
        %v449 = vrot.slane %v375, %v448
        %vm458 = vcmask 1040384
        %v459 = vsel %vm458, %v380, %v421
        %v460 = vsel %vm458, %v384, %v425
        %v461 = vsel %vm458, %v388, %v429
        %v462 = vsel %vm458, %v392, %v433
        %v463 = vsel %vm458, %v396, %v437
        %v464 = vsel %vm458, %v400, %v441
        %v465 = vsel %vm458, %v404, %v445
        %v466 = vsel %vm458, %v408, %v449
        %v467 = vand.u32 2147483647, %v459
        %vm468 = vcmp.le.f32.partialorder %v467, 0.7853982
        %vm469 = vcmp.lt.s32.totalorder %v459, 0
        %v470 = vand.u32 %v459, 2139095040
        %v471 = vshrl.u32 %v470, 23
        %v472 = vsub.s32 %v471, 127
        %v473 = vand.u32 2147483647, %v459
        %v474 = vand.u32 %v473, 8388607
        %v475 = vor.u32 %v474, 8388608
        %v476 = vsub.s32 0, %v475
        %v477 = vadd.s32 %v472, 1
        %vm478 = vcmp.gt.s32.totalorder %v477, 0
        %v479 = vsel %vm478, %v477, 0
        %v480 = vshrl.u32 %v479, 5
        %v481 = vand.u32 %v479, 31
        %v482 = vsub.s32 32, %v481
        %v483 = vshrl.u32 683565275, %v482
        %v484 = vshll.u32 683565275, %v481
        %v485 = vshrl.u32 2475754826, %v482
        %v486 = vor.u32 %v484, %v485
        %v487 = vshll.u32 2475754826, %v481
        %v488 = vshrl.u32 2131351028, %v482
        %v489 = vor.u32 %v487, %v488
        %v490 = vshll.u32 2131351028, %v481
        %v491 = vshrl.u32 2102212464, %v482
        %v492 = vor.u32 %v490, %v491
        %v493 = vshll.u32 2102212464, %v481
        %v494 = vshrl.u32 920167782, %v482
        %v495 = vor.u32 %v493, %v494
        %v496 = vshll.u32 920167782, %v481
        %v497 = vshrl.u32 1326507024, %v482
        %v498 = vor.u32 %v496, %v497
        %vm499 = vcmp.lt.s32.totalorder %v480, 1
        %vm500 = vcmp.lt.s32.totalorder %v480, 2
        %vm501 = vcmp.lt.s32.totalorder %v480, 3
        %vm502 = vcmp.lt.s32.totalorder %v480, 4
        %v503 = vsel %vm499, %v483, %v486
        %v504 = vsel %vm502, %v492, 2102212464
        %v505 = vsel %vm501, %v489, %v504
        %v506 = vsel %vm500, %v503, %v505
        %v507 = vsel %vm499, %v486, %v489
        %v508 = vsel %vm502, %v495, 920167782
        %v509 = vsel %vm501, %v492, %v508
        %v510 = vsel %vm500, %v507, %v509
        %v511 = vsel %vm499, %v489, %v492
        %v512 = vsel %vm502, %v498, 1326507024
        %v513 = vsel %vm501, %v495, %v512
        %v514 = vsel %vm500, %v511, %v513
        %v515 = vshll.u32 %v475, 8
        %v516 = vmul.u32.u64.compose %v515, %v514
        %v517 = vextract.low.u32 %v516
        %v518 = vextract.high.u32 %v516
        %v519 = vmul.u32.u64.compose %v515, %v510
        %v520 = vextract.low.u32 %v519
        %v521 = vextract.high.u32 %v519
        %v522 = vmul.u32 %v515, %v506
        %v523 = vadd.s32 %v518, %v520
        %vm524 = vc.u32 %v518, %v520
        %v525 = vadd.s32 %v521, 1
        %v526 = vsel %vm524, %v525, %v521
        %v527 = vadd.s32 %v522, %v526
        %v528 = vadd.s32 %v527, 536870912
        %v529 = vshrl.u32 %v528, 30
        %v530 = vshll.u32 %v529, 30
        %v531 = vsub.s32 %v527, %v530
        %vm532 = vcmp.lt.s32.totalorder %v531, 0
        %v533 = vsub.s32 0, %v531
        %v534 = vsel %vm532, %v533, %v531
        %v535 = vclz %v534
        %v536 = vsub.s32 %v535, 2
        %vm537 = vcmp.gt.s32.totalorder 0, %v536
        %v538 = vsel %vm537, 0, %v536
        %v539 = vsub.s32 32, %v538
        %v540 = vshll.u32 %v531, %v538
        %v541 = vshrl.u32 %v523, %v539
        %v542 = vor.u32 %v540, %v541
        %v543 = vsub.s32 4294967266, %v538
        %v544 = vadd.s32 %v543, 127
        %v545 = vshll.u32 %v544, 23
        %v546 = vor.u32 4788187, %v545
        %v547 = vand.u32 2147483647, %v546
        %v549 = vcvt.s32.f32 %v542
        %v550 = vmul.f32 %v549, %v547
        %v551 = vxor.u32 %v550, 2147483648
        %v552 = vsel %vm469, %v551, %v550
        %v553 = vsub.s32 4, %v529
        %v554 = vsel %vm469, %v553, %v529
        %v555 = vsel %vm468, %v459, %v552
        %v556 = vsel %vm468, 0, %v554
        %v557 = vcosq.f32.pop %v555
        %v558 = vsinq.f32.pop %v555
        %vm559 = vweird.f32 %v459
        %v560 = vand.u32 %v556, 3
        %vm561 = vcmp.lt.s32.totalorder %v560, 2
        %vm562 = vcmp.eq.s32.totalorder %v560, 0
        %v563 = vxor.u32 %v558, 2147483648
        %v564 = vsel %vm562, %v557, %v563
        %vm565 = vcmp.eq.s32.totalorder %v560, 2
        %v566 = vxor.u32 %v557, 2147483648
        %v567 = vsel %vm565, %v566, %v558
        %v568 = vsel %vm561, %v564, %v567
        %v569 = vsel %vm559, nan, %v568
        %v570 = vand.u32 2147483647, %v460
        %vm571 = vcmp.le.f32.partialorder %v570, 0.7853982
        %vm572 = vcmp.lt.s32.totalorder %v460, 0
        %v573 = vand.u32 %v460, 2139095040
        %v574 = vshrl.u32 %v573, 23
        %v575 = vsub.s32 %v574, 127
        %v576 = vand.u32 2147483647, %v460
        %v577 = vand.u32 %v576, 8388607
        %v578 = vor.u32 %v577, 8388608
        %v579 = vsub.s32 0, %v578
        %v580 = vadd.s32 %v575, 1
        %vm581 = vcmp.gt.s32.totalorder %v580, 0
        %v582 = vsel %vm581, %v580, 0
        %v583 = vshrl.u32 %v582, 5
        %v584 = vand.u32 %v582, 31
        %v585 = vsub.s32 32, %v584
        %v586 = vshrl.u32 683565275, %v585
        %v587 = vshll.u32 683565275, %v584
        %v588 = vshrl.u32 2475754826, %v585
        %v589 = vor.u32 %v587, %v588
        %v590 = vshll.u32 2475754826, %v584
        %v591 = vshrl.u32 2131351028, %v585
        %v592 = vor.u32 %v590, %v591
        %v593 = vshll.u32 2131351028, %v584
        %v594 = vshrl.u32 2102212464, %v585
        %v595 = vor.u32 %v593, %v594
        %v596 = vshll.u32 2102212464, %v584
        %v597 = vshrl.u32 920167782, %v585
        %v598 = vor.u32 %v596, %v597
        %v599 = vshll.u32 920167782, %v584
        %v600 = vshrl.u32 1326507024, %v585
        %v601 = vor.u32 %v599, %v600
        %vm602 = vcmp.lt.s32.totalorder %v583, 1
        %vm603 = vcmp.lt.s32.totalorder %v583, 2
        %vm604 = vcmp.lt.s32.totalorder %v583, 3
        %vm605 = vcmp.lt.s32.totalorder %v583, 4
        %v606 = vsel %vm602, %v586, %v589
        %v607 = vsel %vm605, %v595, 2102212464
        %v608 = vsel %vm604, %v592, %v607
        %v609 = vsel %vm603, %v606, %v608
        %v610 = vsel %vm602, %v589, %v592
        %v611 = vsel %vm605, %v598, 920167782
        %v612 = vsel %vm604, %v595, %v611
        %v613 = vsel %vm603, %v610, %v612
        %v614 = vsel %vm602, %v592, %v595
        %v615 = vsel %vm605, %v601, 1326507024
        %v616 = vsel %vm604, %v598, %v615
        %v617 = vsel %vm603, %v614, %v616
        %v618 = vshll.u32 %v578, 8
        %v619 = vmul.u32.u64.compose %v618, %v617
        %v620 = vextract.low.u32 %v619
        %v621 = vextract.high.u32 %v619
        %v622 = vmul.u32.u64.compose %v618, %v613
        %v623 = vextract.low.u32 %v622
        %v624 = vextract.high.u32 %v622
        %v625 = vmul.u32 %v618, %v609
        %v626 = vadd.s32 %v621, %v623
        %vm627 = vc.u32 %v621, %v623
        %v628 = vadd.s32 %v624, 1
        %v629 = vsel %vm627, %v628, %v624
        %v630 = vadd.s32 %v625, %v629
        %v631 = vadd.s32 %v630, 536870912
        %v632 = vshrl.u32 %v631, 30
        %v633 = vshll.u32 %v632, 30
        %v634 = vsub.s32 %v630, %v633
        %vm635 = vcmp.lt.s32.totalorder %v634, 0
        %v636 = vsub.s32 0, %v634
        %v637 = vsel %vm635, %v636, %v634
        %v638 = vclz %v637
        %v639 = vsub.s32 %v638, 2
        %vm640 = vcmp.gt.s32.totalorder 0, %v639
        %v641 = vsel %vm640, 0, %v639
        %v642 = vsub.s32 32, %v641
        %v643 = vshll.u32 %v634, %v641
        %v644 = vshrl.u32 %v626, %v642
        %v645 = vor.u32 %v643, %v644
        %v646 = vsub.s32 4294967266, %v641
        %v647 = vadd.s32 %v646, 127
        %v648 = vshll.u32 %v647, 23
        %v649 = vor.u32 4788187, %v648
        %v650 = vand.u32 2147483647, %v649
        %v652 = vcvt.s32.f32 %v645
        %v653 = vmul.f32 %v652, %v650
        %v654 = vxor.u32 %v653, 2147483648
        %v655 = vsel %vm572, %v654, %v653
        %v656 = vsub.s32 4, %v632
        %v657 = vsel %vm572, %v656, %v632
        %v658 = vsel %vm571, %v460, %v655
        %v659 = vsel %vm571, 0, %v657
        %v660 = vcosq.f32.pop %v658
        %v661 = vsinq.f32.pop %v658
        %vm662 = vweird.f32 %v460
        %v663 = vand.u32 %v659, 3
        %vm664 = vcmp.lt.s32.totalorder %v663, 2
        %vm665 = vcmp.eq.s32.totalorder %v663, 0
        %v666 = vxor.u32 %v661, 2147483648
        %v667 = vsel %vm665, %v660, %v666
        %vm668 = vcmp.eq.s32.totalorder %v663, 2
        %v669 = vxor.u32 %v660, 2147483648
        %v670 = vsel %vm668, %v669, %v661
        %v671 = vsel %vm664, %v667, %v670
        %v672 = vsel %vm662, nan, %v671
        %v673 = vand.u32 2147483647, %v461
        %vm674 = vcmp.le.f32.partialorder %v673, 0.7853982
        %vm675 = vcmp.lt.s32.totalorder %v461, 0
        %v676 = vand.u32 %v461, 2139095040
        %v677 = vshrl.u32 %v676, 23
        %v678 = vsub.s32 %v677, 127
        %v679 = vand.u32 2147483647, %v461
        %v680 = vand.u32 %v679, 8388607
        %v681 = vor.u32 %v680, 8388608
        %v682 = vsub.s32 0, %v681
        %v683 = vadd.s32 %v678, 1
        %vm684 = vcmp.gt.s32.totalorder %v683, 0
        %v685 = vsel %vm684, %v683, 0
        %v686 = vshrl.u32 %v685, 5
        %v687 = vand.u32 %v685, 31
        %v688 = vsub.s32 32, %v687
        %v689 = vshrl.u32 683565275, %v688
        %v690 = vshll.u32 683565275, %v687
        %v691 = vshrl.u32 2475754826, %v688
        %v692 = vor.u32 %v690, %v691
        %v693 = vshll.u32 2475754826, %v687
        %v694 = vshrl.u32 2131351028, %v688
        %v695 = vor.u32 %v693, %v694
        %v696 = vshll.u32 2131351028, %v687
        %v697 = vshrl.u32 2102212464, %v688
        %v698 = vor.u32 %v696, %v697
        %v699 = vshll.u32 2102212464, %v687
        %v700 = vshrl.u32 920167782, %v688
        %v701 = vor.u32 %v699, %v700
        %v702 = vshll.u32 920167782, %v687
        %v703 = vshrl.u32 1326507024, %v688
        %v704 = vor.u32 %v702, %v703
        %vm705 = vcmp.lt.s32.totalorder %v686, 1
        %vm706 = vcmp.lt.s32.totalorder %v686, 2
        %vm707 = vcmp.lt.s32.totalorder %v686, 3
        %vm708 = vcmp.lt.s32.totalorder %v686, 4
        %v709 = vsel %vm705, %v689, %v692
        %v710 = vsel %vm708, %v698, 2102212464
        %v711 = vsel %vm707, %v695, %v710
        %v712 = vsel %vm706, %v709, %v711
        %v713 = vsel %vm705, %v692, %v695
        %v714 = vsel %vm708, %v701, 920167782
        %v715 = vsel %vm707, %v698, %v714
        %v716 = vsel %vm706, %v713, %v715
        %v717 = vsel %vm705, %v695, %v698
        %v718 = vsel %vm708, %v704, 1326507024
        %v719 = vsel %vm707, %v701, %v718
        %v720 = vsel %vm706, %v717, %v719
        %v721 = vshll.u32 %v681, 8
        %v722 = vmul.u32.u64.compose %v721, %v720
        %v723 = vextract.low.u32 %v722
        %v724 = vextract.high.u32 %v722
        %v725 = vmul.u32.u64.compose %v721, %v716
        %v726 = vextract.low.u32 %v725
        %v727 = vextract.high.u32 %v725
        %v728 = vmul.u32 %v721, %v712
        %v729 = vadd.s32 %v724, %v726
        %vm730 = vc.u32 %v724, %v726
        %v731 = vadd.s32 %v727, 1
        %v732 = vsel %vm730, %v731, %v727
        %v733 = vadd.s32 %v728, %v732
        %v734 = vadd.s32 %v733, 536870912
        %v735 = vshrl.u32 %v734, 30
        %v736 = vshll.u32 %v735, 30
        %v737 = vsub.s32 %v733, %v736
        %vm738 = vcmp.lt.s32.totalorder %v737, 0
        %v739 = vsub.s32 0, %v737
        %v740 = vsel %vm738, %v739, %v737
        %v741 = vclz %v740
        %v742 = vsub.s32 %v741, 2
        %vm743 = vcmp.gt.s32.totalorder 0, %v742
        %v744 = vsel %vm743, 0, %v742
        %v745 = vsub.s32 32, %v744
        %v746 = vshll.u32 %v737, %v744
        %v747 = vshrl.u32 %v729, %v745
        %v748 = vor.u32 %v746, %v747
        %v749 = vsub.s32 4294967266, %v744
        %v750 = vadd.s32 %v749, 127
        %v751 = vshll.u32 %v750, 23
        %v752 = vor.u32 4788187, %v751
        %v753 = vand.u32 2147483647, %v752
        %v755 = vcvt.s32.f32 %v748
        %v756 = vmul.f32 %v755, %v753
        %v757 = vxor.u32 %v756, 2147483648
        %v758 = vsel %vm675, %v757, %v756
        %v759 = vsub.s32 4, %v735
        %v760 = vsel %vm675, %v759, %v735
        %v761 = vsel %vm674, %v461, %v758
        %v762 = vsel %vm674, 0, %v760
        %v763 = vcosq.f32.pop %v761
        %v764 = vsinq.f32.pop %v761
        %vm765 = vweird.f32 %v461
        %v766 = vand.u32 %v762, 3
        %vm767 = vcmp.lt.s32.totalorder %v766, 2
        %vm768 = vcmp.eq.s32.totalorder %v766, 0
        %v769 = vxor.u32 %v764, 2147483648
        %v770 = vsel %vm768, %v763, %v769
        %vm771 = vcmp.eq.s32.totalorder %v766, 2
        %v772 = vxor.u32 %v763, 2147483648
        %v773 = vsel %vm771, %v772, %v764
        %v774 = vsel %vm767, %v770, %v773
        %v775 = vsel %vm765, nan, %v774
        %v776 = vand.u32 2147483647, %v462
        %vm777 = vcmp.le.f32.partialorder %v776, 0.7853982
        %vm778 = vcmp.lt.s32.totalorder %v462, 0
        %v779 = vand.u32 %v462, 2139095040
        %v780 = vshrl.u32 %v779, 23
        %v781 = vsub.s32 %v780, 127
        %v782 = vand.u32 2147483647, %v462
        %v783 = vand.u32 %v782, 8388607
        %v784 = vor.u32 %v783, 8388608
        %v785 = vsub.s32 0, %v784
        %v786 = vadd.s32 %v781, 1
        %vm787 = vcmp.gt.s32.totalorder %v786, 0
        %v788 = vsel %vm787, %v786, 0
        %v789 = vshrl.u32 %v788, 5
        %v790 = vand.u32 %v788, 31
        %v791 = vsub.s32 32, %v790
        %v792 = vshrl.u32 683565275, %v791
        %v793 = vshll.u32 683565275, %v790
        %v794 = vshrl.u32 2475754826, %v791
        %v795 = vor.u32 %v793, %v794
        %v796 = vshll.u32 2475754826, %v790
        %v797 = vshrl.u32 2131351028, %v791
        %v798 = vor.u32 %v796, %v797
        %v799 = vshll.u32 2131351028, %v790
        %v800 = vshrl.u32 2102212464, %v791
        %v801 = vor.u32 %v799, %v800
        %v802 = vshll.u32 2102212464, %v790
        %v803 = vshrl.u32 920167782, %v791
        %v804 = vor.u32 %v802, %v803
        %v805 = vshll.u32 920167782, %v790
        %v806 = vshrl.u32 1326507024, %v791
        %v807 = vor.u32 %v805, %v806
        %vm808 = vcmp.lt.s32.totalorder %v789, 1
        %vm809 = vcmp.lt.s32.totalorder %v789, 2
        %vm810 = vcmp.lt.s32.totalorder %v789, 3
        %vm811 = vcmp.lt.s32.totalorder %v789, 4
        %v812 = vsel %vm808, %v792, %v795
        %v813 = vsel %vm811, %v801, 2102212464
        %v814 = vsel %vm810, %v798, %v813
        %v815 = vsel %vm809, %v812, %v814
        %v816 = vsel %vm808, %v795, %v798
        %v817 = vsel %vm811, %v804, 920167782
        %v818 = vsel %vm810, %v801, %v817
        %v819 = vsel %vm809, %v816, %v818
        %v820 = vsel %vm808, %v798, %v801
        %v821 = vsel %vm811, %v807, 1326507024
        %v822 = vsel %vm810, %v804, %v821
        %v823 = vsel %vm809, %v820, %v822
        %v824 = vshll.u32 %v784, 8
        %v825 = vmul.u32.u64.compose %v824, %v823
        %v826 = vextract.low.u32 %v825
        %v827 = vextract.high.u32 %v825
        %v828 = vmul.u32.u64.compose %v824, %v819
        %v829 = vextract.low.u32 %v828
        %v830 = vextract.high.u32 %v828
        %v831 = vmul.u32 %v824, %v815
        %v832 = vadd.s32 %v827, %v829
        %vm833 = vc.u32 %v827, %v829
        %v834 = vadd.s32 %v830, 1
        %v835 = vsel %vm833, %v834, %v830
        %v836 = vadd.s32 %v831, %v835
        %v837 = vadd.s32 %v836, 536870912
        %v838 = vshrl.u32 %v837, 30
        %v839 = vshll.u32 %v838, 30
        %v840 = vsub.s32 %v836, %v839
        %vm841 = vcmp.lt.s32.totalorder %v840, 0
        %v842 = vsub.s32 0, %v840
        %v843 = vsel %vm841, %v842, %v840
        %v844 = vclz %v843
        %v845 = vsub.s32 %v844, 2
        %vm846 = vcmp.gt.s32.totalorder 0, %v845
        %v847 = vsel %vm846, 0, %v845
        %v848 = vsub.s32 32, %v847
        %v849 = vshll.u32 %v840, %v847
        %v850 = vshrl.u32 %v832, %v848
        %v851 = vor.u32 %v849, %v850
        %v852 = vsub.s32 4294967266, %v847
        %v853 = vadd.s32 %v852, 127
        %v854 = vshll.u32 %v853, 23
        %v855 = vor.u32 4788187, %v854
        %v856 = vand.u32 2147483647, %v855
        %v858 = vcvt.s32.f32 %v851
        %v859 = vmul.f32 %v858, %v856
        %v860 = vxor.u32 %v859, 2147483648
        %v861 = vsel %vm778, %v860, %v859
        %v862 = vsub.s32 4, %v838
        %v863 = vsel %vm778, %v862, %v838
        %v864 = vsel %vm777, %v462, %v861
        %v865 = vsel %vm777, 0, %v863
        %v866 = vcosq.f32.pop %v864
        %v867 = vsinq.f32.pop %v864
        %vm868 = vweird.f32 %v462
        %v869 = vand.u32 %v865, 3
        %vm870 = vcmp.lt.s32.totalorder %v869, 2
        %vm871 = vcmp.eq.s32.totalorder %v869, 0
        %v872 = vxor.u32 %v867, 2147483648
        %v873 = vsel %vm871, %v866, %v872
        %vm874 = vcmp.eq.s32.totalorder %v869, 2
        %v875 = vxor.u32 %v866, 2147483648
        %v876 = vsel %vm874, %v875, %v867
        %v877 = vsel %vm870, %v873, %v876
        %v878 = vsel %vm868, nan, %v877
        %v879 = vand.u32 2147483647, %v463
        %vm880 = vcmp.le.f32.partialorder %v879, 0.7853982
        %vm881 = vcmp.lt.s32.totalorder %v463, 0
        %v882 = vand.u32 %v463, 2139095040
        %v883 = vshrl.u32 %v882, 23
        %v884 = vsub.s32 %v883, 127
        %v885 = vand.u32 2147483647, %v463
        %v886 = vand.u32 %v885, 8388607
        %v887 = vor.u32 %v886, 8388608
        %v888 = vsub.s32 0, %v887
        %v889 = vadd.s32 %v884, 1
        %vm890 = vcmp.gt.s32.totalorder %v889, 0
        %v891 = vsel %vm890, %v889, 0
        %v892 = vshrl.u32 %v891, 5
        %v893 = vand.u32 %v891, 31
        %v894 = vsub.s32 32, %v893
        %v895 = vshrl.u32 683565275, %v894
        %v896 = vshll.u32 683565275, %v893
        %v897 = vshrl.u32 2475754826, %v894
        %v898 = vor.u32 %v896, %v897
        %v899 = vshll.u32 2475754826, %v893
        %v900 = vshrl.u32 2131351028, %v894
        %v901 = vor.u32 %v899, %v900
        %v902 = vshll.u32 2131351028, %v893
        %v903 = vshrl.u32 2102212464, %v894
        %v904 = vor.u32 %v902, %v903
        %v905 = vshll.u32 2102212464, %v893
        %v906 = vshrl.u32 920167782, %v894
        %v907 = vor.u32 %v905, %v906
        %v908 = vshll.u32 920167782, %v893
        %v909 = vshrl.u32 1326507024, %v894
        %v910 = vor.u32 %v908, %v909
        %vm911 = vcmp.lt.s32.totalorder %v892, 1
        %vm912 = vcmp.lt.s32.totalorder %v892, 2
        %vm913 = vcmp.lt.s32.totalorder %v892, 3
        %vm914 = vcmp.lt.s32.totalorder %v892, 4
        %v915 = vsel %vm911, %v895, %v898
        %v916 = vsel %vm914, %v904, 2102212464
        %v917 = vsel %vm913, %v901, %v916
        %v918 = vsel %vm912, %v915, %v917
        %v919 = vsel %vm911, %v898, %v901
        %v920 = vsel %vm914, %v907, 920167782
        %v921 = vsel %vm913, %v904, %v920
        %v922 = vsel %vm912, %v919, %v921
        %v923 = vsel %vm911, %v901, %v904
        %v924 = vsel %vm914, %v910, 1326507024
        %v925 = vsel %vm913, %v907, %v924
        %v926 = vsel %vm912, %v923, %v925
        %v927 = vshll.u32 %v887, 8
        %v928 = vmul.u32.u64.compose %v927, %v926
        %v929 = vextract.low.u32 %v928
        %v930 = vextract.high.u32 %v928
        %v931 = vmul.u32.u64.compose %v927, %v922
        %v932 = vextract.low.u32 %v931
        %v933 = vextract.high.u32 %v931
        %v934 = vmul.u32 %v927, %v918
        %v935 = vadd.s32 %v930, %v932
        %vm936 = vc.u32 %v930, %v932
        %v937 = vadd.s32 %v933, 1
        %v938 = vsel %vm936, %v937, %v933
        %v939 = vadd.s32 %v934, %v938
        %v940 = vadd.s32 %v939, 536870912
        %v941 = vshrl.u32 %v940, 30
        %v942 = vshll.u32 %v941, 30
        %v943 = vsub.s32 %v939, %v942
        %vm944 = vcmp.lt.s32.totalorder %v943, 0
        %v945 = vsub.s32 0, %v943
        %v946 = vsel %vm944, %v945, %v943
        %v947 = vclz %v946
        %v948 = vsub.s32 %v947, 2
        %vm949 = vcmp.gt.s32.totalorder 0, %v948
        %v950 = vsel %vm949, 0, %v948
        %v951 = vsub.s32 32, %v950
        %v952 = vshll.u32 %v943, %v950
        %v953 = vshrl.u32 %v935, %v951
        %v954 = vor.u32 %v952, %v953
        %v955 = vsub.s32 4294967266, %v950
        %v956 = vadd.s32 %v955, 127
        %v957 = vshll.u32 %v956, 23
        %v958 = vor.u32 4788187, %v957
        %v959 = vand.u32 2147483647, %v958
        %v961 = vcvt.s32.f32 %v954
        %v962 = vmul.f32 %v961, %v959
        %v963 = vxor.u32 %v962, 2147483648
        %v964 = vsel %vm881, %v963, %v962
        %v965 = vsub.s32 4, %v941
        %v966 = vsel %vm881, %v965, %v941
        %v967 = vsel %vm880, %v463, %v964
        %v968 = vsel %vm880, 0, %v966
        %v969 = vcosq.f32.pop %v967
        %v970 = vsinq.f32.pop %v967
        %vm971 = vweird.f32 %v463
        %v972 = vand.u32 %v968, 3
        %vm973 = vcmp.lt.s32.totalorder %v972, 2
        %vm974 = vcmp.eq.s32.totalorder %v972, 0
        %v975 = vxor.u32 %v970, 2147483648
        %v976 = vsel %vm974, %v969, %v975
        %vm977 = vcmp.eq.s32.totalorder %v972, 2
        %v978 = vxor.u32 %v969, 2147483648
        %v979 = vsel %vm977, %v978, %v970
        %v980 = vsel %vm973, %v976, %v979
        %v981 = vsel %vm971, nan, %v980
        %v982 = vand.u32 2147483647, %v464
        %vm983 = vcmp.le.f32.partialorder %v982, 0.7853982
        %vm984 = vcmp.lt.s32.totalorder %v464, 0
        %v985 = vand.u32 %v464, 2139095040
        %v986 = vshrl.u32 %v985, 23
        %v987 = vsub.s32 %v986, 127
        %v988 = vand.u32 2147483647, %v464
        %v989 = vand.u32 %v988, 8388607
        %v990 = vor.u32 %v989, 8388608
        %v991 = vsub.s32 0, %v990
        %v992 = vadd.s32 %v987, 1
        %vm993 = vcmp.gt.s32.totalorder %v992, 0
        %v994 = vsel %vm993, %v992, 0
        %v995 = vshrl.u32 %v994, 5
        %v996 = vand.u32 %v994, 31
        %v997 = vsub.s32 32, %v996
        %v998 = vshrl.u32 683565275, %v997
        %v999 = vshll.u32 683565275, %v996
        %v1000 = vshrl.u32 2475754826, %v997
        %v1001 = vor.u32 %v999, %v1000
        %v1002 = vshll.u32 2475754826, %v996
        %v1003 = vshrl.u32 2131351028, %v997
        %v1004 = vor.u32 %v1002, %v1003
        %v1005 = vshll.u32 2131351028, %v996
        %v1006 = vshrl.u32 2102212464, %v997
        %v1007 = vor.u32 %v1005, %v1006
        %v1008 = vshll.u32 2102212464, %v996
        %v1009 = vshrl.u32 920167782, %v997
        %v1010 = vor.u32 %v1008, %v1009
        %v1011 = vshll.u32 920167782, %v996
        %v1012 = vshrl.u32 1326507024, %v997
        %v1013 = vor.u32 %v1011, %v1012
        %vm1014 = vcmp.lt.s32.totalorder %v995, 1
        %vm1015 = vcmp.lt.s32.totalorder %v995, 2
        %vm1016 = vcmp.lt.s32.totalorder %v995, 3
        %vm1017 = vcmp.lt.s32.totalorder %v995, 4
        %v1018 = vsel %vm1014, %v998, %v1001
        %v1019 = vsel %vm1017, %v1007, 2102212464
        %v1020 = vsel %vm1016, %v1004, %v1019
        %v1021 = vsel %vm1015, %v1018, %v1020
        %v1022 = vsel %vm1014, %v1001, %v1004
        %v1023 = vsel %vm1017, %v1010, 920167782
        %v1024 = vsel %vm1016, %v1007, %v1023
        %v1025 = vsel %vm1015, %v1022, %v1024
        %v1026 = vsel %vm1014, %v1004, %v1007
        %v1027 = vsel %vm1017, %v1013, 1326507024
        %v1028 = vsel %vm1016, %v1010, %v1027
        %v1029 = vsel %vm1015, %v1026, %v1028
        %v1030 = vshll.u32 %v990, 8
        %v1031 = vmul.u32.u64.compose %v1030, %v1029
        %v1032 = vextract.low.u32 %v1031
        %v1033 = vextract.high.u32 %v1031
        %v1034 = vmul.u32.u64.compose %v1030, %v1025
        %v1035 = vextract.low.u32 %v1034
        %v1036 = vextract.high.u32 %v1034
        %v1037 = vmul.u32 %v1030, %v1021
        %v1038 = vadd.s32 %v1033, %v1035
        %vm1039 = vc.u32 %v1033, %v1035
        %v1040 = vadd.s32 %v1036, 1
        %v1041 = vsel %vm1039, %v1040, %v1036
        %v1042 = vadd.s32 %v1037, %v1041
        %v1043 = vadd.s32 %v1042, 536870912
        %v1044 = vshrl.u32 %v1043, 30
        %v1045 = vshll.u32 %v1044, 30
        %v1046 = vsub.s32 %v1042, %v1045
        %vm1047 = vcmp.lt.s32.totalorder %v1046, 0
        %v1048 = vsub.s32 0, %v1046
        %v1049 = vsel %vm1047, %v1048, %v1046
        %v1050 = vclz %v1049
        %v1051 = vsub.s32 %v1050, 2
        %vm1052 = vcmp.gt.s32.totalorder 0, %v1051
        %v1053 = vsel %vm1052, 0, %v1051
        %v1054 = vsub.s32 32, %v1053
        %v1055 = vshll.u32 %v1046, %v1053
        %v1056 = vshrl.u32 %v1038, %v1054
        %v1057 = vor.u32 %v1055, %v1056
        %v1058 = vsub.s32 4294967266, %v1053
        %v1059 = vadd.s32 %v1058, 127
        %v1060 = vshll.u32 %v1059, 23
        %v1061 = vor.u32 4788187, %v1060
        %v1062 = vand.u32 2147483647, %v1061
        %v1064 = vcvt.s32.f32 %v1057
        %v1065 = vmul.f32 %v1064, %v1062
        %v1066 = vxor.u32 %v1065, 2147483648
        %v1067 = vsel %vm984, %v1066, %v1065
        %v1068 = vsub.s32 4, %v1044
        %v1069 = vsel %vm984, %v1068, %v1044
        %v1070 = vsel %vm983, %v464, %v1067
        %v1071 = vsel %vm983, 0, %v1069
        %v1072 = vcosq.f32.pop %v1070
        %v1073 = vsinq.f32.pop %v1070
        %vm1074 = vweird.f32 %v464
        %v1075 = vand.u32 %v1071, 3
        %vm1076 = vcmp.lt.s32.totalorder %v1075, 2
        %vm1077 = vcmp.eq.s32.totalorder %v1075, 0
        %v1078 = vxor.u32 %v1073, 2147483648
        %v1079 = vsel %vm1077, %v1072, %v1078
        %vm1080 = vcmp.eq.s32.totalorder %v1075, 2
        %v1081 = vxor.u32 %v1072, 2147483648
        %v1082 = vsel %vm1080, %v1081, %v1073
        %v1083 = vsel %vm1076, %v1079, %v1082
        %v1084 = vsel %vm1074, nan, %v1083
        %v1085 = vand.u32 2147483647, %v465
        %vm1086 = vcmp.le.f32.partialorder %v1085, 0.7853982
        %vm1087 = vcmp.lt.s32.totalorder %v465, 0
        %v1088 = vand.u32 %v465, 2139095040
        %v1089 = vshrl.u32 %v1088, 23
        %v1090 = vsub.s32 %v1089, 127
        %v1091 = vand.u32 2147483647, %v465
        %v1092 = vand.u32 %v1091, 8388607
        %v1093 = vor.u32 %v1092, 8388608
        %v1094 = vsub.s32 0, %v1093
        %v1095 = vadd.s32 %v1090, 1
        %vm1096 = vcmp.gt.s32.totalorder %v1095, 0
        %v1097 = vsel %vm1096, %v1095, 0
        %v1098 = vshrl.u32 %v1097, 5
        %v1099 = vand.u32 %v1097, 31
        %v1100 = vsub.s32 32, %v1099
        %v1101 = vshrl.u32 683565275, %v1100
        %v1102 = vshll.u32 683565275, %v1099
        %v1103 = vshrl.u32 2475754826, %v1100
        %v1104 = vor.u32 %v1102, %v1103
        %v1105 = vshll.u32 2475754826, %v1099
        %v1106 = vshrl.u32 2131351028, %v1100
        %v1107 = vor.u32 %v1105, %v1106
        %v1108 = vshll.u32 2131351028, %v1099
        %v1109 = vshrl.u32 2102212464, %v1100
        %v1110 = vor.u32 %v1108, %v1109
        %v1111 = vshll.u32 2102212464, %v1099
        %v1112 = vshrl.u32 920167782, %v1100
        %v1113 = vor.u32 %v1111, %v1112
        %v1114 = vshll.u32 920167782, %v1099
        %v1115 = vshrl.u32 1326507024, %v1100
        %v1116 = vor.u32 %v1114, %v1115
        %vm1117 = vcmp.lt.s32.totalorder %v1098, 1
        %vm1118 = vcmp.lt.s32.totalorder %v1098, 2
        %vm1119 = vcmp.lt.s32.totalorder %v1098, 3
        %vm1120 = vcmp.lt.s32.totalorder %v1098, 4
        %v1121 = vsel %vm1117, %v1101, %v1104
        %v1122 = vsel %vm1120, %v1110, 2102212464
        %v1123 = vsel %vm1119, %v1107, %v1122
        %v1124 = vsel %vm1118, %v1121, %v1123
        %v1125 = vsel %vm1117, %v1104, %v1107
        %v1126 = vsel %vm1120, %v1113, 920167782
        %v1127 = vsel %vm1119, %v1110, %v1126
        %v1128 = vsel %vm1118, %v1125, %v1127
        %v1129 = vsel %vm1117, %v1107, %v1110
        %v1130 = vsel %vm1120, %v1116, 1326507024
        %v1131 = vsel %vm1119, %v1113, %v1130
        %v1132 = vsel %vm1118, %v1129, %v1131
        %v1133 = vshll.u32 %v1093, 8
        %v1134 = vmul.u32.u64.compose %v1133, %v1132
        %v1135 = vextract.low.u32 %v1134
        %v1136 = vextract.high.u32 %v1134
        %v1137 = vmul.u32.u64.compose %v1133, %v1128
        %v1138 = vextract.low.u32 %v1137
        %v1139 = vextract.high.u32 %v1137
        %v1140 = vmul.u32 %v1133, %v1124
        %v1141 = vadd.s32 %v1136, %v1138
        %vm1142 = vc.u32 %v1136, %v1138
        %v1143 = vadd.s32 %v1139, 1
        %v1144 = vsel %vm1142, %v1143, %v1139
        %v1145 = vadd.s32 %v1140, %v1144
        %v1146 = vadd.s32 %v1145, 536870912
        %v1147 = vshrl.u32 %v1146, 30
        %v1148 = vshll.u32 %v1147, 30
        %v1149 = vsub.s32 %v1145, %v1148
        %vm1150 = vcmp.lt.s32.totalorder %v1149, 0
        %v1151 = vsub.s32 0, %v1149
        %v1152 = vsel %vm1150, %v1151, %v1149
        %v1153 = vclz %v1152
        %v1154 = vsub.s32 %v1153, 2
        %vm1155 = vcmp.gt.s32.totalorder 0, %v1154
        %v1156 = vsel %vm1155, 0, %v1154
        %v1157 = vsub.s32 32, %v1156
        %v1158 = vshll.u32 %v1149, %v1156
        %v1159 = vshrl.u32 %v1141, %v1157
        %v1160 = vor.u32 %v1158, %v1159
        %v1161 = vsub.s32 4294967266, %v1156
        %v1162 = vadd.s32 %v1161, 127
        %v1163 = vshll.u32 %v1162, 23
        %v1164 = vor.u32 4788187, %v1163
        %v1165 = vand.u32 2147483647, %v1164
        %v1167 = vcvt.s32.f32 %v1160
        %v1168 = vmul.f32 %v1167, %v1165
        %v1169 = vxor.u32 %v1168, 2147483648
        %v1170 = vsel %vm1087, %v1169, %v1168
        %v1171 = vsub.s32 4, %v1147
        %v1172 = vsel %vm1087, %v1171, %v1147
        %v1173 = vsel %vm1086, %v465, %v1170
        %v1174 = vsel %vm1086, 0, %v1172
        %v1175 = vcosq.f32.pop %v1173
        %v1176 = vsinq.f32.pop %v1173
        %vm1177 = vweird.f32 %v465
        %v1178 = vand.u32 %v1174, 3
        %vm1179 = vcmp.lt.s32.totalorder %v1178, 2
        %vm1180 = vcmp.eq.s32.totalorder %v1178, 0
        %v1181 = vxor.u32 %v1176, 2147483648
        %v1182 = vsel %vm1180, %v1175, %v1181
        %vm1183 = vcmp.eq.s32.totalorder %v1178, 2
        %v1184 = vxor.u32 %v1175, 2147483648
        %v1185 = vsel %vm1183, %v1184, %v1176
        %v1186 = vsel %vm1179, %v1182, %v1185
        %v1187 = vsel %vm1177, nan, %v1186
        %v1188 = vand.u32 2147483647, %v466
        %vm1189 = vcmp.le.f32.partialorder %v1188, 0.7853982
        %vm1190 = vcmp.lt.s32.totalorder %v466, 0
        %v1191 = vand.u32 %v466, 2139095040
        %v1192 = vshrl.u32 %v1191, 23
        %v1193 = vsub.s32 %v1192, 127
        %v1194 = vand.u32 2147483647, %v466
        %v1195 = vand.u32 %v1194, 8388607
        %v1196 = vor.u32 %v1195, 8388608
        %v1197 = vsub.s32 0, %v1196
        %v1198 = vadd.s32 %v1193, 1
        %vm1199 = vcmp.gt.s32.totalorder %v1198, 0
        %v1200 = vsel %vm1199, %v1198, 0
        %v1201 = vshrl.u32 %v1200, 5
        %v1202 = vand.u32 %v1200, 31
        %v1203 = vsub.s32 32, %v1202
        %v1204 = vshrl.u32 683565275, %v1203
        %v1205 = vshll.u32 683565275, %v1202
        %v1206 = vshrl.u32 2475754826, %v1203
        %v1207 = vor.u32 %v1205, %v1206
        %v1208 = vshll.u32 2475754826, %v1202
        %v1209 = vshrl.u32 2131351028, %v1203
        %v1210 = vor.u32 %v1208, %v1209
        %v1211 = vshll.u32 2131351028, %v1202
        %v1212 = vshrl.u32 2102212464, %v1203
        %v1213 = vor.u32 %v1211, %v1212
        %v1214 = vshll.u32 2102212464, %v1202
        %v1215 = vshrl.u32 920167782, %v1203
        %v1216 = vor.u32 %v1214, %v1215
        %v1217 = vshll.u32 920167782, %v1202
        %v1218 = vshrl.u32 1326507024, %v1203
        %v1219 = vor.u32 %v1217, %v1218
        %vm1220 = vcmp.lt.s32.totalorder %v1201, 1
        %vm1221 = vcmp.lt.s32.totalorder %v1201, 2
        %vm1222 = vcmp.lt.s32.totalorder %v1201, 3
        %vm1223 = vcmp.lt.s32.totalorder %v1201, 4
        %v1224 = vsel %vm1220, %v1204, %v1207
        %v1225 = vsel %vm1223, %v1213, 2102212464
        %v1226 = vsel %vm1222, %v1210, %v1225
        %v1227 = vsel %vm1221, %v1224, %v1226
        %v1228 = vsel %vm1220, %v1207, %v1210
        %v1229 = vsel %vm1223, %v1216, 920167782
        %v1230 = vsel %vm1222, %v1213, %v1229
        %v1231 = vsel %vm1221, %v1228, %v1230
        %v1232 = vsel %vm1220, %v1210, %v1213
        %v1233 = vsel %vm1223, %v1219, 1326507024
        %v1234 = vsel %vm1222, %v1216, %v1233
        %v1235 = vsel %vm1221, %v1232, %v1234
        %v1236 = vshll.u32 %v1196, 8
        %v1237 = vmul.u32.u64.compose %v1236, %v1235
        %v1238 = vextract.low.u32 %v1237
        %v1239 = vextract.high.u32 %v1237
        %v1240 = vmul.u32.u64.compose %v1236, %v1231
        %v1241 = vextract.low.u32 %v1240
        %v1242 = vextract.high.u32 %v1240
        %v1243 = vmul.u32 %v1236, %v1227
        %v1244 = vadd.s32 %v1239, %v1241
        %vm1245 = vc.u32 %v1239, %v1241
        %v1246 = vadd.s32 %v1242, 1
        %v1247 = vsel %vm1245, %v1246, %v1242
        %v1248 = vadd.s32 %v1243, %v1247
        %v1249 = vadd.s32 %v1248, 536870912
        %v1250 = vshrl.u32 %v1249, 30
        %v1251 = vshll.u32 %v1250, 30
        %v1252 = vsub.s32 %v1248, %v1251
        %vm1253 = vcmp.lt.s32.totalorder %v1252, 0
        %v1254 = vsub.s32 0, %v1252
        %v1255 = vsel %vm1253, %v1254, %v1252
        %v1256 = vclz %v1255
        %v1257 = vsub.s32 %v1256, 2
        %vm1258 = vcmp.gt.s32.totalorder 0, %v1257
        %v1259 = vsel %vm1258, 0, %v1257
        %v1260 = vsub.s32 32, %v1259
        %v1261 = vshll.u32 %v1252, %v1259
        %v1262 = vshrl.u32 %v1244, %v1260
        %v1263 = vor.u32 %v1261, %v1262
        %v1264 = vsub.s32 4294967266, %v1259
        %v1265 = vadd.s32 %v1264, 127
        %v1266 = vshll.u32 %v1265, 23
        %v1267 = vor.u32 4788187, %v1266
        %v1268 = vand.u32 2147483647, %v1267
        %v1270 = vcvt.s32.f32 %v1263
        %v1271 = vmul.f32 %v1270, %v1268
        %v1272 = vxor.u32 %v1271, 2147483648
        %v1273 = vsel %vm1190, %v1272, %v1271
        %v1274 = vsub.s32 4, %v1250
        %v1275 = vsel %vm1190, %v1274, %v1250
        %v1276 = vsel %vm1189, %v466, %v1273
        %v1277 = vsel %vm1189, 0, %v1275
        %v1278 = vcosq.f32.pop %v1276
        %v1279 = vsinq.f32.pop %v1276
        %vm1280 = vweird.f32 %v466
        %v1281 = vand.u32 %v1277, 3
        %vm1282 = vcmp.lt.s32.totalorder %v1281, 2
        %vm1283 = vcmp.eq.s32.totalorder %v1281, 0
        %v1284 = vxor.u32 %v1279, 2147483648
        %v1285 = vsel %vm1283, %v1278, %v1284
        %vm1286 = vcmp.eq.s32.totalorder %v1281, 2
        %v1287 = vxor.u32 %v1278, 2147483648
        %v1288 = vsel %vm1286, %v1287, %v1279
        %v1289 = vsel %vm1282, %v1285, %v1288
        %v1290 = vsel %vm1280, nan, %v1289
        %v1291 = vand.u32 2147483647, %v459
        %vm1292 = vcmp.le.f32.partialorder %v1291, 0.7853982
        %vm1293 = vcmp.lt.s32.totalorder %v459, 0
        %v1294 = vand.u32 %v459, 2139095040
        %v1295 = vshrl.u32 %v1294, 23
        %v1296 = vsub.s32 %v1295, 127
        %v1297 = vand.u32 2147483647, %v459
        %v1298 = vand.u32 %v1297, 8388607
        %v1299 = vor.u32 %v1298, 8388608
        %v1300 = vsub.s32 0, %v1299
        %v1301 = vadd.s32 %v1296, 1
        %vm1302 = vcmp.gt.s32.totalorder %v1301, 0
        %v1303 = vsel %vm1302, %v1301, 0
        %v1304 = vshrl.u32 %v1303, 5
        %v1305 = vand.u32 %v1303, 31
        %v1306 = vsub.s32 32, %v1305
        %v1307 = vshrl.u32 683565275, %v1306
        %v1308 = vshll.u32 683565275, %v1305
        %v1309 = vshrl.u32 2475754826, %v1306
        %v1310 = vor.u32 %v1308, %v1309
        %v1311 = vshll.u32 2475754826, %v1305
        %v1312 = vshrl.u32 2131351028, %v1306
        %v1313 = vor.u32 %v1311, %v1312
        %v1314 = vshll.u32 2131351028, %v1305
        %v1315 = vshrl.u32 2102212464, %v1306
        %v1316 = vor.u32 %v1314, %v1315
        %v1317 = vshll.u32 2102212464, %v1305
        %v1318 = vshrl.u32 920167782, %v1306
        %v1319 = vor.u32 %v1317, %v1318
        %v1320 = vshll.u32 920167782, %v1305
        %v1321 = vshrl.u32 1326507024, %v1306
        %v1322 = vor.u32 %v1320, %v1321
        %vm1323 = vcmp.lt.s32.totalorder %v1304, 1
        %vm1324 = vcmp.lt.s32.totalorder %v1304, 2
        %vm1325 = vcmp.lt.s32.totalorder %v1304, 3
        %vm1326 = vcmp.lt.s32.totalorder %v1304, 4
        %v1327 = vsel %vm1323, %v1307, %v1310
        %v1328 = vsel %vm1326, %v1316, 2102212464
        %v1329 = vsel %vm1325, %v1313, %v1328
        %v1330 = vsel %vm1324, %v1327, %v1329
        %v1331 = vsel %vm1323, %v1310, %v1313
        %v1332 = vsel %vm1326, %v1319, 920167782
        %v1333 = vsel %vm1325, %v1316, %v1332
        %v1334 = vsel %vm1324, %v1331, %v1333
        %v1335 = vsel %vm1323, %v1313, %v1316
        %v1336 = vsel %vm1326, %v1322, 1326507024
        %v1337 = vsel %vm1325, %v1319, %v1336
        %v1338 = vsel %vm1324, %v1335, %v1337
        %v1339 = vshll.u32 %v1299, 8
        %v1340 = vmul.u32.u64.compose %v1339, %v1338
        %v1341 = vextract.low.u32 %v1340
        %v1342 = vextract.high.u32 %v1340
        %v1343 = vmul.u32.u64.compose %v1339, %v1334
        %v1344 = vextract.low.u32 %v1343
        %v1345 = vextract.high.u32 %v1343
        %v1346 = vmul.u32 %v1339, %v1330
        %v1347 = vadd.s32 %v1342, %v1344
        %vm1348 = vc.u32 %v1342, %v1344
        %v1349 = vadd.s32 %v1345, 1
        %v1350 = vsel %vm1348, %v1349, %v1345
        %v1351 = vadd.s32 %v1346, %v1350
        %v1352 = vadd.s32 %v1351, 536870912
        %v1353 = vshrl.u32 %v1352, 30
        %v1354 = vshll.u32 %v1353, 30
        %v1355 = vsub.s32 %v1351, %v1354
        %vm1356 = vcmp.lt.s32.totalorder %v1355, 0
        %v1357 = vsub.s32 0, %v1355
        %v1358 = vsel %vm1356, %v1357, %v1355
        %v1359 = vclz %v1358
        %v1360 = vsub.s32 %v1359, 2
        %vm1361 = vcmp.gt.s32.totalorder 0, %v1360
        %v1362 = vsel %vm1361, 0, %v1360
        %v1363 = vsub.s32 32, %v1362
        %v1364 = vshll.u32 %v1355, %v1362
        %v1365 = vshrl.u32 %v1347, %v1363
        %v1366 = vor.u32 %v1364, %v1365
        %v1367 = vsub.s32 4294967266, %v1362
        %v1368 = vadd.s32 %v1367, 127
        %v1369 = vshll.u32 %v1368, 23
        %v1370 = vor.u32 4788187, %v1369
        %v1371 = vand.u32 2147483647, %v1370
        %v1373 = vcvt.s32.f32 %v1366
        %v1374 = vmul.f32 %v1373, %v1371
        %v1375 = vxor.u32 %v1374, 2147483648
        %v1376 = vsel %vm1293, %v1375, %v1374
        %v1377 = vsub.s32 4, %v1353
        %v1378 = vsel %vm1293, %v1377, %v1353
        %v1379 = vsel %vm1292, %v459, %v1376
        %v1380 = vsel %vm1292, 0, %v1378
        %v1381 = vcosq.f32.pop %v1379
        %v1382 = vsinq.f32.pop %v1379
        %vm1383 = vweird.f32 %v459
        %v1384 = vadd.s32 %v1380, 3
        %v1385 = vand.u32 %v1384, 3
        %vm1386 = vcmp.lt.s32.totalorder %v1385, 2
        %vm1387 = vcmp.eq.s32.totalorder %v1385, 0
        %v1388 = vxor.u32 %v1382, 2147483648
        %v1389 = vsel %vm1387, %v1381, %v1388
        %vm1390 = vcmp.eq.s32.totalorder %v1385, 2
        %v1391 = vxor.u32 %v1381, 2147483648
        %v1392 = vsel %vm1390, %v1391, %v1382
        %v1393 = vsel %vm1386, %v1389, %v1392
        %v1394 = vsel %vm1383, nan, %v1393
        %v1395 = vand.u32 2147483647, %v460
        %vm1396 = vcmp.le.f32.partialorder %v1395, 0.7853982
        %vm1397 = vcmp.lt.s32.totalorder %v460, 0
        %v1398 = vand.u32 %v460, 2139095040
        %v1399 = vshrl.u32 %v1398, 23
        %v1400 = vsub.s32 %v1399, 127
        %v1401 = vand.u32 2147483647, %v460
        %v1402 = vand.u32 %v1401, 8388607
        %v1403 = vor.u32 %v1402, 8388608
        %v1404 = vsub.s32 0, %v1403
        %v1405 = vadd.s32 %v1400, 1
        %vm1406 = vcmp.gt.s32.totalorder %v1405, 0
        %v1407 = vsel %vm1406, %v1405, 0
        %v1408 = vshrl.u32 %v1407, 5
        %v1409 = vand.u32 %v1407, 31
        %v1410 = vsub.s32 32, %v1409
        %v1411 = vshrl.u32 683565275, %v1410
        %v1412 = vshll.u32 683565275, %v1409
        %v1413 = vshrl.u32 2475754826, %v1410
        %v1414 = vor.u32 %v1412, %v1413
        %v1415 = vshll.u32 2475754826, %v1409
        %v1416 = vshrl.u32 2131351028, %v1410
        %v1417 = vor.u32 %v1415, %v1416
        %v1418 = vshll.u32 2131351028, %v1409
        %v1419 = vshrl.u32 2102212464, %v1410
        %v1420 = vor.u32 %v1418, %v1419
        %v1421 = vshll.u32 2102212464, %v1409
        %v1422 = vshrl.u32 920167782, %v1410
        %v1423 = vor.u32 %v1421, %v1422
        %v1424 = vshll.u32 920167782, %v1409
        %v1425 = vshrl.u32 1326507024, %v1410
        %v1426 = vor.u32 %v1424, %v1425
        %vm1427 = vcmp.lt.s32.totalorder %v1408, 1
        %vm1428 = vcmp.lt.s32.totalorder %v1408, 2
        %vm1429 = vcmp.lt.s32.totalorder %v1408, 3
        %vm1430 = vcmp.lt.s32.totalorder %v1408, 4
        %v1431 = vsel %vm1427, %v1411, %v1414
        %v1432 = vsel %vm1430, %v1420, 2102212464
        %v1433 = vsel %vm1429, %v1417, %v1432
        %v1434 = vsel %vm1428, %v1431, %v1433
        %v1435 = vsel %vm1427, %v1414, %v1417
        %v1436 = vsel %vm1430, %v1423, 920167782
        %v1437 = vsel %vm1429, %v1420, %v1436
        %v1438 = vsel %vm1428, %v1435, %v1437
        %v1439 = vsel %vm1427, %v1417, %v1420
        %v1440 = vsel %vm1430, %v1426, 1326507024
        %v1441 = vsel %vm1429, %v1423, %v1440
        %v1442 = vsel %vm1428, %v1439, %v1441
        %v1443 = vshll.u32 %v1403, 8
        %v1444 = vmul.u32.u64.compose %v1443, %v1442
        %v1445 = vextract.low.u32 %v1444
        %v1446 = vextract.high.u32 %v1444
        %v1447 = vmul.u32.u64.compose %v1443, %v1438
        %v1448 = vextract.low.u32 %v1447
        %v1449 = vextract.high.u32 %v1447
        %v1450 = vmul.u32 %v1443, %v1434
        %v1451 = vadd.s32 %v1446, %v1448
        %vm1452 = vc.u32 %v1446, %v1448
        %v1453 = vadd.s32 %v1449, 1
        %v1454 = vsel %vm1452, %v1453, %v1449
        %v1455 = vadd.s32 %v1450, %v1454
        %v1456 = vadd.s32 %v1455, 536870912
        %v1457 = vshrl.u32 %v1456, 30
        %v1458 = vshll.u32 %v1457, 30
        %v1459 = vsub.s32 %v1455, %v1458
        %vm1460 = vcmp.lt.s32.totalorder %v1459, 0
        %v1461 = vsub.s32 0, %v1459
        %v1462 = vsel %vm1460, %v1461, %v1459
        %v1463 = vclz %v1462
        %v1464 = vsub.s32 %v1463, 2
        %vm1465 = vcmp.gt.s32.totalorder 0, %v1464
        %v1466 = vsel %vm1465, 0, %v1464
        %v1467 = vsub.s32 32, %v1466
        %v1468 = vshll.u32 %v1459, %v1466
        %v1469 = vshrl.u32 %v1451, %v1467
        %v1470 = vor.u32 %v1468, %v1469
        %v1471 = vsub.s32 4294967266, %v1466
        %v1472 = vadd.s32 %v1471, 127
        %v1473 = vshll.u32 %v1472, 23
        %v1474 = vor.u32 4788187, %v1473
        %v1475 = vand.u32 2147483647, %v1474
        %v1477 = vcvt.s32.f32 %v1470
        %v1478 = vmul.f32 %v1477, %v1475
        %v1479 = vxor.u32 %v1478, 2147483648
        %v1480 = vsel %vm1397, %v1479, %v1478
        %v1481 = vsub.s32 4, %v1457
        %v1482 = vsel %vm1397, %v1481, %v1457
        %v1483 = vsel %vm1396, %v460, %v1480
        %v1484 = vsel %vm1396, 0, %v1482
        %v1485 = vcosq.f32.pop %v1483
        %v1486 = vsinq.f32.pop %v1483
        %vm1487 = vweird.f32 %v460
        %v1488 = vadd.s32 %v1484, 3
        %v1489 = vand.u32 %v1488, 3
        %vm1490 = vcmp.lt.s32.totalorder %v1489, 2
        %vm1491 = vcmp.eq.s32.totalorder %v1489, 0
        %v1492 = vxor.u32 %v1486, 2147483648
        %v1493 = vsel %vm1491, %v1485, %v1492
        %vm1494 = vcmp.eq.s32.totalorder %v1489, 2
        %v1495 = vxor.u32 %v1485, 2147483648
        %v1496 = vsel %vm1494, %v1495, %v1486
        %v1497 = vsel %vm1490, %v1493, %v1496
        %v1498 = vsel %vm1487, nan, %v1497
        %v1499 = vand.u32 2147483647, %v461
        %vm1500 = vcmp.le.f32.partialorder %v1499, 0.7853982
        %vm1501 = vcmp.lt.s32.totalorder %v461, 0
        %v1502 = vand.u32 %v461, 2139095040
        %v1503 = vshrl.u32 %v1502, 23
        %v1504 = vsub.s32 %v1503, 127
        %v1505 = vand.u32 2147483647, %v461
        %v1506 = vand.u32 %v1505, 8388607
        %v1507 = vor.u32 %v1506, 8388608
        %v1508 = vsub.s32 0, %v1507
        %v1509 = vadd.s32 %v1504, 1
        %vm1510 = vcmp.gt.s32.totalorder %v1509, 0
        %v1511 = vsel %vm1510, %v1509, 0
        %v1512 = vshrl.u32 %v1511, 5
        %v1513 = vand.u32 %v1511, 31
        %v1514 = vsub.s32 32, %v1513
        %v1515 = vshrl.u32 683565275, %v1514
        %v1516 = vshll.u32 683565275, %v1513
        %v1517 = vshrl.u32 2475754826, %v1514
        %v1518 = vor.u32 %v1516, %v1517
        %v1519 = vshll.u32 2475754826, %v1513
        %v1520 = vshrl.u32 2131351028, %v1514
        %v1521 = vor.u32 %v1519, %v1520
        %v1522 = vshll.u32 2131351028, %v1513
        %v1523 = vshrl.u32 2102212464, %v1514
        %v1524 = vor.u32 %v1522, %v1523
        %v1525 = vshll.u32 2102212464, %v1513
        %v1526 = vshrl.u32 920167782, %v1514
        %v1527 = vor.u32 %v1525, %v1526
        %v1528 = vshll.u32 920167782, %v1513
        %v1529 = vshrl.u32 1326507024, %v1514
        %v1530 = vor.u32 %v1528, %v1529
        %vm1531 = vcmp.lt.s32.totalorder %v1512, 1
        %vm1532 = vcmp.lt.s32.totalorder %v1512, 2
        %vm1533 = vcmp.lt.s32.totalorder %v1512, 3
        %vm1534 = vcmp.lt.s32.totalorder %v1512, 4
        %v1535 = vsel %vm1531, %v1515, %v1518
        %v1536 = vsel %vm1534, %v1524, 2102212464
        %v1537 = vsel %vm1533, %v1521, %v1536
        %v1538 = vsel %vm1532, %v1535, %v1537
        %v1539 = vsel %vm1531, %v1518, %v1521
        %v1540 = vsel %vm1534, %v1527, 920167782
        %v1541 = vsel %vm1533, %v1524, %v1540
        %v1542 = vsel %vm1532, %v1539, %v1541
        %v1543 = vsel %vm1531, %v1521, %v1524
        %v1544 = vsel %vm1534, %v1530, 1326507024
        %v1545 = vsel %vm1533, %v1527, %v1544
        %v1546 = vsel %vm1532, %v1543, %v1545
        %v1547 = vshll.u32 %v1507, 8
        %v1548 = vmul.u32.u64.compose %v1547, %v1546
        %v1549 = vextract.low.u32 %v1548
        %v1550 = vextract.high.u32 %v1548
        %v1551 = vmul.u32.u64.compose %v1547, %v1542
        %v1552 = vextract.low.u32 %v1551
        %v1553 = vextract.high.u32 %v1551
        %v1554 = vmul.u32 %v1547, %v1538
        %v1555 = vadd.s32 %v1550, %v1552
        %vm1556 = vc.u32 %v1550, %v1552
        %v1557 = vadd.s32 %v1553, 1
        %v1558 = vsel %vm1556, %v1557, %v1553
        %v1559 = vadd.s32 %v1554, %v1558
        %v1560 = vadd.s32 %v1559, 536870912
        %v1561 = vshrl.u32 %v1560, 30
        %v1562 = vshll.u32 %v1561, 30
        %v1563 = vsub.s32 %v1559, %v1562
        %vm1564 = vcmp.lt.s32.totalorder %v1563, 0
        %v1565 = vsub.s32 0, %v1563
        %v1566 = vsel %vm1564, %v1565, %v1563
        %v1567 = vclz %v1566
        %v1568 = vsub.s32 %v1567, 2
        %vm1569 = vcmp.gt.s32.totalorder 0, %v1568
        %v1570 = vsel %vm1569, 0, %v1568
        %v1571 = vsub.s32 32, %v1570
        %v1572 = vshll.u32 %v1563, %v1570
        %v1573 = vshrl.u32 %v1555, %v1571
        %v1574 = vor.u32 %v1572, %v1573
        %v1575 = vsub.s32 4294967266, %v1570
        %v1576 = vadd.s32 %v1575, 127
        %v1577 = vshll.u32 %v1576, 23
        %v1578 = vor.u32 4788187, %v1577
        %v1579 = vand.u32 2147483647, %v1578
        %v1581 = vcvt.s32.f32 %v1574
        %v1582 = vmul.f32 %v1581, %v1579
        %v1583 = vxor.u32 %v1582, 2147483648
        %v1584 = vsel %vm1501, %v1583, %v1582
        %v1585 = vsub.s32 4, %v1561
        %v1586 = vsel %vm1501, %v1585, %v1561
        %v1587 = vsel %vm1500, %v461, %v1584
        %v1588 = vsel %vm1500, 0, %v1586
        %v1589 = vcosq.f32.pop %v1587
        %v1590 = vsinq.f32.pop %v1587
        %vm1591 = vweird.f32 %v461
        %v1592 = vadd.s32 %v1588, 3
        %v1593 = vand.u32 %v1592, 3
        %vm1594 = vcmp.lt.s32.totalorder %v1593, 2
        %vm1595 = vcmp.eq.s32.totalorder %v1593, 0
        %v1596 = vxor.u32 %v1590, 2147483648
        %v1597 = vsel %vm1595, %v1589, %v1596
        %vm1598 = vcmp.eq.s32.totalorder %v1593, 2
        %v1599 = vxor.u32 %v1589, 2147483648
        %v1600 = vsel %vm1598, %v1599, %v1590
        %v1601 = vsel %vm1594, %v1597, %v1600
        %v1602 = vsel %vm1591, nan, %v1601
        %v1603 = vand.u32 2147483647, %v462
        %vm1604 = vcmp.le.f32.partialorder %v1603, 0.7853982
        %vm1605 = vcmp.lt.s32.totalorder %v462, 0
        %v1606 = vand.u32 %v462, 2139095040
        %v1607 = vshrl.u32 %v1606, 23
        %v1608 = vsub.s32 %v1607, 127
        %v1609 = vand.u32 2147483647, %v462
        %v1610 = vand.u32 %v1609, 8388607
        %v1611 = vor.u32 %v1610, 8388608
        %v1612 = vsub.s32 0, %v1611
        %v1613 = vadd.s32 %v1608, 1
        %vm1614 = vcmp.gt.s32.totalorder %v1613, 0
        %v1615 = vsel %vm1614, %v1613, 0
        %v1616 = vshrl.u32 %v1615, 5
        %v1617 = vand.u32 %v1615, 31
        %v1618 = vsub.s32 32, %v1617
        %v1619 = vshrl.u32 683565275, %v1618
        %v1620 = vshll.u32 683565275, %v1617
        %v1621 = vshrl.u32 2475754826, %v1618
        %v1622 = vor.u32 %v1620, %v1621
        %v1623 = vshll.u32 2475754826, %v1617
        %v1624 = vshrl.u32 2131351028, %v1618
        %v1625 = vor.u32 %v1623, %v1624
        %v1626 = vshll.u32 2131351028, %v1617
        %v1627 = vshrl.u32 2102212464, %v1618
        %v1628 = vor.u32 %v1626, %v1627
        %v1629 = vshll.u32 2102212464, %v1617
        %v1630 = vshrl.u32 920167782, %v1618
        %v1631 = vor.u32 %v1629, %v1630
        %v1632 = vshll.u32 920167782, %v1617
        %v1633 = vshrl.u32 1326507024, %v1618
        %v1634 = vor.u32 %v1632, %v1633
        %vm1635 = vcmp.lt.s32.totalorder %v1616, 1
        %vm1636 = vcmp.lt.s32.totalorder %v1616, 2
        %vm1637 = vcmp.lt.s32.totalorder %v1616, 3
        %vm1638 = vcmp.lt.s32.totalorder %v1616, 4
        %v1639 = vsel %vm1635, %v1619, %v1622
        %v1640 = vsel %vm1638, %v1628, 2102212464
        %v1641 = vsel %vm1637, %v1625, %v1640
        %v1642 = vsel %vm1636, %v1639, %v1641
        %v1643 = vsel %vm1635, %v1622, %v1625
        %v1644 = vsel %vm1638, %v1631, 920167782
        %v1645 = vsel %vm1637, %v1628, %v1644
        %v1646 = vsel %vm1636, %v1643, %v1645
        %v1647 = vsel %vm1635, %v1625, %v1628
        %v1648 = vsel %vm1638, %v1634, 1326507024
        %v1649 = vsel %vm1637, %v1631, %v1648
        %v1650 = vsel %vm1636, %v1647, %v1649
        %v1651 = vshll.u32 %v1611, 8
        %v1652 = vmul.u32.u64.compose %v1651, %v1650
        %v1653 = vextract.low.u32 %v1652
        %v1654 = vextract.high.u32 %v1652
        %v1655 = vmul.u32.u64.compose %v1651, %v1646
        %v1656 = vextract.low.u32 %v1655
        %v1657 = vextract.high.u32 %v1655
        %v1658 = vmul.u32 %v1651, %v1642
        %v1659 = vadd.s32 %v1654, %v1656
        %vm1660 = vc.u32 %v1654, %v1656
        %v1661 = vadd.s32 %v1657, 1
        %v1662 = vsel %vm1660, %v1661, %v1657
        %v1663 = vadd.s32 %v1658, %v1662
        %v1664 = vadd.s32 %v1663, 536870912
        %v1665 = vshrl.u32 %v1664, 30
        %v1666 = vshll.u32 %v1665, 30
        %v1667 = vsub.s32 %v1663, %v1666
        %vm1668 = vcmp.lt.s32.totalorder %v1667, 0
        %v1669 = vsub.s32 0, %v1667
        %v1670 = vsel %vm1668, %v1669, %v1667
        %v1671 = vclz %v1670
        %v1672 = vsub.s32 %v1671, 2
        %vm1673 = vcmp.gt.s32.totalorder 0, %v1672
        %v1674 = vsel %vm1673, 0, %v1672
        %v1675 = vsub.s32 32, %v1674
        %v1676 = vshll.u32 %v1667, %v1674
        %v1677 = vshrl.u32 %v1659, %v1675
        %v1678 = vor.u32 %v1676, %v1677
        %v1679 = vsub.s32 4294967266, %v1674
        %v1680 = vadd.s32 %v1679, 127
        %v1681 = vshll.u32 %v1680, 23
        %v1682 = vor.u32 4788187, %v1681
        %v1683 = vand.u32 2147483647, %v1682
        %v1685 = vcvt.s32.f32 %v1678
        %v1686 = vmul.f32 %v1685, %v1683
        %v1687 = vxor.u32 %v1686, 2147483648
        %v1688 = vsel %vm1605, %v1687, %v1686
        %v1689 = vsub.s32 4, %v1665
        %v1690 = vsel %vm1605, %v1689, %v1665
        %v1691 = vsel %vm1604, %v462, %v1688
        %v1692 = vsel %vm1604, 0, %v1690
        %v1693 = vcosq.f32.pop %v1691
        %v1694 = vsinq.f32.pop %v1691
        %vm1695 = vweird.f32 %v462
        %v1696 = vadd.s32 %v1692, 3
        %v1697 = vand.u32 %v1696, 3
        %vm1698 = vcmp.lt.s32.totalorder %v1697, 2
        %vm1699 = vcmp.eq.s32.totalorder %v1697, 0
        %v1700 = vxor.u32 %v1694, 2147483648
        %v1701 = vsel %vm1699, %v1693, %v1700
        %vm1702 = vcmp.eq.s32.totalorder %v1697, 2
        %v1703 = vxor.u32 %v1693, 2147483648
        %v1704 = vsel %vm1702, %v1703, %v1694
        %v1705 = vsel %vm1698, %v1701, %v1704
        %v1706 = vsel %vm1695, nan, %v1705
        %v1707 = vand.u32 2147483647, %v463
        %vm1708 = vcmp.le.f32.partialorder %v1707, 0.7853982
        %vm1709 = vcmp.lt.s32.totalorder %v463, 0
        %v1710 = vand.u32 %v463, 2139095040
        %v1711 = vshrl.u32 %v1710, 23
        %v1712 = vsub.s32 %v1711, 127
        %v1713 = vand.u32 2147483647, %v463
        %v1714 = vand.u32 %v1713, 8388607
        %v1715 = vor.u32 %v1714, 8388608
        %v1716 = vsub.s32 0, %v1715
        %v1717 = vadd.s32 %v1712, 1
        %vm1718 = vcmp.gt.s32.totalorder %v1717, 0
        %v1719 = vsel %vm1718, %v1717, 0
        %v1720 = vshrl.u32 %v1719, 5
        %v1721 = vand.u32 %v1719, 31
        %v1722 = vsub.s32 32, %v1721
        %v1723 = vshrl.u32 683565275, %v1722
        %v1724 = vshll.u32 683565275, %v1721
        %v1725 = vshrl.u32 2475754826, %v1722
        %v1726 = vor.u32 %v1724, %v1725
        %v1727 = vshll.u32 2475754826, %v1721
        %v1728 = vshrl.u32 2131351028, %v1722
        %v1729 = vor.u32 %v1727, %v1728
        %v1730 = vshll.u32 2131351028, %v1721
        %v1731 = vshrl.u32 2102212464, %v1722
        %v1732 = vor.u32 %v1730, %v1731
        %v1733 = vshll.u32 2102212464, %v1721
        %v1734 = vshrl.u32 920167782, %v1722
        %v1735 = vor.u32 %v1733, %v1734
        %v1736 = vshll.u32 920167782, %v1721
        %v1737 = vshrl.u32 1326507024, %v1722
        %v1738 = vor.u32 %v1736, %v1737
        %vm1739 = vcmp.lt.s32.totalorder %v1720, 1
        %vm1740 = vcmp.lt.s32.totalorder %v1720, 2
        %vm1741 = vcmp.lt.s32.totalorder %v1720, 3
        %vm1742 = vcmp.lt.s32.totalorder %v1720, 4
        %v1743 = vsel %vm1739, %v1723, %v1726
        %v1744 = vsel %vm1742, %v1732, 2102212464
        %v1745 = vsel %vm1741, %v1729, %v1744
        %v1746 = vsel %vm1740, %v1743, %v1745
        %v1747 = vsel %vm1739, %v1726, %v1729
        %v1748 = vsel %vm1742, %v1735, 920167782
        %v1749 = vsel %vm1741, %v1732, %v1748
        %v1750 = vsel %vm1740, %v1747, %v1749
        %v1751 = vsel %vm1739, %v1729, %v1732
        %v1752 = vsel %vm1742, %v1738, 1326507024
        %v1753 = vsel %vm1741, %v1735, %v1752
        %v1754 = vsel %vm1740, %v1751, %v1753
        %v1755 = vshll.u32 %v1715, 8
        %v1756 = vmul.u32.u64.compose %v1755, %v1754
        %v1757 = vextract.low.u32 %v1756
        %v1758 = vextract.high.u32 %v1756
        %v1759 = vmul.u32.u64.compose %v1755, %v1750
        %v1760 = vextract.low.u32 %v1759
        %v1761 = vextract.high.u32 %v1759
        %v1762 = vmul.u32 %v1755, %v1746
        %v1763 = vadd.s32 %v1758, %v1760
        %vm1764 = vc.u32 %v1758, %v1760
        %v1765 = vadd.s32 %v1761, 1
        %v1766 = vsel %vm1764, %v1765, %v1761
        %v1767 = vadd.s32 %v1762, %v1766
        %v1768 = vadd.s32 %v1767, 536870912
        %v1769 = vshrl.u32 %v1768, 30
        %v1770 = vshll.u32 %v1769, 30
        %v1771 = vsub.s32 %v1767, %v1770
        %vm1772 = vcmp.lt.s32.totalorder %v1771, 0
        %v1773 = vsub.s32 0, %v1771
        %v1774 = vsel %vm1772, %v1773, %v1771
        %v1775 = vclz %v1774
        %v1776 = vsub.s32 %v1775, 2
        %vm1777 = vcmp.gt.s32.totalorder 0, %v1776
        %v1778 = vsel %vm1777, 0, %v1776
        %v1779 = vsub.s32 32, %v1778
        %v1780 = vshll.u32 %v1771, %v1778
        %v1781 = vshrl.u32 %v1763, %v1779
        %v1782 = vor.u32 %v1780, %v1781
        %v1783 = vsub.s32 4294967266, %v1778
        %v1784 = vadd.s32 %v1783, 127
        %v1785 = vshll.u32 %v1784, 23
        %v1786 = vor.u32 4788187, %v1785
        %v1787 = vand.u32 2147483647, %v1786
        %v1789 = vcvt.s32.f32 %v1782
        %v1790 = vmul.f32 %v1789, %v1787
        %v1791 = vxor.u32 %v1790, 2147483648
        %v1792 = vsel %vm1709, %v1791, %v1790
        %v1793 = vsub.s32 4, %v1769
        %v1794 = vsel %vm1709, %v1793, %v1769
        %v1795 = vsel %vm1708, %v463, %v1792
        %v1796 = vsel %vm1708, 0, %v1794
        %v1797 = vcosq.f32.pop %v1795
        %v1798 = vsinq.f32.pop %v1795
        %vm1799 = vweird.f32 %v463
        %v1800 = vadd.s32 %v1796, 3
        %v1801 = vand.u32 %v1800, 3
        %vm1802 = vcmp.lt.s32.totalorder %v1801, 2
        %vm1803 = vcmp.eq.s32.totalorder %v1801, 0
        %v1804 = vxor.u32 %v1798, 2147483648
        %v1805 = vsel %vm1803, %v1797, %v1804
        %vm1806 = vcmp.eq.s32.totalorder %v1801, 2
        %v1807 = vxor.u32 %v1797, 2147483648
        %v1808 = vsel %vm1806, %v1807, %v1798
        %v1809 = vsel %vm1802, %v1805, %v1808
        %v1810 = vsel %vm1799, nan, %v1809
        %v1811 = vand.u32 2147483647, %v464
        %vm1812 = vcmp.le.f32.partialorder %v1811, 0.7853982
        %vm1813 = vcmp.lt.s32.totalorder %v464, 0
        %v1814 = vand.u32 %v464, 2139095040
        %v1815 = vshrl.u32 %v1814, 23
        %v1816 = vsub.s32 %v1815, 127
        %v1817 = vand.u32 2147483647, %v464
        %v1818 = vand.u32 %v1817, 8388607
        %v1819 = vor.u32 %v1818, 8388608
        %v1820 = vsub.s32 0, %v1819
        %v1821 = vadd.s32 %v1816, 1
        %vm1822 = vcmp.gt.s32.totalorder %v1821, 0
        %v1823 = vsel %vm1822, %v1821, 0
        %v1824 = vshrl.u32 %v1823, 5
        %v1825 = vand.u32 %v1823, 31
        %v1826 = vsub.s32 32, %v1825
        %v1827 = vshrl.u32 683565275, %v1826
        %v1828 = vshll.u32 683565275, %v1825
        %v1829 = vshrl.u32 2475754826, %v1826
        %v1830 = vor.u32 %v1828, %v1829
        %v1831 = vshll.u32 2475754826, %v1825
        %v1832 = vshrl.u32 2131351028, %v1826
        %v1833 = vor.u32 %v1831, %v1832
        %v1834 = vshll.u32 2131351028, %v1825
        %v1835 = vshrl.u32 2102212464, %v1826
        %v1836 = vor.u32 %v1834, %v1835
        %v1837 = vshll.u32 2102212464, %v1825
        %v1838 = vshrl.u32 920167782, %v1826
        %v1839 = vor.u32 %v1837, %v1838
        %v1840 = vshll.u32 920167782, %v1825
        %v1841 = vshrl.u32 1326507024, %v1826
        %v1842 = vor.u32 %v1840, %v1841
        %vm1843 = vcmp.lt.s32.totalorder %v1824, 1
        %vm1844 = vcmp.lt.s32.totalorder %v1824, 2
        %vm1845 = vcmp.lt.s32.totalorder %v1824, 3
        %vm1846 = vcmp.lt.s32.totalorder %v1824, 4
        %v1847 = vsel %vm1843, %v1827, %v1830
        %v1848 = vsel %vm1846, %v1836, 2102212464
        %v1849 = vsel %vm1845, %v1833, %v1848
        %v1850 = vsel %vm1844, %v1847, %v1849
        %v1851 = vsel %vm1843, %v1830, %v1833
        %v1852 = vsel %vm1846, %v1839, 920167782
        %v1853 = vsel %vm1845, %v1836, %v1852
        %v1854 = vsel %vm1844, %v1851, %v1853
        %v1855 = vsel %vm1843, %v1833, %v1836
        %v1856 = vsel %vm1846, %v1842, 1326507024
        %v1857 = vsel %vm1845, %v1839, %v1856
        %v1858 = vsel %vm1844, %v1855, %v1857
        %v1859 = vshll.u32 %v1819, 8
        %v1860 = vmul.u32.u64.compose %v1859, %v1858
        %v1861 = vextract.low.u32 %v1860
        %v1862 = vextract.high.u32 %v1860
        %v1863 = vmul.u32.u64.compose %v1859, %v1854
        %v1864 = vextract.low.u32 %v1863
        %v1865 = vextract.high.u32 %v1863
        %v1866 = vmul.u32 %v1859, %v1850
        %v1867 = vadd.s32 %v1862, %v1864
        %vm1868 = vc.u32 %v1862, %v1864
        %v1869 = vadd.s32 %v1865, 1
        %v1870 = vsel %vm1868, %v1869, %v1865
        %v1871 = vadd.s32 %v1866, %v1870
        %v1872 = vadd.s32 %v1871, 536870912
        %v1873 = vshrl.u32 %v1872, 30
        %v1874 = vshll.u32 %v1873, 30
        %v1875 = vsub.s32 %v1871, %v1874
        %vm1876 = vcmp.lt.s32.totalorder %v1875, 0
        %v1877 = vsub.s32 0, %v1875
        %v1878 = vsel %vm1876, %v1877, %v1875
        %v1879 = vclz %v1878
        %v1880 = vsub.s32 %v1879, 2
        %vm1881 = vcmp.gt.s32.totalorder 0, %v1880
        %v1882 = vsel %vm1881, 0, %v1880
        %v1883 = vsub.s32 32, %v1882
        %v1884 = vshll.u32 %v1875, %v1882
        %v1885 = vshrl.u32 %v1867, %v1883
        %v1886 = vor.u32 %v1884, %v1885
        %v1887 = vsub.s32 4294967266, %v1882
        %v1888 = vadd.s32 %v1887, 127
        %v1889 = vshll.u32 %v1888, 23
        %v1890 = vor.u32 4788187, %v1889
        %v1891 = vand.u32 2147483647, %v1890
        %v1893 = vcvt.s32.f32 %v1886
        %v1894 = vmul.f32 %v1893, %v1891
        %v1895 = vxor.u32 %v1894, 2147483648
        %v1896 = vsel %vm1813, %v1895, %v1894
        %v1897 = vsub.s32 4, %v1873
        %v1898 = vsel %vm1813, %v1897, %v1873
        %v1899 = vsel %vm1812, %v464, %v1896
        %v1900 = vsel %vm1812, 0, %v1898
        %v1901 = vcosq.f32.pop %v1899
        %v1902 = vsinq.f32.pop %v1899
        %vm1903 = vweird.f32 %v464
        %v1904 = vadd.s32 %v1900, 3
        %v1905 = vand.u32 %v1904, 3
        %vm1906 = vcmp.lt.s32.totalorder %v1905, 2
        %vm1907 = vcmp.eq.s32.totalorder %v1905, 0
        %v1908 = vxor.u32 %v1902, 2147483648
        %v1909 = vsel %vm1907, %v1901, %v1908
        %vm1910 = vcmp.eq.s32.totalorder %v1905, 2
        %v1911 = vxor.u32 %v1901, 2147483648
        %v1912 = vsel %vm1910, %v1911, %v1902
        %v1913 = vsel %vm1906, %v1909, %v1912
        %v1914 = vsel %vm1903, nan, %v1913
        %v1915 = vand.u32 2147483647, %v465
        %vm1916 = vcmp.le.f32.partialorder %v1915, 0.7853982
        %vm1917 = vcmp.lt.s32.totalorder %v465, 0
        %v1918 = vand.u32 %v465, 2139095040
        %v1919 = vshrl.u32 %v1918, 23
        %v1920 = vsub.s32 %v1919, 127
        %v1921 = vand.u32 2147483647, %v465
        %v1922 = vand.u32 %v1921, 8388607
        %v1923 = vor.u32 %v1922, 8388608
        %v1924 = vsub.s32 0, %v1923
        %v1925 = vadd.s32 %v1920, 1
        %vm1926 = vcmp.gt.s32.totalorder %v1925, 0
        %v1927 = vsel %vm1926, %v1925, 0
        %v1928 = vshrl.u32 %v1927, 5
        %v1929 = vand.u32 %v1927, 31
        %v1930 = vsub.s32 32, %v1929
        %v1931 = vshrl.u32 683565275, %v1930
        %v1932 = vshll.u32 683565275, %v1929
        %v1933 = vshrl.u32 2475754826, %v1930
        %v1934 = vor.u32 %v1932, %v1933
        %v1935 = vshll.u32 2475754826, %v1929
        %v1936 = vshrl.u32 2131351028, %v1930
        %v1937 = vor.u32 %v1935, %v1936
        %v1938 = vshll.u32 2131351028, %v1929
        %v1939 = vshrl.u32 2102212464, %v1930
        %v1940 = vor.u32 %v1938, %v1939
        %v1941 = vshll.u32 2102212464, %v1929
        %v1942 = vshrl.u32 920167782, %v1930
        %v1943 = vor.u32 %v1941, %v1942
        %v1944 = vshll.u32 920167782, %v1929
        %v1945 = vshrl.u32 1326507024, %v1930
        %v1946 = vor.u32 %v1944, %v1945
        %vm1947 = vcmp.lt.s32.totalorder %v1928, 1
        %vm1948 = vcmp.lt.s32.totalorder %v1928, 2
        %vm1949 = vcmp.lt.s32.totalorder %v1928, 3
        %vm1950 = vcmp.lt.s32.totalorder %v1928, 4
        %v1951 = vsel %vm1947, %v1931, %v1934
        %v1952 = vsel %vm1950, %v1940, 2102212464
        %v1953 = vsel %vm1949, %v1937, %v1952
        %v1954 = vsel %vm1948, %v1951, %v1953
        %v1955 = vsel %vm1947, %v1934, %v1937
        %v1956 = vsel %vm1950, %v1943, 920167782
        %v1957 = vsel %vm1949, %v1940, %v1956
        %v1958 = vsel %vm1948, %v1955, %v1957
        %v1959 = vsel %vm1947, %v1937, %v1940
        %v1960 = vsel %vm1950, %v1946, 1326507024
        %v1961 = vsel %vm1949, %v1943, %v1960
        %v1962 = vsel %vm1948, %v1959, %v1961
        %v1963 = vshll.u32 %v1923, 8
        %v1964 = vmul.u32.u64.compose %v1963, %v1962
        %v1965 = vextract.low.u32 %v1964
        %v1966 = vextract.high.u32 %v1964
        %v1967 = vmul.u32.u64.compose %v1963, %v1958
        %v1968 = vextract.low.u32 %v1967
        %v1969 = vextract.high.u32 %v1967
        %v1970 = vmul.u32 %v1963, %v1954
        %v1971 = vadd.s32 %v1966, %v1968
        %vm1972 = vc.u32 %v1966, %v1968
        %v1973 = vadd.s32 %v1969, 1
        %v1974 = vsel %vm1972, %v1973, %v1969
        %v1975 = vadd.s32 %v1970, %v1974
        %v1976 = vadd.s32 %v1975, 536870912
        %v1977 = vshrl.u32 %v1976, 30
        %v1978 = vshll.u32 %v1977, 30
        %v1979 = vsub.s32 %v1975, %v1978
        %vm1980 = vcmp.lt.s32.totalorder %v1979, 0
        %v1981 = vsub.s32 0, %v1979
        %v1982 = vsel %vm1980, %v1981, %v1979
        %v1983 = vclz %v1982
        %v1984 = vsub.s32 %v1983, 2
        %vm1985 = vcmp.gt.s32.totalorder 0, %v1984
        %v1986 = vsel %vm1985, 0, %v1984
        %v1987 = vsub.s32 32, %v1986
        %v1988 = vshll.u32 %v1979, %v1986
        %v1989 = vshrl.u32 %v1971, %v1987
        %v1990 = vor.u32 %v1988, %v1989
        %v1991 = vsub.s32 4294967266, %v1986
        %v1992 = vadd.s32 %v1991, 127
        %v1993 = vshll.u32 %v1992, 23
        %v1994 = vor.u32 4788187, %v1993
        %v1995 = vand.u32 2147483647, %v1994
        %v1997 = vcvt.s32.f32 %v1990
        %v1998 = vmul.f32 %v1997, %v1995
        %v1999 = vxor.u32 %v1998, 2147483648
        %v2000 = vsel %vm1917, %v1999, %v1998
        %v2001 = vsub.s32 4, %v1977
        %v2002 = vsel %vm1917, %v2001, %v1977
        %v2003 = vsel %vm1916, %v465, %v2000
        %v2004 = vsel %vm1916, 0, %v2002
        %v2005 = vcosq.f32.pop %v2003
        %v2006 = vsinq.f32.pop %v2003
        %vm2007 = vweird.f32 %v465
        %v2008 = vadd.s32 %v2004, 3
        %v2009 = vand.u32 %v2008, 3
        %vm2010 = vcmp.lt.s32.totalorder %v2009, 2
        %vm2011 = vcmp.eq.s32.totalorder %v2009, 0
        %v2012 = vxor.u32 %v2006, 2147483648
        %v2013 = vsel %vm2011, %v2005, %v2012
        %vm2014 = vcmp.eq.s32.totalorder %v2009, 2
        %v2015 = vxor.u32 %v2005, 2147483648
        %v2016 = vsel %vm2014, %v2015, %v2006
        %v2017 = vsel %vm2010, %v2013, %v2016
        %v2018 = vsel %vm2007, nan, %v2017
        %v2019 = vand.u32 2147483647, %v466
        %vm2020 = vcmp.le.f32.partialorder %v2019, 0.7853982
        %vm2021 = vcmp.lt.s32.totalorder %v466, 0
        %v2022 = vand.u32 %v466, 2139095040
        %v2023 = vshrl.u32 %v2022, 23
        %v2024 = vsub.s32 %v2023, 127
        %v2025 = vand.u32 2147483647, %v466
        %v2026 = vand.u32 %v2025, 8388607
        %v2027 = vor.u32 %v2026, 8388608
        %v2028 = vsub.s32 0, %v2027
        %v2029 = vadd.s32 %v2024, 1
        %vm2030 = vcmp.gt.s32.totalorder %v2029, 0
        %v2031 = vsel %vm2030, %v2029, 0
        %v2032 = vshrl.u32 %v2031, 5
        %v2033 = vand.u32 %v2031, 31
        %v2034 = vsub.s32 32, %v2033
        %v2035 = vshrl.u32 683565275, %v2034
        %v2036 = vshll.u32 683565275, %v2033
        %v2037 = vshrl.u32 2475754826, %v2034
        %v2038 = vor.u32 %v2036, %v2037
        %v2039 = vshll.u32 2475754826, %v2033
        %v2040 = vshrl.u32 2131351028, %v2034
        %v2041 = vor.u32 %v2039, %v2040
        %v2042 = vshll.u32 2131351028, %v2033
        %v2043 = vshrl.u32 2102212464, %v2034
        %v2044 = vor.u32 %v2042, %v2043
        %v2045 = vshll.u32 2102212464, %v2033
        %v2046 = vshrl.u32 920167782, %v2034
        %v2047 = vor.u32 %v2045, %v2046
        %v2048 = vshll.u32 920167782, %v2033
        %v2049 = vshrl.u32 1326507024, %v2034
        %v2050 = vor.u32 %v2048, %v2049
        %vm2051 = vcmp.lt.s32.totalorder %v2032, 1
        %vm2052 = vcmp.lt.s32.totalorder %v2032, 2
        %vm2053 = vcmp.lt.s32.totalorder %v2032, 3
        %vm2054 = vcmp.lt.s32.totalorder %v2032, 4
        %v2055 = vsel %vm2051, %v2035, %v2038
        %v2056 = vsel %vm2054, %v2044, 2102212464
        %v2057 = vsel %vm2053, %v2041, %v2056
        %v2058 = vsel %vm2052, %v2055, %v2057
        %v2059 = vsel %vm2051, %v2038, %v2041
        %v2060 = vsel %vm2054, %v2047, 920167782
        %v2061 = vsel %vm2053, %v2044, %v2060
        %v2062 = vsel %vm2052, %v2059, %v2061
        %v2063 = vsel %vm2051, %v2041, %v2044
        %v2064 = vsel %vm2054, %v2050, 1326507024
        %v2065 = vsel %vm2053, %v2047, %v2064
        %v2066 = vsel %vm2052, %v2063, %v2065
        %v2067 = vshll.u32 %v2027, 8
        %v2068 = vmul.u32.u64.compose %v2067, %v2066
        %v2069 = vextract.low.u32 %v2068
        %v2070 = vextract.high.u32 %v2068
        %v2071 = vmul.u32.u64.compose %v2067, %v2062
        %v2072 = vextract.low.u32 %v2071
        %v2073 = vextract.high.u32 %v2071
        %v2074 = vmul.u32 %v2067, %v2058
        %v2075 = vadd.s32 %v2070, %v2072
        %vm2076 = vc.u32 %v2070, %v2072
        %v2077 = vadd.s32 %v2073, 1
        %v2078 = vsel %vm2076, %v2077, %v2073
        %v2079 = vadd.s32 %v2074, %v2078
        %v2080 = vadd.s32 %v2079, 536870912
        %v2081 = vshrl.u32 %v2080, 30
        %v2082 = vshll.u32 %v2081, 30
        %v2083 = vsub.s32 %v2079, %v2082
        %vm2084 = vcmp.lt.s32.totalorder %v2083, 0
        %v2085 = vsub.s32 0, %v2083
        %v2086 = vsel %vm2084, %v2085, %v2083
        %v2087 = vclz %v2086
        %v2088 = vsub.s32 %v2087, 2
        %vm2089 = vcmp.gt.s32.totalorder 0, %v2088
        %v2090 = vsel %vm2089, 0, %v2088
        %v2091 = vsub.s32 32, %v2090
        %v2092 = vshll.u32 %v2083, %v2090
        %v2093 = vshrl.u32 %v2075, %v2091
        %v2094 = vor.u32 %v2092, %v2093
        %v2095 = vsub.s32 4294967266, %v2090
        %v2096 = vadd.s32 %v2095, 127
        %v2097 = vshll.u32 %v2096, 23
        %v2098 = vor.u32 4788187, %v2097
        %v2099 = vand.u32 2147483647, %v2098
        %v2101 = vcvt.s32.f32 %v2094
        %v2102 = vmul.f32 %v2101, %v2099
        %v2103 = vxor.u32 %v2102, 2147483648
        %v2104 = vsel %vm2021, %v2103, %v2102
        %v2105 = vsub.s32 4, %v2081
        %v2106 = vsel %vm2021, %v2105, %v2081
        %v2107 = vsel %vm2020, %v466, %v2104
        %v2108 = vsel %vm2020, 0, %v2106
        %v2109 = vcosq.f32.pop %v2107
        %v2110 = vsinq.f32.pop %v2107
        %vm2111 = vweird.f32 %v466
        %v2112 = vadd.s32 %v2108, 3
        %v2113 = vand.u32 %v2112, 3
        %vm2114 = vcmp.lt.s32.totalorder %v2113, 2
        %vm2115 = vcmp.eq.s32.totalorder %v2113, 0
        %v2116 = vxor.u32 %v2110, 2147483648
        %v2117 = vsel %vm2115, %v2109, %v2116
        %vm2118 = vcmp.eq.s32.totalorder %v2113, 2
        %v2119 = vxor.u32 %v2109, 2147483648
        %v2120 = vsel %vm2118, %v2119, %v2110
        %v2121 = vsel %vm2114, %v2117, %v2120
        %v2122 = vsel %vm2111, nan, %v2121
        %v2123 = vmul.f32 %v374, -1.0
        %v2124 = vmul.f32 %v374, -3.0
        %v2125 = vmul.f32 %v2124, %v2123
        %v2126 = vmul.f32 %v270, 3.0
        %v2127 = vmul.f32 %v2126, %v2123
        %v2128 = vmul.f32 %v2126, %v270
        %v2129 = vsub.f32 %v2128, 1.0
        %v2130 = vrcp.pop 2.0
        %v2131 = vmul.f32 %v2129, %v2130
        %v2132 = vld [vmem:[%s0] sm:$0xff]
        %v2133 = vld [vmem:[%s0 + $0x8] sm:$0xff]
        %v2134 = vld [vmem:[%s0 + $0x10] sm:$0x3]
        %2136 = vset.pattern.permute.xlu0 0
        %2137 = vperm.xlu0 %2136, %v2132
        %v2138 = vpop.permute.xlu0 %2137
        %2141 = vset.pattern.permute.xlu0 0
        %2142 = vperm.xlu0 %2141, %v2133
        %v2143 = vpop.permute.xlu0 %2142
        %2146 = vset.pattern.permute.xlu0 0
        %2147 = vperm.xlu0 %2146, %v2134
        %v2148 = vpop.permute.xlu0 %2147
        %v2151 = vlaneseq
        %v2152 = vshrl.u32 %v2151, 7
        %v2153 = vsub.s32 0, %v2152
        %v2154 = vrot.slane %v163, %v2153
        %v2155 = vlaneseq
        %v2156 = vshrl.u32 %v2155, 7
        %v2157 = vsub.s32 1, %v2156
        %v2158 = vrot.slane %v163, %v2157
        %v2159 = vlaneseq
        %v2160 = vshrl.u32 %v2159, 7
        %v2161 = vsub.s32 2, %v2160
        %v2162 = vrot.slane %v163, %v2161
        %v2163 = vlaneseq
        %v2164 = vshrl.u32 %v2163, 7
        %v2165 = vsub.s32 3, %v2164
        %v2166 = vrot.slane %v163, %v2165
        %v2167 = vlaneseq
        %v2168 = vshrl.u32 %v2167, 7
        %v2169 = vsub.s32 4, %v2168
        %v2170 = vrot.slane %v163, %v2169
        %v2171 = vlaneseq
        %v2172 = vshrl.u32 %v2171, 7
        %v2173 = vsub.s32 5, %v2172
        %v2174 = vrot.slane %v163, %v2173
        %v2175 = vlaneseq
        %v2176 = vshrl.u32 %v2175, 7
        %v2177 = vsub.s32 6, %v2176
        %v2178 = vrot.slane %v163, %v2177
        %v2179 = vlaneseq
        %v2180 = vshrl.u32 %v2179, 7
        %v2181 = vsub.s32 7, %v2180
        %v2182 = vrot.slane %v163, %v2181
        %v2191 = vmul.f32 %v2138, %v2154
        %v2192 = vmul.f32 %v2138, %v2158
        %v2193 = vmul.f32 %v2138, %v2162
        %v2194 = vmul.f32 %v2138, %v2166
        %v2195 = vmul.f32 %v2138, %v2170
        %v2196 = vmul.f32 %v2138, %v2174
        %v2197 = vmul.f32 %v2138, %v2178
        %v2198 = vmul.f32 %v2138, %v2182
        %v2199 = vmul.f32 %v2143, %v2154
        %v2200 = vmul.f32 %v2143, %v2158
        %v2201 = vmul.f32 %v2143, %v2162
        %v2202 = vmul.f32 %v2143, %v2166
        %v2203 = vmul.f32 %v2143, %v2170
        %v2204 = vmul.f32 %v2143, %v2174
        %v2205 = vmul.f32 %v2143, %v2178
        %v2206 = vmul.f32 %v2143, %v2182
        %v2207 = vmul.f32 %v2148, %v2154
        %v2208 = vmul.f32 %v2148, %v2158
        %v2209 = vmul.f32 %v2148, %v2162
        %v2210 = vmul.f32 %v2148, %v2166
        %v2211 = vmul.f32 %v2148, %v2170
        %v2212 = vmul.f32 %v2148, %v2174
        %v2213 = vmul.f32 %v2148, %v2178
        %v2214 = vmul.f32 %v2148, %v2182
        %v2215 = vrcp.pop %v2191
        %v2216 = vmul.f32 1.0, %v2215
        %v2217 = vrcp.pop %v2192
        %v2218 = vmul.f32 1.0, %v2217
        %v2219 = vrcp.pop %v2193
        %v2220 = vmul.f32 1.0, %v2219
        %v2221 = vrcp.pop %v2194
        %v2222 = vmul.f32 1.0, %v2221
        %v2223 = vrcp.pop %v2195
        %v2224 = vmul.f32 1.0, %v2223
        %v2225 = vrcp.pop %v2196
        %v2226 = vmul.f32 1.0, %v2225
        %v2227 = vrcp.pop %v2197
        %v2228 = vmul.f32 1.0, %v2227
        %v2229 = vrcp.pop %v2198
        %v2230 = vmul.f32 1.0, %v2229
        %v2231 = vrcp.pop %v2199
        %v2232 = vmul.f32 1.0, %v2231
        %v2233 = vrcp.pop %v2200
        %v2234 = vmul.f32 1.0, %v2233
        %v2235 = vrcp.pop %v2201
        %v2236 = vmul.f32 1.0, %v2235
        %v2237 = vrcp.pop %v2202
        %v2238 = vmul.f32 1.0, %v2237
        %v2239 = vrcp.pop %v2203
        %v2240 = vmul.f32 1.0, %v2239
        %v2241 = vrcp.pop %v2204
        %v2242 = vmul.f32 1.0, %v2241
        %v2243 = vrcp.pop %v2205
        %v2244 = vmul.f32 1.0, %v2243
        %v2245 = vrcp.pop %v2206
        %v2246 = vmul.f32 1.0, %v2245
        %v2247 = vrcp.pop %v2207
        %v2248 = vmul.f32 1.0, %v2247
        %v2249 = vrcp.pop %v2208
        %v2250 = vmul.f32 1.0, %v2249
        %v2251 = vrcp.pop %v2209
        %v2252 = vmul.f32 1.0, %v2251
        %v2253 = vrcp.pop %v2210
        %v2254 = vmul.f32 1.0, %v2253
        %v2255 = vrcp.pop %v2211
        %v2256 = vmul.f32 1.0, %v2255
        %v2257 = vrcp.pop %v2212
        %v2258 = vmul.f32 1.0, %v2257
        %v2259 = vrcp.pop %v2213
        %v2260 = vmul.f32 1.0, %v2259
        %v2261 = vrcp.pop %v2214
        %v2262 = vmul.f32 1.0, %v2261
        %v2263 = vand.u32 2147483647, %v2191
        %vm2264 = vcmp.le.f32.partialorder %v2263, 0.7853982
        %vm2265 = vcmp.lt.s32.totalorder %v2191, 0
        %v2266 = vand.u32 %v2191, 2139095040
        %v2267 = vshrl.u32 %v2266, 23
        %v2268 = vsub.s32 %v2267, 127
        %v2269 = vand.u32 2147483647, %v2191
        %v2270 = vand.u32 %v2269, 8388607
        %v2271 = vor.u32 %v2270, 8388608
        %v2272 = vsub.s32 0, %v2271
        %v2273 = vadd.s32 %v2268, 1
        %vm2274 = vcmp.gt.s32.totalorder %v2273, 0
        %v2275 = vsel %vm2274, %v2273, 0
        %v2276 = vshrl.u32 %v2275, 5
        %v2277 = vand.u32 %v2275, 31
        %v2278 = vsub.s32 32, %v2277
        %v2279 = vshrl.u32 683565275, %v2278
        %v2280 = vshll.u32 683565275, %v2277
        %v2281 = vshrl.u32 2475754826, %v2278
        %v2282 = vor.u32 %v2280, %v2281
        %v2283 = vshll.u32 2475754826, %v2277
        %v2284 = vshrl.u32 2131351028, %v2278
        %v2285 = vor.u32 %v2283, %v2284
        %v2286 = vshll.u32 2131351028, %v2277
        %v2287 = vshrl.u32 2102212464, %v2278
        %v2288 = vor.u32 %v2286, %v2287
        %v2289 = vshll.u32 2102212464, %v2277
        %v2290 = vshrl.u32 920167782, %v2278
        %v2291 = vor.u32 %v2289, %v2290
        %v2292 = vshll.u32 920167782, %v2277
        %v2293 = vshrl.u32 1326507024, %v2278
        %v2294 = vor.u32 %v2292, %v2293
        %vm2295 = vcmp.lt.s32.totalorder %v2276, 1
        %vm2296 = vcmp.lt.s32.totalorder %v2276, 2
        %vm2297 = vcmp.lt.s32.totalorder %v2276, 3
        %vm2298 = vcmp.lt.s32.totalorder %v2276, 4
        %v2299 = vsel %vm2295, %v2279, %v2282
        %v2300 = vsel %vm2298, %v2288, 2102212464
        %v2301 = vsel %vm2297, %v2285, %v2300
        %v2302 = vsel %vm2296, %v2299, %v2301
        %v2303 = vsel %vm2295, %v2282, %v2285
        %v2304 = vsel %vm2298, %v2291, 920167782
        %v2305 = vsel %vm2297, %v2288, %v2304
        %v2306 = vsel %vm2296, %v2303, %v2305
        %v2307 = vsel %vm2295, %v2285, %v2288
        %v2308 = vsel %vm2298, %v2294, 1326507024
        %v2309 = vsel %vm2297, %v2291, %v2308
        %v2310 = vsel %vm2296, %v2307, %v2309
        %v2311 = vshll.u32 %v2271, 8
        %v2312 = vmul.u32.u64.compose %v2311, %v2310
        %v2313 = vextract.low.u32 %v2312
        %v2314 = vextract.high.u32 %v2312
        %v2315 = vmul.u32.u64.compose %v2311, %v2306
        %v2316 = vextract.low.u32 %v2315
        %v2317 = vextract.high.u32 %v2315
        %v2318 = vmul.u32 %v2311, %v2302
        %v2319 = vadd.s32 %v2314, %v2316
        %vm2320 = vc.u32 %v2314, %v2316
        %v2321 = vadd.s32 %v2317, 1
        %v2322 = vsel %vm2320, %v2321, %v2317
        %v2323 = vadd.s32 %v2318, %v2322
        %v2324 = vadd.s32 %v2323, 536870912
        %v2325 = vshrl.u32 %v2324, 30
        %v2326 = vshll.u32 %v2325, 30
        %v2327 = vsub.s32 %v2323, %v2326
        %vm2328 = vcmp.lt.s32.totalorder %v2327, 0
        %v2329 = vsub.s32 0, %v2327
        %v2330 = vsel %vm2328, %v2329, %v2327
        %v2331 = vclz %v2330
        %v2332 = vsub.s32 %v2331, 2
        %vm2333 = vcmp.gt.s32.totalorder 0, %v2332
        %v2334 = vsel %vm2333, 0, %v2332
        %v2335 = vsub.s32 32, %v2334
        %v2336 = vshll.u32 %v2327, %v2334
        %v2337 = vshrl.u32 %v2319, %v2335
        %v2338 = vor.u32 %v2336, %v2337
        %v2339 = vsub.s32 4294967266, %v2334
        %v2340 = vadd.s32 %v2339, 127
        %v2341 = vshll.u32 %v2340, 23
        %v2342 = vor.u32 4788187, %v2341
        %v2343 = vand.u32 2147483647, %v2342
        %v2345 = vcvt.s32.f32 %v2338
        %v2346 = vmul.f32 %v2345, %v2343
        %v2347 = vxor.u32 %v2346, 2147483648
        %v2348 = vsel %vm2265, %v2347, %v2346
        %v2349 = vsub.s32 4, %v2325
        %v2350 = vsel %vm2265, %v2349, %v2325
        %v2351 = vsel %vm2264, %v2191, %v2348
        %v2352 = vsel %vm2264, 0, %v2350
        %v2353 = vcosq.f32.pop %v2351
        %v2354 = vsinq.f32.pop %v2351
        %vm2355 = vweird.f32 %v2191
        %v2356 = vadd.s32 %v2352, 3
        %v2357 = vand.u32 %v2356, 3
        %vm2358 = vcmp.lt.s32.totalorder %v2357, 2
        %vm2359 = vcmp.eq.s32.totalorder %v2357, 0
        %v2360 = vxor.u32 %v2354, 2147483648
        %v2361 = vsel %vm2359, %v2353, %v2360
        %vm2362 = vcmp.eq.s32.totalorder %v2357, 2
        %v2363 = vxor.u32 %v2353, 2147483648
        %v2364 = vsel %vm2362, %v2363, %v2354
        %v2365 = vsel %vm2358, %v2361, %v2364
        %v2366 = vsel %vm2355, nan, %v2365
        %v2367 = vand.u32 2147483647, %v2192
        %vm2368 = vcmp.le.f32.partialorder %v2367, 0.7853982
        %vm2369 = vcmp.lt.s32.totalorder %v2192, 0
        %v2370 = vand.u32 %v2192, 2139095040
        %v2371 = vshrl.u32 %v2370, 23
        %v2372 = vsub.s32 %v2371, 127
        %v2373 = vand.u32 2147483647, %v2192
        %v2374 = vand.u32 %v2373, 8388607
        %v2375 = vor.u32 %v2374, 8388608
        %v2376 = vsub.s32 0, %v2375
        %v2377 = vadd.s32 %v2372, 1
        %vm2378 = vcmp.gt.s32.totalorder %v2377, 0
        %v2379 = vsel %vm2378, %v2377, 0
        %v2380 = vshrl.u32 %v2379, 5
        %v2381 = vand.u32 %v2379, 31
        %v2382 = vsub.s32 32, %v2381
        %v2383 = vshrl.u32 683565275, %v2382
        %v2384 = vshll.u32 683565275, %v2381
        %v2385 = vshrl.u32 2475754826, %v2382
        %v2386 = vor.u32 %v2384, %v2385
        %v2387 = vshll.u32 2475754826, %v2381
        %v2388 = vshrl.u32 2131351028, %v2382
        %v2389 = vor.u32 %v2387, %v2388
        %v2390 = vshll.u32 2131351028, %v2381
        %v2391 = vshrl.u32 2102212464, %v2382
        %v2392 = vor.u32 %v2390, %v2391
        %v2393 = vshll.u32 2102212464, %v2381
        %v2394 = vshrl.u32 920167782, %v2382
        %v2395 = vor.u32 %v2393, %v2394
        %v2396 = vshll.u32 920167782, %v2381
        %v2397 = vshrl.u32 1326507024, %v2382
        %v2398 = vor.u32 %v2396, %v2397
        %vm2399 = vcmp.lt.s32.totalorder %v2380, 1
        %vm2400 = vcmp.lt.s32.totalorder %v2380, 2
        %vm2401 = vcmp.lt.s32.totalorder %v2380, 3
        %vm2402 = vcmp.lt.s32.totalorder %v2380, 4
        %v2403 = vsel %vm2399, %v2383, %v2386
        %v2404 = vsel %vm2402, %v2392, 2102212464
        %v2405 = vsel %vm2401, %v2389, %v2404
        %v2406 = vsel %vm2400, %v2403, %v2405
        %v2407 = vsel %vm2399, %v2386, %v2389
        %v2408 = vsel %vm2402, %v2395, 920167782
        %v2409 = vsel %vm2401, %v2392, %v2408
        %v2410 = vsel %vm2400, %v2407, %v2409
        %v2411 = vsel %vm2399, %v2389, %v2392
        %v2412 = vsel %vm2402, %v2398, 1326507024
        %v2413 = vsel %vm2401, %v2395, %v2412
        %v2414 = vsel %vm2400, %v2411, %v2413
        %v2415 = vshll.u32 %v2375, 8
        %v2416 = vmul.u32.u64.compose %v2415, %v2414
        %v2417 = vextract.low.u32 %v2416
        %v2418 = vextract.high.u32 %v2416
        %v2419 = vmul.u32.u64.compose %v2415, %v2410
        %v2420 = vextract.low.u32 %v2419
        %v2421 = vextract.high.u32 %v2419
        %v2422 = vmul.u32 %v2415, %v2406
        %v2423 = vadd.s32 %v2418, %v2420
        %vm2424 = vc.u32 %v2418, %v2420
        %v2425 = vadd.s32 %v2421, 1
        %v2426 = vsel %vm2424, %v2425, %v2421
        %v2427 = vadd.s32 %v2422, %v2426
        %v2428 = vadd.s32 %v2427, 536870912
        %v2429 = vshrl.u32 %v2428, 30
        %v2430 = vshll.u32 %v2429, 30
        %v2431 = vsub.s32 %v2427, %v2430
        %vm2432 = vcmp.lt.s32.totalorder %v2431, 0
        %v2433 = vsub.s32 0, %v2431
        %v2434 = vsel %vm2432, %v2433, %v2431
        %v2435 = vclz %v2434
        %v2436 = vsub.s32 %v2435, 2
        %vm2437 = vcmp.gt.s32.totalorder 0, %v2436
        %v2438 = vsel %vm2437, 0, %v2436
        %v2439 = vsub.s32 32, %v2438
        %v2440 = vshll.u32 %v2431, %v2438
        %v2441 = vshrl.u32 %v2423, %v2439
        %v2442 = vor.u32 %v2440, %v2441
        %v2443 = vsub.s32 4294967266, %v2438
        %v2444 = vadd.s32 %v2443, 127
        %v2445 = vshll.u32 %v2444, 23
        %v2446 = vor.u32 4788187, %v2445
        %v2447 = vand.u32 2147483647, %v2446
        %v2449 = vcvt.s32.f32 %v2442
        %v2450 = vmul.f32 %v2449, %v2447
        %v2451 = vxor.u32 %v2450, 2147483648
        %v2452 = vsel %vm2369, %v2451, %v2450
        %v2453 = vsub.s32 4, %v2429
        %v2454 = vsel %vm2369, %v2453, %v2429
        %v2455 = vsel %vm2368, %v2192, %v2452
        %v2456 = vsel %vm2368, 0, %v2454
        %v2457 = vcosq.f32.pop %v2455
        %v2458 = vsinq.f32.pop %v2455
        %vm2459 = vweird.f32 %v2192
        %v2460 = vadd.s32 %v2456, 3
        %v2461 = vand.u32 %v2460, 3
        %vm2462 = vcmp.lt.s32.totalorder %v2461, 2
        %vm2463 = vcmp.eq.s32.totalorder %v2461, 0
        %v2464 = vxor.u32 %v2458, 2147483648
        %v2465 = vsel %vm2463, %v2457, %v2464
        %vm2466 = vcmp.eq.s32.totalorder %v2461, 2
        %v2467 = vxor.u32 %v2457, 2147483648
        %v2468 = vsel %vm2466, %v2467, %v2458
        %v2469 = vsel %vm2462, %v2465, %v2468
        %v2470 = vsel %vm2459, nan, %v2469
        %v2471 = vand.u32 2147483647, %v2193
        %vm2472 = vcmp.le.f32.partialorder %v2471, 0.7853982
        %vm2473 = vcmp.lt.s32.totalorder %v2193, 0
        %v2474 = vand.u32 %v2193, 2139095040
        %v2475 = vshrl.u32 %v2474, 23
        %v2476 = vsub.s32 %v2475, 127
        %v2477 = vand.u32 2147483647, %v2193
        %v2478 = vand.u32 %v2477, 8388607
        %v2479 = vor.u32 %v2478, 8388608
        %v2480 = vsub.s32 0, %v2479
        %v2481 = vadd.s32 %v2476, 1
        %vm2482 = vcmp.gt.s32.totalorder %v2481, 0
        %v2483 = vsel %vm2482, %v2481, 0
        %v2484 = vshrl.u32 %v2483, 5
        %v2485 = vand.u32 %v2483, 31
        %v2486 = vsub.s32 32, %v2485
        %v2487 = vshrl.u32 683565275, %v2486
        %v2488 = vshll.u32 683565275, %v2485
        %v2489 = vshrl.u32 2475754826, %v2486
        %v2490 = vor.u32 %v2488, %v2489
        %v2491 = vshll.u32 2475754826, %v2485
        %v2492 = vshrl.u32 2131351028, %v2486
        %v2493 = vor.u32 %v2491, %v2492
        %v2494 = vshll.u32 2131351028, %v2485
        %v2495 = vshrl.u32 2102212464, %v2486
        %v2496 = vor.u32 %v2494, %v2495
        %v2497 = vshll.u32 2102212464, %v2485
        %v2498 = vshrl.u32 920167782, %v2486
        %v2499 = vor.u32 %v2497, %v2498
        %v2500 = vshll.u32 920167782, %v2485
        %v2501 = vshrl.u32 1326507024, %v2486
        %v2502 = vor.u32 %v2500, %v2501
        %vm2503 = vcmp.lt.s32.totalorder %v2484, 1
        %vm2504 = vcmp.lt.s32.totalorder %v2484, 2
        %vm2505 = vcmp.lt.s32.totalorder %v2484, 3
        %vm2506 = vcmp.lt.s32.totalorder %v2484, 4
        %v2507 = vsel %vm2503, %v2487, %v2490
        %v2508 = vsel %vm2506, %v2496, 2102212464
        %v2509 = vsel %vm2505, %v2493, %v2508
        %v2510 = vsel %vm2504, %v2507, %v2509
        %v2511 = vsel %vm2503, %v2490, %v2493
        %v2512 = vsel %vm2506, %v2499, 920167782
        %v2513 = vsel %vm2505, %v2496, %v2512
        %v2514 = vsel %vm2504, %v2511, %v2513
        %v2515 = vsel %vm2503, %v2493, %v2496
        %v2516 = vsel %vm2506, %v2502, 1326507024
        %v2517 = vsel %vm2505, %v2499, %v2516
        %v2518 = vsel %vm2504, %v2515, %v2517
        %v2519 = vshll.u32 %v2479, 8
        %v2520 = vmul.u32.u64.compose %v2519, %v2518
        %v2521 = vextract.low.u32 %v2520
        %v2522 = vextract.high.u32 %v2520
        %v2523 = vmul.u32.u64.compose %v2519, %v2514
        %v2524 = vextract.low.u32 %v2523
        %v2525 = vextract.high.u32 %v2523
        %v2526 = vmul.u32 %v2519, %v2510
        %v2527 = vadd.s32 %v2522, %v2524
        %vm2528 = vc.u32 %v2522, %v2524
        %v2529 = vadd.s32 %v2525, 1
        %v2530 = vsel %vm2528, %v2529, %v2525
        %v2531 = vadd.s32 %v2526, %v2530
        %v2532 = vadd.s32 %v2531, 536870912
        %v2533 = vshrl.u32 %v2532, 30
        %v2534 = vshll.u32 %v2533, 30
        %v2535 = vsub.s32 %v2531, %v2534
        %vm2536 = vcmp.lt.s32.totalorder %v2535, 0
        %v2537 = vsub.s32 0, %v2535
        %v2538 = vsel %vm2536, %v2537, %v2535
        %v2539 = vclz %v2538
        %v2540 = vsub.s32 %v2539, 2
        %vm2541 = vcmp.gt.s32.totalorder 0, %v2540
        %v2542 = vsel %vm2541, 0, %v2540
        %v2543 = vsub.s32 32, %v2542
        %v2544 = vshll.u32 %v2535, %v2542
        %v2545 = vshrl.u32 %v2527, %v2543
        %v2546 = vor.u32 %v2544, %v2545
        %v2547 = vsub.s32 4294967266, %v2542
        %v2548 = vadd.s32 %v2547, 127
        %v2549 = vshll.u32 %v2548, 23
        %v2550 = vor.u32 4788187, %v2549
        %v2551 = vand.u32 2147483647, %v2550
        %v2553 = vcvt.s32.f32 %v2546
        %v2554 = vmul.f32 %v2553, %v2551
        %v2555 = vxor.u32 %v2554, 2147483648
        %v2556 = vsel %vm2473, %v2555, %v2554
        %v2557 = vsub.s32 4, %v2533
        %v2558 = vsel %vm2473, %v2557, %v2533
        %v2559 = vsel %vm2472, %v2193, %v2556
        %v2560 = vsel %vm2472, 0, %v2558
        %v2561 = vcosq.f32.pop %v2559
        %v2562 = vsinq.f32.pop %v2559
        %vm2563 = vweird.f32 %v2193
        %v2564 = vadd.s32 %v2560, 3
        %v2565 = vand.u32 %v2564, 3
        %vm2566 = vcmp.lt.s32.totalorder %v2565, 2
        %vm2567 = vcmp.eq.s32.totalorder %v2565, 0
        %v2568 = vxor.u32 %v2562, 2147483648
        %v2569 = vsel %vm2567, %v2561, %v2568
        %vm2570 = vcmp.eq.s32.totalorder %v2565, 2
        %v2571 = vxor.u32 %v2561, 2147483648
        %v2572 = vsel %vm2570, %v2571, %v2562
        %v2573 = vsel %vm2566, %v2569, %v2572
        %v2574 = vsel %vm2563, nan, %v2573
        %v2575 = vand.u32 2147483647, %v2194
        %vm2576 = vcmp.le.f32.partialorder %v2575, 0.7853982
        %vm2577 = vcmp.lt.s32.totalorder %v2194, 0
        %v2578 = vand.u32 %v2194, 2139095040
        %v2579 = vshrl.u32 %v2578, 23
        %v2580 = vsub.s32 %v2579, 127
        %v2581 = vand.u32 2147483647, %v2194
        %v2582 = vand.u32 %v2581, 8388607
        %v2583 = vor.u32 %v2582, 8388608
        %v2584 = vsub.s32 0, %v2583
        %v2585 = vadd.s32 %v2580, 1
        %vm2586 = vcmp.gt.s32.totalorder %v2585, 0
        %v2587 = vsel %vm2586, %v2585, 0
        %v2588 = vshrl.u32 %v2587, 5
        %v2589 = vand.u32 %v2587, 31
        %v2590 = vsub.s32 32, %v2589
        %v2591 = vshrl.u32 683565275, %v2590
        %v2592 = vshll.u32 683565275, %v2589
        %v2593 = vshrl.u32 2475754826, %v2590
        %v2594 = vor.u32 %v2592, %v2593
        %v2595 = vshll.u32 2475754826, %v2589
        %v2596 = vshrl.u32 2131351028, %v2590
        %v2597 = vor.u32 %v2595, %v2596
        %v2598 = vshll.u32 2131351028, %v2589
        %v2599 = vshrl.u32 2102212464, %v2590
        %v2600 = vor.u32 %v2598, %v2599
        %v2601 = vshll.u32 2102212464, %v2589
        %v2602 = vshrl.u32 920167782, %v2590
        %v2603 = vor.u32 %v2601, %v2602
        %v2604 = vshll.u32 920167782, %v2589
        %v2605 = vshrl.u32 1326507024, %v2590
        %v2606 = vor.u32 %v2604, %v2605
        %vm2607 = vcmp.lt.s32.totalorder %v2588, 1
        %vm2608 = vcmp.lt.s32.totalorder %v2588, 2
        %vm2609 = vcmp.lt.s32.totalorder %v2588, 3
        %vm2610 = vcmp.lt.s32.totalorder %v2588, 4
        %v2611 = vsel %vm2607, %v2591, %v2594
        %v2612 = vsel %vm2610, %v2600, 2102212464
        %v2613 = vsel %vm2609, %v2597, %v2612
        %v2614 = vsel %vm2608, %v2611, %v2613
        %v2615 = vsel %vm2607, %v2594, %v2597
        %v2616 = vsel %vm2610, %v2603, 920167782
        %v2617 = vsel %vm2609, %v2600, %v2616
        %v2618 = vsel %vm2608, %v2615, %v2617
        %v2619 = vsel %vm2607, %v2597, %v2600
        %v2620 = vsel %vm2610, %v2606, 1326507024
        %v2621 = vsel %vm2609, %v2603, %v2620
        %v2622 = vsel %vm2608, %v2619, %v2621
        %v2623 = vshll.u32 %v2583, 8
        %v2624 = vmul.u32.u64.compose %v2623, %v2622
        %v2625 = vextract.low.u32 %v2624
        %v2626 = vextract.high.u32 %v2624
        %v2627 = vmul.u32.u64.compose %v2623, %v2618
        %v2628 = vextract.low.u32 %v2627
        %v2629 = vextract.high.u32 %v2627
        %v2630 = vmul.u32 %v2623, %v2614
        %v2631 = vadd.s32 %v2626, %v2628
        %vm2632 = vc.u32 %v2626, %v2628
        %v2633 = vadd.s32 %v2629, 1
        %v2634 = vsel %vm2632, %v2633, %v2629
        %v2635 = vadd.s32 %v2630, %v2634
        %v2636 = vadd.s32 %v2635, 536870912
        %v2637 = vshrl.u32 %v2636, 30
        %v2638 = vshll.u32 %v2637, 30
        %v2639 = vsub.s32 %v2635, %v2638
        %vm2640 = vcmp.lt.s32.totalorder %v2639, 0
        %v2641 = vsub.s32 0, %v2639
        %v2642 = vsel %vm2640, %v2641, %v2639
        %v2643 = vclz %v2642
        %v2644 = vsub.s32 %v2643, 2
        %vm2645 = vcmp.gt.s32.totalorder 0, %v2644
        %v2646 = vsel %vm2645, 0, %v2644
        %v2647 = vsub.s32 32, %v2646
        %v2648 = vshll.u32 %v2639, %v2646
        %v2649 = vshrl.u32 %v2631, %v2647
        %v2650 = vor.u32 %v2648, %v2649
        %v2651 = vsub.s32 4294967266, %v2646
        %v2652 = vadd.s32 %v2651, 127
        %v2653 = vshll.u32 %v2652, 23
        %v2654 = vor.u32 4788187, %v2653
        %v2655 = vand.u32 2147483647, %v2654
        %v2657 = vcvt.s32.f32 %v2650
        %v2658 = vmul.f32 %v2657, %v2655
        %v2659 = vxor.u32 %v2658, 2147483648
        %v2660 = vsel %vm2577, %v2659, %v2658
        %v2661 = vsub.s32 4, %v2637
        %v2662 = vsel %vm2577, %v2661, %v2637
        %v2663 = vsel %vm2576, %v2194, %v2660
        %v2664 = vsel %vm2576, 0, %v2662
        %v2665 = vcosq.f32.pop %v2663
        %v2666 = vsinq.f32.pop %v2663
        %vm2667 = vweird.f32 %v2194
        %v2668 = vadd.s32 %v2664, 3
        %v2669 = vand.u32 %v2668, 3
        %vm2670 = vcmp.lt.s32.totalorder %v2669, 2
        %vm2671 = vcmp.eq.s32.totalorder %v2669, 0
        %v2672 = vxor.u32 %v2666, 2147483648
        %v2673 = vsel %vm2671, %v2665, %v2672
        %vm2674 = vcmp.eq.s32.totalorder %v2669, 2
        %v2675 = vxor.u32 %v2665, 2147483648
        %v2676 = vsel %vm2674, %v2675, %v2666
        %v2677 = vsel %vm2670, %v2673, %v2676
        %v2678 = vsel %vm2667, nan, %v2677
        %v2679 = vand.u32 2147483647, %v2195
        %vm2680 = vcmp.le.f32.partialorder %v2679, 0.7853982
        %vm2681 = vcmp.lt.s32.totalorder %v2195, 0
        %v2682 = vand.u32 %v2195, 2139095040
        %v2683 = vshrl.u32 %v2682, 23
        %v2684 = vsub.s32 %v2683, 127
        %v2685 = vand.u32 2147483647, %v2195
        %v2686 = vand.u32 %v2685, 8388607
        %v2687 = vor.u32 %v2686, 8388608
        %v2688 = vsub.s32 0, %v2687
        %v2689 = vadd.s32 %v2684, 1
        %vm2690 = vcmp.gt.s32.totalorder %v2689, 0
        %v2691 = vsel %vm2690, %v2689, 0
        %v2692 = vshrl.u32 %v2691, 5
        %v2693 = vand.u32 %v2691, 31
        %v2694 = vsub.s32 32, %v2693
        %v2695 = vshrl.u32 683565275, %v2694
        %v2696 = vshll.u32 683565275, %v2693
        %v2697 = vshrl.u32 2475754826, %v2694
        %v2698 = vor.u32 %v2696, %v2697
        %v2699 = vshll.u32 2475754826, %v2693
        %v2700 = vshrl.u32 2131351028, %v2694
        %v2701 = vor.u32 %v2699, %v2700
        %v2702 = vshll.u32 2131351028, %v2693
        %v2703 = vshrl.u32 2102212464, %v2694
        %v2704 = vor.u32 %v2702, %v2703
        %v2705 = vshll.u32 2102212464, %v2693
        %v2706 = vshrl.u32 920167782, %v2694
        %v2707 = vor.u32 %v2705, %v2706
        %v2708 = vshll.u32 920167782, %v2693
        %v2709 = vshrl.u32 1326507024, %v2694
        %v2710 = vor.u32 %v2708, %v2709
        %vm2711 = vcmp.lt.s32.totalorder %v2692, 1
        %vm2712 = vcmp.lt.s32.totalorder %v2692, 2
        %vm2713 = vcmp.lt.s32.totalorder %v2692, 3
        %vm2714 = vcmp.lt.s32.totalorder %v2692, 4
        %v2715 = vsel %vm2711, %v2695, %v2698
        %v2716 = vsel %vm2714, %v2704, 2102212464
        %v2717 = vsel %vm2713, %v2701, %v2716
        %v2718 = vsel %vm2712, %v2715, %v2717
        %v2719 = vsel %vm2711, %v2698, %v2701
        %v2720 = vsel %vm2714, %v2707, 920167782
        %v2721 = vsel %vm2713, %v2704, %v2720
        %v2722 = vsel %vm2712, %v2719, %v2721
        %v2723 = vsel %vm2711, %v2701, %v2704
        %v2724 = vsel %vm2714, %v2710, 1326507024
        %v2725 = vsel %vm2713, %v2707, %v2724
        %v2726 = vsel %vm2712, %v2723, %v2725
        %v2727 = vshll.u32 %v2687, 8
        %v2728 = vmul.u32.u64.compose %v2727, %v2726
        %v2729 = vextract.low.u32 %v2728
        %v2730 = vextract.high.u32 %v2728
        %v2731 = vmul.u32.u64.compose %v2727, %v2722
        %v2732 = vextract.low.u32 %v2731
        %v2733 = vextract.high.u32 %v2731
        %v2734 = vmul.u32 %v2727, %v2718
        %v2735 = vadd.s32 %v2730, %v2732
        %vm2736 = vc.u32 %v2730, %v2732
        %v2737 = vadd.s32 %v2733, 1
        %v2738 = vsel %vm2736, %v2737, %v2733
        %v2739 = vadd.s32 %v2734, %v2738
        %v2740 = vadd.s32 %v2739, 536870912
        %v2741 = vshrl.u32 %v2740, 30
        %v2742 = vshll.u32 %v2741, 30
        %v2743 = vsub.s32 %v2739, %v2742
        %vm2744 = vcmp.lt.s32.totalorder %v2743, 0
        %v2745 = vsub.s32 0, %v2743
        %v2746 = vsel %vm2744, %v2745, %v2743
        %v2747 = vclz %v2746
        %v2748 = vsub.s32 %v2747, 2
        %vm2749 = vcmp.gt.s32.totalorder 0, %v2748
        %v2750 = vsel %vm2749, 0, %v2748
        %v2751 = vsub.s32 32, %v2750
        %v2752 = vshll.u32 %v2743, %v2750
        %v2753 = vshrl.u32 %v2735, %v2751
        %v2754 = vor.u32 %v2752, %v2753
        %v2755 = vsub.s32 4294967266, %v2750
        %v2756 = vadd.s32 %v2755, 127
        %v2757 = vshll.u32 %v2756, 23
        %v2758 = vor.u32 4788187, %v2757
        %v2759 = vand.u32 2147483647, %v2758
        %v2761 = vcvt.s32.f32 %v2754
        %v2762 = vmul.f32 %v2761, %v2759
        %v2763 = vxor.u32 %v2762, 2147483648
        %v2764 = vsel %vm2681, %v2763, %v2762
        %v2765 = vsub.s32 4, %v2741
        %v2766 = vsel %vm2681, %v2765, %v2741
        %v2767 = vsel %vm2680, %v2195, %v2764
        %v2768 = vsel %vm2680, 0, %v2766
        %v2769 = vcosq.f32.pop %v2767
        %v2770 = vsinq.f32.pop %v2767
        %vm2771 = vweird.f32 %v2195
        %v2772 = vadd.s32 %v2768, 3
        %v2773 = vand.u32 %v2772, 3
        %vm2774 = vcmp.lt.s32.totalorder %v2773, 2
        %vm2775 = vcmp.eq.s32.totalorder %v2773, 0
        %v2776 = vxor.u32 %v2770, 2147483648
        %v2777 = vsel %vm2775, %v2769, %v2776
        %vm2778 = vcmp.eq.s32.totalorder %v2773, 2
        %v2779 = vxor.u32 %v2769, 2147483648
        %v2780 = vsel %vm2778, %v2779, %v2770
        %v2781 = vsel %vm2774, %v2777, %v2780
        %v2782 = vsel %vm2771, nan, %v2781
        %v2783 = vand.u32 2147483647, %v2196
        %vm2784 = vcmp.le.f32.partialorder %v2783, 0.7853982
        %vm2785 = vcmp.lt.s32.totalorder %v2196, 0
        %v2786 = vand.u32 %v2196, 2139095040
        %v2787 = vshrl.u32 %v2786, 23
        %v2788 = vsub.s32 %v2787, 127
        %v2789 = vand.u32 2147483647, %v2196
        %v2790 = vand.u32 %v2789, 8388607
        %v2791 = vor.u32 %v2790, 8388608
        %v2792 = vsub.s32 0, %v2791
        %v2793 = vadd.s32 %v2788, 1
        %vm2794 = vcmp.gt.s32.totalorder %v2793, 0
        %v2795 = vsel %vm2794, %v2793, 0
        %v2796 = vshrl.u32 %v2795, 5
        %v2797 = vand.u32 %v2795, 31
        %v2798 = vsub.s32 32, %v2797
        %v2799 = vshrl.u32 683565275, %v2798
        %v2800 = vshll.u32 683565275, %v2797
        %v2801 = vshrl.u32 2475754826, %v2798
        %v2802 = vor.u32 %v2800, %v2801
        %v2803 = vshll.u32 2475754826, %v2797
        %v2804 = vshrl.u32 2131351028, %v2798
        %v2805 = vor.u32 %v2803, %v2804
        %v2806 = vshll.u32 2131351028, %v2797
        %v2807 = vshrl.u32 2102212464, %v2798
        %v2808 = vor.u32 %v2806, %v2807
        %v2809 = vshll.u32 2102212464, %v2797
        %v2810 = vshrl.u32 920167782, %v2798
        %v2811 = vor.u32 %v2809, %v2810
        %v2812 = vshll.u32 920167782, %v2797
        %v2813 = vshrl.u32 1326507024, %v2798
        %v2814 = vor.u32 %v2812, %v2813
        %vm2815 = vcmp.lt.s32.totalorder %v2796, 1
        %vm2816 = vcmp.lt.s32.totalorder %v2796, 2
        %vm2817 = vcmp.lt.s32.totalorder %v2796, 3
        %vm2818 = vcmp.lt.s32.totalorder %v2796, 4
        %v2819 = vsel %vm2815, %v2799, %v2802
        %v2820 = vsel %vm2818, %v2808, 2102212464
        %v2821 = vsel %vm2817, %v2805, %v2820
        %v2822 = vsel %vm2816, %v2819, %v2821
        %v2823 = vsel %vm2815, %v2802, %v2805
        %v2824 = vsel %vm2818, %v2811, 920167782
        %v2825 = vsel %vm2817, %v2808, %v2824
        %v2826 = vsel %vm2816, %v2823, %v2825
        %v2827 = vsel %vm2815, %v2805, %v2808
        %v2828 = vsel %vm2818, %v2814, 1326507024
        %v2829 = vsel %vm2817, %v2811, %v2828
        %v2830 = vsel %vm2816, %v2827, %v2829
        %v2831 = vshll.u32 %v2791, 8
        %v2832 = vmul.u32.u64.compose %v2831, %v2830
        %v2833 = vextract.low.u32 %v2832
        %v2834 = vextract.high.u32 %v2832
        %v2835 = vmul.u32.u64.compose %v2831, %v2826
        %v2836 = vextract.low.u32 %v2835
        %v2837 = vextract.high.u32 %v2835
        %v2838 = vmul.u32 %v2831, %v2822
        %v2839 = vadd.s32 %v2834, %v2836
        %vm2840 = vc.u32 %v2834, %v2836
        %v2841 = vadd.s32 %v2837, 1
        %v2842 = vsel %vm2840, %v2841, %v2837
        %v2843 = vadd.s32 %v2838, %v2842
        %v2844 = vadd.s32 %v2843, 536870912
        %v2845 = vshrl.u32 %v2844, 30
        %v2846 = vshll.u32 %v2845, 30
        %v2847 = vsub.s32 %v2843, %v2846
        %vm2848 = vcmp.lt.s32.totalorder %v2847, 0
        %v2849 = vsub.s32 0, %v2847
        %v2850 = vsel %vm2848, %v2849, %v2847
        %v2851 = vclz %v2850
        %v2852 = vsub.s32 %v2851, 2
        %vm2853 = vcmp.gt.s32.totalorder 0, %v2852
        %v2854 = vsel %vm2853, 0, %v2852
        %v2855 = vsub.s32 32, %v2854
        %v2856 = vshll.u32 %v2847, %v2854
        %v2857 = vshrl.u32 %v2839, %v2855
        %v2858 = vor.u32 %v2856, %v2857
        %v2859 = vsub.s32 4294967266, %v2854
        %v2860 = vadd.s32 %v2859, 127
        %v2861 = vshll.u32 %v2860, 23
        %v2862 = vor.u32 4788187, %v2861
        %v2863 = vand.u32 2147483647, %v2862
        %v2865 = vcvt.s32.f32 %v2858
        %v2866 = vmul.f32 %v2865, %v2863
        %v2867 = vxor.u32 %v2866, 2147483648
        %v2868 = vsel %vm2785, %v2867, %v2866
        %v2869 = vsub.s32 4, %v2845
        %v2870 = vsel %vm2785, %v2869, %v2845
        %v2871 = vsel %vm2784, %v2196, %v2868
        %v2872 = vsel %vm2784, 0, %v2870
        %v2873 = vcosq.f32.pop %v2871
        %v2874 = vsinq.f32.pop %v2871
        %vm2875 = vweird.f32 %v2196
        %v2876 = vadd.s32 %v2872, 3
        %v2877 = vand.u32 %v2876, 3
        %vm2878 = vcmp.lt.s32.totalorder %v2877, 2
        %vm2879 = vcmp.eq.s32.totalorder %v2877, 0
        %v2880 = vxor.u32 %v2874, 2147483648
        %v2881 = vsel %vm2879, %v2873, %v2880
        %vm2882 = vcmp.eq.s32.totalorder %v2877, 2
        %v2883 = vxor.u32 %v2873, 2147483648
        %v2884 = vsel %vm2882, %v2883, %v2874
        %v2885 = vsel %vm2878, %v2881, %v2884
        %v2886 = vsel %vm2875, nan, %v2885
        %v2887 = vand.u32 2147483647, %v2197
        %vm2888 = vcmp.le.f32.partialorder %v2887, 0.7853982
        %vm2889 = vcmp.lt.s32.totalorder %v2197, 0
        %v2890 = vand.u32 %v2197, 2139095040
        %v2891 = vshrl.u32 %v2890, 23
        %v2892 = vsub.s32 %v2891, 127
        %v2893 = vand.u32 2147483647, %v2197
        %v2894 = vand.u32 %v2893, 8388607
        %v2895 = vor.u32 %v2894, 8388608
        %v2896 = vsub.s32 0, %v2895
        %v2897 = vadd.s32 %v2892, 1
        %vm2898 = vcmp.gt.s32.totalorder %v2897, 0
        %v2899 = vsel %vm2898, %v2897, 0
        %v2900 = vshrl.u32 %v2899, 5
        %v2901 = vand.u32 %v2899, 31
        %v2902 = vsub.s32 32, %v2901
        %v2903 = vshrl.u32 683565275, %v2902
        %v2904 = vshll.u32 683565275, %v2901
        %v2905 = vshrl.u32 2475754826, %v2902
        %v2906 = vor.u32 %v2904, %v2905
        %v2907 = vshll.u32 2475754826, %v2901
        %v2908 = vshrl.u32 2131351028, %v2902
        %v2909 = vor.u32 %v2907, %v2908
        %v2910 = vshll.u32 2131351028, %v2901
        %v2911 = vshrl.u32 2102212464, %v2902
        %v2912 = vor.u32 %v2910, %v2911
        %v2913 = vshll.u32 2102212464, %v2901
        %v2914 = vshrl.u32 920167782, %v2902
        %v2915 = vor.u32 %v2913, %v2914
        %v2916 = vshll.u32 920167782, %v2901
        %v2917 = vshrl.u32 1326507024, %v2902
        %v2918 = vor.u32 %v2916, %v2917
        %vm2919 = vcmp.lt.s32.totalorder %v2900, 1
        %vm2920 = vcmp.lt.s32.totalorder %v2900, 2
        %vm2921 = vcmp.lt.s32.totalorder %v2900, 3
        %vm2922 = vcmp.lt.s32.totalorder %v2900, 4
        %v2923 = vsel %vm2919, %v2903, %v2906
        %v2924 = vsel %vm2922, %v2912, 2102212464
        %v2925 = vsel %vm2921, %v2909, %v2924
        %v2926 = vsel %vm2920, %v2923, %v2925
        %v2927 = vsel %vm2919, %v2906, %v2909
        %v2928 = vsel %vm2922, %v2915, 920167782
        %v2929 = vsel %vm2921, %v2912, %v2928
        %v2930 = vsel %vm2920, %v2927, %v2929
        %v2931 = vsel %vm2919, %v2909, %v2912
        %v2932 = vsel %vm2922, %v2918, 1326507024
        %v2933 = vsel %vm2921, %v2915, %v2932
        %v2934 = vsel %vm2920, %v2931, %v2933
        %v2935 = vshll.u32 %v2895, 8
        %v2936 = vmul.u32.u64.compose %v2935, %v2934
        %v2937 = vextract.low.u32 %v2936
        %v2938 = vextract.high.u32 %v2936
        %v2939 = vmul.u32.u64.compose %v2935, %v2930
        %v2940 = vextract.low.u32 %v2939
        %v2941 = vextract.high.u32 %v2939
        %v2942 = vmul.u32 %v2935, %v2926
        %v2943 = vadd.s32 %v2938, %v2940
        %vm2944 = vc.u32 %v2938, %v2940
        %v2945 = vadd.s32 %v2941, 1
        %v2946 = vsel %vm2944, %v2945, %v2941
        %v2947 = vadd.s32 %v2942, %v2946
        %v2948 = vadd.s32 %v2947, 536870912
        %v2949 = vshrl.u32 %v2948, 30
        %v2950 = vshll.u32 %v2949, 30
        %v2951 = vsub.s32 %v2947, %v2950
        %vm2952 = vcmp.lt.s32.totalorder %v2951, 0
        %v2953 = vsub.s32 0, %v2951
        %v2954 = vsel %vm2952, %v2953, %v2951
        %v2955 = vclz %v2954
        %v2956 = vsub.s32 %v2955, 2
        %vm2957 = vcmp.gt.s32.totalorder 0, %v2956
        %v2958 = vsel %vm2957, 0, %v2956
        %v2959 = vsub.s32 32, %v2958
        %v2960 = vshll.u32 %v2951, %v2958
        %v2961 = vshrl.u32 %v2943, %v2959
        %v2962 = vor.u32 %v2960, %v2961
        %v2963 = vsub.s32 4294967266, %v2958
        %v2964 = vadd.s32 %v2963, 127
        %v2965 = vshll.u32 %v2964, 23
        %v2966 = vor.u32 4788187, %v2965
        %v2967 = vand.u32 2147483647, %v2966
        %v2969 = vcvt.s32.f32 %v2962
        %v2970 = vmul.f32 %v2969, %v2967
        %v2971 = vxor.u32 %v2970, 2147483648
        %v2972 = vsel %vm2889, %v2971, %v2970
        %v2973 = vsub.s32 4, %v2949
        %v2974 = vsel %vm2889, %v2973, %v2949
        %v2975 = vsel %vm2888, %v2197, %v2972
        %v2976 = vsel %vm2888, 0, %v2974
        %v2977 = vcosq.f32.pop %v2975
        %v2978 = vsinq.f32.pop %v2975
        %vm2979 = vweird.f32 %v2197
        %v2980 = vadd.s32 %v2976, 3
        %v2981 = vand.u32 %v2980, 3
        %vm2982 = vcmp.lt.s32.totalorder %v2981, 2
        %vm2983 = vcmp.eq.s32.totalorder %v2981, 0
        %v2984 = vxor.u32 %v2978, 2147483648
        %v2985 = vsel %vm2983, %v2977, %v2984
        %vm2986 = vcmp.eq.s32.totalorder %v2981, 2
        %v2987 = vxor.u32 %v2977, 2147483648
        %v2988 = vsel %vm2986, %v2987, %v2978
        %v2989 = vsel %vm2982, %v2985, %v2988
        %v2990 = vsel %vm2979, nan, %v2989
        %v2991 = vand.u32 2147483647, %v2198
        %vm2992 = vcmp.le.f32.partialorder %v2991, 0.7853982
        %vm2993 = vcmp.lt.s32.totalorder %v2198, 0
        %v2994 = vand.u32 %v2198, 2139095040
        %v2995 = vshrl.u32 %v2994, 23
        %v2996 = vsub.s32 %v2995, 127
        %v2997 = vand.u32 2147483647, %v2198
        %v2998 = vand.u32 %v2997, 8388607
        %v2999 = vor.u32 %v2998, 8388608
        %v3000 = vsub.s32 0, %v2999
        %v3001 = vadd.s32 %v2996, 1
        %vm3002 = vcmp.gt.s32.totalorder %v3001, 0
        %v3003 = vsel %vm3002, %v3001, 0
        %v3004 = vshrl.u32 %v3003, 5
        %v3005 = vand.u32 %v3003, 31
        %v3006 = vsub.s32 32, %v3005
        %v3007 = vshrl.u32 683565275, %v3006
        %v3008 = vshll.u32 683565275, %v3005
        %v3009 = vshrl.u32 2475754826, %v3006
        %v3010 = vor.u32 %v3008, %v3009
        %v3011 = vshll.u32 2475754826, %v3005
        %v3012 = vshrl.u32 2131351028, %v3006
        %v3013 = vor.u32 %v3011, %v3012
        %v3014 = vshll.u32 2131351028, %v3005
        %v3015 = vshrl.u32 2102212464, %v3006
        %v3016 = vor.u32 %v3014, %v3015
        %v3017 = vshll.u32 2102212464, %v3005
        %v3018 = vshrl.u32 920167782, %v3006
        %v3019 = vor.u32 %v3017, %v3018
        %v3020 = vshll.u32 920167782, %v3005
        %v3021 = vshrl.u32 1326507024, %v3006
        %v3022 = vor.u32 %v3020, %v3021
        %vm3023 = vcmp.lt.s32.totalorder %v3004, 1
        %vm3024 = vcmp.lt.s32.totalorder %v3004, 2
        %vm3025 = vcmp.lt.s32.totalorder %v3004, 3
        %vm3026 = vcmp.lt.s32.totalorder %v3004, 4
        %v3027 = vsel %vm3023, %v3007, %v3010
        %v3028 = vsel %vm3026, %v3016, 2102212464
        %v3029 = vsel %vm3025, %v3013, %v3028
        %v3030 = vsel %vm3024, %v3027, %v3029
        %v3031 = vsel %vm3023, %v3010, %v3013
        %v3032 = vsel %vm3026, %v3019, 920167782
        %v3033 = vsel %vm3025, %v3016, %v3032
        %v3034 = vsel %vm3024, %v3031, %v3033
        %v3035 = vsel %vm3023, %v3013, %v3016
        %v3036 = vsel %vm3026, %v3022, 1326507024
        %v3037 = vsel %vm3025, %v3019, %v3036
        %v3038 = vsel %vm3024, %v3035, %v3037
        %v3039 = vshll.u32 %v2999, 8
        %v3040 = vmul.u32.u64.compose %v3039, %v3038
        %v3041 = vextract.low.u32 %v3040
        %v3042 = vextract.high.u32 %v3040
        %v3043 = vmul.u32.u64.compose %v3039, %v3034
        %v3044 = vextract.low.u32 %v3043
        %v3045 = vextract.high.u32 %v3043
        %v3046 = vmul.u32 %v3039, %v3030
        %v3047 = vadd.s32 %v3042, %v3044
        %vm3048 = vc.u32 %v3042, %v3044
        %v3049 = vadd.s32 %v3045, 1
        %v3050 = vsel %vm3048, %v3049, %v3045
        %v3051 = vadd.s32 %v3046, %v3050
        %v3052 = vadd.s32 %v3051, 536870912
        %v3053 = vshrl.u32 %v3052, 30
        %v3054 = vshll.u32 %v3053, 30
        %v3055 = vsub.s32 %v3051, %v3054
        %vm3056 = vcmp.lt.s32.totalorder %v3055, 0
        %v3057 = vsub.s32 0, %v3055
        %v3058 = vsel %vm3056, %v3057, %v3055
        %v3059 = vclz %v3058
        %v3060 = vsub.s32 %v3059, 2
        %vm3061 = vcmp.gt.s32.totalorder 0, %v3060
        %v3062 = vsel %vm3061, 0, %v3060
        %v3063 = vsub.s32 32, %v3062
        %v3064 = vshll.u32 %v3055, %v3062
        %v3065 = vshrl.u32 %v3047, %v3063
        %v3066 = vor.u32 %v3064, %v3065
        %v3067 = vsub.s32 4294967266, %v3062
        %v3068 = vadd.s32 %v3067, 127
        %v3069 = vshll.u32 %v3068, 23
        %v3070 = vor.u32 4788187, %v3069
        %v3071 = vand.u32 2147483647, %v3070
        %v3073 = vcvt.s32.f32 %v3066
        %v3074 = vmul.f32 %v3073, %v3071
        %v3075 = vxor.u32 %v3074, 2147483648
        %v3076 = vsel %vm2993, %v3075, %v3074
        %v3077 = vsub.s32 4, %v3053
        %v3078 = vsel %vm2993, %v3077, %v3053
        %v3079 = vsel %vm2992, %v2198, %v3076
        %v3080 = vsel %vm2992, 0, %v3078
        %v3081 = vcosq.f32.pop %v3079
        %v3082 = vsinq.f32.pop %v3079
        %vm3083 = vweird.f32 %v2198
        %v3084 = vadd.s32 %v3080, 3
        %v3085 = vand.u32 %v3084, 3
        %vm3086 = vcmp.lt.s32.totalorder %v3085, 2
        %vm3087 = vcmp.eq.s32.totalorder %v3085, 0
        %v3088 = vxor.u32 %v3082, 2147483648
        %v3089 = vsel %vm3087, %v3081, %v3088
        %vm3090 = vcmp.eq.s32.totalorder %v3085, 2
        %v3091 = vxor.u32 %v3081, 2147483648
        %v3092 = vsel %vm3090, %v3091, %v3082
        %v3093 = vsel %vm3086, %v3089, %v3092
        %v3094 = vsel %vm3083, nan, %v3093
        %v3095 = vand.u32 2147483647, %v2199
        %vm3096 = vcmp.le.f32.partialorder %v3095, 0.7853982
        %vm3097 = vcmp.lt.s32.totalorder %v2199, 0
        %v3098 = vand.u32 %v2199, 2139095040
        %v3099 = vshrl.u32 %v3098, 23
        %v3100 = vsub.s32 %v3099, 127
        %v3101 = vand.u32 2147483647, %v2199
        %v3102 = vand.u32 %v3101, 8388607
        %v3103 = vor.u32 %v3102, 8388608
        %v3104 = vsub.s32 0, %v3103
        %v3105 = vadd.s32 %v3100, 1
        %vm3106 = vcmp.gt.s32.totalorder %v3105, 0
        %v3107 = vsel %vm3106, %v3105, 0
        %v3108 = vshrl.u32 %v3107, 5
        %v3109 = vand.u32 %v3107, 31
        %v3110 = vsub.s32 32, %v3109
        %v3111 = vshrl.u32 683565275, %v3110
        %v3112 = vshll.u32 683565275, %v3109
        %v3113 = vshrl.u32 2475754826, %v3110
        %v3114 = vor.u32 %v3112, %v3113
        %v3115 = vshll.u32 2475754826, %v3109
        %v3116 = vshrl.u32 2131351028, %v3110
        %v3117 = vor.u32 %v3115, %v3116
        %v3118 = vshll.u32 2131351028, %v3109
        %v3119 = vshrl.u32 2102212464, %v3110
        %v3120 = vor.u32 %v3118, %v3119
        %v3121 = vshll.u32 2102212464, %v3109
        %v3122 = vshrl.u32 920167782, %v3110
        %v3123 = vor.u32 %v3121, %v3122
        %v3124 = vshll.u32 920167782, %v3109
        %v3125 = vshrl.u32 1326507024, %v3110
        %v3126 = vor.u32 %v3124, %v3125
        %vm3127 = vcmp.lt.s32.totalorder %v3108, 1
        %vm3128 = vcmp.lt.s32.totalorder %v3108, 2
        %vm3129 = vcmp.lt.s32.totalorder %v3108, 3
        %vm3130 = vcmp.lt.s32.totalorder %v3108, 4
        %v3131 = vsel %vm3127, %v3111, %v3114
        %v3132 = vsel %vm3130, %v3120, 2102212464
        %v3133 = vsel %vm3129, %v3117, %v3132
        %v3134 = vsel %vm3128, %v3131, %v3133
        %v3135 = vsel %vm3127, %v3114, %v3117
        %v3136 = vsel %vm3130, %v3123, 920167782
        %v3137 = vsel %vm3129, %v3120, %v3136
        %v3138 = vsel %vm3128, %v3135, %v3137
        %v3139 = vsel %vm3127, %v3117, %v3120
        %v3140 = vsel %vm3130, %v3126, 1326507024
        %v3141 = vsel %vm3129, %v3123, %v3140
        %v3142 = vsel %vm3128, %v3139, %v3141
        %v3143 = vshll.u32 %v3103, 8
        %v3144 = vmul.u32.u64.compose %v3143, %v3142
        %v3145 = vextract.low.u32 %v3144
        %v3146 = vextract.high.u32 %v3144
        %v3147 = vmul.u32.u64.compose %v3143, %v3138
        %v3148 = vextract.low.u32 %v3147
        %v3149 = vextract.high.u32 %v3147
        %v3150 = vmul.u32 %v3143, %v3134
        %v3151 = vadd.s32 %v3146, %v3148
        %vm3152 = vc.u32 %v3146, %v3148
        %v3153 = vadd.s32 %v3149, 1
        %v3154 = vsel %vm3152, %v3153, %v3149
        %v3155 = vadd.s32 %v3150, %v3154
        %v3156 = vadd.s32 %v3155, 536870912
        %v3157 = vshrl.u32 %v3156, 30
        %v3158 = vshll.u32 %v3157, 30
        %v3159 = vsub.s32 %v3155, %v3158
        %vm3160 = vcmp.lt.s32.totalorder %v3159, 0
        %v3161 = vsub.s32 0, %v3159
        %v3162 = vsel %vm3160, %v3161, %v3159
        %v3163 = vclz %v3162
        %v3164 = vsub.s32 %v3163, 2
        %vm3165 = vcmp.gt.s32.totalorder 0, %v3164
        %v3166 = vsel %vm3165, 0, %v3164
        %v3167 = vsub.s32 32, %v3166
        %v3168 = vshll.u32 %v3159, %v3166
        %v3169 = vshrl.u32 %v3151, %v3167
        %v3170 = vor.u32 %v3168, %v3169
        %v3171 = vsub.s32 4294967266, %v3166
        %v3172 = vadd.s32 %v3171, 127
        %v3173 = vshll.u32 %v3172, 23
        %v3174 = vor.u32 4788187, %v3173
        %v3175 = vand.u32 2147483647, %v3174
        %v3177 = vcvt.s32.f32 %v3170
        %v3178 = vmul.f32 %v3177, %v3175
        %v3179 = vxor.u32 %v3178, 2147483648
        %v3180 = vsel %vm3097, %v3179, %v3178
        %v3181 = vsub.s32 4, %v3157
        %v3182 = vsel %vm3097, %v3181, %v3157
        %v3183 = vsel %vm3096, %v2199, %v3180
        %v3184 = vsel %vm3096, 0, %v3182
        %v3185 = vcosq.f32.pop %v3183
        %v3186 = vsinq.f32.pop %v3183
        %vm3187 = vweird.f32 %v2199
        %v3188 = vadd.s32 %v3184, 3
        %v3189 = vand.u32 %v3188, 3
        %vm3190 = vcmp.lt.s32.totalorder %v3189, 2
        %vm3191 = vcmp.eq.s32.totalorder %v3189, 0
        %v3192 = vxor.u32 %v3186, 2147483648
        %v3193 = vsel %vm3191, %v3185, %v3192
        %vm3194 = vcmp.eq.s32.totalorder %v3189, 2
        %v3195 = vxor.u32 %v3185, 2147483648
        %v3196 = vsel %vm3194, %v3195, %v3186
        %v3197 = vsel %vm3190, %v3193, %v3196
        %v3198 = vsel %vm3187, nan, %v3197
        %v3199 = vand.u32 2147483647, %v2200
        %vm3200 = vcmp.le.f32.partialorder %v3199, 0.7853982
        %vm3201 = vcmp.lt.s32.totalorder %v2200, 0
        %v3202 = vand.u32 %v2200, 2139095040
        %v3203 = vshrl.u32 %v3202, 23
        %v3204 = vsub.s32 %v3203, 127
        %v3205 = vand.u32 2147483647, %v2200
        %v3206 = vand.u32 %v3205, 8388607
        %v3207 = vor.u32 %v3206, 8388608
        %v3208 = vsub.s32 0, %v3207
        %v3209 = vadd.s32 %v3204, 1
        %vm3210 = vcmp.gt.s32.totalorder %v3209, 0
        %v3211 = vsel %vm3210, %v3209, 0
        %v3212 = vshrl.u32 %v3211, 5
        %v3213 = vand.u32 %v3211, 31
        %v3214 = vsub.s32 32, %v3213
        %v3215 = vshrl.u32 683565275, %v3214
        %v3216 = vshll.u32 683565275, %v3213
        %v3217 = vshrl.u32 2475754826, %v3214
        %v3218 = vor.u32 %v3216, %v3217
        %v3219 = vshll.u32 2475754826, %v3213
        %v3220 = vshrl.u32 2131351028, %v3214
        %v3221 = vor.u32 %v3219, %v3220
        %v3222 = vshll.u32 2131351028, %v3213
        %v3223 = vshrl.u32 2102212464, %v3214
        %v3224 = vor.u32 %v3222, %v3223
        %v3225 = vshll.u32 2102212464, %v3213
        %v3226 = vshrl.u32 920167782, %v3214
        %v3227 = vor.u32 %v3225, %v3226
        %v3228 = vshll.u32 920167782, %v3213
        %v3229 = vshrl.u32 1326507024, %v3214
        %v3230 = vor.u32 %v3228, %v3229
        %vm3231 = vcmp.lt.s32.totalorder %v3212, 1
        %vm3232 = vcmp.lt.s32.totalorder %v3212, 2
        %vm3233 = vcmp.lt.s32.totalorder %v3212, 3
        %vm3234 = vcmp.lt.s32.totalorder %v3212, 4
        %v3235 = vsel %vm3231, %v3215, %v3218
        %v3236 = vsel %vm3234, %v3224, 2102212464
        %v3237 = vsel %vm3233, %v3221, %v3236
        %v3238 = vsel %vm3232, %v3235, %v3237
        %v3239 = vsel %vm3231, %v3218, %v3221
        %v3240 = vsel %vm3234, %v3227, 920167782
        %v3241 = vsel %vm3233, %v3224, %v3240
        %v3242 = vsel %vm3232, %v3239, %v3241
        %v3243 = vsel %vm3231, %v3221, %v3224
        %v3244 = vsel %vm3234, %v3230, 1326507024
        %v3245 = vsel %vm3233, %v3227, %v3244
        %v3246 = vsel %vm3232, %v3243, %v3245
        %v3247 = vshll.u32 %v3207, 8
        %v3248 = vmul.u32.u64.compose %v3247, %v3246
        %v3249 = vextract.low.u32 %v3248
        %v3250 = vextract.high.u32 %v3248
        %v3251 = vmul.u32.u64.compose %v3247, %v3242
        %v3252 = vextract.low.u32 %v3251
        %v3253 = vextract.high.u32 %v3251
        %v3254 = vmul.u32 %v3247, %v3238
        %v3255 = vadd.s32 %v3250, %v3252
        %vm3256 = vc.u32 %v3250, %v3252
        %v3257 = vadd.s32 %v3253, 1
        %v3258 = vsel %vm3256, %v3257, %v3253
        %v3259 = vadd.s32 %v3254, %v3258
        %v3260 = vadd.s32 %v3259, 536870912
        %v3261 = vshrl.u32 %v3260, 30
        %v3262 = vshll.u32 %v3261, 30
        %v3263 = vsub.s32 %v3259, %v3262
        %vm3264 = vcmp.lt.s32.totalorder %v3263, 0
        %v3265 = vsub.s32 0, %v3263
        %v3266 = vsel %vm3264, %v3265, %v3263
        %v3267 = vclz %v3266
        %v3268 = vsub.s32 %v3267, 2
        %vm3269 = vcmp.gt.s32.totalorder 0, %v3268
        %v3270 = vsel %vm3269, 0, %v3268
        %v3271 = vsub.s32 32, %v3270
        %v3272 = vshll.u32 %v3263, %v3270
        %v3273 = vshrl.u32 %v3255, %v3271
        %v3274 = vor.u32 %v3272, %v3273
        %v3275 = vsub.s32 4294967266, %v3270
        %v3276 = vadd.s32 %v3275, 127
        %v3277 = vshll.u32 %v3276, 23
        %v3278 = vor.u32 4788187, %v3277
        %v3279 = vand.u32 2147483647, %v3278
        %v3281 = vcvt.s32.f32 %v3274
        %v3282 = vmul.f32 %v3281, %v3279
        %v3283 = vxor.u32 %v3282, 2147483648
        %v3284 = vsel %vm3201, %v3283, %v3282
        %v3285 = vsub.s32 4, %v3261
        %v3286 = vsel %vm3201, %v3285, %v3261
        %v3287 = vsel %vm3200, %v2200, %v3284
        %v3288 = vsel %vm3200, 0, %v3286
        %v3289 = vcosq.f32.pop %v3287
        %v3290 = vsinq.f32.pop %v3287
        %vm3291 = vweird.f32 %v2200
        %v3292 = vadd.s32 %v3288, 3
        %v3293 = vand.u32 %v3292, 3
        %vm3294 = vcmp.lt.s32.totalorder %v3293, 2
        %vm3295 = vcmp.eq.s32.totalorder %v3293, 0
        %v3296 = vxor.u32 %v3290, 2147483648
        %v3297 = vsel %vm3295, %v3289, %v3296
        %vm3298 = vcmp.eq.s32.totalorder %v3293, 2
        %v3299 = vxor.u32 %v3289, 2147483648
        %v3300 = vsel %vm3298, %v3299, %v3290
        %v3301 = vsel %vm3294, %v3297, %v3300
        %v3302 = vsel %vm3291, nan, %v3301
        %v3303 = vand.u32 2147483647, %v2201
        %vm3304 = vcmp.le.f32.partialorder %v3303, 0.7853982
        %vm3305 = vcmp.lt.s32.totalorder %v2201, 0
        %v3306 = vand.u32 %v2201, 2139095040
        %v3307 = vshrl.u32 %v3306, 23
        %v3308 = vsub.s32 %v3307, 127
        %v3309 = vand.u32 2147483647, %v2201
        %v3310 = vand.u32 %v3309, 8388607
        %v3311 = vor.u32 %v3310, 8388608
        %v3312 = vsub.s32 0, %v3311
        %v3313 = vadd.s32 %v3308, 1
        %vm3314 = vcmp.gt.s32.totalorder %v3313, 0
        %v3315 = vsel %vm3314, %v3313, 0
        %v3316 = vshrl.u32 %v3315, 5
        %v3317 = vand.u32 %v3315, 31
        %v3318 = vsub.s32 32, %v3317
        %v3319 = vshrl.u32 683565275, %v3318
        %v3320 = vshll.u32 683565275, %v3317
        %v3321 = vshrl.u32 2475754826, %v3318
        %v3322 = vor.u32 %v3320, %v3321
        %v3323 = vshll.u32 2475754826, %v3317
        %v3324 = vshrl.u32 2131351028, %v3318
        %v3325 = vor.u32 %v3323, %v3324
        %v3326 = vshll.u32 2131351028, %v3317
        %v3327 = vshrl.u32 2102212464, %v3318
        %v3328 = vor.u32 %v3326, %v3327
        %v3329 = vshll.u32 2102212464, %v3317
        %v3330 = vshrl.u32 920167782, %v3318
        %v3331 = vor.u32 %v3329, %v3330
        %v3332 = vshll.u32 920167782, %v3317
        %v3333 = vshrl.u32 1326507024, %v3318
        %v3334 = vor.u32 %v3332, %v3333
        %vm3335 = vcmp.lt.s32.totalorder %v3316, 1
        %vm3336 = vcmp.lt.s32.totalorder %v3316, 2
        %vm3337 = vcmp.lt.s32.totalorder %v3316, 3
        %vm3338 = vcmp.lt.s32.totalorder %v3316, 4
        %v3339 = vsel %vm3335, %v3319, %v3322
        %v3340 = vsel %vm3338, %v3328, 2102212464
        %v3341 = vsel %vm3337, %v3325, %v3340
        %v3342 = vsel %vm3336, %v3339, %v3341
        %v3343 = vsel %vm3335, %v3322, %v3325
        %v3344 = vsel %vm3338, %v3331, 920167782
        %v3345 = vsel %vm3337, %v3328, %v3344
        %v3346 = vsel %vm3336, %v3343, %v3345
        %v3347 = vsel %vm3335, %v3325, %v3328
        %v3348 = vsel %vm3338, %v3334, 1326507024
        %v3349 = vsel %vm3337, %v3331, %v3348
        %v3350 = vsel %vm3336, %v3347, %v3349
        %v3351 = vshll.u32 %v3311, 8
        %v3352 = vmul.u32.u64.compose %v3351, %v3350
        %v3353 = vextract.low.u32 %v3352
        %v3354 = vextract.high.u32 %v3352
        %v3355 = vmul.u32.u64.compose %v3351, %v3346
        %v3356 = vextract.low.u32 %v3355
        %v3357 = vextract.high.u32 %v3355
        %v3358 = vmul.u32 %v3351, %v3342
        %v3359 = vadd.s32 %v3354, %v3356
        %vm3360 = vc.u32 %v3354, %v3356
        %v3361 = vadd.s32 %v3357, 1
        %v3362 = vsel %vm3360, %v3361, %v3357
        %v3363 = vadd.s32 %v3358, %v3362
        %v3364 = vadd.s32 %v3363, 536870912
        %v3365 = vshrl.u32 %v3364, 30
        %v3366 = vshll.u32 %v3365, 30
        %v3367 = vsub.s32 %v3363, %v3366
        %vm3368 = vcmp.lt.s32.totalorder %v3367, 0
        %v3369 = vsub.s32 0, %v3367
        %v3370 = vsel %vm3368, %v3369, %v3367
        %v3371 = vclz %v3370
        %v3372 = vsub.s32 %v3371, 2
        %vm3373 = vcmp.gt.s32.totalorder 0, %v3372
        %v3374 = vsel %vm3373, 0, %v3372
        %v3375 = vsub.s32 32, %v3374
        %v3376 = vshll.u32 %v3367, %v3374
        %v3377 = vshrl.u32 %v3359, %v3375
        %v3378 = vor.u32 %v3376, %v3377
        %v3379 = vsub.s32 4294967266, %v3374
        %v3380 = vadd.s32 %v3379, 127
        %v3381 = vshll.u32 %v3380, 23
        %v3382 = vor.u32 4788187, %v3381
        %v3383 = vand.u32 2147483647, %v3382
        %v3385 = vcvt.s32.f32 %v3378
        %v3386 = vmul.f32 %v3385, %v3383
        %v3387 = vxor.u32 %v3386, 2147483648
        %v3388 = vsel %vm3305, %v3387, %v3386
        %v3389 = vsub.s32 4, %v3365
        %v3390 = vsel %vm3305, %v3389, %v3365
        %v3391 = vsel %vm3304, %v2201, %v3388
        %v3392 = vsel %vm3304, 0, %v3390
        %v3393 = vcosq.f32.pop %v3391
        %v3394 = vsinq.f32.pop %v3391
        %vm3395 = vweird.f32 %v2201
        %v3396 = vadd.s32 %v3392, 3
        %v3397 = vand.u32 %v3396, 3
        %vm3398 = vcmp.lt.s32.totalorder %v3397, 2
        %vm3399 = vcmp.eq.s32.totalorder %v3397, 0
        %v3400 = vxor.u32 %v3394, 2147483648
        %v3401 = vsel %vm3399, %v3393, %v3400
        %vm3402 = vcmp.eq.s32.totalorder %v3397, 2
        %v3403 = vxor.u32 %v3393, 2147483648
        %v3404 = vsel %vm3402, %v3403, %v3394
        %v3405 = vsel %vm3398, %v3401, %v3404
        %v3406 = vsel %vm3395, nan, %v3405
        %v3407 = vand.u32 2147483647, %v2202
        %vm3408 = vcmp.le.f32.partialorder %v3407, 0.7853982
        %vm3409 = vcmp.lt.s32.totalorder %v2202, 0
        %v3410 = vand.u32 %v2202, 2139095040
        %v3411 = vshrl.u32 %v3410, 23
        %v3412 = vsub.s32 %v3411, 127
        %v3413 = vand.u32 2147483647, %v2202
        %v3414 = vand.u32 %v3413, 8388607
        %v3415 = vor.u32 %v3414, 8388608
        %v3416 = vsub.s32 0, %v3415
        %v3417 = vadd.s32 %v3412, 1
        %vm3418 = vcmp.gt.s32.totalorder %v3417, 0
        %v3419 = vsel %vm3418, %v3417, 0
        %v3420 = vshrl.u32 %v3419, 5
        %v3421 = vand.u32 %v3419, 31
        %v3422 = vsub.s32 32, %v3421
        %v3423 = vshrl.u32 683565275, %v3422
        %v3424 = vshll.u32 683565275, %v3421
        %v3425 = vshrl.u32 2475754826, %v3422
        %v3426 = vor.u32 %v3424, %v3425
        %v3427 = vshll.u32 2475754826, %v3421
        %v3428 = vshrl.u32 2131351028, %v3422
        %v3429 = vor.u32 %v3427, %v3428
        %v3430 = vshll.u32 2131351028, %v3421
        %v3431 = vshrl.u32 2102212464, %v3422
        %v3432 = vor.u32 %v3430, %v3431
        %v3433 = vshll.u32 2102212464, %v3421
        %v3434 = vshrl.u32 920167782, %v3422
        %v3435 = vor.u32 %v3433, %v3434
        %v3436 = vshll.u32 920167782, %v3421
        %v3437 = vshrl.u32 1326507024, %v3422
        %v3438 = vor.u32 %v3436, %v3437
        %vm3439 = vcmp.lt.s32.totalorder %v3420, 1
        %vm3440 = vcmp.lt.s32.totalorder %v3420, 2
        %vm3441 = vcmp.lt.s32.totalorder %v3420, 3
        %vm3442 = vcmp.lt.s32.totalorder %v3420, 4
        %v3443 = vsel %vm3439, %v3423, %v3426
        %v3444 = vsel %vm3442, %v3432, 2102212464
        %v3445 = vsel %vm3441, %v3429, %v3444
        %v3446 = vsel %vm3440, %v3443, %v3445
        %v3447 = vsel %vm3439, %v3426, %v3429
        %v3448 = vsel %vm3442, %v3435, 920167782
        %v3449 = vsel %vm3441, %v3432, %v3448
        %v3450 = vsel %vm3440, %v3447, %v3449
        %v3451 = vsel %vm3439, %v3429, %v3432
        %v3452 = vsel %vm3442, %v3438, 1326507024
        %v3453 = vsel %vm3441, %v3435, %v3452
        %v3454 = vsel %vm3440, %v3451, %v3453
        %v3455 = vshll.u32 %v3415, 8
        %v3456 = vmul.u32.u64.compose %v3455, %v3454
        %v3457 = vextract.low.u32 %v3456
        %v3458 = vextract.high.u32 %v3456
        %v3459 = vmul.u32.u64.compose %v3455, %v3450
        %v3460 = vextract.low.u32 %v3459
        %v3461 = vextract.high.u32 %v3459
        %v3462 = vmul.u32 %v3455, %v3446
        %v3463 = vadd.s32 %v3458, %v3460
        %vm3464 = vc.u32 %v3458, %v3460
        %v3465 = vadd.s32 %v3461, 1
        %v3466 = vsel %vm3464, %v3465, %v3461
        %v3467 = vadd.s32 %v3462, %v3466
        %v3468 = vadd.s32 %v3467, 536870912
        %v3469 = vshrl.u32 %v3468, 30
        %v3470 = vshll.u32 %v3469, 30
        %v3471 = vsub.s32 %v3467, %v3470
        %vm3472 = vcmp.lt.s32.totalorder %v3471, 0
        %v3473 = vsub.s32 0, %v3471
        %v3474 = vsel %vm3472, %v3473, %v3471
        %v3475 = vclz %v3474
        %v3476 = vsub.s32 %v3475, 2
        %vm3477 = vcmp.gt.s32.totalorder 0, %v3476
        %v3478 = vsel %vm3477, 0, %v3476
        %v3479 = vsub.s32 32, %v3478
        %v3480 = vshll.u32 %v3471, %v3478
        %v3481 = vshrl.u32 %v3463, %v3479
        %v3482 = vor.u32 %v3480, %v3481
        %v3483 = vsub.s32 4294967266, %v3478
        %v3484 = vadd.s32 %v3483, 127
        %v3485 = vshll.u32 %v3484, 23
        %v3486 = vor.u32 4788187, %v3485
        %v3487 = vand.u32 2147483647, %v3486
        %v3489 = vcvt.s32.f32 %v3482
        %v3490 = vmul.f32 %v3489, %v3487
        %v3491 = vxor.u32 %v3490, 2147483648
        %v3492 = vsel %vm3409, %v3491, %v3490
        %v3493 = vsub.s32 4, %v3469
        %v3494 = vsel %vm3409, %v3493, %v3469
        %v3495 = vsel %vm3408, %v2202, %v3492
        %v3496 = vsel %vm3408, 0, %v3494
        %v3497 = vcosq.f32.pop %v3495
        %v3498 = vsinq.f32.pop %v3495
        %vm3499 = vweird.f32 %v2202
        %v3500 = vadd.s32 %v3496, 3
        %v3501 = vand.u32 %v3500, 3
        %vm3502 = vcmp.lt.s32.totalorder %v3501, 2
        %vm3503 = vcmp.eq.s32.totalorder %v3501, 0
        %v3504 = vxor.u32 %v3498, 2147483648
        %v3505 = vsel %vm3503, %v3497, %v3504
        %vm3506 = vcmp.eq.s32.totalorder %v3501, 2
        %v3507 = vxor.u32 %v3497, 2147483648
        %v3508 = vsel %vm3506, %v3507, %v3498
        %v3509 = vsel %vm3502, %v3505, %v3508
        %v3510 = vsel %vm3499, nan, %v3509
        %v3511 = vand.u32 2147483647, %v2203
        %vm3512 = vcmp.le.f32.partialorder %v3511, 0.7853982
        %vm3513 = vcmp.lt.s32.totalorder %v2203, 0
        %v3514 = vand.u32 %v2203, 2139095040
        %v3515 = vshrl.u32 %v3514, 23
        %v3516 = vsub.s32 %v3515, 127
        %v3517 = vand.u32 2147483647, %v2203
        %v3518 = vand.u32 %v3517, 8388607
        %v3519 = vor.u32 %v3518, 8388608
        %v3520 = vsub.s32 0, %v3519
        %v3521 = vadd.s32 %v3516, 1
        %vm3522 = vcmp.gt.s32.totalorder %v3521, 0
        %v3523 = vsel %vm3522, %v3521, 0
        %v3524 = vshrl.u32 %v3523, 5
        %v3525 = vand.u32 %v3523, 31
        %v3526 = vsub.s32 32, %v3525
        %v3527 = vshrl.u32 683565275, %v3526
        %v3528 = vshll.u32 683565275, %v3525
        %v3529 = vshrl.u32 2475754826, %v3526
        %v3530 = vor.u32 %v3528, %v3529
        %v3531 = vshll.u32 2475754826, %v3525
        %v3532 = vshrl.u32 2131351028, %v3526
        %v3533 = vor.u32 %v3531, %v3532
        %v3534 = vshll.u32 2131351028, %v3525
        %v3535 = vshrl.u32 2102212464, %v3526
        %v3536 = vor.u32 %v3534, %v3535
        %v3537 = vshll.u32 2102212464, %v3525
        %v3538 = vshrl.u32 920167782, %v3526
        %v3539 = vor.u32 %v3537, %v3538
        %v3540 = vshll.u32 920167782, %v3525
        %v3541 = vshrl.u32 1326507024, %v3526
        %v3542 = vor.u32 %v3540, %v3541
        %vm3543 = vcmp.lt.s32.totalorder %v3524, 1
        %vm3544 = vcmp.lt.s32.totalorder %v3524, 2
        %vm3545 = vcmp.lt.s32.totalorder %v3524, 3
        %vm3546 = vcmp.lt.s32.totalorder %v3524, 4
        %v3547 = vsel %vm3543, %v3527, %v3530
        %v3548 = vsel %vm3546, %v3536, 2102212464
        %v3549 = vsel %vm3545, %v3533, %v3548
        %v3550 = vsel %vm3544, %v3547, %v3549
        %v3551 = vsel %vm3543, %v3530, %v3533
        %v3552 = vsel %vm3546, %v3539, 920167782
        %v3553 = vsel %vm3545, %v3536, %v3552
        %v3554 = vsel %vm3544, %v3551, %v3553
        %v3555 = vsel %vm3543, %v3533, %v3536
        %v3556 = vsel %vm3546, %v3542, 1326507024
        %v3557 = vsel %vm3545, %v3539, %v3556
        %v3558 = vsel %vm3544, %v3555, %v3557
        %v3559 = vshll.u32 %v3519, 8
        %v3560 = vmul.u32.u64.compose %v3559, %v3558
        %v3561 = vextract.low.u32 %v3560
        %v3562 = vextract.high.u32 %v3560
        %v3563 = vmul.u32.u64.compose %v3559, %v3554
        %v3564 = vextract.low.u32 %v3563
        %v3565 = vextract.high.u32 %v3563
        %v3566 = vmul.u32 %v3559, %v3550
        %v3567 = vadd.s32 %v3562, %v3564
        %vm3568 = vc.u32 %v3562, %v3564
        %v3569 = vadd.s32 %v3565, 1
        %v3570 = vsel %vm3568, %v3569, %v3565
        %v3571 = vadd.s32 %v3566, %v3570
        %v3572 = vadd.s32 %v3571, 536870912
        %v3573 = vshrl.u32 %v3572, 30
        %v3574 = vshll.u32 %v3573, 30
        %v3575 = vsub.s32 %v3571, %v3574
        %vm3576 = vcmp.lt.s32.totalorder %v3575, 0
        %v3577 = vsub.s32 0, %v3575
        %v3578 = vsel %vm3576, %v3577, %v3575
        %v3579 = vclz %v3578
        %v3580 = vsub.s32 %v3579, 2
        %vm3581 = vcmp.gt.s32.totalorder 0, %v3580
        %v3582 = vsel %vm3581, 0, %v3580
        %v3583 = vsub.s32 32, %v3582
        %v3584 = vshll.u32 %v3575, %v3582
        %v3585 = vshrl.u32 %v3567, %v3583
        %v3586 = vor.u32 %v3584, %v3585
        %v3587 = vsub.s32 4294967266, %v3582
        %v3588 = vadd.s32 %v3587, 127
        %v3589 = vshll.u32 %v3588, 23
        %v3590 = vor.u32 4788187, %v3589
        %v3591 = vand.u32 2147483647, %v3590
        %v3593 = vcvt.s32.f32 %v3586
        %v3594 = vmul.f32 %v3593, %v3591
        %v3595 = vxor.u32 %v3594, 2147483648
        %v3596 = vsel %vm3513, %v3595, %v3594
        %v3597 = vsub.s32 4, %v3573
        %v3598 = vsel %vm3513, %v3597, %v3573
        %v3599 = vsel %vm3512, %v2203, %v3596
        %v3600 = vsel %vm3512, 0, %v3598
        %v3601 = vcosq.f32.pop %v3599
        %v3602 = vsinq.f32.pop %v3599
        %vm3603 = vweird.f32 %v2203
        %v3604 = vadd.s32 %v3600, 3
        %v3605 = vand.u32 %v3604, 3
        %vm3606 = vcmp.lt.s32.totalorder %v3605, 2
        %vm3607 = vcmp.eq.s32.totalorder %v3605, 0
        %v3608 = vxor.u32 %v3602, 2147483648
        %v3609 = vsel %vm3607, %v3601, %v3608
        %vm3610 = vcmp.eq.s32.totalorder %v3605, 2
        %v3611 = vxor.u32 %v3601, 2147483648
        %v3612 = vsel %vm3610, %v3611, %v3602
        %v3613 = vsel %vm3606, %v3609, %v3612
        %v3614 = vsel %vm3603, nan, %v3613
        %v3615 = vand.u32 2147483647, %v2204
        %vm3616 = vcmp.le.f32.partialorder %v3615, 0.7853982
        %vm3617 = vcmp.lt.s32.totalorder %v2204, 0
        %v3618 = vand.u32 %v2204, 2139095040
        %v3619 = vshrl.u32 %v3618, 23
        %v3620 = vsub.s32 %v3619, 127
        %v3621 = vand.u32 2147483647, %v2204
        %v3622 = vand.u32 %v3621, 8388607
        %v3623 = vor.u32 %v3622, 8388608
        %v3624 = vsub.s32 0, %v3623
        %v3625 = vadd.s32 %v3620, 1
        %vm3626 = vcmp.gt.s32.totalorder %v3625, 0
        %v3627 = vsel %vm3626, %v3625, 0
        %v3628 = vshrl.u32 %v3627, 5
        %v3629 = vand.u32 %v3627, 31
        %v3630 = vsub.s32 32, %v3629
        %v3631 = vshrl.u32 683565275, %v3630
        %v3632 = vshll.u32 683565275, %v3629
        %v3633 = vshrl.u32 2475754826, %v3630
        %v3634 = vor.u32 %v3632, %v3633
        %v3635 = vshll.u32 2475754826, %v3629
        %v3636 = vshrl.u32 2131351028, %v3630
        %v3637 = vor.u32 %v3635, %v3636
        %v3638 = vshll.u32 2131351028, %v3629
        %v3639 = vshrl.u32 2102212464, %v3630
        %v3640 = vor.u32 %v3638, %v3639
        %v3641 = vshll.u32 2102212464, %v3629
        %v3642 = vshrl.u32 920167782, %v3630
        %v3643 = vor.u32 %v3641, %v3642
        %v3644 = vshll.u32 920167782, %v3629
        %v3645 = vshrl.u32 1326507024, %v3630
        %v3646 = vor.u32 %v3644, %v3645
        %vm3647 = vcmp.lt.s32.totalorder %v3628, 1
        %vm3648 = vcmp.lt.s32.totalorder %v3628, 2
        %vm3649 = vcmp.lt.s32.totalorder %v3628, 3
        %vm3650 = vcmp.lt.s32.totalorder %v3628, 4
        %v3651 = vsel %vm3647, %v3631, %v3634
        %v3652 = vsel %vm3650, %v3640, 2102212464
        %v3653 = vsel %vm3649, %v3637, %v3652
        %v3654 = vsel %vm3648, %v3651, %v3653
        %v3655 = vsel %vm3647, %v3634, %v3637
        %v3656 = vsel %vm3650, %v3643, 920167782
        %v3657 = vsel %vm3649, %v3640, %v3656
        %v3658 = vsel %vm3648, %v3655, %v3657
        %v3659 = vsel %vm3647, %v3637, %v3640
        %v3660 = vsel %vm3650, %v3646, 1326507024
        %v3661 = vsel %vm3649, %v3643, %v3660
        %v3662 = vsel %vm3648, %v3659, %v3661
        %v3663 = vshll.u32 %v3623, 8
        %v3664 = vmul.u32.u64.compose %v3663, %v3662
        %v3665 = vextract.low.u32 %v3664
        %v3666 = vextract.high.u32 %v3664
        %v3667 = vmul.u32.u64.compose %v3663, %v3658
        %v3668 = vextract.low.u32 %v3667
        %v3669 = vextract.high.u32 %v3667
        %v3670 = vmul.u32 %v3663, %v3654
        %v3671 = vadd.s32 %v3666, %v3668
        %vm3672 = vc.u32 %v3666, %v3668
        %v3673 = vadd.s32 %v3669, 1
        %v3674 = vsel %vm3672, %v3673, %v3669
        %v3675 = vadd.s32 %v3670, %v3674
        %v3676 = vadd.s32 %v3675, 536870912
        %v3677 = vshrl.u32 %v3676, 30
        %v3678 = vshll.u32 %v3677, 30
        %v3679 = vsub.s32 %v3675, %v3678
        %vm3680 = vcmp.lt.s32.totalorder %v3679, 0
        %v3681 = vsub.s32 0, %v3679
        %v3682 = vsel %vm3680, %v3681, %v3679
        %v3683 = vclz %v3682
        %v3684 = vsub.s32 %v3683, 2
        %vm3685 = vcmp.gt.s32.totalorder 0, %v3684
        %v3686 = vsel %vm3685, 0, %v3684
        %v3687 = vsub.s32 32, %v3686
        %v3688 = vshll.u32 %v3679, %v3686
        %v3689 = vshrl.u32 %v3671, %v3687
        %v3690 = vor.u32 %v3688, %v3689
        %v3691 = vsub.s32 4294967266, %v3686
        %v3692 = vadd.s32 %v3691, 127
        %v3693 = vshll.u32 %v3692, 23
        %v3694 = vor.u32 4788187, %v3693
        %v3695 = vand.u32 2147483647, %v3694
        %v3697 = vcvt.s32.f32 %v3690
        %v3698 = vmul.f32 %v3697, %v3695
        %v3699 = vxor.u32 %v3698, 2147483648
        %v3700 = vsel %vm3617, %v3699, %v3698
        %v3701 = vsub.s32 4, %v3677
        %v3702 = vsel %vm3617, %v3701, %v3677
        %v3703 = vsel %vm3616, %v2204, %v3700
        %v3704 = vsel %vm3616, 0, %v3702
        %v3705 = vcosq.f32.pop %v3703
        %v3706 = vsinq.f32.pop %v3703
        %vm3707 = vweird.f32 %v2204
        %v3708 = vadd.s32 %v3704, 3
        %v3709 = vand.u32 %v3708, 3
        %vm3710 = vcmp.lt.s32.totalorder %v3709, 2
        %vm3711 = vcmp.eq.s32.totalorder %v3709, 0
        %v3712 = vxor.u32 %v3706, 2147483648
        %v3713 = vsel %vm3711, %v3705, %v3712
        %vm3714 = vcmp.eq.s32.totalorder %v3709, 2
        %v3715 = vxor.u32 %v3705, 2147483648
        %v3716 = vsel %vm3714, %v3715, %v3706
        %v3717 = vsel %vm3710, %v3713, %v3716
        %v3718 = vsel %vm3707, nan, %v3717
        %v3719 = vand.u32 2147483647, %v2205
        %vm3720 = vcmp.le.f32.partialorder %v3719, 0.7853982
        %vm3721 = vcmp.lt.s32.totalorder %v2205, 0
        %v3722 = vand.u32 %v2205, 2139095040
        %v3723 = vshrl.u32 %v3722, 23
        %v3724 = vsub.s32 %v3723, 127
        %v3725 = vand.u32 2147483647, %v2205
        %v3726 = vand.u32 %v3725, 8388607
        %v3727 = vor.u32 %v3726, 8388608
        %v3728 = vsub.s32 0, %v3727
        %v3729 = vadd.s32 %v3724, 1
        %vm3730 = vcmp.gt.s32.totalorder %v3729, 0
        %v3731 = vsel %vm3730, %v3729, 0
        %v3732 = vshrl.u32 %v3731, 5
        %v3733 = vand.u32 %v3731, 31
        %v3734 = vsub.s32 32, %v3733
        %v3735 = vshrl.u32 683565275, %v3734
        %v3736 = vshll.u32 683565275, %v3733
        %v3737 = vshrl.u32 2475754826, %v3734
        %v3738 = vor.u32 %v3736, %v3737
        %v3739 = vshll.u32 2475754826, %v3733
        %v3740 = vshrl.u32 2131351028, %v3734
        %v3741 = vor.u32 %v3739, %v3740
        %v3742 = vshll.u32 2131351028, %v3733
        %v3743 = vshrl.u32 2102212464, %v3734
        %v3744 = vor.u32 %v3742, %v3743
        %v3745 = vshll.u32 2102212464, %v3733
        %v3746 = vshrl.u32 920167782, %v3734
        %v3747 = vor.u32 %v3745, %v3746
        %v3748 = vshll.u32 920167782, %v3733
        %v3749 = vshrl.u32 1326507024, %v3734
        %v3750 = vor.u32 %v3748, %v3749
        %vm3751 = vcmp.lt.s32.totalorder %v3732, 1
        %vm3752 = vcmp.lt.s32.totalorder %v3732, 2
        %vm3753 = vcmp.lt.s32.totalorder %v3732, 3
        %vm3754 = vcmp.lt.s32.totalorder %v3732, 4
        %v3755 = vsel %vm3751, %v3735, %v3738
        %v3756 = vsel %vm3754, %v3744, 2102212464
        %v3757 = vsel %vm3753, %v3741, %v3756
        %v3758 = vsel %vm3752, %v3755, %v3757
        %v3759 = vsel %vm3751, %v3738, %v3741
        %v3760 = vsel %vm3754, %v3747, 920167782
        %v3761 = vsel %vm3753, %v3744, %v3760
        %v3762 = vsel %vm3752, %v3759, %v3761
        %v3763 = vsel %vm3751, %v3741, %v3744
        %v3764 = vsel %vm3754, %v3750, 1326507024
        %v3765 = vsel %vm3753, %v3747, %v3764
        %v3766 = vsel %vm3752, %v3763, %v3765
        %v3767 = vshll.u32 %v3727, 8
        %v3768 = vmul.u32.u64.compose %v3767, %v3766
        %v3769 = vextract.low.u32 %v3768
        %v3770 = vextract.high.u32 %v3768
        %v3771 = vmul.u32.u64.compose %v3767, %v3762
        %v3772 = vextract.low.u32 %v3771
        %v3773 = vextract.high.u32 %v3771
        %v3774 = vmul.u32 %v3767, %v3758
        %v3775 = vadd.s32 %v3770, %v3772
        %vm3776 = vc.u32 %v3770, %v3772
        %v3777 = vadd.s32 %v3773, 1
        %v3778 = vsel %vm3776, %v3777, %v3773
        %v3779 = vadd.s32 %v3774, %v3778
        %v3780 = vadd.s32 %v3779, 536870912
        %v3781 = vshrl.u32 %v3780, 30
        %v3782 = vshll.u32 %v3781, 30
        %v3783 = vsub.s32 %v3779, %v3782
        %vm3784 = vcmp.lt.s32.totalorder %v3783, 0
        %v3785 = vsub.s32 0, %v3783
        %v3786 = vsel %vm3784, %v3785, %v3783
        %v3787 = vclz %v3786
        %v3788 = vsub.s32 %v3787, 2
        %vm3789 = vcmp.gt.s32.totalorder 0, %v3788
        %v3790 = vsel %vm3789, 0, %v3788
        %v3791 = vsub.s32 32, %v3790
        %v3792 = vshll.u32 %v3783, %v3790
        %v3793 = vshrl.u32 %v3775, %v3791
        %v3794 = vor.u32 %v3792, %v3793
        %v3795 = vsub.s32 4294967266, %v3790
        %v3796 = vadd.s32 %v3795, 127
        %v3797 = vshll.u32 %v3796, 23
        %v3798 = vor.u32 4788187, %v3797
        %v3799 = vand.u32 2147483647, %v3798
        %v3801 = vcvt.s32.f32 %v3794
        %v3802 = vmul.f32 %v3801, %v3799
        %v3803 = vxor.u32 %v3802, 2147483648
        %v3804 = vsel %vm3721, %v3803, %v3802
        %v3805 = vsub.s32 4, %v3781
        %v3806 = vsel %vm3721, %v3805, %v3781
        %v3807 = vsel %vm3720, %v2205, %v3804
        %v3808 = vsel %vm3720, 0, %v3806
        %v3809 = vcosq.f32.pop %v3807
        %v3810 = vsinq.f32.pop %v3807
        %vm3811 = vweird.f32 %v2205
        %v3812 = vadd.s32 %v3808, 3
        %v3813 = vand.u32 %v3812, 3
        %vm3814 = vcmp.lt.s32.totalorder %v3813, 2
        %vm3815 = vcmp.eq.s32.totalorder %v3813, 0
        %v3816 = vxor.u32 %v3810, 2147483648
        %v3817 = vsel %vm3815, %v3809, %v3816
        %vm3818 = vcmp.eq.s32.totalorder %v3813, 2
        %v3819 = vxor.u32 %v3809, 2147483648
        %v3820 = vsel %vm3818, %v3819, %v3810
        %v3821 = vsel %vm3814, %v3817, %v3820
        %v3822 = vsel %vm3811, nan, %v3821
        %v3823 = vand.u32 2147483647, %v2206
        %vm3824 = vcmp.le.f32.partialorder %v3823, 0.7853982
        %vm3825 = vcmp.lt.s32.totalorder %v2206, 0
        %v3826 = vand.u32 %v2206, 2139095040
        %v3827 = vshrl.u32 %v3826, 23
        %v3828 = vsub.s32 %v3827, 127
        %v3829 = vand.u32 2147483647, %v2206
        %v3830 = vand.u32 %v3829, 8388607
        %v3831 = vor.u32 %v3830, 8388608
        %v3832 = vsub.s32 0, %v3831
        %v3833 = vadd.s32 %v3828, 1
        %vm3834 = vcmp.gt.s32.totalorder %v3833, 0
        %v3835 = vsel %vm3834, %v3833, 0
        %v3836 = vshrl.u32 %v3835, 5
        %v3837 = vand.u32 %v3835, 31
        %v3838 = vsub.s32 32, %v3837
        %v3839 = vshrl.u32 683565275, %v3838
        %v3840 = vshll.u32 683565275, %v3837
        %v3841 = vshrl.u32 2475754826, %v3838
        %v3842 = vor.u32 %v3840, %v3841
        %v3843 = vshll.u32 2475754826, %v3837
        %v3844 = vshrl.u32 2131351028, %v3838
        %v3845 = vor.u32 %v3843, %v3844
        %v3846 = vshll.u32 2131351028, %v3837
        %v3847 = vshrl.u32 2102212464, %v3838
        %v3848 = vor.u32 %v3846, %v3847
        %v3849 = vshll.u32 2102212464, %v3837
        %v3850 = vshrl.u32 920167782, %v3838
        %v3851 = vor.u32 %v3849, %v3850
        %v3852 = vshll.u32 920167782, %v3837
        %v3853 = vshrl.u32 1326507024, %v3838
        %v3854 = vor.u32 %v3852, %v3853
        %vm3855 = vcmp.lt.s32.totalorder %v3836, 1
        %vm3856 = vcmp.lt.s32.totalorder %v3836, 2
        %vm3857 = vcmp.lt.s32.totalorder %v3836, 3
        %vm3858 = vcmp.lt.s32.totalorder %v3836, 4
        %v3859 = vsel %vm3855, %v3839, %v3842
        %v3860 = vsel %vm3858, %v3848, 2102212464
        %v3861 = vsel %vm3857, %v3845, %v3860
        %v3862 = vsel %vm3856, %v3859, %v3861
        %v3863 = vsel %vm3855, %v3842, %v3845
        %v3864 = vsel %vm3858, %v3851, 920167782
        %v3865 = vsel %vm3857, %v3848, %v3864
        %v3866 = vsel %vm3856, %v3863, %v3865
        %v3867 = vsel %vm3855, %v3845, %v3848
        %v3868 = vsel %vm3858, %v3854, 1326507024
        %v3869 = vsel %vm3857, %v3851, %v3868
        %v3870 = vsel %vm3856, %v3867, %v3869
        %v3871 = vshll.u32 %v3831, 8
        %v3872 = vmul.u32.u64.compose %v3871, %v3870
        %v3873 = vextract.low.u32 %v3872
        %v3874 = vextract.high.u32 %v3872
        %v3875 = vmul.u32.u64.compose %v3871, %v3866
        %v3876 = vextract.low.u32 %v3875
        %v3877 = vextract.high.u32 %v3875
        %v3878 = vmul.u32 %v3871, %v3862
        %v3879 = vadd.s32 %v3874, %v3876
        %vm3880 = vc.u32 %v3874, %v3876
        %v3881 = vadd.s32 %v3877, 1
        %v3882 = vsel %vm3880, %v3881, %v3877
        %v3883 = vadd.s32 %v3878, %v3882
        %v3884 = vadd.s32 %v3883, 536870912
        %v3885 = vshrl.u32 %v3884, 30
        %v3886 = vshll.u32 %v3885, 30
        %v3887 = vsub.s32 %v3883, %v3886
        %vm3888 = vcmp.lt.s32.totalorder %v3887, 0
        %v3889 = vsub.s32 0, %v3887
        %v3890 = vsel %vm3888, %v3889, %v3887
        %v3891 = vclz %v3890
        %v3892 = vsub.s32 %v3891, 2
        %vm3893 = vcmp.gt.s32.totalorder 0, %v3892
        %v3894 = vsel %vm3893, 0, %v3892
        %v3895 = vsub.s32 32, %v3894
        %v3896 = vshll.u32 %v3887, %v3894
        %v3897 = vshrl.u32 %v3879, %v3895
        %v3898 = vor.u32 %v3896, %v3897
        %v3899 = vsub.s32 4294967266, %v3894
        %v3900 = vadd.s32 %v3899, 127
        %v3901 = vshll.u32 %v3900, 23
        %v3902 = vor.u32 4788187, %v3901
        %v3903 = vand.u32 2147483647, %v3902
        %v3905 = vcvt.s32.f32 %v3898
        %v3906 = vmul.f32 %v3905, %v3903
        %v3907 = vxor.u32 %v3906, 2147483648
        %v3908 = vsel %vm3825, %v3907, %v3906
        %v3909 = vsub.s32 4, %v3885
        %v3910 = vsel %vm3825, %v3909, %v3885
        %v3911 = vsel %vm3824, %v2206, %v3908
        %v3912 = vsel %vm3824, 0, %v3910
        %v3913 = vcosq.f32.pop %v3911
        %v3914 = vsinq.f32.pop %v3911
        %vm3915 = vweird.f32 %v2206
        %v3916 = vadd.s32 %v3912, 3
        %v3917 = vand.u32 %v3916, 3
        %vm3918 = vcmp.lt.s32.totalorder %v3917, 2
        %vm3919 = vcmp.eq.s32.totalorder %v3917, 0
        %v3920 = vxor.u32 %v3914, 2147483648
        %v3921 = vsel %vm3919, %v3913, %v3920
        %vm3922 = vcmp.eq.s32.totalorder %v3917, 2
        %v3923 = vxor.u32 %v3913, 2147483648
        %v3924 = vsel %vm3922, %v3923, %v3914
        %v3925 = vsel %vm3918, %v3921, %v3924
        %v3926 = vsel %vm3915, nan, %v3925
        %v3927 = vand.u32 2147483647, %v2207
        %vm3928 = vcmp.le.f32.partialorder %v3927, 0.7853982
        %vm3929 = vcmp.lt.s32.totalorder %v2207, 0
        %v3930 = vand.u32 %v2207, 2139095040
        %v3931 = vshrl.u32 %v3930, 23
        %v3932 = vsub.s32 %v3931, 127
        %v3933 = vand.u32 2147483647, %v2207
        %v3934 = vand.u32 %v3933, 8388607
        %v3935 = vor.u32 %v3934, 8388608
        %v3936 = vsub.s32 0, %v3935
        %v3937 = vadd.s32 %v3932, 1
        %vm3938 = vcmp.gt.s32.totalorder %v3937, 0
        %v3939 = vsel %vm3938, %v3937, 0
        %v3940 = vshrl.u32 %v3939, 5
        %v3941 = vand.u32 %v3939, 31
        %v3942 = vsub.s32 32, %v3941
        %v3943 = vshrl.u32 683565275, %v3942
        %v3944 = vshll.u32 683565275, %v3941
        %v3945 = vshrl.u32 2475754826, %v3942
        %v3946 = vor.u32 %v3944, %v3945
        %v3947 = vshll.u32 2475754826, %v3941
        %v3948 = vshrl.u32 2131351028, %v3942
        %v3949 = vor.u32 %v3947, %v3948
        %v3950 = vshll.u32 2131351028, %v3941
        %v3951 = vshrl.u32 2102212464, %v3942
        %v3952 = vor.u32 %v3950, %v3951
        %v3953 = vshll.u32 2102212464, %v3941
        %v3954 = vshrl.u32 920167782, %v3942
        %v3955 = vor.u32 %v3953, %v3954
        %v3956 = vshll.u32 920167782, %v3941
        %v3957 = vshrl.u32 1326507024, %v3942
        %v3958 = vor.u32 %v3956, %v3957
        %vm3959 = vcmp.lt.s32.totalorder %v3940, 1
        %vm3960 = vcmp.lt.s32.totalorder %v3940, 2
        %vm3961 = vcmp.lt.s32.totalorder %v3940, 3
        %vm3962 = vcmp.lt.s32.totalorder %v3940, 4
        %v3963 = vsel %vm3959, %v3943, %v3946
        %v3964 = vsel %vm3962, %v3952, 2102212464
        %v3965 = vsel %vm3961, %v3949, %v3964
        %v3966 = vsel %vm3960, %v3963, %v3965
        %v3967 = vsel %vm3959, %v3946, %v3949
        %v3968 = vsel %vm3962, %v3955, 920167782
        %v3969 = vsel %vm3961, %v3952, %v3968
        %v3970 = vsel %vm3960, %v3967, %v3969
        %v3971 = vsel %vm3959, %v3949, %v3952
        %v3972 = vsel %vm3962, %v3958, 1326507024
        %v3973 = vsel %vm3961, %v3955, %v3972
        %v3974 = vsel %vm3960, %v3971, %v3973
        %v3975 = vshll.u32 %v3935, 8
        %v3976 = vmul.u32.u64.compose %v3975, %v3974
        %v3977 = vextract.low.u32 %v3976
        %v3978 = vextract.high.u32 %v3976
        %v3979 = vmul.u32.u64.compose %v3975, %v3970
        %v3980 = vextract.low.u32 %v3979
        %v3981 = vextract.high.u32 %v3979
        %v3982 = vmul.u32 %v3975, %v3966
        %v3983 = vadd.s32 %v3978, %v3980
        %vm3984 = vc.u32 %v3978, %v3980
        %v3985 = vadd.s32 %v3981, 1
        %v3986 = vsel %vm3984, %v3985, %v3981
        %v3987 = vadd.s32 %v3982, %v3986
        %v3988 = vadd.s32 %v3987, 536870912
        %v3989 = vshrl.u32 %v3988, 30
        %v3990 = vshll.u32 %v3989, 30
        %v3991 = vsub.s32 %v3987, %v3990
        %vm3992 = vcmp.lt.s32.totalorder %v3991, 0
        %v3993 = vsub.s32 0, %v3991
        %v3994 = vsel %vm3992, %v3993, %v3991
        %v3995 = vclz %v3994
        %v3996 = vsub.s32 %v3995, 2
        %vm3997 = vcmp.gt.s32.totalorder 0, %v3996
        %v3998 = vsel %vm3997, 0, %v3996
        %v3999 = vsub.s32 32, %v3998
        %v4000 = vshll.u32 %v3991, %v3998
        %v4001 = vshrl.u32 %v3983, %v3999
        %v4002 = vor.u32 %v4000, %v4001
        %v4003 = vsub.s32 4294967266, %v3998
        %v4004 = vadd.s32 %v4003, 127
        %v4005 = vshll.u32 %v4004, 23
        %v4006 = vor.u32 4788187, %v4005
        %v4007 = vand.u32 2147483647, %v4006
        %v4009 = vcvt.s32.f32 %v4002
        %v4010 = vmul.f32 %v4009, %v4007
        %v4011 = vxor.u32 %v4010, 2147483648
        %v4012 = vsel %vm3929, %v4011, %v4010
        %v4013 = vsub.s32 4, %v3989
        %v4014 = vsel %vm3929, %v4013, %v3989
        %v4015 = vsel %vm3928, %v2207, %v4012
        %v4016 = vsel %vm3928, 0, %v4014
        %v4017 = vcosq.f32.pop %v4015
        %v4018 = vsinq.f32.pop %v4015
        %vm4019 = vweird.f32 %v2207
        %v4020 = vadd.s32 %v4016, 3
        %v4021 = vand.u32 %v4020, 3
        %vm4022 = vcmp.lt.s32.totalorder %v4021, 2
        %vm4023 = vcmp.eq.s32.totalorder %v4021, 0
        %v4024 = vxor.u32 %v4018, 2147483648
        %v4025 = vsel %vm4023, %v4017, %v4024
        %vm4026 = vcmp.eq.s32.totalorder %v4021, 2
        %v4027 = vxor.u32 %v4017, 2147483648
        %v4028 = vsel %vm4026, %v4027, %v4018
        %v4029 = vsel %vm4022, %v4025, %v4028
        %v4030 = vsel %vm4019, nan, %v4029
        %v4031 = vand.u32 2147483647, %v2208
        %vm4032 = vcmp.le.f32.partialorder %v4031, 0.7853982
        %vm4033 = vcmp.lt.s32.totalorder %v2208, 0
        %v4034 = vand.u32 %v2208, 2139095040
        %v4035 = vshrl.u32 %v4034, 23
        %v4036 = vsub.s32 %v4035, 127
        %v4037 = vand.u32 2147483647, %v2208
        %v4038 = vand.u32 %v4037, 8388607
        %v4039 = vor.u32 %v4038, 8388608
        %v4040 = vsub.s32 0, %v4039
        %v4041 = vadd.s32 %v4036, 1
        %vm4042 = vcmp.gt.s32.totalorder %v4041, 0
        %v4043 = vsel %vm4042, %v4041, 0
        %v4044 = vshrl.u32 %v4043, 5
        %v4045 = vand.u32 %v4043, 31
        %v4046 = vsub.s32 32, %v4045
        %v4047 = vshrl.u32 683565275, %v4046
        %v4048 = vshll.u32 683565275, %v4045
        %v4049 = vshrl.u32 2475754826, %v4046
        %v4050 = vor.u32 %v4048, %v4049
        %v4051 = vshll.u32 2475754826, %v4045
        %v4052 = vshrl.u32 2131351028, %v4046
        %v4053 = vor.u32 %v4051, %v4052
        %v4054 = vshll.u32 2131351028, %v4045
        %v4055 = vshrl.u32 2102212464, %v4046
        %v4056 = vor.u32 %v4054, %v4055
        %v4057 = vshll.u32 2102212464, %v4045
        %v4058 = vshrl.u32 920167782, %v4046
        %v4059 = vor.u32 %v4057, %v4058
        %v4060 = vshll.u32 920167782, %v4045
        %v4061 = vshrl.u32 1326507024, %v4046
        %v4062 = vor.u32 %v4060, %v4061
        %vm4063 = vcmp.lt.s32.totalorder %v4044, 1
        %vm4064 = vcmp.lt.s32.totalorder %v4044, 2
        %vm4065 = vcmp.lt.s32.totalorder %v4044, 3
        %vm4066 = vcmp.lt.s32.totalorder %v4044, 4
        %v4067 = vsel %vm4063, %v4047, %v4050
        %v4068 = vsel %vm4066, %v4056, 2102212464
        %v4069 = vsel %vm4065, %v4053, %v4068
        %v4070 = vsel %vm4064, %v4067, %v4069
        %v4071 = vsel %vm4063, %v4050, %v4053
        %v4072 = vsel %vm4066, %v4059, 920167782
        %v4073 = vsel %vm4065, %v4056, %v4072
        %v4074 = vsel %vm4064, %v4071, %v4073
        %v4075 = vsel %vm4063, %v4053, %v4056
        %v4076 = vsel %vm4066, %v4062, 1326507024
        %v4077 = vsel %vm4065, %v4059, %v4076
        %v4078 = vsel %vm4064, %v4075, %v4077
        %v4079 = vshll.u32 %v4039, 8
        %v4080 = vmul.u32.u64.compose %v4079, %v4078
        %v4081 = vextract.low.u32 %v4080
        %v4082 = vextract.high.u32 %v4080
        %v4083 = vmul.u32.u64.compose %v4079, %v4074
        %v4084 = vextract.low.u32 %v4083
        %v4085 = vextract.high.u32 %v4083
        %v4086 = vmul.u32 %v4079, %v4070
        %v4087 = vadd.s32 %v4082, %v4084
        %vm4088 = vc.u32 %v4082, %v4084
        %v4089 = vadd.s32 %v4085, 1
        %v4090 = vsel %vm4088, %v4089, %v4085
        %v4091 = vadd.s32 %v4086, %v4090
        %v4092 = vadd.s32 %v4091, 536870912
        %v4093 = vshrl.u32 %v4092, 30
        %v4094 = vshll.u32 %v4093, 30
        %v4095 = vsub.s32 %v4091, %v4094
        %vm4096 = vcmp.lt.s32.totalorder %v4095, 0
        %v4097 = vsub.s32 0, %v4095
        %v4098 = vsel %vm4096, %v4097, %v4095
        %v4099 = vclz %v4098
        %v4100 = vsub.s32 %v4099, 2
        %vm4101 = vcmp.gt.s32.totalorder 0, %v4100
        %v4102 = vsel %vm4101, 0, %v4100
        %v4103 = vsub.s32 32, %v4102
        %v4104 = vshll.u32 %v4095, %v4102
        %v4105 = vshrl.u32 %v4087, %v4103
        %v4106 = vor.u32 %v4104, %v4105
        %v4107 = vsub.s32 4294967266, %v4102
        %v4108 = vadd.s32 %v4107, 127
        %v4109 = vshll.u32 %v4108, 23
        %v4110 = vor.u32 4788187, %v4109
        %v4111 = vand.u32 2147483647, %v4110
        %v4113 = vcvt.s32.f32 %v4106
        %v4114 = vmul.f32 %v4113, %v4111
        %v4115 = vxor.u32 %v4114, 2147483648
        %v4116 = vsel %vm4033, %v4115, %v4114
        %v4117 = vsub.s32 4, %v4093
        %v4118 = vsel %vm4033, %v4117, %v4093
        %v4119 = vsel %vm4032, %v2208, %v4116
        %v4120 = vsel %vm4032, 0, %v4118
        %v4121 = vcosq.f32.pop %v4119
        %v4122 = vsinq.f32.pop %v4119
        %vm4123 = vweird.f32 %v2208
        %v4124 = vadd.s32 %v4120, 3
        %v4125 = vand.u32 %v4124, 3
        %vm4126 = vcmp.lt.s32.totalorder %v4125, 2
        %vm4127 = vcmp.eq.s32.totalorder %v4125, 0
        %v4128 = vxor.u32 %v4122, 2147483648
        %v4129 = vsel %vm4127, %v4121, %v4128
        %vm4130 = vcmp.eq.s32.totalorder %v4125, 2
        %v4131 = vxor.u32 %v4121, 2147483648
        %v4132 = vsel %vm4130, %v4131, %v4122
        %v4133 = vsel %vm4126, %v4129, %v4132
        %v4134 = vsel %vm4123, nan, %v4133
        %v4135 = vand.u32 2147483647, %v2209
        %vm4136 = vcmp.le.f32.partialorder %v4135, 0.7853982
        %vm4137 = vcmp.lt.s32.totalorder %v2209, 0
        %v4138 = vand.u32 %v2209, 2139095040
        %v4139 = vshrl.u32 %v4138, 23
        %v4140 = vsub.s32 %v4139, 127
        %v4141 = vand.u32 2147483647, %v2209
        %v4142 = vand.u32 %v4141, 8388607
        %v4143 = vor.u32 %v4142, 8388608
        %v4144 = vsub.s32 0, %v4143
        %v4145 = vadd.s32 %v4140, 1
        %vm4146 = vcmp.gt.s32.totalorder %v4145, 0
        %v4147 = vsel %vm4146, %v4145, 0
        %v4148 = vshrl.u32 %v4147, 5
        %v4149 = vand.u32 %v4147, 31
        %v4150 = vsub.s32 32, %v4149
        %v4151 = vshrl.u32 683565275, %v4150
        %v4152 = vshll.u32 683565275, %v4149
        %v4153 = vshrl.u32 2475754826, %v4150
        %v4154 = vor.u32 %v4152, %v4153
        %v4155 = vshll.u32 2475754826, %v4149
        %v4156 = vshrl.u32 2131351028, %v4150
        %v4157 = vor.u32 %v4155, %v4156
        %v4158 = vshll.u32 2131351028, %v4149
        %v4159 = vshrl.u32 2102212464, %v4150
        %v4160 = vor.u32 %v4158, %v4159
        %v4161 = vshll.u32 2102212464, %v4149
        %v4162 = vshrl.u32 920167782, %v4150
        %v4163 = vor.u32 %v4161, %v4162
        %v4164 = vshll.u32 920167782, %v4149
        %v4165 = vshrl.u32 1326507024, %v4150
        %v4166 = vor.u32 %v4164, %v4165
        %vm4167 = vcmp.lt.s32.totalorder %v4148, 1
        %vm4168 = vcmp.lt.s32.totalorder %v4148, 2
        %vm4169 = vcmp.lt.s32.totalorder %v4148, 3
        %vm4170 = vcmp.lt.s32.totalorder %v4148, 4
        %v4171 = vsel %vm4167, %v4151, %v4154
        %v4172 = vsel %vm4170, %v4160, 2102212464
        %v4173 = vsel %vm4169, %v4157, %v4172
        %v4174 = vsel %vm4168, %v4171, %v4173
        %v4175 = vsel %vm4167, %v4154, %v4157
        %v4176 = vsel %vm4170, %v4163, 920167782
        %v4177 = vsel %vm4169, %v4160, %v4176
        %v4178 = vsel %vm4168, %v4175, %v4177
        %v4179 = vsel %vm4167, %v4157, %v4160
        %v4180 = vsel %vm4170, %v4166, 1326507024
        %v4181 = vsel %vm4169, %v4163, %v4180
        %v4182 = vsel %vm4168, %v4179, %v4181
        %v4183 = vshll.u32 %v4143, 8
        %v4184 = vmul.u32.u64.compose %v4183, %v4182
        %v4185 = vextract.low.u32 %v4184
        %v4186 = vextract.high.u32 %v4184
        %v4187 = vmul.u32.u64.compose %v4183, %v4178
        %v4188 = vextract.low.u32 %v4187
        %v4189 = vextract.high.u32 %v4187
        %v4190 = vmul.u32 %v4183, %v4174
        %v4191 = vadd.s32 %v4186, %v4188
        %vm4192 = vc.u32 %v4186, %v4188
        %v4193 = vadd.s32 %v4189, 1
        %v4194 = vsel %vm4192, %v4193, %v4189
        %v4195 = vadd.s32 %v4190, %v4194
        %v4196 = vadd.s32 %v4195, 536870912
        %v4197 = vshrl.u32 %v4196, 30
        %v4198 = vshll.u32 %v4197, 30
        %v4199 = vsub.s32 %v4195, %v4198
        %vm4200 = vcmp.lt.s32.totalorder %v4199, 0
        %v4201 = vsub.s32 0, %v4199
        %v4202 = vsel %vm4200, %v4201, %v4199
        %v4203 = vclz %v4202
        %v4204 = vsub.s32 %v4203, 2
        %vm4205 = vcmp.gt.s32.totalorder 0, %v4204
        %v4206 = vsel %vm4205, 0, %v4204
        %v4207 = vsub.s32 32, %v4206
        %v4208 = vshll.u32 %v4199, %v4206
        %v4209 = vshrl.u32 %v4191, %v4207
        %v4210 = vor.u32 %v4208, %v4209
        %v4211 = vsub.s32 4294967266, %v4206
        %v4212 = vadd.s32 %v4211, 127
        %v4213 = vshll.u32 %v4212, 23
        %v4214 = vor.u32 4788187, %v4213
        %v4215 = vand.u32 2147483647, %v4214
        %v4217 = vcvt.s32.f32 %v4210
        %v4218 = vmul.f32 %v4217, %v4215
        %v4219 = vxor.u32 %v4218, 2147483648
        %v4220 = vsel %vm4137, %v4219, %v4218
        %v4221 = vsub.s32 4, %v4197
        %v4222 = vsel %vm4137, %v4221, %v4197
        %v4223 = vsel %vm4136, %v2209, %v4220
        %v4224 = vsel %vm4136, 0, %v4222
        %v4225 = vcosq.f32.pop %v4223
        %v4226 = vsinq.f32.pop %v4223
        %vm4227 = vweird.f32 %v2209
        %v4228 = vadd.s32 %v4224, 3
        %v4229 = vand.u32 %v4228, 3
        %vm4230 = vcmp.lt.s32.totalorder %v4229, 2
        %vm4231 = vcmp.eq.s32.totalorder %v4229, 0
        %v4232 = vxor.u32 %v4226, 2147483648
        %v4233 = vsel %vm4231, %v4225, %v4232
        %vm4234 = vcmp.eq.s32.totalorder %v4229, 2
        %v4235 = vxor.u32 %v4225, 2147483648
        %v4236 = vsel %vm4234, %v4235, %v4226
        %v4237 = vsel %vm4230, %v4233, %v4236
        %v4238 = vsel %vm4227, nan, %v4237
        %v4239 = vand.u32 2147483647, %v2210
        %vm4240 = vcmp.le.f32.partialorder %v4239, 0.7853982
        %vm4241 = vcmp.lt.s32.totalorder %v2210, 0
        %v4242 = vand.u32 %v2210, 2139095040
        %v4243 = vshrl.u32 %v4242, 23
        %v4244 = vsub.s32 %v4243, 127
        %v4245 = vand.u32 2147483647, %v2210
        %v4246 = vand.u32 %v4245, 8388607
        %v4247 = vor.u32 %v4246, 8388608
        %v4248 = vsub.s32 0, %v4247
        %v4249 = vadd.s32 %v4244, 1
        %vm4250 = vcmp.gt.s32.totalorder %v4249, 0
        %v4251 = vsel %vm4250, %v4249, 0
        %v4252 = vshrl.u32 %v4251, 5
        %v4253 = vand.u32 %v4251, 31
        %v4254 = vsub.s32 32, %v4253
        %v4255 = vshrl.u32 683565275, %v4254
        %v4256 = vshll.u32 683565275, %v4253
        %v4257 = vshrl.u32 2475754826, %v4254
        %v4258 = vor.u32 %v4256, %v4257
        %v4259 = vshll.u32 2475754826, %v4253
        %v4260 = vshrl.u32 2131351028, %v4254
        %v4261 = vor.u32 %v4259, %v4260
        %v4262 = vshll.u32 2131351028, %v4253
        %v4263 = vshrl.u32 2102212464, %v4254
        %v4264 = vor.u32 %v4262, %v4263
        %v4265 = vshll.u32 2102212464, %v4253
        %v4266 = vshrl.u32 920167782, %v4254
        %v4267 = vor.u32 %v4265, %v4266
        %v4268 = vshll.u32 920167782, %v4253
        %v4269 = vshrl.u32 1326507024, %v4254
        %v4270 = vor.u32 %v4268, %v4269
        %vm4271 = vcmp.lt.s32.totalorder %v4252, 1
        %vm4272 = vcmp.lt.s32.totalorder %v4252, 2
        %vm4273 = vcmp.lt.s32.totalorder %v4252, 3
        %vm4274 = vcmp.lt.s32.totalorder %v4252, 4
        %v4275 = vsel %vm4271, %v4255, %v4258
        %v4276 = vsel %vm4274, %v4264, 2102212464
        %v4277 = vsel %vm4273, %v4261, %v4276
        %v4278 = vsel %vm4272, %v4275, %v4277
        %v4279 = vsel %vm4271, %v4258, %v4261
        %v4280 = vsel %vm4274, %v4267, 920167782
        %v4281 = vsel %vm4273, %v4264, %v4280
        %v4282 = vsel %vm4272, %v4279, %v4281
        %v4283 = vsel %vm4271, %v4261, %v4264
        %v4284 = vsel %vm4274, %v4270, 1326507024
        %v4285 = vsel %vm4273, %v4267, %v4284
        %v4286 = vsel %vm4272, %v4283, %v4285
        %v4287 = vshll.u32 %v4247, 8
        %v4288 = vmul.u32.u64.compose %v4287, %v4286
        %v4289 = vextract.low.u32 %v4288
        %v4290 = vextract.high.u32 %v4288
        %v4291 = vmul.u32.u64.compose %v4287, %v4282
        %v4292 = vextract.low.u32 %v4291
        %v4293 = vextract.high.u32 %v4291
        %v4294 = vmul.u32 %v4287, %v4278
        %v4295 = vadd.s32 %v4290, %v4292
        %vm4296 = vc.u32 %v4290, %v4292
        %v4297 = vadd.s32 %v4293, 1
        %v4298 = vsel %vm4296, %v4297, %v4293
        %v4299 = vadd.s32 %v4294, %v4298
        %v4300 = vadd.s32 %v4299, 536870912
        %v4301 = vshrl.u32 %v4300, 30
        %v4302 = vshll.u32 %v4301, 30
        %v4303 = vsub.s32 %v4299, %v4302
        %vm4304 = vcmp.lt.s32.totalorder %v4303, 0
        %v4305 = vsub.s32 0, %v4303
        %v4306 = vsel %vm4304, %v4305, %v4303
        %v4307 = vclz %v4306
        %v4308 = vsub.s32 %v4307, 2
        %vm4309 = vcmp.gt.s32.totalorder 0, %v4308
        %v4310 = vsel %vm4309, 0, %v4308
        %v4311 = vsub.s32 32, %v4310
        %v4312 = vshll.u32 %v4303, %v4310
        %v4313 = vshrl.u32 %v4295, %v4311
        %v4314 = vor.u32 %v4312, %v4313
        %v4315 = vsub.s32 4294967266, %v4310
        %v4316 = vadd.s32 %v4315, 127
        %v4317 = vshll.u32 %v4316, 23
        %v4318 = vor.u32 4788187, %v4317
        %v4319 = vand.u32 2147483647, %v4318
        %v4321 = vcvt.s32.f32 %v4314
        %v4322 = vmul.f32 %v4321, %v4319
        %v4323 = vxor.u32 %v4322, 2147483648
        %v4324 = vsel %vm4241, %v4323, %v4322
        %v4325 = vsub.s32 4, %v4301
        %v4326 = vsel %vm4241, %v4325, %v4301
        %v4327 = vsel %vm4240, %v2210, %v4324
        %v4328 = vsel %vm4240, 0, %v4326
        %v4329 = vcosq.f32.pop %v4327
        %v4330 = vsinq.f32.pop %v4327
        %vm4331 = vweird.f32 %v2210
        %v4332 = vadd.s32 %v4328, 3
        %v4333 = vand.u32 %v4332, 3
        %vm4334 = vcmp.lt.s32.totalorder %v4333, 2
        %vm4335 = vcmp.eq.s32.totalorder %v4333, 0
        %v4336 = vxor.u32 %v4330, 2147483648
        %v4337 = vsel %vm4335, %v4329, %v4336
        %vm4338 = vcmp.eq.s32.totalorder %v4333, 2
        %v4339 = vxor.u32 %v4329, 2147483648
        %v4340 = vsel %vm4338, %v4339, %v4330
        %v4341 = vsel %vm4334, %v4337, %v4340
        %v4342 = vsel %vm4331, nan, %v4341
        %v4343 = vand.u32 2147483647, %v2211
        %vm4344 = vcmp.le.f32.partialorder %v4343, 0.7853982
        %vm4345 = vcmp.lt.s32.totalorder %v2211, 0
        %v4346 = vand.u32 %v2211, 2139095040
        %v4347 = vshrl.u32 %v4346, 23
        %v4348 = vsub.s32 %v4347, 127
        %v4349 = vand.u32 2147483647, %v2211
        %v4350 = vand.u32 %v4349, 8388607
        %v4351 = vor.u32 %v4350, 8388608
        %v4352 = vsub.s32 0, %v4351
        %v4353 = vadd.s32 %v4348, 1
        %vm4354 = vcmp.gt.s32.totalorder %v4353, 0
        %v4355 = vsel %vm4354, %v4353, 0
        %v4356 = vshrl.u32 %v4355, 5
        %v4357 = vand.u32 %v4355, 31
        %v4358 = vsub.s32 32, %v4357
        %v4359 = vshrl.u32 683565275, %v4358
        %v4360 = vshll.u32 683565275, %v4357
        %v4361 = vshrl.u32 2475754826, %v4358
        %v4362 = vor.u32 %v4360, %v4361
        %v4363 = vshll.u32 2475754826, %v4357
        %v4364 = vshrl.u32 2131351028, %v4358
        %v4365 = vor.u32 %v4363, %v4364
        %v4366 = vshll.u32 2131351028, %v4357
        %v4367 = vshrl.u32 2102212464, %v4358
        %v4368 = vor.u32 %v4366, %v4367
        %v4369 = vshll.u32 2102212464, %v4357
        %v4370 = vshrl.u32 920167782, %v4358
        %v4371 = vor.u32 %v4369, %v4370
        %v4372 = vshll.u32 920167782, %v4357
        %v4373 = vshrl.u32 1326507024, %v4358
        %v4374 = vor.u32 %v4372, %v4373
        %vm4375 = vcmp.lt.s32.totalorder %v4356, 1
        %vm4376 = vcmp.lt.s32.totalorder %v4356, 2
        %vm4377 = vcmp.lt.s32.totalorder %v4356, 3
        %vm4378 = vcmp.lt.s32.totalorder %v4356, 4
        %v4379 = vsel %vm4375, %v4359, %v4362
        %v4380 = vsel %vm4378, %v4368, 2102212464
        %v4381 = vsel %vm4377, %v4365, %v4380
        %v4382 = vsel %vm4376, %v4379, %v4381
        %v4383 = vsel %vm4375, %v4362, %v4365
        %v4384 = vsel %vm4378, %v4371, 920167782
        %v4385 = vsel %vm4377, %v4368, %v4384
        %v4386 = vsel %vm4376, %v4383, %v4385
        %v4387 = vsel %vm4375, %v4365, %v4368
        %v4388 = vsel %vm4378, %v4374, 1326507024
        %v4389 = vsel %vm4377, %v4371, %v4388
        %v4390 = vsel %vm4376, %v4387, %v4389
        %v4391 = vshll.u32 %v4351, 8
        %v4392 = vmul.u32.u64.compose %v4391, %v4390
        %v4393 = vextract.low.u32 %v4392
        %v4394 = vextract.high.u32 %v4392
        %v4395 = vmul.u32.u64.compose %v4391, %v4386
        %v4396 = vextract.low.u32 %v4395
        %v4397 = vextract.high.u32 %v4395
        %v4398 = vmul.u32 %v4391, %v4382
        %v4399 = vadd.s32 %v4394, %v4396
        %vm4400 = vc.u32 %v4394, %v4396
        %v4401 = vadd.s32 %v4397, 1
        %v4402 = vsel %vm4400, %v4401, %v4397
        %v4403 = vadd.s32 %v4398, %v4402
        %v4404 = vadd.s32 %v4403, 536870912
        %v4405 = vshrl.u32 %v4404, 30
        %v4406 = vshll.u32 %v4405, 30
        %v4407 = vsub.s32 %v4403, %v4406
        %vm4408 = vcmp.lt.s32.totalorder %v4407, 0
        %v4409 = vsub.s32 0, %v4407
        %v4410 = vsel %vm4408, %v4409, %v4407
        %v4411 = vclz %v4410
        %v4412 = vsub.s32 %v4411, 2
        %vm4413 = vcmp.gt.s32.totalorder 0, %v4412
        %v4414 = vsel %vm4413, 0, %v4412
        %v4415 = vsub.s32 32, %v4414
        %v4416 = vshll.u32 %v4407, %v4414
        %v4417 = vshrl.u32 %v4399, %v4415
        %v4418 = vor.u32 %v4416, %v4417
        %v4419 = vsub.s32 4294967266, %v4414
        %v4420 = vadd.s32 %v4419, 127
        %v4421 = vshll.u32 %v4420, 23
        %v4422 = vor.u32 4788187, %v4421
        %v4423 = vand.u32 2147483647, %v4422
        %v4425 = vcvt.s32.f32 %v4418
        %v4426 = vmul.f32 %v4425, %v4423
        %v4427 = vxor.u32 %v4426, 2147483648
        %v4428 = vsel %vm4345, %v4427, %v4426
        %v4429 = vsub.s32 4, %v4405
        %v4430 = vsel %vm4345, %v4429, %v4405
        %v4431 = vsel %vm4344, %v2211, %v4428
        %v4432 = vsel %vm4344, 0, %v4430
        %v4433 = vcosq.f32.pop %v4431
        %v4434 = vsinq.f32.pop %v4431
        %vm4435 = vweird.f32 %v2211
        %v4436 = vadd.s32 %v4432, 3
        %v4437 = vand.u32 %v4436, 3
        %vm4438 = vcmp.lt.s32.totalorder %v4437, 2
        %vm4439 = vcmp.eq.s32.totalorder %v4437, 0
        %v4440 = vxor.u32 %v4434, 2147483648
        %v4441 = vsel %vm4439, %v4433, %v4440
        %vm4442 = vcmp.eq.s32.totalorder %v4437, 2
        %v4443 = vxor.u32 %v4433, 2147483648
        %v4444 = vsel %vm4442, %v4443, %v4434
        %v4445 = vsel %vm4438, %v4441, %v4444
        %v4446 = vsel %vm4435, nan, %v4445
        %v4447 = vand.u32 2147483647, %v2212
        %vm4448 = vcmp.le.f32.partialorder %v4447, 0.7853982
        %vm4449 = vcmp.lt.s32.totalorder %v2212, 0
        %v4450 = vand.u32 %v2212, 2139095040
        %v4451 = vshrl.u32 %v4450, 23
        %v4452 = vsub.s32 %v4451, 127
        %v4453 = vand.u32 2147483647, %v2212
        %v4454 = vand.u32 %v4453, 8388607
        %v4455 = vor.u32 %v4454, 8388608
        %v4456 = vsub.s32 0, %v4455
        %v4457 = vadd.s32 %v4452, 1
        %vm4458 = vcmp.gt.s32.totalorder %v4457, 0
        %v4459 = vsel %vm4458, %v4457, 0
        %v4460 = vshrl.u32 %v4459, 5
        %v4461 = vand.u32 %v4459, 31
        %v4462 = vsub.s32 32, %v4461
        %v4463 = vshrl.u32 683565275, %v4462
        %v4464 = vshll.u32 683565275, %v4461
        %v4465 = vshrl.u32 2475754826, %v4462
        %v4466 = vor.u32 %v4464, %v4465
        %v4467 = vshll.u32 2475754826, %v4461
        %v4468 = vshrl.u32 2131351028, %v4462
        %v4469 = vor.u32 %v4467, %v4468
        %v4470 = vshll.u32 2131351028, %v4461
        %v4471 = vshrl.u32 2102212464, %v4462
        %v4472 = vor.u32 %v4470, %v4471
        %v4473 = vshll.u32 2102212464, %v4461
        %v4474 = vshrl.u32 920167782, %v4462
        %v4475 = vor.u32 %v4473, %v4474
        %v4476 = vshll.u32 920167782, %v4461
        %v4477 = vshrl.u32 1326507024, %v4462
        %v4478 = vor.u32 %v4476, %v4477
        %vm4479 = vcmp.lt.s32.totalorder %v4460, 1
        %vm4480 = vcmp.lt.s32.totalorder %v4460, 2
        %vm4481 = vcmp.lt.s32.totalorder %v4460, 3
        %vm4482 = vcmp.lt.s32.totalorder %v4460, 4
        %v4483 = vsel %vm4479, %v4463, %v4466
        %v4484 = vsel %vm4482, %v4472, 2102212464
        %v4485 = vsel %vm4481, %v4469, %v4484
        %v4486 = vsel %vm4480, %v4483, %v4485
        %v4487 = vsel %vm4479, %v4466, %v4469
        %v4488 = vsel %vm4482, %v4475, 920167782
        %v4489 = vsel %vm4481, %v4472, %v4488
        %v4490 = vsel %vm4480, %v4487, %v4489
        %v4491 = vsel %vm4479, %v4469, %v4472
        %v4492 = vsel %vm4482, %v4478, 1326507024
        %v4493 = vsel %vm4481, %v4475, %v4492
        %v4494 = vsel %vm4480, %v4491, %v4493
        %v4495 = vshll.u32 %v4455, 8
        %v4496 = vmul.u32.u64.compose %v4495, %v4494
        %v4497 = vextract.low.u32 %v4496
        %v4498 = vextract.high.u32 %v4496
        %v4499 = vmul.u32.u64.compose %v4495, %v4490
        %v4500 = vextract.low.u32 %v4499
        %v4501 = vextract.high.u32 %v4499
        %v4502 = vmul.u32 %v4495, %v4486
        %v4503 = vadd.s32 %v4498, %v4500
        %vm4504 = vc.u32 %v4498, %v4500
        %v4505 = vadd.s32 %v4501, 1
        %v4506 = vsel %vm4504, %v4505, %v4501
        %v4507 = vadd.s32 %v4502, %v4506
        %v4508 = vadd.s32 %v4507, 536870912
        %v4509 = vshrl.u32 %v4508, 30
        %v4510 = vshll.u32 %v4509, 30
        %v4511 = vsub.s32 %v4507, %v4510
        %vm4512 = vcmp.lt.s32.totalorder %v4511, 0
        %v4513 = vsub.s32 0, %v4511
        %v4514 = vsel %vm4512, %v4513, %v4511
        %v4515 = vclz %v4514
        %v4516 = vsub.s32 %v4515, 2
        %vm4517 = vcmp.gt.s32.totalorder 0, %v4516
        %v4518 = vsel %vm4517, 0, %v4516
        %v4519 = vsub.s32 32, %v4518
        %v4520 = vshll.u32 %v4511, %v4518
        %v4521 = vshrl.u32 %v4503, %v4519
        %v4522 = vor.u32 %v4520, %v4521
        %v4523 = vsub.s32 4294967266, %v4518
        %v4524 = vadd.s32 %v4523, 127
        %v4525 = vshll.u32 %v4524, 23
        %v4526 = vor.u32 4788187, %v4525
        %v4527 = vand.u32 2147483647, %v4526
        %v4529 = vcvt.s32.f32 %v4522
        %v4530 = vmul.f32 %v4529, %v4527
        %v4531 = vxor.u32 %v4530, 2147483648
        %v4532 = vsel %vm4449, %v4531, %v4530
        %v4533 = vsub.s32 4, %v4509
        %v4534 = vsel %vm4449, %v4533, %v4509
        %v4535 = vsel %vm4448, %v2212, %v4532
        %v4536 = vsel %vm4448, 0, %v4534
        %v4537 = vcosq.f32.pop %v4535
        %v4538 = vsinq.f32.pop %v4535
        %vm4539 = vweird.f32 %v2212
        %v4540 = vadd.s32 %v4536, 3
        %v4541 = vand.u32 %v4540, 3
        %vm4542 = vcmp.lt.s32.totalorder %v4541, 2
        %vm4543 = vcmp.eq.s32.totalorder %v4541, 0
        %v4544 = vxor.u32 %v4538, 2147483648
        %v4545 = vsel %vm4543, %v4537, %v4544
        %vm4546 = vcmp.eq.s32.totalorder %v4541, 2
        %v4547 = vxor.u32 %v4537, 2147483648
        %v4548 = vsel %vm4546, %v4547, %v4538
        %v4549 = vsel %vm4542, %v4545, %v4548
        %v4550 = vsel %vm4539, nan, %v4549
        %v4551 = vand.u32 2147483647, %v2213
        %vm4552 = vcmp.le.f32.partialorder %v4551, 0.7853982
        %vm4553 = vcmp.lt.s32.totalorder %v2213, 0
        %v4554 = vand.u32 %v2213, 2139095040
        %v4555 = vshrl.u32 %v4554, 23
        %v4556 = vsub.s32 %v4555, 127
        %v4557 = vand.u32 2147483647, %v2213
        %v4558 = vand.u32 %v4557, 8388607
        %v4559 = vor.u32 %v4558, 8388608
        %v4560 = vsub.s32 0, %v4559
        %v4561 = vadd.s32 %v4556, 1
        %vm4562 = vcmp.gt.s32.totalorder %v4561, 0
        %v4563 = vsel %vm4562, %v4561, 0
        %v4564 = vshrl.u32 %v4563, 5
        %v4565 = vand.u32 %v4563, 31
        %v4566 = vsub.s32 32, %v4565
        %v4567 = vshrl.u32 683565275, %v4566
        %v4568 = vshll.u32 683565275, %v4565
        %v4569 = vshrl.u32 2475754826, %v4566
        %v4570 = vor.u32 %v4568, %v4569
        %v4571 = vshll.u32 2475754826, %v4565
        %v4572 = vshrl.u32 2131351028, %v4566
        %v4573 = vor.u32 %v4571, %v4572
        %v4574 = vshll.u32 2131351028, %v4565
        %v4575 = vshrl.u32 2102212464, %v4566
        %v4576 = vor.u32 %v4574, %v4575
        %v4577 = vshll.u32 2102212464, %v4565
        %v4578 = vshrl.u32 920167782, %v4566
        %v4579 = vor.u32 %v4577, %v4578
        %v4580 = vshll.u32 920167782, %v4565
        %v4581 = vshrl.u32 1326507024, %v4566
        %v4582 = vor.u32 %v4580, %v4581
        %vm4583 = vcmp.lt.s32.totalorder %v4564, 1
        %vm4584 = vcmp.lt.s32.totalorder %v4564, 2
        %vm4585 = vcmp.lt.s32.totalorder %v4564, 3
        %vm4586 = vcmp.lt.s32.totalorder %v4564, 4
        %v4587 = vsel %vm4583, %v4567, %v4570
        %v4588 = vsel %vm4586, %v4576, 2102212464
        %v4589 = vsel %vm4585, %v4573, %v4588
        %v4590 = vsel %vm4584, %v4587, %v4589
        %v4591 = vsel %vm4583, %v4570, %v4573
        %v4592 = vsel %vm4586, %v4579, 920167782
        %v4593 = vsel %vm4585, %v4576, %v4592
        %v4594 = vsel %vm4584, %v4591, %v4593
        %v4595 = vsel %vm4583, %v4573, %v4576
        %v4596 = vsel %vm4586, %v4582, 1326507024
        %v4597 = vsel %vm4585, %v4579, %v4596
        %v4598 = vsel %vm4584, %v4595, %v4597
        %v4599 = vshll.u32 %v4559, 8
        %v4600 = vmul.u32.u64.compose %v4599, %v4598
        %v4601 = vextract.low.u32 %v4600
        %v4602 = vextract.high.u32 %v4600
        %v4603 = vmul.u32.u64.compose %v4599, %v4594
        %v4604 = vextract.low.u32 %v4603
        %v4605 = vextract.high.u32 %v4603
        %v4606 = vmul.u32 %v4599, %v4590
        %v4607 = vadd.s32 %v4602, %v4604
        %vm4608 = vc.u32 %v4602, %v4604
        %v4609 = vadd.s32 %v4605, 1
        %v4610 = vsel %vm4608, %v4609, %v4605
        %v4611 = vadd.s32 %v4606, %v4610
        %v4612 = vadd.s32 %v4611, 536870912
        %v4613 = vshrl.u32 %v4612, 30
        %v4614 = vshll.u32 %v4613, 30
        %v4615 = vsub.s32 %v4611, %v4614
        %vm4616 = vcmp.lt.s32.totalorder %v4615, 0
        %v4617 = vsub.s32 0, %v4615
        %v4618 = vsel %vm4616, %v4617, %v4615
        %v4619 = vclz %v4618
        %v4620 = vsub.s32 %v4619, 2
        %vm4621 = vcmp.gt.s32.totalorder 0, %v4620
        %v4622 = vsel %vm4621, 0, %v4620
        %v4623 = vsub.s32 32, %v4622
        %v4624 = vshll.u32 %v4615, %v4622
        %v4625 = vshrl.u32 %v4607, %v4623
        %v4626 = vor.u32 %v4624, %v4625
        %v4627 = vsub.s32 4294967266, %v4622
        %v4628 = vadd.s32 %v4627, 127
        %v4629 = vshll.u32 %v4628, 23
        %v4630 = vor.u32 4788187, %v4629
        %v4631 = vand.u32 2147483647, %v4630
        %v4633 = vcvt.s32.f32 %v4626
        %v4634 = vmul.f32 %v4633, %v4631
        %v4635 = vxor.u32 %v4634, 2147483648
        %v4636 = vsel %vm4553, %v4635, %v4634
        %v4637 = vsub.s32 4, %v4613
        %v4638 = vsel %vm4553, %v4637, %v4613
        %v4639 = vsel %vm4552, %v2213, %v4636
        %v4640 = vsel %vm4552, 0, %v4638
        %v4641 = vcosq.f32.pop %v4639
        %v4642 = vsinq.f32.pop %v4639
        %vm4643 = vweird.f32 %v2213
        %v4644 = vadd.s32 %v4640, 3
        %v4645 = vand.u32 %v4644, 3
        %vm4646 = vcmp.lt.s32.totalorder %v4645, 2
        %vm4647 = vcmp.eq.s32.totalorder %v4645, 0
        %v4648 = vxor.u32 %v4642, 2147483648
        %v4649 = vsel %vm4647, %v4641, %v4648
        %vm4650 = vcmp.eq.s32.totalorder %v4645, 2
        %v4651 = vxor.u32 %v4641, 2147483648
        %v4652 = vsel %vm4650, %v4651, %v4642
        %v4653 = vsel %vm4646, %v4649, %v4652
        %v4654 = vsel %vm4643, nan, %v4653
        %v4655 = vand.u32 2147483647, %v2214
        %vm4656 = vcmp.le.f32.partialorder %v4655, 0.7853982
        %vm4657 = vcmp.lt.s32.totalorder %v2214, 0
        %v4658 = vand.u32 %v2214, 2139095040
        %v4659 = vshrl.u32 %v4658, 23
        %v4660 = vsub.s32 %v4659, 127
        %v4661 = vand.u32 2147483647, %v2214
        %v4662 = vand.u32 %v4661, 8388607
        %v4663 = vor.u32 %v4662, 8388608
        %v4664 = vsub.s32 0, %v4663
        %v4665 = vadd.s32 %v4660, 1
        %vm4666 = vcmp.gt.s32.totalorder %v4665, 0
        %v4667 = vsel %vm4666, %v4665, 0
        %v4668 = vshrl.u32 %v4667, 5
        %v4669 = vand.u32 %v4667, 31
        %v4670 = vsub.s32 32, %v4669
        %v4671 = vshrl.u32 683565275, %v4670
        %v4672 = vshll.u32 683565275, %v4669
        %v4673 = vshrl.u32 2475754826, %v4670
        %v4674 = vor.u32 %v4672, %v4673
        %v4675 = vshll.u32 2475754826, %v4669
        %v4676 = vshrl.u32 2131351028, %v4670
        %v4677 = vor.u32 %v4675, %v4676
        %v4678 = vshll.u32 2131351028, %v4669
        %v4679 = vshrl.u32 2102212464, %v4670
        %v4680 = vor.u32 %v4678, %v4679
        %v4681 = vshll.u32 2102212464, %v4669
        %v4682 = vshrl.u32 920167782, %v4670
        %v4683 = vor.u32 %v4681, %v4682
        %v4684 = vshll.u32 920167782, %v4669
        %v4685 = vshrl.u32 1326507024, %v4670
        %v4686 = vor.u32 %v4684, %v4685
        %vm4687 = vcmp.lt.s32.totalorder %v4668, 1
        %vm4688 = vcmp.lt.s32.totalorder %v4668, 2
        %vm4689 = vcmp.lt.s32.totalorder %v4668, 3
        %vm4690 = vcmp.lt.s32.totalorder %v4668, 4
        %v4691 = vsel %vm4687, %v4671, %v4674
        %v4692 = vsel %vm4690, %v4680, 2102212464
        %v4693 = vsel %vm4689, %v4677, %v4692
        %v4694 = vsel %vm4688, %v4691, %v4693
        %v4695 = vsel %vm4687, %v4674, %v4677
        %v4696 = vsel %vm4690, %v4683, 920167782
        %v4697 = vsel %vm4689, %v4680, %v4696
        %v4698 = vsel %vm4688, %v4695, %v4697
        %v4699 = vsel %vm4687, %v4677, %v4680
        %v4700 = vsel %vm4690, %v4686, 1326507024
        %v4701 = vsel %vm4689, %v4683, %v4700
        %v4702 = vsel %vm4688, %v4699, %v4701
        %v4703 = vshll.u32 %v4663, 8
        %v4704 = vmul.u32.u64.compose %v4703, %v4702
        %v4705 = vextract.low.u32 %v4704
        %v4706 = vextract.high.u32 %v4704
        %v4707 = vmul.u32.u64.compose %v4703, %v4698
        %v4708 = vextract.low.u32 %v4707
        %v4709 = vextract.high.u32 %v4707
        %v4710 = vmul.u32 %v4703, %v4694
        %v4711 = vadd.s32 %v4706, %v4708
        %vm4712 = vc.u32 %v4706, %v4708
        %v4713 = vadd.s32 %v4709, 1
        %v4714 = vsel %vm4712, %v4713, %v4709
        %v4715 = vadd.s32 %v4710, %v4714
        %v4716 = vadd.s32 %v4715, 536870912
        %v4717 = vshrl.u32 %v4716, 30
        %v4718 = vshll.u32 %v4717, 30
        %v4719 = vsub.s32 %v4715, %v4718
        %vm4720 = vcmp.lt.s32.totalorder %v4719, 0
        %v4721 = vsub.s32 0, %v4719
        %v4722 = vsel %vm4720, %v4721, %v4719
        %v4723 = vclz %v4722
        %v4724 = vsub.s32 %v4723, 2
        %vm4725 = vcmp.gt.s32.totalorder 0, %v4724
        %v4726 = vsel %vm4725, 0, %v4724
        %v4727 = vsub.s32 32, %v4726
        %v4728 = vshll.u32 %v4719, %v4726
        %v4729 = vshrl.u32 %v4711, %v4727
        %v4730 = vor.u32 %v4728, %v4729
        %v4731 = vsub.s32 4294967266, %v4726
        %v4732 = vadd.s32 %v4731, 127
        %v4733 = vshll.u32 %v4732, 23
        %v4734 = vor.u32 4788187, %v4733
        %v4735 = vand.u32 2147483647, %v4734
        %v4737 = vcvt.s32.f32 %v4730
        %v4738 = vmul.f32 %v4737, %v4735
        %v4739 = vxor.u32 %v4738, 2147483648
        %v4740 = vsel %vm4657, %v4739, %v4738
        %v4741 = vsub.s32 4, %v4717
        %v4742 = vsel %vm4657, %v4741, %v4717
        %v4743 = vsel %vm4656, %v2214, %v4740
        %v4744 = vsel %vm4656, 0, %v4742
        %v4745 = vcosq.f32.pop %v4743
        %v4746 = vsinq.f32.pop %v4743
        %vm4747 = vweird.f32 %v2214
        %v4748 = vadd.s32 %v4744, 3
        %v4749 = vand.u32 %v4748, 3
        %vm4750 = vcmp.lt.s32.totalorder %v4749, 2
        %vm4751 = vcmp.eq.s32.totalorder %v4749, 0
        %v4752 = vxor.u32 %v4746, 2147483648
        %v4753 = vsel %vm4751, %v4745, %v4752
        %vm4754 = vcmp.eq.s32.totalorder %v4749, 2
        %v4755 = vxor.u32 %v4745, 2147483648
        %v4756 = vsel %vm4754, %v4755, %v4746
        %v4757 = vsel %vm4750, %v4753, %v4756
        %v4758 = vsel %vm4747, nan, %v4757
        %v4759 = vand.u32 2147483647, %v2191
        %vm4760 = vcmp.le.f32.partialorder %v4759, 0.7853982
        %vm4761 = vcmp.lt.s32.totalorder %v2191, 0
        %v4762 = vand.u32 %v2191, 2139095040
        %v4763 = vshrl.u32 %v4762, 23
        %v4764 = vsub.s32 %v4763, 127
        %v4765 = vand.u32 2147483647, %v2191
        %v4766 = vand.u32 %v4765, 8388607
        %v4767 = vor.u32 %v4766, 8388608
        %v4768 = vsub.s32 0, %v4767
        %v4769 = vadd.s32 %v4764, 1
        %vm4770 = vcmp.gt.s32.totalorder %v4769, 0
        %v4771 = vsel %vm4770, %v4769, 0
        %v4772 = vshrl.u32 %v4771, 5
        %v4773 = vand.u32 %v4771, 31
        %v4774 = vsub.s32 32, %v4773
        %v4775 = vshrl.u32 683565275, %v4774
        %v4776 = vshll.u32 683565275, %v4773
        %v4777 = vshrl.u32 2475754826, %v4774
        %v4778 = vor.u32 %v4776, %v4777
        %v4779 = vshll.u32 2475754826, %v4773
        %v4780 = vshrl.u32 2131351028, %v4774
        %v4781 = vor.u32 %v4779, %v4780
        %v4782 = vshll.u32 2131351028, %v4773
        %v4783 = vshrl.u32 2102212464, %v4774
        %v4784 = vor.u32 %v4782, %v4783
        %v4785 = vshll.u32 2102212464, %v4773
        %v4786 = vshrl.u32 920167782, %v4774
        %v4787 = vor.u32 %v4785, %v4786
        %v4788 = vshll.u32 920167782, %v4773
        %v4789 = vshrl.u32 1326507024, %v4774
        %v4790 = vor.u32 %v4788, %v4789
        %vm4791 = vcmp.lt.s32.totalorder %v4772, 1
        %vm4792 = vcmp.lt.s32.totalorder %v4772, 2
        %vm4793 = vcmp.lt.s32.totalorder %v4772, 3
        %vm4794 = vcmp.lt.s32.totalorder %v4772, 4
        %v4795 = vsel %vm4791, %v4775, %v4778
        %v4796 = vsel %vm4794, %v4784, 2102212464
        %v4797 = vsel %vm4793, %v4781, %v4796
        %v4798 = vsel %vm4792, %v4795, %v4797
        %v4799 = vsel %vm4791, %v4778, %v4781
        %v4800 = vsel %vm4794, %v4787, 920167782
        %v4801 = vsel %vm4793, %v4784, %v4800
        %v4802 = vsel %vm4792, %v4799, %v4801
        %v4803 = vsel %vm4791, %v4781, %v4784
        %v4804 = vsel %vm4794, %v4790, 1326507024
        %v4805 = vsel %vm4793, %v4787, %v4804
        %v4806 = vsel %vm4792, %v4803, %v4805
        %v4807 = vshll.u32 %v4767, 8
        %v4808 = vmul.u32.u64.compose %v4807, %v4806
        %v4809 = vextract.low.u32 %v4808
        %v4810 = vextract.high.u32 %v4808
        %v4811 = vmul.u32.u64.compose %v4807, %v4802
        %v4812 = vextract.low.u32 %v4811
        %v4813 = vextract.high.u32 %v4811
        %v4814 = vmul.u32 %v4807, %v4798
        %v4815 = vadd.s32 %v4810, %v4812
        %vm4816 = vc.u32 %v4810, %v4812
        %v4817 = vadd.s32 %v4813, 1
        %v4818 = vsel %vm4816, %v4817, %v4813
        %v4819 = vadd.s32 %v4814, %v4818
        %v4820 = vadd.s32 %v4819, 536870912
        %v4821 = vshrl.u32 %v4820, 30
        %v4822 = vshll.u32 %v4821, 30
        %v4823 = vsub.s32 %v4819, %v4822
        %vm4824 = vcmp.lt.s32.totalorder %v4823, 0
        %v4825 = vsub.s32 0, %v4823
        %v4826 = vsel %vm4824, %v4825, %v4823
        %v4827 = vclz %v4826
        %v4828 = vsub.s32 %v4827, 2
        %vm4829 = vcmp.gt.s32.totalorder 0, %v4828
        %v4830 = vsel %vm4829, 0, %v4828
        %v4831 = vsub.s32 32, %v4830
        %v4832 = vshll.u32 %v4823, %v4830
        %v4833 = vshrl.u32 %v4815, %v4831
        %v4834 = vor.u32 %v4832, %v4833
        %v4835 = vsub.s32 4294967266, %v4830
        %v4836 = vadd.s32 %v4835, 127
        %v4837 = vshll.u32 %v4836, 23
        %v4838 = vor.u32 4788187, %v4837
        %v4839 = vand.u32 2147483647, %v4838
        %v4841 = vcvt.s32.f32 %v4834
        %v4842 = vmul.f32 %v4841, %v4839
        %v4843 = vxor.u32 %v4842, 2147483648
        %v4844 = vsel %vm4761, %v4843, %v4842
        %v4845 = vsub.s32 4, %v4821
        %v4846 = vsel %vm4761, %v4845, %v4821
        %v4847 = vsel %vm4760, %v2191, %v4844
        %v4848 = vsel %vm4760, 0, %v4846
        %v4849 = vcosq.f32.pop %v4847
        %v4850 = vsinq.f32.pop %v4847
        %vm4851 = vweird.f32 %v2191
        %v4852 = vand.u32 %v4848, 3
        %vm4853 = vcmp.lt.s32.totalorder %v4852, 2
        %vm4854 = vcmp.eq.s32.totalorder %v4852, 0
        %v4855 = vxor.u32 %v4850, 2147483648
        %v4856 = vsel %vm4854, %v4849, %v4855
        %vm4857 = vcmp.eq.s32.totalorder %v4852, 2
        %v4858 = vxor.u32 %v4849, 2147483648
        %v4859 = vsel %vm4857, %v4858, %v4850
        %v4860 = vsel %vm4853, %v4856, %v4859
        %v4861 = vsel %vm4851, nan, %v4860
        %v4862 = vand.u32 2147483647, %v2192
        %vm4863 = vcmp.le.f32.partialorder %v4862, 0.7853982
        %vm4864 = vcmp.lt.s32.totalorder %v2192, 0
        %v4865 = vand.u32 %v2192, 2139095040
        %v4866 = vshrl.u32 %v4865, 23
        %v4867 = vsub.s32 %v4866, 127
        %v4868 = vand.u32 2147483647, %v2192
        %v4869 = vand.u32 %v4868, 8388607
        %v4870 = vor.u32 %v4869, 8388608
        %v4871 = vsub.s32 0, %v4870
        %v4872 = vadd.s32 %v4867, 1
        %vm4873 = vcmp.gt.s32.totalorder %v4872, 0
        %v4874 = vsel %vm4873, %v4872, 0
        %v4875 = vshrl.u32 %v4874, 5
        %v4876 = vand.u32 %v4874, 31
        %v4877 = vsub.s32 32, %v4876
        %v4878 = vshrl.u32 683565275, %v4877
        %v4879 = vshll.u32 683565275, %v4876
        %v4880 = vshrl.u32 2475754826, %v4877
        %v4881 = vor.u32 %v4879, %v4880
        %v4882 = vshll.u32 2475754826, %v4876
        %v4883 = vshrl.u32 2131351028, %v4877
        %v4884 = vor.u32 %v4882, %v4883
        %v4885 = vshll.u32 2131351028, %v4876
        %v4886 = vshrl.u32 2102212464, %v4877
        %v4887 = vor.u32 %v4885, %v4886
        %v4888 = vshll.u32 2102212464, %v4876
        %v4889 = vshrl.u32 920167782, %v4877
        %v4890 = vor.u32 %v4888, %v4889
        %v4891 = vshll.u32 920167782, %v4876
        %v4892 = vshrl.u32 1326507024, %v4877
        %v4893 = vor.u32 %v4891, %v4892
        %vm4894 = vcmp.lt.s32.totalorder %v4875, 1
        %vm4895 = vcmp.lt.s32.totalorder %v4875, 2
        %vm4896 = vcmp.lt.s32.totalorder %v4875, 3
        %vm4897 = vcmp.lt.s32.totalorder %v4875, 4
        %v4898 = vsel %vm4894, %v4878, %v4881
        %v4899 = vsel %vm4897, %v4887, 2102212464
        %v4900 = vsel %vm4896, %v4884, %v4899
        %v4901 = vsel %vm4895, %v4898, %v4900
        %v4902 = vsel %vm4894, %v4881, %v4884
        %v4903 = vsel %vm4897, %v4890, 920167782
        %v4904 = vsel %vm4896, %v4887, %v4903
        %v4905 = vsel %vm4895, %v4902, %v4904
        %v4906 = vsel %vm4894, %v4884, %v4887
        %v4907 = vsel %vm4897, %v4893, 1326507024
        %v4908 = vsel %vm4896, %v4890, %v4907
        %v4909 = vsel %vm4895, %v4906, %v4908
        %v4910 = vshll.u32 %v4870, 8
        %v4911 = vmul.u32.u64.compose %v4910, %v4909
        %v4912 = vextract.low.u32 %v4911
        %v4913 = vextract.high.u32 %v4911
        %v4914 = vmul.u32.u64.compose %v4910, %v4905
        %v4915 = vextract.low.u32 %v4914
        %v4916 = vextract.high.u32 %v4914
        %v4917 = vmul.u32 %v4910, %v4901
        %v4918 = vadd.s32 %v4913, %v4915
        %vm4919 = vc.u32 %v4913, %v4915
        %v4920 = vadd.s32 %v4916, 1
        %v4921 = vsel %vm4919, %v4920, %v4916
        %v4922 = vadd.s32 %v4917, %v4921
        %v4923 = vadd.s32 %v4922, 536870912
        %v4924 = vshrl.u32 %v4923, 30
        %v4925 = vshll.u32 %v4924, 30
        %v4926 = vsub.s32 %v4922, %v4925
        %vm4927 = vcmp.lt.s32.totalorder %v4926, 0
        %v4928 = vsub.s32 0, %v4926
        %v4929 = vsel %vm4927, %v4928, %v4926
        %v4930 = vclz %v4929
        %v4931 = vsub.s32 %v4930, 2
        %vm4932 = vcmp.gt.s32.totalorder 0, %v4931
        %v4933 = vsel %vm4932, 0, %v4931
        %v4934 = vsub.s32 32, %v4933
        %v4935 = vshll.u32 %v4926, %v4933
        %v4936 = vshrl.u32 %v4918, %v4934
        %v4937 = vor.u32 %v4935, %v4936
        %v4938 = vsub.s32 4294967266, %v4933
        %v4939 = vadd.s32 %v4938, 127
        %v4940 = vshll.u32 %v4939, 23
        %v4941 = vor.u32 4788187, %v4940
        %v4942 = vand.u32 2147483647, %v4941
        %v4944 = vcvt.s32.f32 %v4937
        %v4945 = vmul.f32 %v4944, %v4942
        %v4946 = vxor.u32 %v4945, 2147483648
        %v4947 = vsel %vm4864, %v4946, %v4945
        %v4948 = vsub.s32 4, %v4924
        %v4949 = vsel %vm4864, %v4948, %v4924
        %v4950 = vsel %vm4863, %v2192, %v4947
        %v4951 = vsel %vm4863, 0, %v4949
        %v4952 = vcosq.f32.pop %v4950
        %v4953 = vsinq.f32.pop %v4950
        %vm4954 = vweird.f32 %v2192
        %v4955 = vand.u32 %v4951, 3
        %vm4956 = vcmp.lt.s32.totalorder %v4955, 2
        %vm4957 = vcmp.eq.s32.totalorder %v4955, 0
        %v4958 = vxor.u32 %v4953, 2147483648
        %v4959 = vsel %vm4957, %v4952, %v4958
        %vm4960 = vcmp.eq.s32.totalorder %v4955, 2
        %v4961 = vxor.u32 %v4952, 2147483648
        %v4962 = vsel %vm4960, %v4961, %v4953
        %v4963 = vsel %vm4956, %v4959, %v4962
        %v4964 = vsel %vm4954, nan, %v4963
        %v4965 = vand.u32 2147483647, %v2193
        %vm4966 = vcmp.le.f32.partialorder %v4965, 0.7853982
        %vm4967 = vcmp.lt.s32.totalorder %v2193, 0
        %v4968 = vand.u32 %v2193, 2139095040
        %v4969 = vshrl.u32 %v4968, 23
        %v4970 = vsub.s32 %v4969, 127
        %v4971 = vand.u32 2147483647, %v2193
        %v4972 = vand.u32 %v4971, 8388607
        %v4973 = vor.u32 %v4972, 8388608
        %v4974 = vsub.s32 0, %v4973
        %v4975 = vadd.s32 %v4970, 1
        %vm4976 = vcmp.gt.s32.totalorder %v4975, 0
        %v4977 = vsel %vm4976, %v4975, 0
        %v4978 = vshrl.u32 %v4977, 5
        %v4979 = vand.u32 %v4977, 31
        %v4980 = vsub.s32 32, %v4979
        %v4981 = vshrl.u32 683565275, %v4980
        %v4982 = vshll.u32 683565275, %v4979
        %v4983 = vshrl.u32 2475754826, %v4980
        %v4984 = vor.u32 %v4982, %v4983
        %v4985 = vshll.u32 2475754826, %v4979
        %v4986 = vshrl.u32 2131351028, %v4980
        %v4987 = vor.u32 %v4985, %v4986
        %v4988 = vshll.u32 2131351028, %v4979
        %v4989 = vshrl.u32 2102212464, %v4980
        %v4990 = vor.u32 %v4988, %v4989
        %v4991 = vshll.u32 2102212464, %v4979
        %v4992 = vshrl.u32 920167782, %v4980
        %v4993 = vor.u32 %v4991, %v4992
        %v4994 = vshll.u32 920167782, %v4979
        %v4995 = vshrl.u32 1326507024, %v4980
        %v4996 = vor.u32 %v4994, %v4995
        %vm4997 = vcmp.lt.s32.totalorder %v4978, 1
        %vm4998 = vcmp.lt.s32.totalorder %v4978, 2
        %vm4999 = vcmp.lt.s32.totalorder %v4978, 3
        %vm5000 = vcmp.lt.s32.totalorder %v4978, 4
        %v5001 = vsel %vm4997, %v4981, %v4984
        %v5002 = vsel %vm5000, %v4990, 2102212464
        %v5003 = vsel %vm4999, %v4987, %v5002
        %v5004 = vsel %vm4998, %v5001, %v5003
        %v5005 = vsel %vm4997, %v4984, %v4987
        %v5006 = vsel %vm5000, %v4993, 920167782
        %v5007 = vsel %vm4999, %v4990, %v5006
        %v5008 = vsel %vm4998, %v5005, %v5007
        %v5009 = vsel %vm4997, %v4987, %v4990
        %v5010 = vsel %vm5000, %v4996, 1326507024
        %v5011 = vsel %vm4999, %v4993, %v5010
        %v5012 = vsel %vm4998, %v5009, %v5011
        %v5013 = vshll.u32 %v4973, 8
        %v5014 = vmul.u32.u64.compose %v5013, %v5012
        %v5015 = vextract.low.u32 %v5014
        %v5016 = vextract.high.u32 %v5014
        %v5017 = vmul.u32.u64.compose %v5013, %v5008
        %v5018 = vextract.low.u32 %v5017
        %v5019 = vextract.high.u32 %v5017
        %v5020 = vmul.u32 %v5013, %v5004
        %v5021 = vadd.s32 %v5016, %v5018
        %vm5022 = vc.u32 %v5016, %v5018
        %v5023 = vadd.s32 %v5019, 1
        %v5024 = vsel %vm5022, %v5023, %v5019
        %v5025 = vadd.s32 %v5020, %v5024
        %v5026 = vadd.s32 %v5025, 536870912
        %v5027 = vshrl.u32 %v5026, 30
        %v5028 = vshll.u32 %v5027, 30
        %v5029 = vsub.s32 %v5025, %v5028
        %vm5030 = vcmp.lt.s32.totalorder %v5029, 0
        %v5031 = vsub.s32 0, %v5029
        %v5032 = vsel %vm5030, %v5031, %v5029
        %v5033 = vclz %v5032
        %v5034 = vsub.s32 %v5033, 2
        %vm5035 = vcmp.gt.s32.totalorder 0, %v5034
        %v5036 = vsel %vm5035, 0, %v5034
        %v5037 = vsub.s32 32, %v5036
        %v5038 = vshll.u32 %v5029, %v5036
        %v5039 = vshrl.u32 %v5021, %v5037
        %v5040 = vor.u32 %v5038, %v5039
        %v5041 = vsub.s32 4294967266, %v5036
        %v5042 = vadd.s32 %v5041, 127
        %v5043 = vshll.u32 %v5042, 23
        %v5044 = vor.u32 4788187, %v5043
        %v5045 = vand.u32 2147483647, %v5044
        %v5047 = vcvt.s32.f32 %v5040
        %v5048 = vmul.f32 %v5047, %v5045
        %v5049 = vxor.u32 %v5048, 2147483648
        %v5050 = vsel %vm4967, %v5049, %v5048
        %v5051 = vsub.s32 4, %v5027
        %v5052 = vsel %vm4967, %v5051, %v5027
        %v5053 = vsel %vm4966, %v2193, %v5050
        %v5054 = vsel %vm4966, 0, %v5052
        %v5055 = vcosq.f32.pop %v5053
        %v5056 = vsinq.f32.pop %v5053
        %vm5057 = vweird.f32 %v2193
        %v5058 = vand.u32 %v5054, 3
        %vm5059 = vcmp.lt.s32.totalorder %v5058, 2
        %vm5060 = vcmp.eq.s32.totalorder %v5058, 0
        %v5061 = vxor.u32 %v5056, 2147483648
        %v5062 = vsel %vm5060, %v5055, %v5061
        %vm5063 = vcmp.eq.s32.totalorder %v5058, 2
        %v5064 = vxor.u32 %v5055, 2147483648
        %v5065 = vsel %vm5063, %v5064, %v5056
        %v5066 = vsel %vm5059, %v5062, %v5065
        %v5067 = vsel %vm5057, nan, %v5066
        %v5068 = vand.u32 2147483647, %v2194
        %vm5069 = vcmp.le.f32.partialorder %v5068, 0.7853982
        %vm5070 = vcmp.lt.s32.totalorder %v2194, 0
        %v5071 = vand.u32 %v2194, 2139095040
        %v5072 = vshrl.u32 %v5071, 23
        %v5073 = vsub.s32 %v5072, 127
        %v5074 = vand.u32 2147483647, %v2194
        %v5075 = vand.u32 %v5074, 8388607
        %v5076 = vor.u32 %v5075, 8388608
        %v5077 = vsub.s32 0, %v5076
        %v5078 = vadd.s32 %v5073, 1
        %vm5079 = vcmp.gt.s32.totalorder %v5078, 0
        %v5080 = vsel %vm5079, %v5078, 0
        %v5081 = vshrl.u32 %v5080, 5
        %v5082 = vand.u32 %v5080, 31
        %v5083 = vsub.s32 32, %v5082
        %v5084 = vshrl.u32 683565275, %v5083
        %v5085 = vshll.u32 683565275, %v5082
        %v5086 = vshrl.u32 2475754826, %v5083
        %v5087 = vor.u32 %v5085, %v5086
        %v5088 = vshll.u32 2475754826, %v5082
        %v5089 = vshrl.u32 2131351028, %v5083
        %v5090 = vor.u32 %v5088, %v5089
        %v5091 = vshll.u32 2131351028, %v5082
        %v5092 = vshrl.u32 2102212464, %v5083
        %v5093 = vor.u32 %v5091, %v5092
        %v5094 = vshll.u32 2102212464, %v5082
        %v5095 = vshrl.u32 920167782, %v5083
        %v5096 = vor.u32 %v5094, %v5095
        %v5097 = vshll.u32 920167782, %v5082
        %v5098 = vshrl.u32 1326507024, %v5083
        %v5099 = vor.u32 %v5097, %v5098
        %vm5100 = vcmp.lt.s32.totalorder %v5081, 1
        %vm5101 = vcmp.lt.s32.totalorder %v5081, 2
        %vm5102 = vcmp.lt.s32.totalorder %v5081, 3
        %vm5103 = vcmp.lt.s32.totalorder %v5081, 4
        %v5104 = vsel %vm5100, %v5084, %v5087
        %v5105 = vsel %vm5103, %v5093, 2102212464
        %v5106 = vsel %vm5102, %v5090, %v5105
        %v5107 = vsel %vm5101, %v5104, %v5106
        %v5108 = vsel %vm5100, %v5087, %v5090
        %v5109 = vsel %vm5103, %v5096, 920167782
        %v5110 = vsel %vm5102, %v5093, %v5109
        %v5111 = vsel %vm5101, %v5108, %v5110
        %v5112 = vsel %vm5100, %v5090, %v5093
        %v5113 = vsel %vm5103, %v5099, 1326507024
        %v5114 = vsel %vm5102, %v5096, %v5113
        %v5115 = vsel %vm5101, %v5112, %v5114
        %v5116 = vshll.u32 %v5076, 8
        %v5117 = vmul.u32.u64.compose %v5116, %v5115
        %v5118 = vextract.low.u32 %v5117
        %v5119 = vextract.high.u32 %v5117
        %v5120 = vmul.u32.u64.compose %v5116, %v5111
        %v5121 = vextract.low.u32 %v5120
        %v5122 = vextract.high.u32 %v5120
        %v5123 = vmul.u32 %v5116, %v5107
        %v5124 = vadd.s32 %v5119, %v5121
        %vm5125 = vc.u32 %v5119, %v5121
        %v5126 = vadd.s32 %v5122, 1
        %v5127 = vsel %vm5125, %v5126, %v5122
        %v5128 = vadd.s32 %v5123, %v5127
        %v5129 = vadd.s32 %v5128, 536870912
        %v5130 = vshrl.u32 %v5129, 30
        %v5131 = vshll.u32 %v5130, 30
        %v5132 = vsub.s32 %v5128, %v5131
        %vm5133 = vcmp.lt.s32.totalorder %v5132, 0
        %v5134 = vsub.s32 0, %v5132
        %v5135 = vsel %vm5133, %v5134, %v5132
        %v5136 = vclz %v5135
        %v5137 = vsub.s32 %v5136, 2
        %vm5138 = vcmp.gt.s32.totalorder 0, %v5137
        %v5139 = vsel %vm5138, 0, %v5137
        %v5140 = vsub.s32 32, %v5139
        %v5141 = vshll.u32 %v5132, %v5139
        %v5142 = vshrl.u32 %v5124, %v5140
        %v5143 = vor.u32 %v5141, %v5142
        %v5144 = vsub.s32 4294967266, %v5139
        %v5145 = vadd.s32 %v5144, 127
        %v5146 = vshll.u32 %v5145, 23
        %v5147 = vor.u32 4788187, %v5146
        %v5148 = vand.u32 2147483647, %v5147
        %v5150 = vcvt.s32.f32 %v5143
        %v5151 = vmul.f32 %v5150, %v5148
        %v5152 = vxor.u32 %v5151, 2147483648
        %v5153 = vsel %vm5070, %v5152, %v5151
        %v5154 = vsub.s32 4, %v5130
        %v5155 = vsel %vm5070, %v5154, %v5130
        %v5156 = vsel %vm5069, %v2194, %v5153
        %v5157 = vsel %vm5069, 0, %v5155
        %v5158 = vcosq.f32.pop %v5156
        %v5159 = vsinq.f32.pop %v5156
        %vm5160 = vweird.f32 %v2194
        %v5161 = vand.u32 %v5157, 3
        %vm5162 = vcmp.lt.s32.totalorder %v5161, 2
        %vm5163 = vcmp.eq.s32.totalorder %v5161, 0
        %v5164 = vxor.u32 %v5159, 2147483648
        %v5165 = vsel %vm5163, %v5158, %v5164
        %vm5166 = vcmp.eq.s32.totalorder %v5161, 2
        %v5167 = vxor.u32 %v5158, 2147483648
        %v5168 = vsel %vm5166, %v5167, %v5159
        %v5169 = vsel %vm5162, %v5165, %v5168
        %v5170 = vsel %vm5160, nan, %v5169
        %v5171 = vand.u32 2147483647, %v2195
        %vm5172 = vcmp.le.f32.partialorder %v5171, 0.7853982
        %vm5173 = vcmp.lt.s32.totalorder %v2195, 0
        %v5174 = vand.u32 %v2195, 2139095040
        %v5175 = vshrl.u32 %v5174, 23
        %v5176 = vsub.s32 %v5175, 127
        %v5177 = vand.u32 2147483647, %v2195
        %v5178 = vand.u32 %v5177, 8388607
        %v5179 = vor.u32 %v5178, 8388608
        %v5180 = vsub.s32 0, %v5179
        %v5181 = vadd.s32 %v5176, 1
        %vm5182 = vcmp.gt.s32.totalorder %v5181, 0
        %v5183 = vsel %vm5182, %v5181, 0
        %v5184 = vshrl.u32 %v5183, 5
        %v5185 = vand.u32 %v5183, 31
        %v5186 = vsub.s32 32, %v5185
        %v5187 = vshrl.u32 683565275, %v5186
        %v5188 = vshll.u32 683565275, %v5185
        %v5189 = vshrl.u32 2475754826, %v5186
        %v5190 = vor.u32 %v5188, %v5189
        %v5191 = vshll.u32 2475754826, %v5185
        %v5192 = vshrl.u32 2131351028, %v5186
        %v5193 = vor.u32 %v5191, %v5192
        %v5194 = vshll.u32 2131351028, %v5185
        %v5195 = vshrl.u32 2102212464, %v5186
        %v5196 = vor.u32 %v5194, %v5195
        %v5197 = vshll.u32 2102212464, %v5185
        %v5198 = vshrl.u32 920167782, %v5186
        %v5199 = vor.u32 %v5197, %v5198
        %v5200 = vshll.u32 920167782, %v5185
        %v5201 = vshrl.u32 1326507024, %v5186
        %v5202 = vor.u32 %v5200, %v5201
        %vm5203 = vcmp.lt.s32.totalorder %v5184, 1
        %vm5204 = vcmp.lt.s32.totalorder %v5184, 2
        %vm5205 = vcmp.lt.s32.totalorder %v5184, 3
        %vm5206 = vcmp.lt.s32.totalorder %v5184, 4
        %v5207 = vsel %vm5203, %v5187, %v5190
        %v5208 = vsel %vm5206, %v5196, 2102212464
        %v5209 = vsel %vm5205, %v5193, %v5208
        %v5210 = vsel %vm5204, %v5207, %v5209
        %v5211 = vsel %vm5203, %v5190, %v5193
        %v5212 = vsel %vm5206, %v5199, 920167782
        %v5213 = vsel %vm5205, %v5196, %v5212
        %v5214 = vsel %vm5204, %v5211, %v5213
        %v5215 = vsel %vm5203, %v5193, %v5196
        %v5216 = vsel %vm5206, %v5202, 1326507024
        %v5217 = vsel %vm5205, %v5199, %v5216
        %v5218 = vsel %vm5204, %v5215, %v5217
        %v5219 = vshll.u32 %v5179, 8
        %v5220 = vmul.u32.u64.compose %v5219, %v5218
        %v5221 = vextract.low.u32 %v5220
        %v5222 = vextract.high.u32 %v5220
        %v5223 = vmul.u32.u64.compose %v5219, %v5214
        %v5224 = vextract.low.u32 %v5223
        %v5225 = vextract.high.u32 %v5223
        %v5226 = vmul.u32 %v5219, %v5210
        %v5227 = vadd.s32 %v5222, %v5224
        %vm5228 = vc.u32 %v5222, %v5224
        %v5229 = vadd.s32 %v5225, 1
        %v5230 = vsel %vm5228, %v5229, %v5225
        %v5231 = vadd.s32 %v5226, %v5230
        %v5232 = vadd.s32 %v5231, 536870912
        %v5233 = vshrl.u32 %v5232, 30
        %v5234 = vshll.u32 %v5233, 30
        %v5235 = vsub.s32 %v5231, %v5234
        %vm5236 = vcmp.lt.s32.totalorder %v5235, 0
        %v5237 = vsub.s32 0, %v5235
        %v5238 = vsel %vm5236, %v5237, %v5235
        %v5239 = vclz %v5238
        %v5240 = vsub.s32 %v5239, 2
        %vm5241 = vcmp.gt.s32.totalorder 0, %v5240
        %v5242 = vsel %vm5241, 0, %v5240
        %v5243 = vsub.s32 32, %v5242
        %v5244 = vshll.u32 %v5235, %v5242
        %v5245 = vshrl.u32 %v5227, %v5243
        %v5246 = vor.u32 %v5244, %v5245
        %v5247 = vsub.s32 4294967266, %v5242
        %v5248 = vadd.s32 %v5247, 127
        %v5249 = vshll.u32 %v5248, 23
        %v5250 = vor.u32 4788187, %v5249
        %v5251 = vand.u32 2147483647, %v5250
        %v5253 = vcvt.s32.f32 %v5246
        %v5254 = vmul.f32 %v5253, %v5251
        %v5255 = vxor.u32 %v5254, 2147483648
        %v5256 = vsel %vm5173, %v5255, %v5254
        %v5257 = vsub.s32 4, %v5233
        %v5258 = vsel %vm5173, %v5257, %v5233
        %v5259 = vsel %vm5172, %v2195, %v5256
        %v5260 = vsel %vm5172, 0, %v5258
        %v5261 = vcosq.f32.pop %v5259
        %v5262 = vsinq.f32.pop %v5259
        %vm5263 = vweird.f32 %v2195
        %v5264 = vand.u32 %v5260, 3
        %vm5265 = vcmp.lt.s32.totalorder %v5264, 2
        %vm5266 = vcmp.eq.s32.totalorder %v5264, 0
        %v5267 = vxor.u32 %v5262, 2147483648
        %v5268 = vsel %vm5266, %v5261, %v5267
        %vm5269 = vcmp.eq.s32.totalorder %v5264, 2
        %v5270 = vxor.u32 %v5261, 2147483648
        %v5271 = vsel %vm5269, %v5270, %v5262
        %v5272 = vsel %vm5265, %v5268, %v5271
        %v5273 = vsel %vm5263, nan, %v5272
        %v5274 = vand.u32 2147483647, %v2196
        %vm5275 = vcmp.le.f32.partialorder %v5274, 0.7853982
        %vm5276 = vcmp.lt.s32.totalorder %v2196, 0
        %v5277 = vand.u32 %v2196, 2139095040
        %v5278 = vshrl.u32 %v5277, 23
        %v5279 = vsub.s32 %v5278, 127
        %v5280 = vand.u32 2147483647, %v2196
        %v5281 = vand.u32 %v5280, 8388607
        %v5282 = vor.u32 %v5281, 8388608
        %v5283 = vsub.s32 0, %v5282
        %v5284 = vadd.s32 %v5279, 1
        %vm5285 = vcmp.gt.s32.totalorder %v5284, 0
        %v5286 = vsel %vm5285, %v5284, 0
        %v5287 = vshrl.u32 %v5286, 5
        %v5288 = vand.u32 %v5286, 31
        %v5289 = vsub.s32 32, %v5288
        %v5290 = vshrl.u32 683565275, %v5289
        %v5291 = vshll.u32 683565275, %v5288
        %v5292 = vshrl.u32 2475754826, %v5289
        %v5293 = vor.u32 %v5291, %v5292
        %v5294 = vshll.u32 2475754826, %v5288
        %v5295 = vshrl.u32 2131351028, %v5289
        %v5296 = vor.u32 %v5294, %v5295
        %v5297 = vshll.u32 2131351028, %v5288
        %v5298 = vshrl.u32 2102212464, %v5289
        %v5299 = vor.u32 %v5297, %v5298
        %v5300 = vshll.u32 2102212464, %v5288
        %v5301 = vshrl.u32 920167782, %v5289
        %v5302 = vor.u32 %v5300, %v5301
        %v5303 = vshll.u32 920167782, %v5288
        %v5304 = vshrl.u32 1326507024, %v5289
        %v5305 = vor.u32 %v5303, %v5304
        %vm5306 = vcmp.lt.s32.totalorder %v5287, 1
        %vm5307 = vcmp.lt.s32.totalorder %v5287, 2
        %vm5308 = vcmp.lt.s32.totalorder %v5287, 3
        %vm5309 = vcmp.lt.s32.totalorder %v5287, 4
        %v5310 = vsel %vm5306, %v5290, %v5293
        %v5311 = vsel %vm5309, %v5299, 2102212464
        %v5312 = vsel %vm5308, %v5296, %v5311
        %v5313 = vsel %vm5307, %v5310, %v5312
        %v5314 = vsel %vm5306, %v5293, %v5296
        %v5315 = vsel %vm5309, %v5302, 920167782
        %v5316 = vsel %vm5308, %v5299, %v5315
        %v5317 = vsel %vm5307, %v5314, %v5316
        %v5318 = vsel %vm5306, %v5296, %v5299
        %v5319 = vsel %vm5309, %v5305, 1326507024
        %v5320 = vsel %vm5308, %v5302, %v5319
        %v5321 = vsel %vm5307, %v5318, %v5320
        %v5322 = vshll.u32 %v5282, 8
        %v5323 = vmul.u32.u64.compose %v5322, %v5321
        %v5324 = vextract.low.u32 %v5323
        %v5325 = vextract.high.u32 %v5323
        %v5326 = vmul.u32.u64.compose %v5322, %v5317
        %v5327 = vextract.low.u32 %v5326
        %v5328 = vextract.high.u32 %v5326
        %v5329 = vmul.u32 %v5322, %v5313
        %v5330 = vadd.s32 %v5325, %v5327
        %vm5331 = vc.u32 %v5325, %v5327
        %v5332 = vadd.s32 %v5328, 1
        %v5333 = vsel %vm5331, %v5332, %v5328
        %v5334 = vadd.s32 %v5329, %v5333
        %v5335 = vadd.s32 %v5334, 536870912
        %v5336 = vshrl.u32 %v5335, 30
        %v5337 = vshll.u32 %v5336, 30
        %v5338 = vsub.s32 %v5334, %v5337
        %vm5339 = vcmp.lt.s32.totalorder %v5338, 0
        %v5340 = vsub.s32 0, %v5338
        %v5341 = vsel %vm5339, %v5340, %v5338
        %v5342 = vclz %v5341
        %v5343 = vsub.s32 %v5342, 2
        %vm5344 = vcmp.gt.s32.totalorder 0, %v5343
        %v5345 = vsel %vm5344, 0, %v5343
        %v5346 = vsub.s32 32, %v5345
        %v5347 = vshll.u32 %v5338, %v5345
        %v5348 = vshrl.u32 %v5330, %v5346
        %v5349 = vor.u32 %v5347, %v5348
        %v5350 = vsub.s32 4294967266, %v5345
        %v5351 = vadd.s32 %v5350, 127
        %v5352 = vshll.u32 %v5351, 23
        %v5353 = vor.u32 4788187, %v5352
        %v5354 = vand.u32 2147483647, %v5353
        %v5356 = vcvt.s32.f32 %v5349
        %v5357 = vmul.f32 %v5356, %v5354
        %v5358 = vxor.u32 %v5357, 2147483648
        %v5359 = vsel %vm5276, %v5358, %v5357
        %v5360 = vsub.s32 4, %v5336
        %v5361 = vsel %vm5276, %v5360, %v5336
        %v5362 = vsel %vm5275, %v2196, %v5359
        %v5363 = vsel %vm5275, 0, %v5361
        %v5364 = vcosq.f32.pop %v5362
        %v5365 = vsinq.f32.pop %v5362
        %vm5366 = vweird.f32 %v2196
        %v5367 = vand.u32 %v5363, 3
        %vm5368 = vcmp.lt.s32.totalorder %v5367, 2
        %vm5369 = vcmp.eq.s32.totalorder %v5367, 0
        %v5370 = vxor.u32 %v5365, 2147483648
        %v5371 = vsel %vm5369, %v5364, %v5370
        %vm5372 = vcmp.eq.s32.totalorder %v5367, 2
        %v5373 = vxor.u32 %v5364, 2147483648
        %v5374 = vsel %vm5372, %v5373, %v5365
        %v5375 = vsel %vm5368, %v5371, %v5374
        %v5376 = vsel %vm5366, nan, %v5375
        %v5377 = vand.u32 2147483647, %v2197
        %vm5378 = vcmp.le.f32.partialorder %v5377, 0.7853982
        %vm5379 = vcmp.lt.s32.totalorder %v2197, 0
        %v5380 = vand.u32 %v2197, 2139095040
        %v5381 = vshrl.u32 %v5380, 23
        %v5382 = vsub.s32 %v5381, 127
        %v5383 = vand.u32 2147483647, %v2197
        %v5384 = vand.u32 %v5383, 8388607
        %v5385 = vor.u32 %v5384, 8388608
        %v5386 = vsub.s32 0, %v5385
        %v5387 = vadd.s32 %v5382, 1
        %vm5388 = vcmp.gt.s32.totalorder %v5387, 0
        %v5389 = vsel %vm5388, %v5387, 0
        %v5390 = vshrl.u32 %v5389, 5
        %v5391 = vand.u32 %v5389, 31
        %v5392 = vsub.s32 32, %v5391
        %v5393 = vshrl.u32 683565275, %v5392
        %v5394 = vshll.u32 683565275, %v5391
        %v5395 = vshrl.u32 2475754826, %v5392
        %v5396 = vor.u32 %v5394, %v5395
        %v5397 = vshll.u32 2475754826, %v5391
        %v5398 = vshrl.u32 2131351028, %v5392
        %v5399 = vor.u32 %v5397, %v5398
        %v5400 = vshll.u32 2131351028, %v5391
        %v5401 = vshrl.u32 2102212464, %v5392
        %v5402 = vor.u32 %v5400, %v5401
        %v5403 = vshll.u32 2102212464, %v5391
        %v5404 = vshrl.u32 920167782, %v5392
        %v5405 = vor.u32 %v5403, %v5404
        %v5406 = vshll.u32 920167782, %v5391
        %v5407 = vshrl.u32 1326507024, %v5392
        %v5408 = vor.u32 %v5406, %v5407
        %vm5409 = vcmp.lt.s32.totalorder %v5390, 1
        %vm5410 = vcmp.lt.s32.totalorder %v5390, 2
        %vm5411 = vcmp.lt.s32.totalorder %v5390, 3
        %vm5412 = vcmp.lt.s32.totalorder %v5390, 4
        %v5413 = vsel %vm5409, %v5393, %v5396
        %v5414 = vsel %vm5412, %v5402, 2102212464
        %v5415 = vsel %vm5411, %v5399, %v5414
        %v5416 = vsel %vm5410, %v5413, %v5415
        %v5417 = vsel %vm5409, %v5396, %v5399
        %v5418 = vsel %vm5412, %v5405, 920167782
        %v5419 = vsel %vm5411, %v5402, %v5418
        %v5420 = vsel %vm5410, %v5417, %v5419
        %v5421 = vsel %vm5409, %v5399, %v5402
        %v5422 = vsel %vm5412, %v5408, 1326507024
        %v5423 = vsel %vm5411, %v5405, %v5422
        %v5424 = vsel %vm5410, %v5421, %v5423
        %v5425 = vshll.u32 %v5385, 8
        %v5426 = vmul.u32.u64.compose %v5425, %v5424
        %v5427 = vextract.low.u32 %v5426
        %v5428 = vextract.high.u32 %v5426
        %v5429 = vmul.u32.u64.compose %v5425, %v5420
        %v5430 = vextract.low.u32 %v5429
        %v5431 = vextract.high.u32 %v5429
        %v5432 = vmul.u32 %v5425, %v5416
        %v5433 = vadd.s32 %v5428, %v5430
        %vm5434 = vc.u32 %v5428, %v5430
        %v5435 = vadd.s32 %v5431, 1
        %v5436 = vsel %vm5434, %v5435, %v5431
        %v5437 = vadd.s32 %v5432, %v5436
        %v5438 = vadd.s32 %v5437, 536870912
        %v5439 = vshrl.u32 %v5438, 30
        %v5440 = vshll.u32 %v5439, 30
        %v5441 = vsub.s32 %v5437, %v5440
        %vm5442 = vcmp.lt.s32.totalorder %v5441, 0
        %v5443 = vsub.s32 0, %v5441
        %v5444 = vsel %vm5442, %v5443, %v5441
        %v5445 = vclz %v5444
        %v5446 = vsub.s32 %v5445, 2
        %vm5447 = vcmp.gt.s32.totalorder 0, %v5446
        %v5448 = vsel %vm5447, 0, %v5446
        %v5449 = vsub.s32 32, %v5448
        %v5450 = vshll.u32 %v5441, %v5448
        %v5451 = vshrl.u32 %v5433, %v5449
        %v5452 = vor.u32 %v5450, %v5451
        %v5453 = vsub.s32 4294967266, %v5448
        %v5454 = vadd.s32 %v5453, 127
        %v5455 = vshll.u32 %v5454, 23
        %v5456 = vor.u32 4788187, %v5455
        %v5457 = vand.u32 2147483647, %v5456
        %v5459 = vcvt.s32.f32 %v5452
        %v5460 = vmul.f32 %v5459, %v5457
        %v5461 = vxor.u32 %v5460, 2147483648
        %v5462 = vsel %vm5379, %v5461, %v5460
        %v5463 = vsub.s32 4, %v5439
        %v5464 = vsel %vm5379, %v5463, %v5439
        %v5465 = vsel %vm5378, %v2197, %v5462
        %v5466 = vsel %vm5378, 0, %v5464
        %v5467 = vcosq.f32.pop %v5465
        %v5468 = vsinq.f32.pop %v5465
        %vm5469 = vweird.f32 %v2197
        %v5470 = vand.u32 %v5466, 3
        %vm5471 = vcmp.lt.s32.totalorder %v5470, 2
        %vm5472 = vcmp.eq.s32.totalorder %v5470, 0
        %v5473 = vxor.u32 %v5468, 2147483648
        %v5474 = vsel %vm5472, %v5467, %v5473
        %vm5475 = vcmp.eq.s32.totalorder %v5470, 2
        %v5476 = vxor.u32 %v5467, 2147483648
        %v5477 = vsel %vm5475, %v5476, %v5468
        %v5478 = vsel %vm5471, %v5474, %v5477
        %v5479 = vsel %vm5469, nan, %v5478
        %v5480 = vand.u32 2147483647, %v2198
        %vm5481 = vcmp.le.f32.partialorder %v5480, 0.7853982
        %vm5482 = vcmp.lt.s32.totalorder %v2198, 0
        %v5483 = vand.u32 %v2198, 2139095040
        %v5484 = vshrl.u32 %v5483, 23
        %v5485 = vsub.s32 %v5484, 127
        %v5486 = vand.u32 2147483647, %v2198
        %v5487 = vand.u32 %v5486, 8388607
        %v5488 = vor.u32 %v5487, 8388608
        %v5489 = vsub.s32 0, %v5488
        %v5490 = vadd.s32 %v5485, 1
        %vm5491 = vcmp.gt.s32.totalorder %v5490, 0
        %v5492 = vsel %vm5491, %v5490, 0
        %v5493 = vshrl.u32 %v5492, 5
        %v5494 = vand.u32 %v5492, 31
        %v5495 = vsub.s32 32, %v5494
        %v5496 = vshrl.u32 683565275, %v5495
        %v5497 = vshll.u32 683565275, %v5494
        %v5498 = vshrl.u32 2475754826, %v5495
        %v5499 = vor.u32 %v5497, %v5498
        %v5500 = vshll.u32 2475754826, %v5494
        %v5501 = vshrl.u32 2131351028, %v5495
        %v5502 = vor.u32 %v5500, %v5501
        %v5503 = vshll.u32 2131351028, %v5494
        %v5504 = vshrl.u32 2102212464, %v5495
        %v5505 = vor.u32 %v5503, %v5504
        %v5506 = vshll.u32 2102212464, %v5494
        %v5507 = vshrl.u32 920167782, %v5495
        %v5508 = vor.u32 %v5506, %v5507
        %v5509 = vshll.u32 920167782, %v5494
        %v5510 = vshrl.u32 1326507024, %v5495
        %v5511 = vor.u32 %v5509, %v5510
        %vm5512 = vcmp.lt.s32.totalorder %v5493, 1
        %vm5513 = vcmp.lt.s32.totalorder %v5493, 2
        %vm5514 = vcmp.lt.s32.totalorder %v5493, 3
        %vm5515 = vcmp.lt.s32.totalorder %v5493, 4
        %v5516 = vsel %vm5512, %v5496, %v5499
        %v5517 = vsel %vm5515, %v5505, 2102212464
        %v5518 = vsel %vm5514, %v5502, %v5517
        %v5519 = vsel %vm5513, %v5516, %v5518
        %v5520 = vsel %vm5512, %v5499, %v5502
        %v5521 = vsel %vm5515, %v5508, 920167782
        %v5522 = vsel %vm5514, %v5505, %v5521
        %v5523 = vsel %vm5513, %v5520, %v5522
        %v5524 = vsel %vm5512, %v5502, %v5505
        %v5525 = vsel %vm5515, %v5511, 1326507024
        %v5526 = vsel %vm5514, %v5508, %v5525
        %v5527 = vsel %vm5513, %v5524, %v5526
        %v5528 = vshll.u32 %v5488, 8
        %v5529 = vmul.u32.u64.compose %v5528, %v5527
        %v5530 = vextract.low.u32 %v5529
        %v5531 = vextract.high.u32 %v5529
        %v5532 = vmul.u32.u64.compose %v5528, %v5523
        %v5533 = vextract.low.u32 %v5532
        %v5534 = vextract.high.u32 %v5532
        %v5535 = vmul.u32 %v5528, %v5519
        %v5536 = vadd.s32 %v5531, %v5533
        %vm5537 = vc.u32 %v5531, %v5533
        %v5538 = vadd.s32 %v5534, 1
        %v5539 = vsel %vm5537, %v5538, %v5534
        %v5540 = vadd.s32 %v5535, %v5539
        %v5541 = vadd.s32 %v5540, 536870912
        %v5542 = vshrl.u32 %v5541, 30
        %v5543 = vshll.u32 %v5542, 30
        %v5544 = vsub.s32 %v5540, %v5543
        %vm5545 = vcmp.lt.s32.totalorder %v5544, 0
        %v5546 = vsub.s32 0, %v5544
        %v5547 = vsel %vm5545, %v5546, %v5544
        %v5548 = vclz %v5547
        %v5549 = vsub.s32 %v5548, 2
        %vm5550 = vcmp.gt.s32.totalorder 0, %v5549
        %v5551 = vsel %vm5550, 0, %v5549
        %v5552 = vsub.s32 32, %v5551
        %v5553 = vshll.u32 %v5544, %v5551
        %v5554 = vshrl.u32 %v5536, %v5552
        %v5555 = vor.u32 %v5553, %v5554
        %v5556 = vsub.s32 4294967266, %v5551
        %v5557 = vadd.s32 %v5556, 127
        %v5558 = vshll.u32 %v5557, 23
        %v5559 = vor.u32 4788187, %v5558
        %v5560 = vand.u32 2147483647, %v5559
        %v5562 = vcvt.s32.f32 %v5555
        %v5563 = vmul.f32 %v5562, %v5560
        %v5564 = vxor.u32 %v5563, 2147483648
        %v5565 = vsel %vm5482, %v5564, %v5563
        %v5566 = vsub.s32 4, %v5542
        %v5567 = vsel %vm5482, %v5566, %v5542
        %v5568 = vsel %vm5481, %v2198, %v5565
        %v5569 = vsel %vm5481, 0, %v5567
        %v5570 = vcosq.f32.pop %v5568
        %v5571 = vsinq.f32.pop %v5568
        %vm5572 = vweird.f32 %v2198
        %v5573 = vand.u32 %v5569, 3
        %vm5574 = vcmp.lt.s32.totalorder %v5573, 2
        %vm5575 = vcmp.eq.s32.totalorder %v5573, 0
        %v5576 = vxor.u32 %v5571, 2147483648
        %v5577 = vsel %vm5575, %v5570, %v5576
        %vm5578 = vcmp.eq.s32.totalorder %v5573, 2
        %v5579 = vxor.u32 %v5570, 2147483648
        %v5580 = vsel %vm5578, %v5579, %v5571
        %v5581 = vsel %vm5574, %v5577, %v5580
        %v5582 = vsel %vm5572, nan, %v5581
        %v5583 = vand.u32 2147483647, %v2199
        %vm5584 = vcmp.le.f32.partialorder %v5583, 0.7853982
        %vm5585 = vcmp.lt.s32.totalorder %v2199, 0
        %v5586 = vand.u32 %v2199, 2139095040
        %v5587 = vshrl.u32 %v5586, 23
        %v5588 = vsub.s32 %v5587, 127
        %v5589 = vand.u32 2147483647, %v2199
        %v5590 = vand.u32 %v5589, 8388607
        %v5591 = vor.u32 %v5590, 8388608
        %v5592 = vsub.s32 0, %v5591
        %v5593 = vadd.s32 %v5588, 1
        %vm5594 = vcmp.gt.s32.totalorder %v5593, 0
        %v5595 = vsel %vm5594, %v5593, 0
        %v5596 = vshrl.u32 %v5595, 5
        %v5597 = vand.u32 %v5595, 31
        %v5598 = vsub.s32 32, %v5597
        %v5599 = vshrl.u32 683565275, %v5598
        %v5600 = vshll.u32 683565275, %v5597
        %v5601 = vshrl.u32 2475754826, %v5598
        %v5602 = vor.u32 %v5600, %v5601
        %v5603 = vshll.u32 2475754826, %v5597
        %v5604 = vshrl.u32 2131351028, %v5598
        %v5605 = vor.u32 %v5603, %v5604
        %v5606 = vshll.u32 2131351028, %v5597
        %v5607 = vshrl.u32 2102212464, %v5598
        %v5608 = vor.u32 %v5606, %v5607
        %v5609 = vshll.u32 2102212464, %v5597
        %v5610 = vshrl.u32 920167782, %v5598
        %v5611 = vor.u32 %v5609, %v5610
        %v5612 = vshll.u32 920167782, %v5597
        %v5613 = vshrl.u32 1326507024, %v5598
        %v5614 = vor.u32 %v5612, %v5613
        %vm5615 = vcmp.lt.s32.totalorder %v5596, 1
        %vm5616 = vcmp.lt.s32.totalorder %v5596, 2
        %vm5617 = vcmp.lt.s32.totalorder %v5596, 3
        %vm5618 = vcmp.lt.s32.totalorder %v5596, 4
        %v5619 = vsel %vm5615, %v5599, %v5602
        %v5620 = vsel %vm5618, %v5608, 2102212464
        %v5621 = vsel %vm5617, %v5605, %v5620
        %v5622 = vsel %vm5616, %v5619, %v5621
        %v5623 = vsel %vm5615, %v5602, %v5605
        %v5624 = vsel %vm5618, %v5611, 920167782
        %v5625 = vsel %vm5617, %v5608, %v5624
        %v5626 = vsel %vm5616, %v5623, %v5625
        %v5627 = vsel %vm5615, %v5605, %v5608
        %v5628 = vsel %vm5618, %v5614, 1326507024
        %v5629 = vsel %vm5617, %v5611, %v5628
        %v5630 = vsel %vm5616, %v5627, %v5629
        %v5631 = vshll.u32 %v5591, 8
        %v5632 = vmul.u32.u64.compose %v5631, %v5630
        %v5633 = vextract.low.u32 %v5632
        %v5634 = vextract.high.u32 %v5632
        %v5635 = vmul.u32.u64.compose %v5631, %v5626
        %v5636 = vextract.low.u32 %v5635
        %v5637 = vextract.high.u32 %v5635
        %v5638 = vmul.u32 %v5631, %v5622
        %v5639 = vadd.s32 %v5634, %v5636
        %vm5640 = vc.u32 %v5634, %v5636
        %v5641 = vadd.s32 %v5637, 1
        %v5642 = vsel %vm5640, %v5641, %v5637
        %v5643 = vadd.s32 %v5638, %v5642
        %v5644 = vadd.s32 %v5643, 536870912
        %v5645 = vshrl.u32 %v5644, 30
        %v5646 = vshll.u32 %v5645, 30
        %v5647 = vsub.s32 %v5643, %v5646
        %vm5648 = vcmp.lt.s32.totalorder %v5647, 0
        %v5649 = vsub.s32 0, %v5647
        %v5650 = vsel %vm5648, %v5649, %v5647
        %v5651 = vclz %v5650
        %v5652 = vsub.s32 %v5651, 2
        %vm5653 = vcmp.gt.s32.totalorder 0, %v5652
        %v5654 = vsel %vm5653, 0, %v5652
        %v5655 = vsub.s32 32, %v5654
        %v5656 = vshll.u32 %v5647, %v5654
        %v5657 = vshrl.u32 %v5639, %v5655
        %v5658 = vor.u32 %v5656, %v5657
        %v5659 = vsub.s32 4294967266, %v5654
        %v5660 = vadd.s32 %v5659, 127
        %v5661 = vshll.u32 %v5660, 23
        %v5662 = vor.u32 4788187, %v5661
        %v5663 = vand.u32 2147483647, %v5662
        %v5665 = vcvt.s32.f32 %v5658
        %v5666 = vmul.f32 %v5665, %v5663
        %v5667 = vxor.u32 %v5666, 2147483648
        %v5668 = vsel %vm5585, %v5667, %v5666
        %v5669 = vsub.s32 4, %v5645
        %v5670 = vsel %vm5585, %v5669, %v5645
        %v5671 = vsel %vm5584, %v2199, %v5668
        %v5672 = vsel %vm5584, 0, %v5670
        %v5673 = vcosq.f32.pop %v5671
        %v5674 = vsinq.f32.pop %v5671
        %vm5675 = vweird.f32 %v2199
        %v5676 = vand.u32 %v5672, 3
        %vm5677 = vcmp.lt.s32.totalorder %v5676, 2
        %vm5678 = vcmp.eq.s32.totalorder %v5676, 0
        %v5679 = vxor.u32 %v5674, 2147483648
        %v5680 = vsel %vm5678, %v5673, %v5679
        %vm5681 = vcmp.eq.s32.totalorder %v5676, 2
        %v5682 = vxor.u32 %v5673, 2147483648
        %v5683 = vsel %vm5681, %v5682, %v5674
        %v5684 = vsel %vm5677, %v5680, %v5683
        %v5685 = vsel %vm5675, nan, %v5684
        %v5686 = vand.u32 2147483647, %v2200
        %vm5687 = vcmp.le.f32.partialorder %v5686, 0.7853982
        %vm5688 = vcmp.lt.s32.totalorder %v2200, 0
        %v5689 = vand.u32 %v2200, 2139095040
        %v5690 = vshrl.u32 %v5689, 23
        %v5691 = vsub.s32 %v5690, 127
        %v5692 = vand.u32 2147483647, %v2200
        %v5693 = vand.u32 %v5692, 8388607
        %v5694 = vor.u32 %v5693, 8388608
        %v5695 = vsub.s32 0, %v5694
        %v5696 = vadd.s32 %v5691, 1
        %vm5697 = vcmp.gt.s32.totalorder %v5696, 0
        %v5698 = vsel %vm5697, %v5696, 0
        %v5699 = vshrl.u32 %v5698, 5
        %v5700 = vand.u32 %v5698, 31
        %v5701 = vsub.s32 32, %v5700
        %v5702 = vshrl.u32 683565275, %v5701
        %v5703 = vshll.u32 683565275, %v5700
        %v5704 = vshrl.u32 2475754826, %v5701
        %v5705 = vor.u32 %v5703, %v5704
        %v5706 = vshll.u32 2475754826, %v5700
        %v5707 = vshrl.u32 2131351028, %v5701
        %v5708 = vor.u32 %v5706, %v5707
        %v5709 = vshll.u32 2131351028, %v5700
        %v5710 = vshrl.u32 2102212464, %v5701
        %v5711 = vor.u32 %v5709, %v5710
        %v5712 = vshll.u32 2102212464, %v5700
        %v5713 = vshrl.u32 920167782, %v5701
        %v5714 = vor.u32 %v5712, %v5713
        %v5715 = vshll.u32 920167782, %v5700
        %v5716 = vshrl.u32 1326507024, %v5701
        %v5717 = vor.u32 %v5715, %v5716
        %vm5718 = vcmp.lt.s32.totalorder %v5699, 1
        %vm5719 = vcmp.lt.s32.totalorder %v5699, 2
        %vm5720 = vcmp.lt.s32.totalorder %v5699, 3
        %vm5721 = vcmp.lt.s32.totalorder %v5699, 4
        %v5722 = vsel %vm5718, %v5702, %v5705
        %v5723 = vsel %vm5721, %v5711, 2102212464
        %v5724 = vsel %vm5720, %v5708, %v5723
        %v5725 = vsel %vm5719, %v5722, %v5724
        %v5726 = vsel %vm5718, %v5705, %v5708
        %v5727 = vsel %vm5721, %v5714, 920167782
        %v5728 = vsel %vm5720, %v5711, %v5727
        %v5729 = vsel %vm5719, %v5726, %v5728
        %v5730 = vsel %vm5718, %v5708, %v5711
        %v5731 = vsel %vm5721, %v5717, 1326507024
        %v5732 = vsel %vm5720, %v5714, %v5731
        %v5733 = vsel %vm5719, %v5730, %v5732
        %v5734 = vshll.u32 %v5694, 8
        %v5735 = vmul.u32.u64.compose %v5734, %v5733
        %v5736 = vextract.low.u32 %v5735
        %v5737 = vextract.high.u32 %v5735
        %v5738 = vmul.u32.u64.compose %v5734, %v5729
        %v5739 = vextract.low.u32 %v5738
        %v5740 = vextract.high.u32 %v5738
        %v5741 = vmul.u32 %v5734, %v5725
        %v5742 = vadd.s32 %v5737, %v5739
        %vm5743 = vc.u32 %v5737, %v5739
        %v5744 = vadd.s32 %v5740, 1
        %v5745 = vsel %vm5743, %v5744, %v5740
        %v5746 = vadd.s32 %v5741, %v5745
        %v5747 = vadd.s32 %v5746, 536870912
        %v5748 = vshrl.u32 %v5747, 30
        %v5749 = vshll.u32 %v5748, 30
        %v5750 = vsub.s32 %v5746, %v5749
        %vm5751 = vcmp.lt.s32.totalorder %v5750, 0
        %v5752 = vsub.s32 0, %v5750
        %v5753 = vsel %vm5751, %v5752, %v5750
        %v5754 = vclz %v5753
        %v5755 = vsub.s32 %v5754, 2
        %vm5756 = vcmp.gt.s32.totalorder 0, %v5755
        %v5757 = vsel %vm5756, 0, %v5755
        %v5758 = vsub.s32 32, %v5757
        %v5759 = vshll.u32 %v5750, %v5757
        %v5760 = vshrl.u32 %v5742, %v5758
        %v5761 = vor.u32 %v5759, %v5760
        %v5762 = vsub.s32 4294967266, %v5757
        %v5763 = vadd.s32 %v5762, 127
        %v5764 = vshll.u32 %v5763, 23
        %v5765 = vor.u32 4788187, %v5764
        %v5766 = vand.u32 2147483647, %v5765
        %v5768 = vcvt.s32.f32 %v5761
        %v5769 = vmul.f32 %v5768, %v5766
        %v5770 = vxor.u32 %v5769, 2147483648
        %v5771 = vsel %vm5688, %v5770, %v5769
        %v5772 = vsub.s32 4, %v5748
        %v5773 = vsel %vm5688, %v5772, %v5748
        %v5774 = vsel %vm5687, %v2200, %v5771
        %v5775 = vsel %vm5687, 0, %v5773
        %v5776 = vcosq.f32.pop %v5774
        %v5777 = vsinq.f32.pop %v5774
        %vm5778 = vweird.f32 %v2200
        %v5779 = vand.u32 %v5775, 3
        %vm5780 = vcmp.lt.s32.totalorder %v5779, 2
        %vm5781 = vcmp.eq.s32.totalorder %v5779, 0
        %v5782 = vxor.u32 %v5777, 2147483648
        %v5783 = vsel %vm5781, %v5776, %v5782
        %vm5784 = vcmp.eq.s32.totalorder %v5779, 2
        %v5785 = vxor.u32 %v5776, 2147483648
        %v5786 = vsel %vm5784, %v5785, %v5777
        %v5787 = vsel %vm5780, %v5783, %v5786
        %v5788 = vsel %vm5778, nan, %v5787
        %v5789 = vand.u32 2147483647, %v2201
        %vm5790 = vcmp.le.f32.partialorder %v5789, 0.7853982
        %vm5791 = vcmp.lt.s32.totalorder %v2201, 0
        %v5792 = vand.u32 %v2201, 2139095040
        %v5793 = vshrl.u32 %v5792, 23
        %v5794 = vsub.s32 %v5793, 127
        %v5795 = vand.u32 2147483647, %v2201
        %v5796 = vand.u32 %v5795, 8388607
        %v5797 = vor.u32 %v5796, 8388608
        %v5798 = vsub.s32 0, %v5797
        %v5799 = vadd.s32 %v5794, 1
        %vm5800 = vcmp.gt.s32.totalorder %v5799, 0
        %v5801 = vsel %vm5800, %v5799, 0
        %v5802 = vshrl.u32 %v5801, 5
        %v5803 = vand.u32 %v5801, 31
        %v5804 = vsub.s32 32, %v5803
        %v5805 = vshrl.u32 683565275, %v5804
        %v5806 = vshll.u32 683565275, %v5803
        %v5807 = vshrl.u32 2475754826, %v5804
        %v5808 = vor.u32 %v5806, %v5807
        %v5809 = vshll.u32 2475754826, %v5803
        %v5810 = vshrl.u32 2131351028, %v5804
        %v5811 = vor.u32 %v5809, %v5810
        %v5812 = vshll.u32 2131351028, %v5803
        %v5813 = vshrl.u32 2102212464, %v5804
        %v5814 = vor.u32 %v5812, %v5813
        %v5815 = vshll.u32 2102212464, %v5803
        %v5816 = vshrl.u32 920167782, %v5804
        %v5817 = vor.u32 %v5815, %v5816
        %v5818 = vshll.u32 920167782, %v5803
        %v5819 = vshrl.u32 1326507024, %v5804
        %v5820 = vor.u32 %v5818, %v5819
        %vm5821 = vcmp.lt.s32.totalorder %v5802, 1
        %vm5822 = vcmp.lt.s32.totalorder %v5802, 2
        %vm5823 = vcmp.lt.s32.totalorder %v5802, 3
        %vm5824 = vcmp.lt.s32.totalorder %v5802, 4
        %v5825 = vsel %vm5821, %v5805, %v5808
        %v5826 = vsel %vm5824, %v5814, 2102212464
        %v5827 = vsel %vm5823, %v5811, %v5826
        %v5828 = vsel %vm5822, %v5825, %v5827
        %v5829 = vsel %vm5821, %v5808, %v5811
        %v5830 = vsel %vm5824, %v5817, 920167782
        %v5831 = vsel %vm5823, %v5814, %v5830
        %v5832 = vsel %vm5822, %v5829, %v5831
        %v5833 = vsel %vm5821, %v5811, %v5814
        %v5834 = vsel %vm5824, %v5820, 1326507024
        %v5835 = vsel %vm5823, %v5817, %v5834
        %v5836 = vsel %vm5822, %v5833, %v5835
        %v5837 = vshll.u32 %v5797, 8
        %v5838 = vmul.u32.u64.compose %v5837, %v5836
        %v5839 = vextract.low.u32 %v5838
        %v5840 = vextract.high.u32 %v5838
        %v5841 = vmul.u32.u64.compose %v5837, %v5832
        %v5842 = vextract.low.u32 %v5841
        %v5843 = vextract.high.u32 %v5841
        %v5844 = vmul.u32 %v5837, %v5828
        %v5845 = vadd.s32 %v5840, %v5842
        %vm5846 = vc.u32 %v5840, %v5842
        %v5847 = vadd.s32 %v5843, 1
        %v5848 = vsel %vm5846, %v5847, %v5843
        %v5849 = vadd.s32 %v5844, %v5848
        %v5850 = vadd.s32 %v5849, 536870912
        %v5851 = vshrl.u32 %v5850, 30
        %v5852 = vshll.u32 %v5851, 30
        %v5853 = vsub.s32 %v5849, %v5852
        %vm5854 = vcmp.lt.s32.totalorder %v5853, 0
        %v5855 = vsub.s32 0, %v5853
        %v5856 = vsel %vm5854, %v5855, %v5853
        %v5857 = vclz %v5856
        %v5858 = vsub.s32 %v5857, 2
        %vm5859 = vcmp.gt.s32.totalorder 0, %v5858
        %v5860 = vsel %vm5859, 0, %v5858
        %v5861 = vsub.s32 32, %v5860
        %v5862 = vshll.u32 %v5853, %v5860
        %v5863 = vshrl.u32 %v5845, %v5861
        %v5864 = vor.u32 %v5862, %v5863
        %v5865 = vsub.s32 4294967266, %v5860
        %v5866 = vadd.s32 %v5865, 127
        %v5867 = vshll.u32 %v5866, 23
        %v5868 = vor.u32 4788187, %v5867
        %v5869 = vand.u32 2147483647, %v5868
        %v5871 = vcvt.s32.f32 %v5864
        %v5872 = vmul.f32 %v5871, %v5869
        %v5873 = vxor.u32 %v5872, 2147483648
        %v5874 = vsel %vm5791, %v5873, %v5872
        %v5875 = vsub.s32 4, %v5851
        %v5876 = vsel %vm5791, %v5875, %v5851
        %v5877 = vsel %vm5790, %v2201, %v5874
        %v5878 = vsel %vm5790, 0, %v5876
        %v5879 = vcosq.f32.pop %v5877
        %v5880 = vsinq.f32.pop %v5877
        %vm5881 = vweird.f32 %v2201
        %v5882 = vand.u32 %v5878, 3
        %vm5883 = vcmp.lt.s32.totalorder %v5882, 2
        %vm5884 = vcmp.eq.s32.totalorder %v5882, 0
        %v5885 = vxor.u32 %v5880, 2147483648
        %v5886 = vsel %vm5884, %v5879, %v5885
        %vm5887 = vcmp.eq.s32.totalorder %v5882, 2
        %v5888 = vxor.u32 %v5879, 2147483648
        %v5889 = vsel %vm5887, %v5888, %v5880
        %v5890 = vsel %vm5883, %v5886, %v5889
        %v5891 = vsel %vm5881, nan, %v5890
        %v5892 = vand.u32 2147483647, %v2202
        %vm5893 = vcmp.le.f32.partialorder %v5892, 0.7853982
        %vm5894 = vcmp.lt.s32.totalorder %v2202, 0
        %v5895 = vand.u32 %v2202, 2139095040
        %v5896 = vshrl.u32 %v5895, 23
        %v5897 = vsub.s32 %v5896, 127
        %v5898 = vand.u32 2147483647, %v2202
        %v5899 = vand.u32 %v5898, 8388607
        %v5900 = vor.u32 %v5899, 8388608
        %v5901 = vsub.s32 0, %v5900
        %v5902 = vadd.s32 %v5897, 1
        %vm5903 = vcmp.gt.s32.totalorder %v5902, 0
        %v5904 = vsel %vm5903, %v5902, 0
        %v5905 = vshrl.u32 %v5904, 5
        %v5906 = vand.u32 %v5904, 31
        %v5907 = vsub.s32 32, %v5906
        %v5908 = vshrl.u32 683565275, %v5907
        %v5909 = vshll.u32 683565275, %v5906
        %v5910 = vshrl.u32 2475754826, %v5907
        %v5911 = vor.u32 %v5909, %v5910
        %v5912 = vshll.u32 2475754826, %v5906
        %v5913 = vshrl.u32 2131351028, %v5907
        %v5914 = vor.u32 %v5912, %v5913
        %v5915 = vshll.u32 2131351028, %v5906
        %v5916 = vshrl.u32 2102212464, %v5907
        %v5917 = vor.u32 %v5915, %v5916
        %v5918 = vshll.u32 2102212464, %v5906
        %v5919 = vshrl.u32 920167782, %v5907
        %v5920 = vor.u32 %v5918, %v5919
        %v5921 = vshll.u32 920167782, %v5906
        %v5922 = vshrl.u32 1326507024, %v5907
        %v5923 = vor.u32 %v5921, %v5922
        %vm5924 = vcmp.lt.s32.totalorder %v5905, 1
        %vm5925 = vcmp.lt.s32.totalorder %v5905, 2
        %vm5926 = vcmp.lt.s32.totalorder %v5905, 3
        %vm5927 = vcmp.lt.s32.totalorder %v5905, 4
        %v5928 = vsel %vm5924, %v5908, %v5911
        %v5929 = vsel %vm5927, %v5917, 2102212464
        %v5930 = vsel %vm5926, %v5914, %v5929
        %v5931 = vsel %vm5925, %v5928, %v5930
        %v5932 = vsel %vm5924, %v5911, %v5914
        %v5933 = vsel %vm5927, %v5920, 920167782
        %v5934 = vsel %vm5926, %v5917, %v5933
        %v5935 = vsel %vm5925, %v5932, %v5934
        %v5936 = vsel %vm5924, %v5914, %v5917
        %v5937 = vsel %vm5927, %v5923, 1326507024
        %v5938 = vsel %vm5926, %v5920, %v5937
        %v5939 = vsel %vm5925, %v5936, %v5938
        %v5940 = vshll.u32 %v5900, 8
        %v5941 = vmul.u32.u64.compose %v5940, %v5939
        %v5942 = vextract.low.u32 %v5941
        %v5943 = vextract.high.u32 %v5941
        %v5944 = vmul.u32.u64.compose %v5940, %v5935
        %v5945 = vextract.low.u32 %v5944
        %v5946 = vextract.high.u32 %v5944
        %v5947 = vmul.u32 %v5940, %v5931
        %v5948 = vadd.s32 %v5943, %v5945
        %vm5949 = vc.u32 %v5943, %v5945
        %v5950 = vadd.s32 %v5946, 1
        %v5951 = vsel %vm5949, %v5950, %v5946
        %v5952 = vadd.s32 %v5947, %v5951
        %v5953 = vadd.s32 %v5952, 536870912
        %v5954 = vshrl.u32 %v5953, 30
        %v5955 = vshll.u32 %v5954, 30
        %v5956 = vsub.s32 %v5952, %v5955
        %vm5957 = vcmp.lt.s32.totalorder %v5956, 0
        %v5958 = vsub.s32 0, %v5956
        %v5959 = vsel %vm5957, %v5958, %v5956
        %v5960 = vclz %v5959
        %v5961 = vsub.s32 %v5960, 2
        %vm5962 = vcmp.gt.s32.totalorder 0, %v5961
        %v5963 = vsel %vm5962, 0, %v5961
        %v5964 = vsub.s32 32, %v5963
        %v5965 = vshll.u32 %v5956, %v5963
        %v5966 = vshrl.u32 %v5948, %v5964
        %v5967 = vor.u32 %v5965, %v5966
        %v5968 = vsub.s32 4294967266, %v5963
        %v5969 = vadd.s32 %v5968, 127
        %v5970 = vshll.u32 %v5969, 23
        %v5971 = vor.u32 4788187, %v5970
        %v5972 = vand.u32 2147483647, %v5971
        %v5974 = vcvt.s32.f32 %v5967
        %v5975 = vmul.f32 %v5974, %v5972
        %v5976 = vxor.u32 %v5975, 2147483648
        %v5977 = vsel %vm5894, %v5976, %v5975
        %v5978 = vsub.s32 4, %v5954
        %v5979 = vsel %vm5894, %v5978, %v5954
        %v5980 = vsel %vm5893, %v2202, %v5977
        %v5981 = vsel %vm5893, 0, %v5979
        %v5982 = vcosq.f32.pop %v5980
        %v5983 = vsinq.f32.pop %v5980
        %vm5984 = vweird.f32 %v2202
        %v5985 = vand.u32 %v5981, 3
        %vm5986 = vcmp.lt.s32.totalorder %v5985, 2
        %vm5987 = vcmp.eq.s32.totalorder %v5985, 0
        %v5988 = vxor.u32 %v5983, 2147483648
        %v5989 = vsel %vm5987, %v5982, %v5988
        %vm5990 = vcmp.eq.s32.totalorder %v5985, 2
        %v5991 = vxor.u32 %v5982, 2147483648
        %v5992 = vsel %vm5990, %v5991, %v5983
        %v5993 = vsel %vm5986, %v5989, %v5992
        %v5994 = vsel %vm5984, nan, %v5993
        %v5995 = vand.u32 2147483647, %v2203
        %vm5996 = vcmp.le.f32.partialorder %v5995, 0.7853982
        %vm5997 = vcmp.lt.s32.totalorder %v2203, 0
        %v5998 = vand.u32 %v2203, 2139095040
        %v5999 = vshrl.u32 %v5998, 23
        %v6000 = vsub.s32 %v5999, 127
        %v6001 = vand.u32 2147483647, %v2203
        %v6002 = vand.u32 %v6001, 8388607
        %v6003 = vor.u32 %v6002, 8388608
        %v6004 = vsub.s32 0, %v6003
        %v6005 = vadd.s32 %v6000, 1
        %vm6006 = vcmp.gt.s32.totalorder %v6005, 0
        %v6007 = vsel %vm6006, %v6005, 0
        %v6008 = vshrl.u32 %v6007, 5
        %v6009 = vand.u32 %v6007, 31
        %v6010 = vsub.s32 32, %v6009
        %v6011 = vshrl.u32 683565275, %v6010
        %v6012 = vshll.u32 683565275, %v6009
        %v6013 = vshrl.u32 2475754826, %v6010
        %v6014 = vor.u32 %v6012, %v6013
        %v6015 = vshll.u32 2475754826, %v6009
        %v6016 = vshrl.u32 2131351028, %v6010
        %v6017 = vor.u32 %v6015, %v6016
        %v6018 = vshll.u32 2131351028, %v6009
        %v6019 = vshrl.u32 2102212464, %v6010
        %v6020 = vor.u32 %v6018, %v6019
        %v6021 = vshll.u32 2102212464, %v6009
        %v6022 = vshrl.u32 920167782, %v6010
        %v6023 = vor.u32 %v6021, %v6022
        %v6024 = vshll.u32 920167782, %v6009
        %v6025 = vshrl.u32 1326507024, %v6010
        %v6026 = vor.u32 %v6024, %v6025
        %vm6027 = vcmp.lt.s32.totalorder %v6008, 1
        %vm6028 = vcmp.lt.s32.totalorder %v6008, 2
        %vm6029 = vcmp.lt.s32.totalorder %v6008, 3
        %vm6030 = vcmp.lt.s32.totalorder %v6008, 4
        %v6031 = vsel %vm6027, %v6011, %v6014
        %v6032 = vsel %vm6030, %v6020, 2102212464
        %v6033 = vsel %vm6029, %v6017, %v6032
        %v6034 = vsel %vm6028, %v6031, %v6033
        %v6035 = vsel %vm6027, %v6014, %v6017
        %v6036 = vsel %vm6030, %v6023, 920167782
        %v6037 = vsel %vm6029, %v6020, %v6036
        %v6038 = vsel %vm6028, %v6035, %v6037
        %v6039 = vsel %vm6027, %v6017, %v6020
        %v6040 = vsel %vm6030, %v6026, 1326507024
        %v6041 = vsel %vm6029, %v6023, %v6040
        %v6042 = vsel %vm6028, %v6039, %v6041
        %v6043 = vshll.u32 %v6003, 8
        %v6044 = vmul.u32.u64.compose %v6043, %v6042
        %v6045 = vextract.low.u32 %v6044
        %v6046 = vextract.high.u32 %v6044
        %v6047 = vmul.u32.u64.compose %v6043, %v6038
        %v6048 = vextract.low.u32 %v6047
        %v6049 = vextract.high.u32 %v6047
        %v6050 = vmul.u32 %v6043, %v6034
        %v6051 = vadd.s32 %v6046, %v6048
        %vm6052 = vc.u32 %v6046, %v6048
        %v6053 = vadd.s32 %v6049, 1
        %v6054 = vsel %vm6052, %v6053, %v6049
        %v6055 = vadd.s32 %v6050, %v6054
        %v6056 = vadd.s32 %v6055, 536870912
        %v6057 = vshrl.u32 %v6056, 30
        %v6058 = vshll.u32 %v6057, 30
        %v6059 = vsub.s32 %v6055, %v6058
        %vm6060 = vcmp.lt.s32.totalorder %v6059, 0
        %v6061 = vsub.s32 0, %v6059
        %v6062 = vsel %vm6060, %v6061, %v6059
        %v6063 = vclz %v6062
        %v6064 = vsub.s32 %v6063, 2
        %vm6065 = vcmp.gt.s32.totalorder 0, %v6064
        %v6066 = vsel %vm6065, 0, %v6064
        %v6067 = vsub.s32 32, %v6066
        %v6068 = vshll.u32 %v6059, %v6066
        %v6069 = vshrl.u32 %v6051, %v6067
        %v6070 = vor.u32 %v6068, %v6069
        %v6071 = vsub.s32 4294967266, %v6066
        %v6072 = vadd.s32 %v6071, 127
        %v6073 = vshll.u32 %v6072, 23
        %v6074 = vor.u32 4788187, %v6073
        %v6075 = vand.u32 2147483647, %v6074
        %v6077 = vcvt.s32.f32 %v6070
        %v6078 = vmul.f32 %v6077, %v6075
        %v6079 = vxor.u32 %v6078, 2147483648
        %v6080 = vsel %vm5997, %v6079, %v6078
        %v6081 = vsub.s32 4, %v6057
        %v6082 = vsel %vm5997, %v6081, %v6057
        %v6083 = vsel %vm5996, %v2203, %v6080
        %v6084 = vsel %vm5996, 0, %v6082
        %v6085 = vcosq.f32.pop %v6083
        %v6086 = vsinq.f32.pop %v6083
        %vm6087 = vweird.f32 %v2203
        %v6088 = vand.u32 %v6084, 3
        %vm6089 = vcmp.lt.s32.totalorder %v6088, 2
        %vm6090 = vcmp.eq.s32.totalorder %v6088, 0
        %v6091 = vxor.u32 %v6086, 2147483648
        %v6092 = vsel %vm6090, %v6085, %v6091
        %vm6093 = vcmp.eq.s32.totalorder %v6088, 2
        %v6094 = vxor.u32 %v6085, 2147483648
        %v6095 = vsel %vm6093, %v6094, %v6086
        %v6096 = vsel %vm6089, %v6092, %v6095
        %v6097 = vsel %vm6087, nan, %v6096
        %v6098 = vand.u32 2147483647, %v2204
        %vm6099 = vcmp.le.f32.partialorder %v6098, 0.7853982
        %vm6100 = vcmp.lt.s32.totalorder %v2204, 0
        %v6101 = vand.u32 %v2204, 2139095040
        %v6102 = vshrl.u32 %v6101, 23
        %v6103 = vsub.s32 %v6102, 127
        %v6104 = vand.u32 2147483647, %v2204
        %v6105 = vand.u32 %v6104, 8388607
        %v6106 = vor.u32 %v6105, 8388608
        %v6107 = vsub.s32 0, %v6106
        %v6108 = vadd.s32 %v6103, 1
        %vm6109 = vcmp.gt.s32.totalorder %v6108, 0
        %v6110 = vsel %vm6109, %v6108, 0
        %v6111 = vshrl.u32 %v6110, 5
        %v6112 = vand.u32 %v6110, 31
        %v6113 = vsub.s32 32, %v6112
        %v6114 = vshrl.u32 683565275, %v6113
        %v6115 = vshll.u32 683565275, %v6112
        %v6116 = vshrl.u32 2475754826, %v6113
        %v6117 = vor.u32 %v6115, %v6116
        %v6118 = vshll.u32 2475754826, %v6112
        %v6119 = vshrl.u32 2131351028, %v6113
        %v6120 = vor.u32 %v6118, %v6119
        %v6121 = vshll.u32 2131351028, %v6112
        %v6122 = vshrl.u32 2102212464, %v6113
        %v6123 = vor.u32 %v6121, %v6122
        %v6124 = vshll.u32 2102212464, %v6112
        %v6125 = vshrl.u32 920167782, %v6113
        %v6126 = vor.u32 %v6124, %v6125
        %v6127 = vshll.u32 920167782, %v6112
        %v6128 = vshrl.u32 1326507024, %v6113
        %v6129 = vor.u32 %v6127, %v6128
        %vm6130 = vcmp.lt.s32.totalorder %v6111, 1
        %vm6131 = vcmp.lt.s32.totalorder %v6111, 2
        %vm6132 = vcmp.lt.s32.totalorder %v6111, 3
        %vm6133 = vcmp.lt.s32.totalorder %v6111, 4
        %v6134 = vsel %vm6130, %v6114, %v6117
        %v6135 = vsel %vm6133, %v6123, 2102212464
        %v6136 = vsel %vm6132, %v6120, %v6135
        %v6137 = vsel %vm6131, %v6134, %v6136
        %v6138 = vsel %vm6130, %v6117, %v6120
        %v6139 = vsel %vm6133, %v6126, 920167782
        %v6140 = vsel %vm6132, %v6123, %v6139
        %v6141 = vsel %vm6131, %v6138, %v6140
        %v6142 = vsel %vm6130, %v6120, %v6123
        %v6143 = vsel %vm6133, %v6129, 1326507024
        %v6144 = vsel %vm6132, %v6126, %v6143
        %v6145 = vsel %vm6131, %v6142, %v6144
        %v6146 = vshll.u32 %v6106, 8
        %v6147 = vmul.u32.u64.compose %v6146, %v6145
        %v6148 = vextract.low.u32 %v6147
        %v6149 = vextract.high.u32 %v6147
        %v6150 = vmul.u32.u64.compose %v6146, %v6141
        %v6151 = vextract.low.u32 %v6150
        %v6152 = vextract.high.u32 %v6150
        %v6153 = vmul.u32 %v6146, %v6137
        %v6154 = vadd.s32 %v6149, %v6151
        %vm6155 = vc.u32 %v6149, %v6151
        %v6156 = vadd.s32 %v6152, 1
        %v6157 = vsel %vm6155, %v6156, %v6152
        %v6158 = vadd.s32 %v6153, %v6157
        %v6159 = vadd.s32 %v6158, 536870912
        %v6160 = vshrl.u32 %v6159, 30
        %v6161 = vshll.u32 %v6160, 30
        %v6162 = vsub.s32 %v6158, %v6161
        %vm6163 = vcmp.lt.s32.totalorder %v6162, 0
        %v6164 = vsub.s32 0, %v6162
        %v6165 = vsel %vm6163, %v6164, %v6162
        %v6166 = vclz %v6165
        %v6167 = vsub.s32 %v6166, 2
        %vm6168 = vcmp.gt.s32.totalorder 0, %v6167
        %v6169 = vsel %vm6168, 0, %v6167
        %v6170 = vsub.s32 32, %v6169
        %v6171 = vshll.u32 %v6162, %v6169
        %v6172 = vshrl.u32 %v6154, %v6170
        %v6173 = vor.u32 %v6171, %v6172
        %v6174 = vsub.s32 4294967266, %v6169
        %v6175 = vadd.s32 %v6174, 127
        %v6176 = vshll.u32 %v6175, 23
        %v6177 = vor.u32 4788187, %v6176
        %v6178 = vand.u32 2147483647, %v6177
        %v6180 = vcvt.s32.f32 %v6173
        %v6181 = vmul.f32 %v6180, %v6178
        %v6182 = vxor.u32 %v6181, 2147483648
        %v6183 = vsel %vm6100, %v6182, %v6181
        %v6184 = vsub.s32 4, %v6160
        %v6185 = vsel %vm6100, %v6184, %v6160
        %v6186 = vsel %vm6099, %v2204, %v6183
        %v6187 = vsel %vm6099, 0, %v6185
        %v6188 = vcosq.f32.pop %v6186
        %v6189 = vsinq.f32.pop %v6186
        %vm6190 = vweird.f32 %v2204
        %v6191 = vand.u32 %v6187, 3
        %vm6192 = vcmp.lt.s32.totalorder %v6191, 2
        %vm6193 = vcmp.eq.s32.totalorder %v6191, 0
        %v6194 = vxor.u32 %v6189, 2147483648
        %v6195 = vsel %vm6193, %v6188, %v6194
        %vm6196 = vcmp.eq.s32.totalorder %v6191, 2
        %v6197 = vxor.u32 %v6188, 2147483648
        %v6198 = vsel %vm6196, %v6197, %v6189
        %v6199 = vsel %vm6192, %v6195, %v6198
        %v6200 = vsel %vm6190, nan, %v6199
        %v6201 = vand.u32 2147483647, %v2205
        %vm6202 = vcmp.le.f32.partialorder %v6201, 0.7853982
        %vm6203 = vcmp.lt.s32.totalorder %v2205, 0
        %v6204 = vand.u32 %v2205, 2139095040
        %v6205 = vshrl.u32 %v6204, 23
        %v6206 = vsub.s32 %v6205, 127
        %v6207 = vand.u32 2147483647, %v2205
        %v6208 = vand.u32 %v6207, 8388607
        %v6209 = vor.u32 %v6208, 8388608
        %v6210 = vsub.s32 0, %v6209
        %v6211 = vadd.s32 %v6206, 1
        %vm6212 = vcmp.gt.s32.totalorder %v6211, 0
        %v6213 = vsel %vm6212, %v6211, 0
        %v6214 = vshrl.u32 %v6213, 5
        %v6215 = vand.u32 %v6213, 31
        %v6216 = vsub.s32 32, %v6215
        %v6217 = vshrl.u32 683565275, %v6216
        %v6218 = vshll.u32 683565275, %v6215
        %v6219 = vshrl.u32 2475754826, %v6216
        %v6220 = vor.u32 %v6218, %v6219
        %v6221 = vshll.u32 2475754826, %v6215
        %v6222 = vshrl.u32 2131351028, %v6216
        %v6223 = vor.u32 %v6221, %v6222
        %v6224 = vshll.u32 2131351028, %v6215
        %v6225 = vshrl.u32 2102212464, %v6216
        %v6226 = vor.u32 %v6224, %v6225
        %v6227 = vshll.u32 2102212464, %v6215
        %v6228 = vshrl.u32 920167782, %v6216
        %v6229 = vor.u32 %v6227, %v6228
        %v6230 = vshll.u32 920167782, %v6215
        %v6231 = vshrl.u32 1326507024, %v6216
        %v6232 = vor.u32 %v6230, %v6231
        %vm6233 = vcmp.lt.s32.totalorder %v6214, 1
        %vm6234 = vcmp.lt.s32.totalorder %v6214, 2
        %vm6235 = vcmp.lt.s32.totalorder %v6214, 3
        %vm6236 = vcmp.lt.s32.totalorder %v6214, 4
        %v6237 = vsel %vm6233, %v6217, %v6220
        %v6238 = vsel %vm6236, %v6226, 2102212464
        %v6239 = vsel %vm6235, %v6223, %v6238
        %v6240 = vsel %vm6234, %v6237, %v6239
        %v6241 = vsel %vm6233, %v6220, %v6223
        %v6242 = vsel %vm6236, %v6229, 920167782
        %v6243 = vsel %vm6235, %v6226, %v6242
        %v6244 = vsel %vm6234, %v6241, %v6243
        %v6245 = vsel %vm6233, %v6223, %v6226
        %v6246 = vsel %vm6236, %v6232, 1326507024
        %v6247 = vsel %vm6235, %v6229, %v6246
        %v6248 = vsel %vm6234, %v6245, %v6247
        %v6249 = vshll.u32 %v6209, 8
        %v6250 = vmul.u32.u64.compose %v6249, %v6248
        %v6251 = vextract.low.u32 %v6250
        %v6252 = vextract.high.u32 %v6250
        %v6253 = vmul.u32.u64.compose %v6249, %v6244
        %v6254 = vextract.low.u32 %v6253
        %v6255 = vextract.high.u32 %v6253
        %v6256 = vmul.u32 %v6249, %v6240
        %v6257 = vadd.s32 %v6252, %v6254
        %vm6258 = vc.u32 %v6252, %v6254
        %v6259 = vadd.s32 %v6255, 1
        %v6260 = vsel %vm6258, %v6259, %v6255
        %v6261 = vadd.s32 %v6256, %v6260
        %v6262 = vadd.s32 %v6261, 536870912
        %v6263 = vshrl.u32 %v6262, 30
        %v6264 = vshll.u32 %v6263, 30
        %v6265 = vsub.s32 %v6261, %v6264
        %vm6266 = vcmp.lt.s32.totalorder %v6265, 0
        %v6267 = vsub.s32 0, %v6265
        %v6268 = vsel %vm6266, %v6267, %v6265
        %v6269 = vclz %v6268
        %v6270 = vsub.s32 %v6269, 2
        %vm6271 = vcmp.gt.s32.totalorder 0, %v6270
        %v6272 = vsel %vm6271, 0, %v6270
        %v6273 = vsub.s32 32, %v6272
        %v6274 = vshll.u32 %v6265, %v6272
        %v6275 = vshrl.u32 %v6257, %v6273
        %v6276 = vor.u32 %v6274, %v6275
        %v6277 = vsub.s32 4294967266, %v6272
        %v6278 = vadd.s32 %v6277, 127
        %v6279 = vshll.u32 %v6278, 23
        %v6280 = vor.u32 4788187, %v6279
        %v6281 = vand.u32 2147483647, %v6280
        %v6283 = vcvt.s32.f32 %v6276
        %v6284 = vmul.f32 %v6283, %v6281
        %v6285 = vxor.u32 %v6284, 2147483648
        %v6286 = vsel %vm6203, %v6285, %v6284
        %v6287 = vsub.s32 4, %v6263
        %v6288 = vsel %vm6203, %v6287, %v6263
        %v6289 = vsel %vm6202, %v2205, %v6286
        %v6290 = vsel %vm6202, 0, %v6288
        %v6291 = vcosq.f32.pop %v6289
        %v6292 = vsinq.f32.pop %v6289
        %vm6293 = vweird.f32 %v2205
        %v6294 = vand.u32 %v6290, 3
        %vm6295 = vcmp.lt.s32.totalorder %v6294, 2
        %vm6296 = vcmp.eq.s32.totalorder %v6294, 0
        %v6297 = vxor.u32 %v6292, 2147483648
        %v6298 = vsel %vm6296, %v6291, %v6297
        %vm6299 = vcmp.eq.s32.totalorder %v6294, 2
        %v6300 = vxor.u32 %v6291, 2147483648
        %v6301 = vsel %vm6299, %v6300, %v6292
        %v6302 = vsel %vm6295, %v6298, %v6301
        %v6303 = vsel %vm6293, nan, %v6302
        %v6304 = vand.u32 2147483647, %v2206
        %vm6305 = vcmp.le.f32.partialorder %v6304, 0.7853982
        %vm6306 = vcmp.lt.s32.totalorder %v2206, 0
        %v6307 = vand.u32 %v2206, 2139095040
        %v6308 = vshrl.u32 %v6307, 23
        %v6309 = vsub.s32 %v6308, 127
        %v6310 = vand.u32 2147483647, %v2206
        %v6311 = vand.u32 %v6310, 8388607
        %v6312 = vor.u32 %v6311, 8388608
        %v6313 = vsub.s32 0, %v6312
        %v6314 = vadd.s32 %v6309, 1
        %vm6315 = vcmp.gt.s32.totalorder %v6314, 0
        %v6316 = vsel %vm6315, %v6314, 0
        %v6317 = vshrl.u32 %v6316, 5
        %v6318 = vand.u32 %v6316, 31
        %v6319 = vsub.s32 32, %v6318
        %v6320 = vshrl.u32 683565275, %v6319
        %v6321 = vshll.u32 683565275, %v6318
        %v6322 = vshrl.u32 2475754826, %v6319
        %v6323 = vor.u32 %v6321, %v6322
        %v6324 = vshll.u32 2475754826, %v6318
        %v6325 = vshrl.u32 2131351028, %v6319
        %v6326 = vor.u32 %v6324, %v6325
        %v6327 = vshll.u32 2131351028, %v6318
        %v6328 = vshrl.u32 2102212464, %v6319
        %v6329 = vor.u32 %v6327, %v6328
        %v6330 = vshll.u32 2102212464, %v6318
        %v6331 = vshrl.u32 920167782, %v6319
        %v6332 = vor.u32 %v6330, %v6331
        %v6333 = vshll.u32 920167782, %v6318
        %v6334 = vshrl.u32 1326507024, %v6319
        %v6335 = vor.u32 %v6333, %v6334
        %vm6336 = vcmp.lt.s32.totalorder %v6317, 1
        %vm6337 = vcmp.lt.s32.totalorder %v6317, 2
        %vm6338 = vcmp.lt.s32.totalorder %v6317, 3
        %vm6339 = vcmp.lt.s32.totalorder %v6317, 4
        %v6340 = vsel %vm6336, %v6320, %v6323
        %v6341 = vsel %vm6339, %v6329, 2102212464
        %v6342 = vsel %vm6338, %v6326, %v6341
        %v6343 = vsel %vm6337, %v6340, %v6342
        %v6344 = vsel %vm6336, %v6323, %v6326
        %v6345 = vsel %vm6339, %v6332, 920167782
        %v6346 = vsel %vm6338, %v6329, %v6345
        %v6347 = vsel %vm6337, %v6344, %v6346
        %v6348 = vsel %vm6336, %v6326, %v6329
        %v6349 = vsel %vm6339, %v6335, 1326507024
        %v6350 = vsel %vm6338, %v6332, %v6349
        %v6351 = vsel %vm6337, %v6348, %v6350
        %v6352 = vshll.u32 %v6312, 8
        %v6353 = vmul.u32.u64.compose %v6352, %v6351
        %v6354 = vextract.low.u32 %v6353
        %v6355 = vextract.high.u32 %v6353
        %v6356 = vmul.u32.u64.compose %v6352, %v6347
        %v6357 = vextract.low.u32 %v6356
        %v6358 = vextract.high.u32 %v6356
        %v6359 = vmul.u32 %v6352, %v6343
        %v6360 = vadd.s32 %v6355, %v6357
        %vm6361 = vc.u32 %v6355, %v6357
        %v6362 = vadd.s32 %v6358, 1
        %v6363 = vsel %vm6361, %v6362, %v6358
        %v6364 = vadd.s32 %v6359, %v6363
        %v6365 = vadd.s32 %v6364, 536870912
        %v6366 = vshrl.u32 %v6365, 30
        %v6367 = vshll.u32 %v6366, 30
        %v6368 = vsub.s32 %v6364, %v6367
        %vm6369 = vcmp.lt.s32.totalorder %v6368, 0
        %v6370 = vsub.s32 0, %v6368
        %v6371 = vsel %vm6369, %v6370, %v6368
        %v6372 = vclz %v6371
        %v6373 = vsub.s32 %v6372, 2
        %vm6374 = vcmp.gt.s32.totalorder 0, %v6373
        %v6375 = vsel %vm6374, 0, %v6373
        %v6376 = vsub.s32 32, %v6375
        %v6377 = vshll.u32 %v6368, %v6375
        %v6378 = vshrl.u32 %v6360, %v6376
        %v6379 = vor.u32 %v6377, %v6378
        %v6380 = vsub.s32 4294967266, %v6375
        %v6381 = vadd.s32 %v6380, 127
        %v6382 = vshll.u32 %v6381, 23
        %v6383 = vor.u32 4788187, %v6382
        %v6384 = vand.u32 2147483647, %v6383
        %v6386 = vcvt.s32.f32 %v6379
        %v6387 = vmul.f32 %v6386, %v6384
        %v6388 = vxor.u32 %v6387, 2147483648
        %v6389 = vsel %vm6306, %v6388, %v6387
        %v6390 = vsub.s32 4, %v6366
        %v6391 = vsel %vm6306, %v6390, %v6366
        %v6392 = vsel %vm6305, %v2206, %v6389
        %v6393 = vsel %vm6305, 0, %v6391
        %v6394 = vcosq.f32.pop %v6392
        %v6395 = vsinq.f32.pop %v6392
        %vm6396 = vweird.f32 %v2206
        %v6397 = vand.u32 %v6393, 3
        %vm6398 = vcmp.lt.s32.totalorder %v6397, 2
        %vm6399 = vcmp.eq.s32.totalorder %v6397, 0
        %v6400 = vxor.u32 %v6395, 2147483648
        %v6401 = vsel %vm6399, %v6394, %v6400
        %vm6402 = vcmp.eq.s32.totalorder %v6397, 2
        %v6403 = vxor.u32 %v6394, 2147483648
        %v6404 = vsel %vm6402, %v6403, %v6395
        %v6405 = vsel %vm6398, %v6401, %v6404
        %v6406 = vsel %vm6396, nan, %v6405
        %v6407 = vand.u32 2147483647, %v2207
        %vm6408 = vcmp.le.f32.partialorder %v6407, 0.7853982
        %vm6409 = vcmp.lt.s32.totalorder %v2207, 0
        %v6410 = vand.u32 %v2207, 2139095040
        %v6411 = vshrl.u32 %v6410, 23
        %v6412 = vsub.s32 %v6411, 127
        %v6413 = vand.u32 2147483647, %v2207
        %v6414 = vand.u32 %v6413, 8388607
        %v6415 = vor.u32 %v6414, 8388608
        %v6416 = vsub.s32 0, %v6415
        %v6417 = vadd.s32 %v6412, 1
        %vm6418 = vcmp.gt.s32.totalorder %v6417, 0
        %v6419 = vsel %vm6418, %v6417, 0
        %v6420 = vshrl.u32 %v6419, 5
        %v6421 = vand.u32 %v6419, 31
        %v6422 = vsub.s32 32, %v6421
        %v6423 = vshrl.u32 683565275, %v6422
        %v6424 = vshll.u32 683565275, %v6421
        %v6425 = vshrl.u32 2475754826, %v6422
        %v6426 = vor.u32 %v6424, %v6425
        %v6427 = vshll.u32 2475754826, %v6421
        %v6428 = vshrl.u32 2131351028, %v6422
        %v6429 = vor.u32 %v6427, %v6428
        %v6430 = vshll.u32 2131351028, %v6421
        %v6431 = vshrl.u32 2102212464, %v6422
        %v6432 = vor.u32 %v6430, %v6431
        %v6433 = vshll.u32 2102212464, %v6421
        %v6434 = vshrl.u32 920167782, %v6422
        %v6435 = vor.u32 %v6433, %v6434
        %v6436 = vshll.u32 920167782, %v6421
        %v6437 = vshrl.u32 1326507024, %v6422
        %v6438 = vor.u32 %v6436, %v6437
        %vm6439 = vcmp.lt.s32.totalorder %v6420, 1
        %vm6440 = vcmp.lt.s32.totalorder %v6420, 2
        %vm6441 = vcmp.lt.s32.totalorder %v6420, 3
        %vm6442 = vcmp.lt.s32.totalorder %v6420, 4
        %v6443 = vsel %vm6439, %v6423, %v6426
        %v6444 = vsel %vm6442, %v6432, 2102212464
        %v6445 = vsel %vm6441, %v6429, %v6444
        %v6446 = vsel %vm6440, %v6443, %v6445
        %v6447 = vsel %vm6439, %v6426, %v6429
        %v6448 = vsel %vm6442, %v6435, 920167782
        %v6449 = vsel %vm6441, %v6432, %v6448
        %v6450 = vsel %vm6440, %v6447, %v6449
        %v6451 = vsel %vm6439, %v6429, %v6432
        %v6452 = vsel %vm6442, %v6438, 1326507024
        %v6453 = vsel %vm6441, %v6435, %v6452
        %v6454 = vsel %vm6440, %v6451, %v6453
        %v6455 = vshll.u32 %v6415, 8
        %v6456 = vmul.u32.u64.compose %v6455, %v6454
        %v6457 = vextract.low.u32 %v6456
        %v6458 = vextract.high.u32 %v6456
        %v6459 = vmul.u32.u64.compose %v6455, %v6450
        %v6460 = vextract.low.u32 %v6459
        %v6461 = vextract.high.u32 %v6459
        %v6462 = vmul.u32 %v6455, %v6446
        %v6463 = vadd.s32 %v6458, %v6460
        %vm6464 = vc.u32 %v6458, %v6460
        %v6465 = vadd.s32 %v6461, 1
        %v6466 = vsel %vm6464, %v6465, %v6461
        %v6467 = vadd.s32 %v6462, %v6466
        %v6468 = vadd.s32 %v6467, 536870912
        %v6469 = vshrl.u32 %v6468, 30
        %v6470 = vshll.u32 %v6469, 30
        %v6471 = vsub.s32 %v6467, %v6470
        %vm6472 = vcmp.lt.s32.totalorder %v6471, 0
        %v6473 = vsub.s32 0, %v6471
        %v6474 = vsel %vm6472, %v6473, %v6471
        %v6475 = vclz %v6474
        %v6476 = vsub.s32 %v6475, 2
        %vm6477 = vcmp.gt.s32.totalorder 0, %v6476
        %v6478 = vsel %vm6477, 0, %v6476
        %v6479 = vsub.s32 32, %v6478
        %v6480 = vshll.u32 %v6471, %v6478
        %v6481 = vshrl.u32 %v6463, %v6479
        %v6482 = vor.u32 %v6480, %v6481
        %v6483 = vsub.s32 4294967266, %v6478
        %v6484 = vadd.s32 %v6483, 127
        %v6485 = vshll.u32 %v6484, 23
        %v6486 = vor.u32 4788187, %v6485
        %v6487 = vand.u32 2147483647, %v6486
        %v6489 = vcvt.s32.f32 %v6482
        %v6490 = vmul.f32 %v6489, %v6487
        %v6491 = vxor.u32 %v6490, 2147483648
        %v6492 = vsel %vm6409, %v6491, %v6490
        %v6493 = vsub.s32 4, %v6469
        %v6494 = vsel %vm6409, %v6493, %v6469
        %v6495 = vsel %vm6408, %v2207, %v6492
        %v6496 = vsel %vm6408, 0, %v6494
        %v6497 = vcosq.f32.pop %v6495
        %v6498 = vsinq.f32.pop %v6495
        %vm6499 = vweird.f32 %v2207
        %v6500 = vand.u32 %v6496, 3
        %vm6501 = vcmp.lt.s32.totalorder %v6500, 2
        %vm6502 = vcmp.eq.s32.totalorder %v6500, 0
        %v6503 = vxor.u32 %v6498, 2147483648
        %v6504 = vsel %vm6502, %v6497, %v6503
        %vm6505 = vcmp.eq.s32.totalorder %v6500, 2
        %v6506 = vxor.u32 %v6497, 2147483648
        %v6507 = vsel %vm6505, %v6506, %v6498
        %v6508 = vsel %vm6501, %v6504, %v6507
        %v6509 = vsel %vm6499, nan, %v6508
        %v6510 = vand.u32 2147483647, %v2208
        %vm6511 = vcmp.le.f32.partialorder %v6510, 0.7853982
        %vm6512 = vcmp.lt.s32.totalorder %v2208, 0
        %v6513 = vand.u32 %v2208, 2139095040
        %v6514 = vshrl.u32 %v6513, 23
        %v6515 = vsub.s32 %v6514, 127
        %v6516 = vand.u32 2147483647, %v2208
        %v6517 = vand.u32 %v6516, 8388607
        %v6518 = vor.u32 %v6517, 8388608
        %v6519 = vsub.s32 0, %v6518
        %v6520 = vadd.s32 %v6515, 1
        %vm6521 = vcmp.gt.s32.totalorder %v6520, 0
        %v6522 = vsel %vm6521, %v6520, 0
        %v6523 = vshrl.u32 %v6522, 5
        %v6524 = vand.u32 %v6522, 31
        %v6525 = vsub.s32 32, %v6524
        %v6526 = vshrl.u32 683565275, %v6525
        %v6527 = vshll.u32 683565275, %v6524
        %v6528 = vshrl.u32 2475754826, %v6525
        %v6529 = vor.u32 %v6527, %v6528
        %v6530 = vshll.u32 2475754826, %v6524
        %v6531 = vshrl.u32 2131351028, %v6525
        %v6532 = vor.u32 %v6530, %v6531
        %v6533 = vshll.u32 2131351028, %v6524
        %v6534 = vshrl.u32 2102212464, %v6525
        %v6535 = vor.u32 %v6533, %v6534
        %v6536 = vshll.u32 2102212464, %v6524
        %v6537 = vshrl.u32 920167782, %v6525
        %v6538 = vor.u32 %v6536, %v6537
        %v6539 = vshll.u32 920167782, %v6524
        %v6540 = vshrl.u32 1326507024, %v6525
        %v6541 = vor.u32 %v6539, %v6540
        %vm6542 = vcmp.lt.s32.totalorder %v6523, 1
        %vm6543 = vcmp.lt.s32.totalorder %v6523, 2
        %vm6544 = vcmp.lt.s32.totalorder %v6523, 3
        %vm6545 = vcmp.lt.s32.totalorder %v6523, 4
        %v6546 = vsel %vm6542, %v6526, %v6529
        %v6547 = vsel %vm6545, %v6535, 2102212464
        %v6548 = vsel %vm6544, %v6532, %v6547
        %v6549 = vsel %vm6543, %v6546, %v6548
        %v6550 = vsel %vm6542, %v6529, %v6532
        %v6551 = vsel %vm6545, %v6538, 920167782
        %v6552 = vsel %vm6544, %v6535, %v6551
        %v6553 = vsel %vm6543, %v6550, %v6552
        %v6554 = vsel %vm6542, %v6532, %v6535
        %v6555 = vsel %vm6545, %v6541, 1326507024
        %v6556 = vsel %vm6544, %v6538, %v6555
        %v6557 = vsel %vm6543, %v6554, %v6556
        %v6558 = vshll.u32 %v6518, 8
        %v6559 = vmul.u32.u64.compose %v6558, %v6557
        %v6560 = vextract.low.u32 %v6559
        %v6561 = vextract.high.u32 %v6559
        %v6562 = vmul.u32.u64.compose %v6558, %v6553
        %v6563 = vextract.low.u32 %v6562
        %v6564 = vextract.high.u32 %v6562
        %v6565 = vmul.u32 %v6558, %v6549
        %v6566 = vadd.s32 %v6561, %v6563
        %vm6567 = vc.u32 %v6561, %v6563
        %v6568 = vadd.s32 %v6564, 1
        %v6569 = vsel %vm6567, %v6568, %v6564
        %v6570 = vadd.s32 %v6565, %v6569
        %v6571 = vadd.s32 %v6570, 536870912
        %v6572 = vshrl.u32 %v6571, 30
        %v6573 = vshll.u32 %v6572, 30
        %v6574 = vsub.s32 %v6570, %v6573
        %vm6575 = vcmp.lt.s32.totalorder %v6574, 0
        %v6576 = vsub.s32 0, %v6574
        %v6577 = vsel %vm6575, %v6576, %v6574
        %v6578 = vclz %v6577
        %v6579 = vsub.s32 %v6578, 2
        %vm6580 = vcmp.gt.s32.totalorder 0, %v6579
        %v6581 = vsel %vm6580, 0, %v6579
        %v6582 = vsub.s32 32, %v6581
        %v6583 = vshll.u32 %v6574, %v6581
        %v6584 = vshrl.u32 %v6566, %v6582
        %v6585 = vor.u32 %v6583, %v6584
        %v6586 = vsub.s32 4294967266, %v6581
        %v6587 = vadd.s32 %v6586, 127
        %v6588 = vshll.u32 %v6587, 23
        %v6589 = vor.u32 4788187, %v6588
        %v6590 = vand.u32 2147483647, %v6589
        %v6592 = vcvt.s32.f32 %v6585
        %v6593 = vmul.f32 %v6592, %v6590
        %v6594 = vxor.u32 %v6593, 2147483648
        %v6595 = vsel %vm6512, %v6594, %v6593
        %v6596 = vsub.s32 4, %v6572
        %v6597 = vsel %vm6512, %v6596, %v6572
        %v6598 = vsel %vm6511, %v2208, %v6595
        %v6599 = vsel %vm6511, 0, %v6597
        %v6600 = vcosq.f32.pop %v6598
        %v6601 = vsinq.f32.pop %v6598
        %vm6602 = vweird.f32 %v2208
        %v6603 = vand.u32 %v6599, 3
        %vm6604 = vcmp.lt.s32.totalorder %v6603, 2
        %vm6605 = vcmp.eq.s32.totalorder %v6603, 0
        %v6606 = vxor.u32 %v6601, 2147483648
        %v6607 = vsel %vm6605, %v6600, %v6606
        %vm6608 = vcmp.eq.s32.totalorder %v6603, 2
        %v6609 = vxor.u32 %v6600, 2147483648
        %v6610 = vsel %vm6608, %v6609, %v6601
        %v6611 = vsel %vm6604, %v6607, %v6610
        %v6612 = vsel %vm6602, nan, %v6611
        %v6613 = vand.u32 2147483647, %v2209
        %vm6614 = vcmp.le.f32.partialorder %v6613, 0.7853982
        %vm6615 = vcmp.lt.s32.totalorder %v2209, 0
        %v6616 = vand.u32 %v2209, 2139095040
        %v6617 = vshrl.u32 %v6616, 23
        %v6618 = vsub.s32 %v6617, 127
        %v6619 = vand.u32 2147483647, %v2209
        %v6620 = vand.u32 %v6619, 8388607
        %v6621 = vor.u32 %v6620, 8388608
        %v6622 = vsub.s32 0, %v6621
        %v6623 = vadd.s32 %v6618, 1
        %vm6624 = vcmp.gt.s32.totalorder %v6623, 0
        %v6625 = vsel %vm6624, %v6623, 0
        %v6626 = vshrl.u32 %v6625, 5
        %v6627 = vand.u32 %v6625, 31
        %v6628 = vsub.s32 32, %v6627
        %v6629 = vshrl.u32 683565275, %v6628
        %v6630 = vshll.u32 683565275, %v6627
        %v6631 = vshrl.u32 2475754826, %v6628
        %v6632 = vor.u32 %v6630, %v6631
        %v6633 = vshll.u32 2475754826, %v6627
        %v6634 = vshrl.u32 2131351028, %v6628
        %v6635 = vor.u32 %v6633, %v6634
        %v6636 = vshll.u32 2131351028, %v6627
        %v6637 = vshrl.u32 2102212464, %v6628
        %v6638 = vor.u32 %v6636, %v6637
        %v6639 = vshll.u32 2102212464, %v6627
        %v6640 = vshrl.u32 920167782, %v6628
        %v6641 = vor.u32 %v6639, %v6640
        %v6642 = vshll.u32 920167782, %v6627
        %v6643 = vshrl.u32 1326507024, %v6628
        %v6644 = vor.u32 %v6642, %v6643
        %vm6645 = vcmp.lt.s32.totalorder %v6626, 1
        %vm6646 = vcmp.lt.s32.totalorder %v6626, 2
        %vm6647 = vcmp.lt.s32.totalorder %v6626, 3
        %vm6648 = vcmp.lt.s32.totalorder %v6626, 4
        %v6649 = vsel %vm6645, %v6629, %v6632
        %v6650 = vsel %vm6648, %v6638, 2102212464
        %v6651 = vsel %vm6647, %v6635, %v6650
        %v6652 = vsel %vm6646, %v6649, %v6651
        %v6653 = vsel %vm6645, %v6632, %v6635
        %v6654 = vsel %vm6648, %v6641, 920167782
        %v6655 = vsel %vm6647, %v6638, %v6654
        %v6656 = vsel %vm6646, %v6653, %v6655
        %v6657 = vsel %vm6645, %v6635, %v6638
        %v6658 = vsel %vm6648, %v6644, 1326507024
        %v6659 = vsel %vm6647, %v6641, %v6658
        %v6660 = vsel %vm6646, %v6657, %v6659
        %v6661 = vshll.u32 %v6621, 8
        %v6662 = vmul.u32.u64.compose %v6661, %v6660
        %v6663 = vextract.low.u32 %v6662
        %v6664 = vextract.high.u32 %v6662
        %v6665 = vmul.u32.u64.compose %v6661, %v6656
        %v6666 = vextract.low.u32 %v6665
        %v6667 = vextract.high.u32 %v6665
        %v6668 = vmul.u32 %v6661, %v6652
        %v6669 = vadd.s32 %v6664, %v6666
        %vm6670 = vc.u32 %v6664, %v6666
        %v6671 = vadd.s32 %v6667, 1
        %v6672 = vsel %vm6670, %v6671, %v6667
        %v6673 = vadd.s32 %v6668, %v6672
        %v6674 = vadd.s32 %v6673, 536870912
        %v6675 = vshrl.u32 %v6674, 30
        %v6676 = vshll.u32 %v6675, 30
        %v6677 = vsub.s32 %v6673, %v6676
        %vm6678 = vcmp.lt.s32.totalorder %v6677, 0
        %v6679 = vsub.s32 0, %v6677
        %v6680 = vsel %vm6678, %v6679, %v6677
        %v6681 = vclz %v6680
        %v6682 = vsub.s32 %v6681, 2
        %vm6683 = vcmp.gt.s32.totalorder 0, %v6682
        %v6684 = vsel %vm6683, 0, %v6682
        %v6685 = vsub.s32 32, %v6684
        %v6686 = vshll.u32 %v6677, %v6684
        %v6687 = vshrl.u32 %v6669, %v6685
        %v6688 = vor.u32 %v6686, %v6687
        %v6689 = vsub.s32 4294967266, %v6684
        %v6690 = vadd.s32 %v6689, 127
        %v6691 = vshll.u32 %v6690, 23
        %v6692 = vor.u32 4788187, %v6691
        %v6693 = vand.u32 2147483647, %v6692
        %v6695 = vcvt.s32.f32 %v6688
        %v6696 = vmul.f32 %v6695, %v6693
        %v6697 = vxor.u32 %v6696, 2147483648
        %v6698 = vsel %vm6615, %v6697, %v6696
        %v6699 = vsub.s32 4, %v6675
        %v6700 = vsel %vm6615, %v6699, %v6675
        %v6701 = vsel %vm6614, %v2209, %v6698
        %v6702 = vsel %vm6614, 0, %v6700
        %v6703 = vcosq.f32.pop %v6701
        %v6704 = vsinq.f32.pop %v6701
        %vm6705 = vweird.f32 %v2209
        %v6706 = vand.u32 %v6702, 3
        %vm6707 = vcmp.lt.s32.totalorder %v6706, 2
        %vm6708 = vcmp.eq.s32.totalorder %v6706, 0
        %v6709 = vxor.u32 %v6704, 2147483648
        %v6710 = vsel %vm6708, %v6703, %v6709
        %vm6711 = vcmp.eq.s32.totalorder %v6706, 2
        %v6712 = vxor.u32 %v6703, 2147483648
        %v6713 = vsel %vm6711, %v6712, %v6704
        %v6714 = vsel %vm6707, %v6710, %v6713
        %v6715 = vsel %vm6705, nan, %v6714
        %v6716 = vand.u32 2147483647, %v2210
        %vm6717 = vcmp.le.f32.partialorder %v6716, 0.7853982
        %vm6718 = vcmp.lt.s32.totalorder %v2210, 0
        %v6719 = vand.u32 %v2210, 2139095040
        %v6720 = vshrl.u32 %v6719, 23
        %v6721 = vsub.s32 %v6720, 127
        %v6722 = vand.u32 2147483647, %v2210
        %v6723 = vand.u32 %v6722, 8388607
        %v6724 = vor.u32 %v6723, 8388608
        %v6725 = vsub.s32 0, %v6724
        %v6726 = vadd.s32 %v6721, 1
        %vm6727 = vcmp.gt.s32.totalorder %v6726, 0
        %v6728 = vsel %vm6727, %v6726, 0
        %v6729 = vshrl.u32 %v6728, 5
        %v6730 = vand.u32 %v6728, 31
        %v6731 = vsub.s32 32, %v6730
        %v6732 = vshrl.u32 683565275, %v6731
        %v6733 = vshll.u32 683565275, %v6730
        %v6734 = vshrl.u32 2475754826, %v6731
        %v6735 = vor.u32 %v6733, %v6734
        %v6736 = vshll.u32 2475754826, %v6730
        %v6737 = vshrl.u32 2131351028, %v6731
        %v6738 = vor.u32 %v6736, %v6737
        %v6739 = vshll.u32 2131351028, %v6730
        %v6740 = vshrl.u32 2102212464, %v6731
        %v6741 = vor.u32 %v6739, %v6740
        %v6742 = vshll.u32 2102212464, %v6730
        %v6743 = vshrl.u32 920167782, %v6731
        %v6744 = vor.u32 %v6742, %v6743
        %v6745 = vshll.u32 920167782, %v6730
        %v6746 = vshrl.u32 1326507024, %v6731
        %v6747 = vor.u32 %v6745, %v6746
        %vm6748 = vcmp.lt.s32.totalorder %v6729, 1
        %vm6749 = vcmp.lt.s32.totalorder %v6729, 2
        %vm6750 = vcmp.lt.s32.totalorder %v6729, 3
        %vm6751 = vcmp.lt.s32.totalorder %v6729, 4
        %v6752 = vsel %vm6748, %v6732, %v6735
        %v6753 = vsel %vm6751, %v6741, 2102212464
        %v6754 = vsel %vm6750, %v6738, %v6753
        %v6755 = vsel %vm6749, %v6752, %v6754
        %v6756 = vsel %vm6748, %v6735, %v6738
        %v6757 = vsel %vm6751, %v6744, 920167782
        %v6758 = vsel %vm6750, %v6741, %v6757
        %v6759 = vsel %vm6749, %v6756, %v6758
        %v6760 = vsel %vm6748, %v6738, %v6741
        %v6761 = vsel %vm6751, %v6747, 1326507024
        %v6762 = vsel %vm6750, %v6744, %v6761
        %v6763 = vsel %vm6749, %v6760, %v6762
        %v6764 = vshll.u32 %v6724, 8
        %v6765 = vmul.u32.u64.compose %v6764, %v6763
        %v6766 = vextract.low.u32 %v6765
        %v6767 = vextract.high.u32 %v6765
        %v6768 = vmul.u32.u64.compose %v6764, %v6759
        %v6769 = vextract.low.u32 %v6768
        %v6770 = vextract.high.u32 %v6768
        %v6771 = vmul.u32 %v6764, %v6755
        %v6772 = vadd.s32 %v6767, %v6769
        %vm6773 = vc.u32 %v6767, %v6769
        %v6774 = vadd.s32 %v6770, 1
        %v6775 = vsel %vm6773, %v6774, %v6770
        %v6776 = vadd.s32 %v6771, %v6775
        %v6777 = vadd.s32 %v6776, 536870912
        %v6778 = vshrl.u32 %v6777, 30
        %v6779 = vshll.u32 %v6778, 30
        %v6780 = vsub.s32 %v6776, %v6779
        %vm6781 = vcmp.lt.s32.totalorder %v6780, 0
        %v6782 = vsub.s32 0, %v6780
        %v6783 = vsel %vm6781, %v6782, %v6780
        %v6784 = vclz %v6783
        %v6785 = vsub.s32 %v6784, 2
        %vm6786 = vcmp.gt.s32.totalorder 0, %v6785
        %v6787 = vsel %vm6786, 0, %v6785
        %v6788 = vsub.s32 32, %v6787
        %v6789 = vshll.u32 %v6780, %v6787
        %v6790 = vshrl.u32 %v6772, %v6788
        %v6791 = vor.u32 %v6789, %v6790
        %v6792 = vsub.s32 4294967266, %v6787
        %v6793 = vadd.s32 %v6792, 127
        %v6794 = vshll.u32 %v6793, 23
        %v6795 = vor.u32 4788187, %v6794
        %v6796 = vand.u32 2147483647, %v6795
        %v6798 = vcvt.s32.f32 %v6791
        %v6799 = vmul.f32 %v6798, %v6796
        %v6800 = vxor.u32 %v6799, 2147483648
        %v6801 = vsel %vm6718, %v6800, %v6799
        %v6802 = vsub.s32 4, %v6778
        %v6803 = vsel %vm6718, %v6802, %v6778
        %v6804 = vsel %vm6717, %v2210, %v6801
        %v6805 = vsel %vm6717, 0, %v6803
        %v6806 = vcosq.f32.pop %v6804
        %v6807 = vsinq.f32.pop %v6804
        %vm6808 = vweird.f32 %v2210
        %v6809 = vand.u32 %v6805, 3
        %vm6810 = vcmp.lt.s32.totalorder %v6809, 2
        %vm6811 = vcmp.eq.s32.totalorder %v6809, 0
        %v6812 = vxor.u32 %v6807, 2147483648
        %v6813 = vsel %vm6811, %v6806, %v6812
        %vm6814 = vcmp.eq.s32.totalorder %v6809, 2
        %v6815 = vxor.u32 %v6806, 2147483648
        %v6816 = vsel %vm6814, %v6815, %v6807
        %v6817 = vsel %vm6810, %v6813, %v6816
        %v6818 = vsel %vm6808, nan, %v6817
        %v6819 = vand.u32 2147483647, %v2211
        %vm6820 = vcmp.le.f32.partialorder %v6819, 0.7853982
        %vm6821 = vcmp.lt.s32.totalorder %v2211, 0
        %v6822 = vand.u32 %v2211, 2139095040
        %v6823 = vshrl.u32 %v6822, 23
        %v6824 = vsub.s32 %v6823, 127
        %v6825 = vand.u32 2147483647, %v2211
        %v6826 = vand.u32 %v6825, 8388607
        %v6827 = vor.u32 %v6826, 8388608
        %v6828 = vsub.s32 0, %v6827
        %v6829 = vadd.s32 %v6824, 1
        %vm6830 = vcmp.gt.s32.totalorder %v6829, 0
        %v6831 = vsel %vm6830, %v6829, 0
        %v6832 = vshrl.u32 %v6831, 5
        %v6833 = vand.u32 %v6831, 31
        %v6834 = vsub.s32 32, %v6833
        %v6835 = vshrl.u32 683565275, %v6834
        %v6836 = vshll.u32 683565275, %v6833
        %v6837 = vshrl.u32 2475754826, %v6834
        %v6838 = vor.u32 %v6836, %v6837
        %v6839 = vshll.u32 2475754826, %v6833
        %v6840 = vshrl.u32 2131351028, %v6834
        %v6841 = vor.u32 %v6839, %v6840
        %v6842 = vshll.u32 2131351028, %v6833
        %v6843 = vshrl.u32 2102212464, %v6834
        %v6844 = vor.u32 %v6842, %v6843
        %v6845 = vshll.u32 2102212464, %v6833
        %v6846 = vshrl.u32 920167782, %v6834
        %v6847 = vor.u32 %v6845, %v6846
        %v6848 = vshll.u32 920167782, %v6833
        %v6849 = vshrl.u32 1326507024, %v6834
        %v6850 = vor.u32 %v6848, %v6849
        %vm6851 = vcmp.lt.s32.totalorder %v6832, 1
        %vm6852 = vcmp.lt.s32.totalorder %v6832, 2
        %vm6853 = vcmp.lt.s32.totalorder %v6832, 3
        %vm6854 = vcmp.lt.s32.totalorder %v6832, 4
        %v6855 = vsel %vm6851, %v6835, %v6838
        %v6856 = vsel %vm6854, %v6844, 2102212464
        %v6857 = vsel %vm6853, %v6841, %v6856
        %v6858 = vsel %vm6852, %v6855, %v6857
        %v6859 = vsel %vm6851, %v6838, %v6841
        %v6860 = vsel %vm6854, %v6847, 920167782
        %v6861 = vsel %vm6853, %v6844, %v6860
        %v6862 = vsel %vm6852, %v6859, %v6861
        %v6863 = vsel %vm6851, %v6841, %v6844
        %v6864 = vsel %vm6854, %v6850, 1326507024
        %v6865 = vsel %vm6853, %v6847, %v6864
        %v6866 = vsel %vm6852, %v6863, %v6865
        %v6867 = vshll.u32 %v6827, 8
        %v6868 = vmul.u32.u64.compose %v6867, %v6866
        %v6869 = vextract.low.u32 %v6868
        %v6870 = vextract.high.u32 %v6868
        %v6871 = vmul.u32.u64.compose %v6867, %v6862
        %v6872 = vextract.low.u32 %v6871
        %v6873 = vextract.high.u32 %v6871
        %v6874 = vmul.u32 %v6867, %v6858
        %v6875 = vadd.s32 %v6870, %v6872
        %vm6876 = vc.u32 %v6870, %v6872
        %v6877 = vadd.s32 %v6873, 1
        %v6878 = vsel %vm6876, %v6877, %v6873
        %v6879 = vadd.s32 %v6874, %v6878
        %v6880 = vadd.s32 %v6879, 536870912
        %v6881 = vshrl.u32 %v6880, 30
        %v6882 = vshll.u32 %v6881, 30
        %v6883 = vsub.s32 %v6879, %v6882
        %vm6884 = vcmp.lt.s32.totalorder %v6883, 0
        %v6885 = vsub.s32 0, %v6883
        %v6886 = vsel %vm6884, %v6885, %v6883
        %v6887 = vclz %v6886
        %v6888 = vsub.s32 %v6887, 2
        %vm6889 = vcmp.gt.s32.totalorder 0, %v6888
        %v6890 = vsel %vm6889, 0, %v6888
        %v6891 = vsub.s32 32, %v6890
        %v6892 = vshll.u32 %v6883, %v6890
        %v6893 = vshrl.u32 %v6875, %v6891
        %v6894 = vor.u32 %v6892, %v6893
        %v6895 = vsub.s32 4294967266, %v6890
        %v6896 = vadd.s32 %v6895, 127
        %v6897 = vshll.u32 %v6896, 23
        %v6898 = vor.u32 4788187, %v6897
        %v6899 = vand.u32 2147483647, %v6898
        %v6901 = vcvt.s32.f32 %v6894
        %v6902 = vmul.f32 %v6901, %v6899
        %v6903 = vxor.u32 %v6902, 2147483648
        %v6904 = vsel %vm6821, %v6903, %v6902
        %v6905 = vsub.s32 4, %v6881
        %v6906 = vsel %vm6821, %v6905, %v6881
        %v6907 = vsel %vm6820, %v2211, %v6904
        %v6908 = vsel %vm6820, 0, %v6906
        %v6909 = vcosq.f32.pop %v6907
        %v6910 = vsinq.f32.pop %v6907
        %vm6911 = vweird.f32 %v2211
        %v6912 = vand.u32 %v6908, 3
        %vm6913 = vcmp.lt.s32.totalorder %v6912, 2
        %vm6914 = vcmp.eq.s32.totalorder %v6912, 0
        %v6915 = vxor.u32 %v6910, 2147483648
        %v6916 = vsel %vm6914, %v6909, %v6915
        %vm6917 = vcmp.eq.s32.totalorder %v6912, 2
        %v6918 = vxor.u32 %v6909, 2147483648
        %v6919 = vsel %vm6917, %v6918, %v6910
        %v6920 = vsel %vm6913, %v6916, %v6919
        %v6921 = vsel %vm6911, nan, %v6920
        %v6922 = vand.u32 2147483647, %v2212
        %vm6923 = vcmp.le.f32.partialorder %v6922, 0.7853982
        %vm6924 = vcmp.lt.s32.totalorder %v2212, 0
        %v6925 = vand.u32 %v2212, 2139095040
        %v6926 = vshrl.u32 %v6925, 23
        %v6927 = vsub.s32 %v6926, 127
        %v6928 = vand.u32 2147483647, %v2212
        %v6929 = vand.u32 %v6928, 8388607
        %v6930 = vor.u32 %v6929, 8388608
        %v6931 = vsub.s32 0, %v6930
        %v6932 = vadd.s32 %v6927, 1
        %vm6933 = vcmp.gt.s32.totalorder %v6932, 0
        %v6934 = vsel %vm6933, %v6932, 0
        %v6935 = vshrl.u32 %v6934, 5
        %v6936 = vand.u32 %v6934, 31
        %v6937 = vsub.s32 32, %v6936
        %v6938 = vshrl.u32 683565275, %v6937
        %v6939 = vshll.u32 683565275, %v6936
        %v6940 = vshrl.u32 2475754826, %v6937
        %v6941 = vor.u32 %v6939, %v6940
        %v6942 = vshll.u32 2475754826, %v6936
        %v6943 = vshrl.u32 2131351028, %v6937
        %v6944 = vor.u32 %v6942, %v6943
        %v6945 = vshll.u32 2131351028, %v6936
        %v6946 = vshrl.u32 2102212464, %v6937
        %v6947 = vor.u32 %v6945, %v6946
        %v6948 = vshll.u32 2102212464, %v6936
        %v6949 = vshrl.u32 920167782, %v6937
        %v6950 = vor.u32 %v6948, %v6949
        %v6951 = vshll.u32 920167782, %v6936
        %v6952 = vshrl.u32 1326507024, %v6937
        %v6953 = vor.u32 %v6951, %v6952
        %vm6954 = vcmp.lt.s32.totalorder %v6935, 1
        %vm6955 = vcmp.lt.s32.totalorder %v6935, 2
        %vm6956 = vcmp.lt.s32.totalorder %v6935, 3
        %vm6957 = vcmp.lt.s32.totalorder %v6935, 4
        %v6958 = vsel %vm6954, %v6938, %v6941
        %v6959 = vsel %vm6957, %v6947, 2102212464
        %v6960 = vsel %vm6956, %v6944, %v6959
        %v6961 = vsel %vm6955, %v6958, %v6960
        %v6962 = vsel %vm6954, %v6941, %v6944
        %v6963 = vsel %vm6957, %v6950, 920167782
        %v6964 = vsel %vm6956, %v6947, %v6963
        %v6965 = vsel %vm6955, %v6962, %v6964
        %v6966 = vsel %vm6954, %v6944, %v6947
        %v6967 = vsel %vm6957, %v6953, 1326507024
        %v6968 = vsel %vm6956, %v6950, %v6967
        %v6969 = vsel %vm6955, %v6966, %v6968
        %v6970 = vshll.u32 %v6930, 8
        %v6971 = vmul.u32.u64.compose %v6970, %v6969
        %v6972 = vextract.low.u32 %v6971
        %v6973 = vextract.high.u32 %v6971
        %v6974 = vmul.u32.u64.compose %v6970, %v6965
        %v6975 = vextract.low.u32 %v6974
        %v6976 = vextract.high.u32 %v6974
        %v6977 = vmul.u32 %v6970, %v6961
        %v6978 = vadd.s32 %v6973, %v6975
        %vm6979 = vc.u32 %v6973, %v6975
        %v6980 = vadd.s32 %v6976, 1
        %v6981 = vsel %vm6979, %v6980, %v6976
        %v6982 = vadd.s32 %v6977, %v6981
        %v6983 = vadd.s32 %v6982, 536870912
        %v6984 = vshrl.u32 %v6983, 30
        %v6985 = vshll.u32 %v6984, 30
        %v6986 = vsub.s32 %v6982, %v6985
        %vm6987 = vcmp.lt.s32.totalorder %v6986, 0
        %v6988 = vsub.s32 0, %v6986
        %v6989 = vsel %vm6987, %v6988, %v6986
        %v6990 = vclz %v6989
        %v6991 = vsub.s32 %v6990, 2
        %vm6992 = vcmp.gt.s32.totalorder 0, %v6991
        %v6993 = vsel %vm6992, 0, %v6991
        %v6994 = vsub.s32 32, %v6993
        %v6995 = vshll.u32 %v6986, %v6993
        %v6996 = vshrl.u32 %v6978, %v6994
        %v6997 = vor.u32 %v6995, %v6996
        %v6998 = vsub.s32 4294967266, %v6993
        %v6999 = vadd.s32 %v6998, 127
        %v7000 = vshll.u32 %v6999, 23
        %v7001 = vor.u32 4788187, %v7000
        %v7002 = vand.u32 2147483647, %v7001
        %v7004 = vcvt.s32.f32 %v6997
        %v7005 = vmul.f32 %v7004, %v7002
        %v7006 = vxor.u32 %v7005, 2147483648
        %v7007 = vsel %vm6924, %v7006, %v7005
        %v7008 = vsub.s32 4, %v6984
        %v7009 = vsel %vm6924, %v7008, %v6984
        %v7010 = vsel %vm6923, %v2212, %v7007
        %v7011 = vsel %vm6923, 0, %v7009
        %v7012 = vcosq.f32.pop %v7010
        %v7013 = vsinq.f32.pop %v7010
        %vm7014 = vweird.f32 %v2212
        %v7015 = vand.u32 %v7011, 3
        %vm7016 = vcmp.lt.s32.totalorder %v7015, 2
        %vm7017 = vcmp.eq.s32.totalorder %v7015, 0
        %v7018 = vxor.u32 %v7013, 2147483648
        %v7019 = vsel %vm7017, %v7012, %v7018
        %vm7020 = vcmp.eq.s32.totalorder %v7015, 2
        %v7021 = vxor.u32 %v7012, 2147483648
        %v7022 = vsel %vm7020, %v7021, %v7013
        %v7023 = vsel %vm7016, %v7019, %v7022
        %v7024 = vsel %vm7014, nan, %v7023
        %v7025 = vand.u32 2147483647, %v2213
        %vm7026 = vcmp.le.f32.partialorder %v7025, 0.7853982
        %vm7027 = vcmp.lt.s32.totalorder %v2213, 0
        %v7028 = vand.u32 %v2213, 2139095040
        %v7029 = vshrl.u32 %v7028, 23
        %v7030 = vsub.s32 %v7029, 127
        %v7031 = vand.u32 2147483647, %v2213
        %v7032 = vand.u32 %v7031, 8388607
        %v7033 = vor.u32 %v7032, 8388608
        %v7034 = vsub.s32 0, %v7033
        %v7035 = vadd.s32 %v7030, 1
        %vm7036 = vcmp.gt.s32.totalorder %v7035, 0
        %v7037 = vsel %vm7036, %v7035, 0
        %v7038 = vshrl.u32 %v7037, 5
        %v7039 = vand.u32 %v7037, 31
        %v7040 = vsub.s32 32, %v7039
        %v7041 = vshrl.u32 683565275, %v7040
        %v7042 = vshll.u32 683565275, %v7039
        %v7043 = vshrl.u32 2475754826, %v7040
        %v7044 = vor.u32 %v7042, %v7043
        %v7045 = vshll.u32 2475754826, %v7039
        %v7046 = vshrl.u32 2131351028, %v7040
        %v7047 = vor.u32 %v7045, %v7046
        %v7048 = vshll.u32 2131351028, %v7039
        %v7049 = vshrl.u32 2102212464, %v7040
        %v7050 = vor.u32 %v7048, %v7049
        %v7051 = vshll.u32 2102212464, %v7039
        %v7052 = vshrl.u32 920167782, %v7040
        %v7053 = vor.u32 %v7051, %v7052
        %v7054 = vshll.u32 920167782, %v7039
        %v7055 = vshrl.u32 1326507024, %v7040
        %v7056 = vor.u32 %v7054, %v7055
        %vm7057 = vcmp.lt.s32.totalorder %v7038, 1
        %vm7058 = vcmp.lt.s32.totalorder %v7038, 2
        %vm7059 = vcmp.lt.s32.totalorder %v7038, 3
        %vm7060 = vcmp.lt.s32.totalorder %v7038, 4
        %v7061 = vsel %vm7057, %v7041, %v7044
        %v7062 = vsel %vm7060, %v7050, 2102212464
        %v7063 = vsel %vm7059, %v7047, %v7062
        %v7064 = vsel %vm7058, %v7061, %v7063
        %v7065 = vsel %vm7057, %v7044, %v7047
        %v7066 = vsel %vm7060, %v7053, 920167782
        %v7067 = vsel %vm7059, %v7050, %v7066
        %v7068 = vsel %vm7058, %v7065, %v7067
        %v7069 = vsel %vm7057, %v7047, %v7050
        %v7070 = vsel %vm7060, %v7056, 1326507024
        %v7071 = vsel %vm7059, %v7053, %v7070
        %v7072 = vsel %vm7058, %v7069, %v7071
        %v7073 = vshll.u32 %v7033, 8
        %v7074 = vmul.u32.u64.compose %v7073, %v7072
        %v7075 = vextract.low.u32 %v7074
        %v7076 = vextract.high.u32 %v7074
        %v7077 = vmul.u32.u64.compose %v7073, %v7068
        %v7078 = vextract.low.u32 %v7077
        %v7079 = vextract.high.u32 %v7077
        %v7080 = vmul.u32 %v7073, %v7064
        %v7081 = vadd.s32 %v7076, %v7078
        %vm7082 = vc.u32 %v7076, %v7078
        %v7083 = vadd.s32 %v7079, 1
        %v7084 = vsel %vm7082, %v7083, %v7079
        %v7085 = vadd.s32 %v7080, %v7084
        %v7086 = vadd.s32 %v7085, 536870912
        %v7087 = vshrl.u32 %v7086, 30
        %v7088 = vshll.u32 %v7087, 30
        %v7089 = vsub.s32 %v7085, %v7088
        %vm7090 = vcmp.lt.s32.totalorder %v7089, 0
        %v7091 = vsub.s32 0, %v7089
        %v7092 = vsel %vm7090, %v7091, %v7089
        %v7093 = vclz %v7092
        %v7094 = vsub.s32 %v7093, 2
        %vm7095 = vcmp.gt.s32.totalorder 0, %v7094
        %v7096 = vsel %vm7095, 0, %v7094
        %v7097 = vsub.s32 32, %v7096
        %v7098 = vshll.u32 %v7089, %v7096
        %v7099 = vshrl.u32 %v7081, %v7097
        %v7100 = vor.u32 %v7098, %v7099
        %v7101 = vsub.s32 4294967266, %v7096
        %v7102 = vadd.s32 %v7101, 127
        %v7103 = vshll.u32 %v7102, 23
        %v7104 = vor.u32 4788187, %v7103
        %v7105 = vand.u32 2147483647, %v7104
        %v7107 = vcvt.s32.f32 %v7100
        %v7108 = vmul.f32 %v7107, %v7105
        %v7109 = vxor.u32 %v7108, 2147483648
        %v7110 = vsel %vm7027, %v7109, %v7108
        %v7111 = vsub.s32 4, %v7087
        %v7112 = vsel %vm7027, %v7111, %v7087
        %v7113 = vsel %vm7026, %v2213, %v7110
        %v7114 = vsel %vm7026, 0, %v7112
        %v7115 = vcosq.f32.pop %v7113
        %v7116 = vsinq.f32.pop %v7113
        %vm7117 = vweird.f32 %v2213
        %v7118 = vand.u32 %v7114, 3
        %vm7119 = vcmp.lt.s32.totalorder %v7118, 2
        %vm7120 = vcmp.eq.s32.totalorder %v7118, 0
        %v7121 = vxor.u32 %v7116, 2147483648
        %v7122 = vsel %vm7120, %v7115, %v7121
        %vm7123 = vcmp.eq.s32.totalorder %v7118, 2
        %v7124 = vxor.u32 %v7115, 2147483648
        %v7125 = vsel %vm7123, %v7124, %v7116
        %v7126 = vsel %vm7119, %v7122, %v7125
        %v7127 = vsel %vm7117, nan, %v7126
        %v7128 = vand.u32 2147483647, %v2214
        %vm7129 = vcmp.le.f32.partialorder %v7128, 0.7853982
        %vm7130 = vcmp.lt.s32.totalorder %v2214, 0
        %v7131 = vand.u32 %v2214, 2139095040
        %v7132 = vshrl.u32 %v7131, 23
        %v7133 = vsub.s32 %v7132, 127
        %v7134 = vand.u32 2147483647, %v2214
        %v7135 = vand.u32 %v7134, 8388607
        %v7136 = vor.u32 %v7135, 8388608
        %v7137 = vsub.s32 0, %v7136
        %v7138 = vadd.s32 %v7133, 1
        %vm7139 = vcmp.gt.s32.totalorder %v7138, 0
        %v7140 = vsel %vm7139, %v7138, 0
        %v7141 = vshrl.u32 %v7140, 5
        %v7142 = vand.u32 %v7140, 31
        %v7143 = vsub.s32 32, %v7142
        %v7144 = vshrl.u32 683565275, %v7143
        %v7145 = vshll.u32 683565275, %v7142
        %v7146 = vshrl.u32 2475754826, %v7143
        %v7147 = vor.u32 %v7145, %v7146
        %v7148 = vshll.u32 2475754826, %v7142
        %v7149 = vshrl.u32 2131351028, %v7143
        %v7150 = vor.u32 %v7148, %v7149
        %v7151 = vshll.u32 2131351028, %v7142
        %v7152 = vshrl.u32 2102212464, %v7143
        %v7153 = vor.u32 %v7151, %v7152
        %v7154 = vshll.u32 2102212464, %v7142
        %v7155 = vshrl.u32 920167782, %v7143
        %v7156 = vor.u32 %v7154, %v7155
        %v7157 = vshll.u32 920167782, %v7142
        %v7158 = vshrl.u32 1326507024, %v7143
        %v7159 = vor.u32 %v7157, %v7158
        %vm7160 = vcmp.lt.s32.totalorder %v7141, 1
        %vm7161 = vcmp.lt.s32.totalorder %v7141, 2
        %vm7162 = vcmp.lt.s32.totalorder %v7141, 3
        %vm7163 = vcmp.lt.s32.totalorder %v7141, 4
        %v7164 = vsel %vm7160, %v7144, %v7147
        %v7165 = vsel %vm7163, %v7153, 2102212464
        %v7166 = vsel %vm7162, %v7150, %v7165
        %v7167 = vsel %vm7161, %v7164, %v7166
        %v7168 = vsel %vm7160, %v7147, %v7150
        %v7169 = vsel %vm7163, %v7156, 920167782
        %v7170 = vsel %vm7162, %v7153, %v7169
        %v7171 = vsel %vm7161, %v7168, %v7170
        %v7172 = vsel %vm7160, %v7150, %v7153
        %v7173 = vsel %vm7163, %v7159, 1326507024
        %v7174 = vsel %vm7162, %v7156, %v7173
        %v7175 = vsel %vm7161, %v7172, %v7174
        %v7176 = vshll.u32 %v7136, 8
        %v7177 = vmul.u32.u64.compose %v7176, %v7175
        %v7178 = vextract.low.u32 %v7177
        %v7179 = vextract.high.u32 %v7177
        %v7180 = vmul.u32.u64.compose %v7176, %v7171
        %v7181 = vextract.low.u32 %v7180
        %v7182 = vextract.high.u32 %v7180
        %v7183 = vmul.u32 %v7176, %v7167
        %v7184 = vadd.s32 %v7179, %v7181
        %vm7185 = vc.u32 %v7179, %v7181
        %v7186 = vadd.s32 %v7182, 1
        %v7187 = vsel %vm7185, %v7186, %v7182
        %v7188 = vadd.s32 %v7183, %v7187
        %v7189 = vadd.s32 %v7188, 536870912
        %v7190 = vshrl.u32 %v7189, 30
        %v7191 = vshll.u32 %v7190, 30
        %v7192 = vsub.s32 %v7188, %v7191
        %vm7193 = vcmp.lt.s32.totalorder %v7192, 0
        %v7194 = vsub.s32 0, %v7192
        %v7195 = vsel %vm7193, %v7194, %v7192
        %v7196 = vclz %v7195
        %v7197 = vsub.s32 %v7196, 2
        %vm7198 = vcmp.gt.s32.totalorder 0, %v7197
        %v7199 = vsel %vm7198, 0, %v7197
        %v7200 = vsub.s32 32, %v7199
        %v7201 = vshll.u32 %v7192, %v7199
        %v7202 = vshrl.u32 %v7184, %v7200
        %v7203 = vor.u32 %v7201, %v7202
        %v7204 = vsub.s32 4294967266, %v7199
        %v7205 = vadd.s32 %v7204, 127
        %v7206 = vshll.u32 %v7205, 23
        %v7207 = vor.u32 4788187, %v7206
        %v7208 = vand.u32 2147483647, %v7207
        %v7210 = vcvt.s32.f32 %v7203
        %v7211 = vmul.f32 %v7210, %v7208
        %v7212 = vxor.u32 %v7211, 2147483648
        %v7213 = vsel %vm7130, %v7212, %v7211
        %v7214 = vsub.s32 4, %v7190
        %v7215 = vsel %vm7130, %v7214, %v7190
        %v7216 = vsel %vm7129, %v2214, %v7213
        %v7217 = vsel %vm7129, 0, %v7215
        %v7218 = vcosq.f32.pop %v7216
        %v7219 = vsinq.f32.pop %v7216
        %vm7220 = vweird.f32 %v2214
        %v7221 = vand.u32 %v7217, 3
        %vm7222 = vcmp.lt.s32.totalorder %v7221, 2
        %vm7223 = vcmp.eq.s32.totalorder %v7221, 0
        %v7224 = vxor.u32 %v7219, 2147483648
        %v7225 = vsel %vm7223, %v7218, %v7224
        %vm7226 = vcmp.eq.s32.totalorder %v7221, 2
        %v7227 = vxor.u32 %v7218, 2147483648
        %v7228 = vsel %vm7226, %v7227, %v7219
        %v7229 = vsel %vm7222, %v7225, %v7228
        %v7230 = vsel %vm7220, nan, %v7229
        %v7231 = vmul.f32 %v2366, %v2216
        %v7232 = vmul.f32 %v2470, %v2218
        %v7233 = vmul.f32 %v2574, %v2220
        %v7234 = vmul.f32 %v2678, %v2222
        %v7235 = vmul.f32 %v2782, %v2224
        %v7236 = vmul.f32 %v2886, %v2226
        %v7237 = vmul.f32 %v2990, %v2228
        %v7238 = vmul.f32 %v3094, %v2230
        %7239 = vset.pattern.permute.xlu0 1
        %7240 = vperm.xlu0 %7239, %v2132
        %v7241 = vpop.permute.xlu0 %7240
        %v7243 = vmul.f32 %v7241, %v7231
        %v7244 = vmul.f32 %v7241, %v7232
        %v7245 = vmul.f32 %v7241, %v7233
        %v7246 = vmul.f32 %v7241, %v7234
        %v7247 = vmul.f32 %v7241, %v7235
        %v7248 = vmul.f32 %v7241, %v7236
        %v7249 = vmul.f32 %v7241, %v7237
        %v7250 = vmul.f32 %v7241, %v7238
        %v7251 = vmul.f32 %v7243, 0.2820948
        %v7252 = vmul.f32 %v7244, 0.2820948
        %v7253 = vmul.f32 %v7245, 0.2820948
        %v7254 = vmul.f32 %v7246, 0.2820948
        %v7255 = vmul.f32 %v7247, 0.2820948
        %v7256 = vmul.f32 %v7248, 0.2820948
        %v7257 = vmul.f32 %v7249, 0.2820948
        %v7258 = vmul.f32 %v7250, 0.2820948
        %v7259 = vmul.f32 %v3198, %v2232
        %v7260 = vmul.f32 %v3302, %v2234
        %v7261 = vmul.f32 %v3406, %v2236
        %v7262 = vmul.f32 %v3510, %v2238
        %v7263 = vmul.f32 %v3614, %v2240
        %v7264 = vmul.f32 %v3718, %v2242
        %v7265 = vmul.f32 %v3822, %v2244
        %v7266 = vmul.f32 %v3926, %v2246
        %v7267 = vsub.f32 %v7231, %v4861
        %v7268 = vsub.f32 %v7232, %v4964
        %v7269 = vsub.f32 %v7233, %v5067
        %v7270 = vsub.f32 %v7234, %v5170
        %v7271 = vsub.f32 %v7235, %v5273
        %v7272 = vsub.f32 %v7236, %v5376
        %v7273 = vsub.f32 %v7237, %v5479
        %v7274 = vsub.f32 %v7238, %v5582
        %v7275 = vsub.f32 %v7259, %v5685
        %v7276 = vsub.f32 %v7260, %v5788
        %v7277 = vsub.f32 %v7261, %v5891
        %v7278 = vsub.f32 %v7262, %v5994
        %v7279 = vsub.f32 %v7263, %v6097
        %v7280 = vsub.f32 %v7264, %v6200
        %v7281 = vsub.f32 %v7265, %v6303
        %v7282 = vsub.f32 %v7266, %v6406
        %v7283 = vmul.f32 %v7267, %v2216
        %v7284 = vmul.f32 %v7268, %v2218
        %v7285 = vmul.f32 %v7269, %v2220
        %v7286 = vmul.f32 %v7270, %v2222
        %v7287 = vmul.f32 %v7271, %v2224
        %v7288 = vmul.f32 %v7272, %v2226
        %v7289 = vmul.f32 %v7273, %v2228
        %v7290 = vmul.f32 %v7274, %v2230
        %v7291 = vmul.f32 %v7275, %v2232
        %v7292 = vmul.f32 %v7276, %v2234
        %v7293 = vmul.f32 %v7277, %v2236
        %v7294 = vmul.f32 %v7278, %v2238
        %v7295 = vmul.f32 %v7279, %v2240
        %v7296 = vmul.f32 %v7280, %v2242
        %v7297 = vmul.f32 %v7281, %v2244
        %v7298 = vmul.f32 %v7282, %v2246
        %7299 = vset.pattern.permute.xlu0 1
        %7300 = vperm.xlu0 %7299, %v2133
        %v7301 = vpop.permute.xlu0 %7300
        %v7303 = vmul.f32 %v7241, %v7283
        %v7304 = vmul.f32 %v7241, %v7284
        %v7305 = vmul.f32 %v7241, %v7285
        %v7306 = vmul.f32 %v7241, %v7286
        %v7307 = vmul.f32 %v7241, %v7287
        %v7308 = vmul.f32 %v7241, %v7288
        %v7309 = vmul.f32 %v7241, %v7289
        %v7310 = vmul.f32 %v7241, %v7290
        %v7311 = vmul.f32 %v7301, %v7291
        %v7312 = vmul.f32 %v7301, %v7292
        %v7313 = vmul.f32 %v7301, %v7293
        %v7314 = vmul.f32 %v7301, %v7294
        %v7315 = vmul.f32 %v7301, %v7295
        %v7316 = vmul.f32 %v7301, %v7296
        %v7317 = vmul.f32 %v7301, %v7297
        %v7318 = vmul.f32 %v7301, %v7298
        %v7319 = vmul.f32 %v270, 0.48860252
        %v7320 = vmul.f32 %v2123, -0.48860252
        %v7329 = vcombine.low %v569, %v672
        %v7330 = vcombine.low %v775, %v878
        %v7331 = vcombine.low %v981, %v1084
        %v7332 = vcombine.low %v1187, %v1290
        %v7334 = vunpack.c.l.s4 1966171168
        %v7335 = vunpack.c.0.s8 %v7334
        %v7336 = vlaneseq
        %v7337 = vshrl.u32 %v7336, 7
        %v7338 = vsub.s32 %v7335, %v7337
        %v7339 = vrot.slane %v7329, %v7338
        %v7341 = vunpack.c.l.s4 1966171168
        %v7342 = vunpack.c.0.s8 %v7341
        %v7343 = vlaneseq
        %v7344 = vshrl.u32 %v7343, 7
        %v7345 = vsub.s32 %v7342, %v7344
        %v7346 = vrot.slane %v7330, %v7345
        %v7348 = vunpack.c.l.s4 1966171168
        %v7349 = vunpack.c.0.s8 %v7348
        %v7350 = vlaneseq
        %v7351 = vshrl.u32 %v7350, 7
        %v7352 = vsub.s32 %v7349, %v7351
        %v7353 = vrot.slane %v7331, %v7352
        %v7355 = vunpack.c.l.s4 1966171168
        %v7356 = vunpack.c.0.s8 %v7355
        %v7357 = vlaneseq
        %v7358 = vshrl.u32 %v7357, 7
        %v7359 = vsub.s32 %v7356, %v7358
        %v7360 = vrot.slane %v7332, %v7359
        %v7361 = vcombine.low %v7339, %v7346
        %v7362 = vcombine.low %v7353, %v7360
        %v7364 = vunpack.c.l.s4 1966171168
        %v7365 = vunpack.c.0.s8 %v7364
        %v7366 = vlaneseq
        %v7367 = vshrl.u32 %v7366, 7
        %v7368 = vsub.s32 %v7365, %v7367
        %v7369 = vrot.slane %v7361, %v7368
        %v7371 = vunpack.c.l.s4 1966171168
        %v7372 = vunpack.c.0.s8 %v7371
        %v7373 = vlaneseq
        %v7374 = vshrl.u32 %v7373, 7
        %v7375 = vsub.s32 %v7372, %v7374
        %v7376 = vrot.slane %v7362, %v7375
        %v7377 = vcombine.low %v7369, %v7376
        %v7379 = vmul.f32 %v7320, %v7377
        %v7388 = vcombine.low %v1394, %v1498
        %v7389 = vcombine.low %v1602, %v1706
        %v7390 = vcombine.low %v1810, %v1914
        %v7391 = vcombine.low %v2018, %v2122
        %v7393 = vunpack.c.l.s4 1966171168
        %v7394 = vunpack.c.0.s8 %v7393
        %v7395 = vlaneseq
        %v7396 = vshrl.u32 %v7395, 7
        %v7397 = vsub.s32 %v7394, %v7396
        %v7398 = vrot.slane %v7388, %v7397
        %v7400 = vunpack.c.l.s4 1966171168
        %v7401 = vunpack.c.0.s8 %v7400
        %v7402 = vlaneseq
        %v7403 = vshrl.u32 %v7402, 7
        %v7404 = vsub.s32 %v7401, %v7403
        %v7405 = vrot.slane %v7389, %v7404
        %v7407 = vunpack.c.l.s4 1966171168
        %v7408 = vunpack.c.0.s8 %v7407
        %v7409 = vlaneseq
        %v7410 = vshrl.u32 %v7409, 7
        %v7411 = vsub.s32 %v7408, %v7410
        %v7412 = vrot.slane %v7390, %v7411
        %v7414 = vunpack.c.l.s4 1966171168
        %v7415 = vunpack.c.0.s8 %v7414
        %v7416 = vlaneseq
        %v7417 = vshrl.u32 %v7416, 7
        %v7418 = vsub.s32 %v7415, %v7417
        %v7419 = vrot.slane %v7391, %v7418
        %v7420 = vcombine.low %v7398, %v7405
        %v7421 = vcombine.low %v7412, %v7419
        %v7423 = vunpack.c.l.s4 1966171168
        %v7424 = vunpack.c.0.s8 %v7423
        %v7425 = vlaneseq
        %v7426 = vshrl.u32 %v7425, 7
        %v7427 = vsub.s32 %v7424, %v7426
        %v7428 = vrot.slane %v7420, %v7427
        %v7430 = vunpack.c.l.s4 1966171168
        %v7431 = vunpack.c.0.s8 %v7430
        %v7432 = vlaneseq
        %v7433 = vshrl.u32 %v7432, 7
        %v7434 = vsub.s32 %v7431, %v7433
        %v7435 = vrot.slane %v7421, %v7434
        %v7436 = vcombine.low %v7428, %v7435
        %v7438 = vmul.f32 %v7320, %v7436
        %v7440 = vlaneseq
        %v7441 = vshrl.u32 %v7440, 7
        %v7442 = vsub.s32 0, %v7441
        %v7443 = vrot.slane %v7319, %v7442
        %v7444 = vlaneseq
        %v7445 = vshrl.u32 %v7444, 7
        %v7446 = vsub.s32 1, %v7445
        %v7447 = vrot.slane %v7319, %v7446
        %v7448 = vlaneseq
        %v7449 = vshrl.u32 %v7448, 7
        %v7450 = vsub.s32 2, %v7449
        %v7451 = vrot.slane %v7319, %v7450
        %v7452 = vlaneseq
        %v7453 = vshrl.u32 %v7452, 7
        %v7454 = vsub.s32 3, %v7453
        %v7455 = vrot.slane %v7319, %v7454
        %v7456 = vlaneseq
        %v7457 = vshrl.u32 %v7456, 7
        %v7458 = vsub.s32 4, %v7457
        %v7459 = vrot.slane %v7319, %v7458
        %v7460 = vlaneseq
        %v7461 = vshrl.u32 %v7460, 7
        %v7462 = vsub.s32 5, %v7461
        %v7463 = vrot.slane %v7319, %v7462
        %v7464 = vlaneseq
        %v7465 = vshrl.u32 %v7464, 7
        %v7466 = vsub.s32 6, %v7465
        %v7467 = vrot.slane %v7319, %v7466
        %v7468 = vlaneseq
        %v7469 = vshrl.u32 %v7468, 7
        %v7470 = vsub.s32 7, %v7469
        %v7471 = vrot.slane %v7319, %v7470
        %v7480 = vmul.f32 %v7443, %v7303
        %v7481 = vmul.f32 %v7447, %v7304
        %v7482 = vmul.f32 %v7451, %v7305
        %v7483 = vmul.f32 %v7455, %v7306
        %v7484 = vmul.f32 %v7459, %v7307
        %v7485 = vmul.f32 %v7463, %v7308
        %v7486 = vmul.f32 %v7467, %v7309
        %v7487 = vmul.f32 %v7471, %v7310
        %v7488 = vmul.f32 %v7443, %v7311
        %v7489 = vmul.f32 %v7447, %v7312
        %v7490 = vmul.f32 %v7451, %v7313
        %v7491 = vmul.f32 %v7455, %v7314
        %v7492 = vmul.f32 %v7459, %v7315
        %v7493 = vmul.f32 %v7463, %v7316
        %v7494 = vmul.f32 %v7467, %v7317
        %v7495 = vmul.f32 %v7471, %v7318
        %v7497 = vlaneseq
        %v7498 = vshrl.u32 %v7497, 7
        %v7499 = vsub.s32 0, %v7498
        %v7500 = vrot.slane %v7379, %v7499
        %v7501 = vlaneseq
        %v7502 = vshrl.u32 %v7501, 7
        %v7503 = vsub.s32 1, %v7502
        %v7504 = vrot.slane %v7379, %v7503
        %v7505 = vlaneseq
        %v7506 = vshrl.u32 %v7505, 7
        %v7507 = vsub.s32 2, %v7506
        %v7508 = vrot.slane %v7379, %v7507
        %v7509 = vlaneseq
        %v7510 = vshrl.u32 %v7509, 7
        %v7511 = vsub.s32 3, %v7510
        %v7512 = vrot.slane %v7379, %v7511
        %v7513 = vlaneseq
        %v7514 = vshrl.u32 %v7513, 7
        %v7515 = vsub.s32 4, %v7514
        %v7516 = vrot.slane %v7379, %v7515
        %v7517 = vlaneseq
        %v7518 = vshrl.u32 %v7517, 7
        %v7519 = vsub.s32 5, %v7518
        %v7520 = vrot.slane %v7379, %v7519
        %v7521 = vlaneseq
        %v7522 = vshrl.u32 %v7521, 7
        %v7523 = vsub.s32 6, %v7522
        %v7524 = vrot.slane %v7379, %v7523
        %v7525 = vlaneseq
        %v7526 = vshrl.u32 %v7525, 7
        %v7527 = vsub.s32 7, %v7526
        %v7528 = vrot.slane %v7379, %v7527
        %v7537 = vmul.f32 %v7500, %v7303
        %v7538 = vmul.f32 %v7504, %v7304
        %v7539 = vmul.f32 %v7508, %v7305
        %v7540 = vmul.f32 %v7512, %v7306
        %v7541 = vmul.f32 %v7516, %v7307
        %v7542 = vmul.f32 %v7520, %v7308
        %v7543 = vmul.f32 %v7524, %v7309
        %v7544 = vmul.f32 %v7528, %v7310
        %v7545 = vmul.f32 %v7500, %v7311
        %v7546 = vmul.f32 %v7504, %v7312
        %v7547 = vmul.f32 %v7508, %v7313
        %v7548 = vmul.f32 %v7512, %v7314
        %v7549 = vmul.f32 %v7516, %v7315
        %v7550 = vmul.f32 %v7520, %v7316
        %v7551 = vmul.f32 %v7524, %v7317
        %v7552 = vmul.f32 %v7528, %v7318
        %v7554 = vlaneseq
        %v7555 = vshrl.u32 %v7554, 7
        %v7556 = vsub.s32 0, %v7555
        %v7557 = vrot.slane %v7438, %v7556
        %v7558 = vlaneseq
        %v7559 = vshrl.u32 %v7558, 7
        %v7560 = vsub.s32 1, %v7559
        %v7561 = vrot.slane %v7438, %v7560
        %v7562 = vlaneseq
        %v7563 = vshrl.u32 %v7562, 7
        %v7564 = vsub.s32 2, %v7563
        %v7565 = vrot.slane %v7438, %v7564
        %v7566 = vlaneseq
        %v7567 = vshrl.u32 %v7566, 7
        %v7568 = vsub.s32 3, %v7567
        %v7569 = vrot.slane %v7438, %v7568
        %v7570 = vlaneseq
        %v7571 = vshrl.u32 %v7570, 7
        %v7572 = vsub.s32 4, %v7571
        %v7573 = vrot.slane %v7438, %v7572
        %v7574 = vlaneseq
        %v7575 = vshrl.u32 %v7574, 7
        %v7576 = vsub.s32 5, %v7575
        %v7577 = vrot.slane %v7438, %v7576
        %v7578 = vlaneseq
        %v7579 = vshrl.u32 %v7578, 7
        %v7580 = vsub.s32 6, %v7579
        %v7581 = vrot.slane %v7438, %v7580
        %v7582 = vlaneseq
        %v7583 = vshrl.u32 %v7582, 7
        %v7584 = vsub.s32 7, %v7583
        %v7585 = vrot.slane %v7438, %v7584
        %v7594 = vmul.f32 %v7557, %v7303
        %v7595 = vmul.f32 %v7561, %v7304
        %v7596 = vmul.f32 %v7565, %v7305
        %v7597 = vmul.f32 %v7569, %v7306
        %v7598 = vmul.f32 %v7573, %v7307
        %v7599 = vmul.f32 %v7577, %v7308
        %v7600 = vmul.f32 %v7581, %v7309
        %v7601 = vmul.f32 %v7585, %v7310
        %v7602 = vmul.f32 %v7557, %v7311
        %v7603 = vmul.f32 %v7561, %v7312
        %v7604 = vmul.f32 %v7565, %v7313
        %v7605 = vmul.f32 %v7569, %v7314
        %v7606 = vmul.f32 %v7573, %v7315
        %v7607 = vmul.f32 %v7577, %v7316
        %v7608 = vmul.f32 %v7581, %v7317
        %v7609 = vmul.f32 %v7585, %v7318
        %v7610 = vmul.f32 %v4030, %v2248
        %v7611 = vmul.f32 %v4134, %v2250
        %v7612 = vmul.f32 %v4238, %v2252
        %v7613 = vmul.f32 %v4342, %v2254
        %v7614 = vmul.f32 %v4446, %v2256
        %v7615 = vmul.f32 %v4550, %v2258
        %v7616 = vmul.f32 %v4654, %v2260
        %v7617 = vmul.f32 %v4758, %v2262
        %v7618 = vsub.f32 %v7610, %v6509
        %v7619 = vsub.f32 %v7611, %v6612
        %v7620 = vsub.f32 %v7612, %v6715
        %v7621 = vsub.f32 %v7613, %v6818
        %v7622 = vsub.f32 %v7614, %v6921
        %v7623 = vsub.f32 %v7615, %v7024
        %v7624 = vsub.f32 %v7616, %v7127
        %v7625 = vsub.f32 %v7617, %v7230
        %v7626 = vmul.f32 %v7618, %v2248
        %v7627 = vmul.f32 %v7619, %v2250
        %v7628 = vmul.f32 %v7620, %v2252
        %v7629 = vmul.f32 %v7621, %v2254
        %v7630 = vmul.f32 %v7622, %v2256
        %v7631 = vmul.f32 %v7623, %v2258
        %v7632 = vmul.f32 %v7624, %v2260
        %v7633 = vmul.f32 %v7625, %v2262
        %v7634 = vmul.f32 %v2232, 3.0
        %v7635 = vmul.f32 %v2234, 3.0
        %v7636 = vmul.f32 %v2236, 3.0
        %v7637 = vmul.f32 %v2238, 3.0
        %v7638 = vmul.f32 %v2240, 3.0
        %v7639 = vmul.f32 %v2242, 3.0
        %v7640 = vmul.f32 %v2244, 3.0
        %v7641 = vmul.f32 %v2246, 3.0
        %v7642 = vmul.f32 %v2248, 3.0
        %v7643 = vmul.f32 %v2250, 3.0
        %v7644 = vmul.f32 %v2252, 3.0
        %v7645 = vmul.f32 %v2254, 3.0
        %v7646 = vmul.f32 %v2256, 3.0
        %v7647 = vmul.f32 %v2258, 3.0
        %v7648 = vmul.f32 %v2260, 3.0
        %v7649 = vmul.f32 %v2262, 3.0
        %v7650 = vmul.f32 %v7634, %v7291
        %v7651 = vmul.f32 %v7635, %v7292
        %v7652 = vmul.f32 %v7636, %v7293
        %v7653 = vmul.f32 %v7637, %v7294
        %v7654 = vmul.f32 %v7638, %v7295
        %v7655 = vmul.f32 %v7639, %v7296
        %v7656 = vmul.f32 %v7640, %v7297
        %v7657 = vmul.f32 %v7641, %v7298
        %v7658 = vmul.f32 %v7642, %v7626
        %v7659 = vmul.f32 %v7643, %v7627
        %v7660 = vmul.f32 %v7644, %v7628
        %v7661 = vmul.f32 %v7645, %v7629
        %v7662 = vmul.f32 %v7646, %v7630
        %v7663 = vmul.f32 %v7647, %v7631
        %v7664 = vmul.f32 %v7648, %v7632
        %v7665 = vmul.f32 %v7649, %v7633
        %v7666 = vsub.f32 %v7650, %v7259
        %v7667 = vsub.f32 %v7651, %v7260
        %v7668 = vsub.f32 %v7652, %v7261
        %v7669 = vsub.f32 %v7653, %v7262
        %v7670 = vsub.f32 %v7654, %v7263
        %v7671 = vsub.f32 %v7655, %v7264
        %v7672 = vsub.f32 %v7656, %v7265
        %v7673 = vsub.f32 %v7657, %v7266
        %v7674 = vsub.f32 %v7658, %v7610
        %v7675 = vsub.f32 %v7659, %v7611
        %v7676 = vsub.f32 %v7660, %v7612
        %v7677 = vsub.f32 %v7661, %v7613
        %v7678 = vsub.f32 %v7662, %v7614
        %v7679 = vsub.f32 %v7663, %v7615
        %v7680 = vsub.f32 %v7664, %v7616
        %v7681 = vsub.f32 %v7665, %v7617
        %7682 = vset.pattern.permute.xlu0 1
        %7683 = vperm.xlu0 %7682, %v2134
        %v7684 = vpop.permute.xlu0 %7683
        %v7686 = vmul.f32 %v7301, %v7666
        %v7687 = vmul.f32 %v7301, %v7667
        %v7688 = vmul.f32 %v7301, %v7668
        %v7689 = vmul.f32 %v7301, %v7669
        %v7690 = vmul.f32 %v7301, %v7670
        %v7691 = vmul.f32 %v7301, %v7671
        %v7692 = vmul.f32 %v7301, %v7672
        %v7693 = vmul.f32 %v7301, %v7673
        %v7694 = vmul.f32 %v7684, %v7674
        %v7695 = vmul.f32 %v7684, %v7675
        %v7696 = vmul.f32 %v7684, %v7676
        %v7697 = vmul.f32 %v7684, %v7677
        %v7698 = vmul.f32 %v7684, %v7678
        %v7699 = vmul.f32 %v7684, %v7679
        %v7700 = vmul.f32 %v7684, %v7680
        %v7701 = vmul.f32 %v7684, %v7681
        %v7702 = vmul.f32 %v2131, 0.63078314
        %v7703 = vmul.f32 %v2127, -0.3641828
        %v7704 = vmul.f32 %v7703, %v7377
        %v7705 = vmul.f32 %v2125, 0.1820914
        %v7706 = vcombine.high %v7339, %v7346
        %v7707 = vcombine.high %v7353, %v7360
        %v7709 = vunpack.c.l.s4 1966171168
        %v7710 = vunpack.c.0.s8 %v7709
        %v7711 = vlaneseq
        %v7712 = vshrl.u32 %v7711, 7
        %v7713 = vsub.s32 %v7710, %v7712
        %v7714 = vrot.slane %v7706, %v7713
        %v7716 = vunpack.c.l.s4 1966171168
        %v7717 = vunpack.c.0.s8 %v7716
        %v7718 = vlaneseq
        %v7719 = vshrl.u32 %v7718, 7
        %v7720 = vsub.s32 %v7717, %v7719
        %v7721 = vrot.slane %v7707, %v7720
        %v7722 = vcombine.low %v7714, %v7721
        %v7724 = vmul.f32 %v7705, %v7722
        %v7725 = vcombine.high %v7398, %v7405
        %v7726 = vcombine.high %v7412, %v7419
        %v7728 = vunpack.c.l.s4 1966171168
        %v7729 = vunpack.c.0.s8 %v7728
        %v7730 = vlaneseq
        %v7731 = vshrl.u32 %v7730, 7
        %v7732 = vsub.s32 %v7729, %v7731
        %v7733 = vrot.slane %v7725, %v7732
        %v7735 = vunpack.c.l.s4 1966171168
        %v7736 = vunpack.c.0.s8 %v7735
        %v7737 = vlaneseq
        %v7738 = vshrl.u32 %v7737, 7
        %v7739 = vsub.s32 %v7736, %v7738
        %v7740 = vrot.slane %v7726, %v7739
        %v7741 = vcombine.low %v7733, %v7740
        %v7743 = vmul.f32 %v7705, %v7741
        %v7744 = vmul.f32 %v7703, %v7436
        %v7746 = vlaneseq
        %v7747 = vshrl.u32 %v7746, 7
        %v7748 = vsub.s32 0, %v7747
        %v7749 = vrot.slane %v7702, %v7748
        %v7750 = vlaneseq
        %v7751 = vshrl.u32 %v7750, 7
        %v7752 = vsub.s32 1, %v7751
        %v7753 = vrot.slane %v7702, %v7752
        %v7754 = vlaneseq
        %v7755 = vshrl.u32 %v7754, 7
        %v7756 = vsub.s32 2, %v7755
        %v7757 = vrot.slane %v7702, %v7756
        %v7758 = vlaneseq
        %v7759 = vshrl.u32 %v7758, 7
        %v7760 = vsub.s32 3, %v7759
        %v7761 = vrot.slane %v7702, %v7760
        %v7762 = vlaneseq
        %v7763 = vshrl.u32 %v7762, 7
        %v7764 = vsub.s32 4, %v7763
        %v7765 = vrot.slane %v7702, %v7764
        %v7766 = vlaneseq
        %v7767 = vshrl.u32 %v7766, 7
        %v7768 = vsub.s32 5, %v7767
        %v7769 = vrot.slane %v7702, %v7768
        %v7770 = vlaneseq
        %v7771 = vshrl.u32 %v7770, 7
        %v7772 = vsub.s32 6, %v7771
        %v7773 = vrot.slane %v7702, %v7772
        %v7774 = vlaneseq
        %v7775 = vshrl.u32 %v7774, 7
        %v7776 = vsub.s32 7, %v7775
        %v7777 = vrot.slane %v7702, %v7776
        %v7786 = vmul.f32 %v7749, %v7686
        %v7787 = vmul.f32 %v7753, %v7687
        %v7788 = vmul.f32 %v7757, %v7688
        %v7789 = vmul.f32 %v7761, %v7689
        %v7790 = vmul.f32 %v7765, %v7690
        %v7791 = vmul.f32 %v7769, %v7691
        %v7792 = vmul.f32 %v7773, %v7692
        %v7793 = vmul.f32 %v7777, %v7693
        %v7794 = vmul.f32 %v7749, %v7694
        %v7795 = vmul.f32 %v7753, %v7695
        %v7796 = vmul.f32 %v7757, %v7696
        %v7797 = vmul.f32 %v7761, %v7697
        %v7798 = vmul.f32 %v7765, %v7698
        %v7799 = vmul.f32 %v7769, %v7699
        %v7800 = vmul.f32 %v7773, %v7700
        %v7801 = vmul.f32 %v7777, %v7701
        %v7803 = vlaneseq
        %v7804 = vshrl.u32 %v7803, 7
        %v7805 = vsub.s32 0, %v7804
        %v7806 = vrot.slane %v7704, %v7805
        %v7807 = vlaneseq
        %v7808 = vshrl.u32 %v7807, 7
        %v7809 = vsub.s32 1, %v7808
        %v7810 = vrot.slane %v7704, %v7809
        %v7811 = vlaneseq
        %v7812 = vshrl.u32 %v7811, 7
        %v7813 = vsub.s32 2, %v7812
        %v7814 = vrot.slane %v7704, %v7813
        %v7815 = vlaneseq
        %v7816 = vshrl.u32 %v7815, 7
        %v7817 = vsub.s32 3, %v7816
        %v7818 = vrot.slane %v7704, %v7817
        %v7819 = vlaneseq
        %v7820 = vshrl.u32 %v7819, 7
        %v7821 = vsub.s32 4, %v7820
        %v7822 = vrot.slane %v7704, %v7821
        %v7823 = vlaneseq
        %v7824 = vshrl.u32 %v7823, 7
        %v7825 = vsub.s32 5, %v7824
        %v7826 = vrot.slane %v7704, %v7825
        %v7827 = vlaneseq
        %v7828 = vshrl.u32 %v7827, 7
        %v7829 = vsub.s32 6, %v7828
        %v7830 = vrot.slane %v7704, %v7829
        %v7831 = vlaneseq
        %v7832 = vshrl.u32 %v7831, 7
        %v7833 = vsub.s32 7, %v7832
        %v7834 = vrot.slane %v7704, %v7833
        %v7843 = vmul.f32 %v7806, %v7686
        %v7844 = vmul.f32 %v7810, %v7687
        %v7845 = vmul.f32 %v7814, %v7688
        %v7846 = vmul.f32 %v7818, %v7689
        %v7847 = vmul.f32 %v7822, %v7690
        %v7848 = vmul.f32 %v7826, %v7691
        %v7849 = vmul.f32 %v7830, %v7692
        %v7850 = vmul.f32 %v7834, %v7693
        %v7851 = vmul.f32 %v7806, %v7694
        %v7852 = vmul.f32 %v7810, %v7695
        %v7853 = vmul.f32 %v7814, %v7696
        %v7854 = vmul.f32 %v7818, %v7697
        %v7855 = vmul.f32 %v7822, %v7698
        %v7856 = vmul.f32 %v7826, %v7699
        %v7857 = vmul.f32 %v7830, %v7700
        %v7858 = vmul.f32 %v7834, %v7701
        %v7860 = vlaneseq
        %v7861 = vshrl.u32 %v7860, 7
        %v7862 = vsub.s32 0, %v7861
        %v7863 = vrot.slane %v7724, %v7862
        %v7864 = vlaneseq
        %v7865 = vshrl.u32 %v7864, 7
        %v7866 = vsub.s32 1, %v7865
        %v7867 = vrot.slane %v7724, %v7866
        %v7868 = vlaneseq
        %v7869 = vshrl.u32 %v7868, 7
        %v7870 = vsub.s32 2, %v7869
        %v7871 = vrot.slane %v7724, %v7870
        %v7872 = vlaneseq
        %v7873 = vshrl.u32 %v7872, 7
        %v7874 = vsub.s32 3, %v7873
        %v7875 = vrot.slane %v7724, %v7874
        %v7876 = vlaneseq
        %v7877 = vshrl.u32 %v7876, 7
        %v7878 = vsub.s32 4, %v7877
        %v7879 = vrot.slane %v7724, %v7878
        %v7880 = vlaneseq
        %v7881 = vshrl.u32 %v7880, 7
        %v7882 = vsub.s32 5, %v7881
        %v7883 = vrot.slane %v7724, %v7882
        %v7884 = vlaneseq
        %v7885 = vshrl.u32 %v7884, 7
        %v7886 = vsub.s32 6, %v7885
        %v7887 = vrot.slane %v7724, %v7886
        %v7888 = vlaneseq
        %v7889 = vshrl.u32 %v7888, 7
        %v7890 = vsub.s32 7, %v7889
        %v7891 = vrot.slane %v7724, %v7890
        %v7900 = vmul.f32 %v7863, %v7686
        %v7901 = vmul.f32 %v7867, %v7687
        %v7902 = vmul.f32 %v7871, %v7688
        %v7903 = vmul.f32 %v7875, %v7689
        %v7904 = vmul.f32 %v7879, %v7690
        %v7905 = vmul.f32 %v7883, %v7691
        %v7906 = vmul.f32 %v7887, %v7692
        %v7907 = vmul.f32 %v7891, %v7693
        %v7908 = vmul.f32 %v7863, %v7694
        %v7909 = vmul.f32 %v7867, %v7695
        %v7910 = vmul.f32 %v7871, %v7696
        %v7911 = vmul.f32 %v7875, %v7697
        %v7912 = vmul.f32 %v7879, %v7698
        %v7913 = vmul.f32 %v7883, %v7699
        %v7914 = vmul.f32 %v7887, %v7700
        %v7915 = vmul.f32 %v7891, %v7701
        %v7917 = vlaneseq
        %v7918 = vshrl.u32 %v7917, 7
        %v7919 = vsub.s32 0, %v7918
        %v7920 = vrot.slane %v7743, %v7919
        %v7921 = vlaneseq
        %v7922 = vshrl.u32 %v7921, 7
        %v7923 = vsub.s32 1, %v7922
        %v7924 = vrot.slane %v7743, %v7923
        %v7925 = vlaneseq
        %v7926 = vshrl.u32 %v7925, 7
        %v7927 = vsub.s32 2, %v7926
        %v7928 = vrot.slane %v7743, %v7927
        %v7929 = vlaneseq
        %v7930 = vshrl.u32 %v7929, 7
        %v7931 = vsub.s32 3, %v7930
        %v7932 = vrot.slane %v7743, %v7931
        %v7933 = vlaneseq
        %v7934 = vshrl.u32 %v7933, 7
        %v7935 = vsub.s32 4, %v7934
        %v7936 = vrot.slane %v7743, %v7935
        %v7937 = vlaneseq
        %v7938 = vshrl.u32 %v7937, 7
        %v7939 = vsub.s32 5, %v7938
        %v7940 = vrot.slane %v7743, %v7939
        %v7941 = vlaneseq
        %v7942 = vshrl.u32 %v7941, 7
        %v7943 = vsub.s32 6, %v7942
        %v7944 = vrot.slane %v7743, %v7943
        %v7945 = vlaneseq
        %v7946 = vshrl.u32 %v7945, 7
        %v7947 = vsub.s32 7, %v7946
        %v7948 = vrot.slane %v7743, %v7947
        %v7957 = vmul.f32 %v7920, %v7686
        %v7958 = vmul.f32 %v7924, %v7687
        %v7959 = vmul.f32 %v7928, %v7688
        %v7960 = vmul.f32 %v7932, %v7689
        %v7961 = vmul.f32 %v7936, %v7690
        %v7962 = vmul.f32 %v7940, %v7691
        %v7963 = vmul.f32 %v7944, %v7692
        %v7964 = vmul.f32 %v7948, %v7693
        %v7965 = vmul.f32 %v7920, %v7694
        %v7966 = vmul.f32 %v7924, %v7695
        %v7967 = vmul.f32 %v7928, %v7696
        %v7968 = vmul.f32 %v7932, %v7697
        %v7969 = vmul.f32 %v7936, %v7698
        %v7970 = vmul.f32 %v7940, %v7699
        %v7971 = vmul.f32 %v7944, %v7700
        %v7972 = vmul.f32 %v7948, %v7701
        %v7974 = vlaneseq
        %v7975 = vshrl.u32 %v7974, 7
        %v7976 = vsub.s32 0, %v7975
        %v7977 = vrot.slane %v7744, %v7976
        %v7978 = vlaneseq
        %v7979 = vshrl.u32 %v7978, 7
        %v7980 = vsub.s32 1, %v7979
        %v7981 = vrot.slane %v7744, %v7980
        %v7982 = vlaneseq
        %v7983 = vshrl.u32 %v7982, 7
        %v7984 = vsub.s32 2, %v7983
        %v7985 = vrot.slane %v7744, %v7984
        %v7986 = vlaneseq
        %v7987 = vshrl.u32 %v7986, 7
        %v7988 = vsub.s32 3, %v7987
        %v7989 = vrot.slane %v7744, %v7988
        %v7990 = vlaneseq
        %v7991 = vshrl.u32 %v7990, 7
        %v7992 = vsub.s32 4, %v7991
        %v7993 = vrot.slane %v7744, %v7992
        %v7994 = vlaneseq
        %v7995 = vshrl.u32 %v7994, 7
        %v7996 = vsub.s32 5, %v7995
        %v7997 = vrot.slane %v7744, %v7996
        %v7998 = vlaneseq
        %v7999 = vshrl.u32 %v7998, 7
        %v8000 = vsub.s32 6, %v7999
        %v8001 = vrot.slane %v7744, %v8000
        %v8002 = vlaneseq
        %v8003 = vshrl.u32 %v8002, 7
        %v8004 = vsub.s32 7, %v8003
        %v8005 = vrot.slane %v7744, %v8004
        %v8014 = vmul.f32 %v7977, %v7686
        %v8015 = vmul.f32 %v7981, %v7687
        %v8016 = vmul.f32 %v7985, %v7688
        %v8017 = vmul.f32 %v7989, %v7689
        %v8018 = vmul.f32 %v7993, %v7690
        %v8019 = vmul.f32 %v7997, %v7691
        %v8020 = vmul.f32 %v8001, %v7692
        %v8021 = vmul.f32 %v8005, %v7693
        %v8022 = vmul.f32 %v7977, %v7694
        %v8023 = vmul.f32 %v7981, %v7695
        %v8024 = vmul.f32 %v7985, %v7696
        %v8025 = vmul.f32 %v7989, %v7697
        %v8026 = vmul.f32 %v7993, %v7698
        %v8027 = vmul.f32 %v7997, %v7699
        %v8028 = vmul.f32 %v8001, %v7700
        %v8029 = vmul.f32 %v8005, %v7701
        %vm8046 = vcmask 1045504
        %v8047 = vrot.slane %v7537, 2
        %v8048 = vrot.slane %v7545, 2
        %v8049 = vsel %vm8046, %v8047, %v8048
        %v8050 = vrot.slane %v7538, 2
        %v8051 = vrot.slane %v7546, 2
        %v8052 = vsel %vm8046, %v8050, %v8051
        %v8053 = vrot.slane %v7539, 2
        %v8054 = vrot.slane %v7547, 2
        %v8055 = vsel %vm8046, %v8053, %v8054
        %v8056 = vrot.slane %v7540, 2
        %v8057 = vrot.slane %v7548, 2
        %v8058 = vsel %vm8046, %v8056, %v8057
        %v8059 = vrot.slane %v7541, 2
        %v8060 = vrot.slane %v7549, 2
        %v8061 = vsel %vm8046, %v8059, %v8060
        %v8062 = vrot.slane %v7542, 2
        %v8063 = vrot.slane %v7550, 2
        %v8064 = vsel %vm8046, %v8062, %v8063
        %v8065 = vrot.slane %v7543, 2
        %v8066 = vrot.slane %v7551, 2
        %v8067 = vsel %vm8046, %v8065, %v8066
        %v8068 = vrot.slane %v7544, 2
        %v8069 = vrot.slane %v7552, 2
        %v8070 = vsel %vm8046, %v8068, %v8069
        %vm8103 = vcmask 1043456
        %v8104 = vrot.slane %v7594, 4
        %v8105 = vrot.slane %v7602, 4
        %v8106 = vsel %vm8103, %v8104, %v8105
        %v8107 = vrot.slane %v7595, 4
        %v8108 = vrot.slane %v7603, 4
        %v8109 = vsel %vm8103, %v8107, %v8108
        %v8110 = vrot.slane %v7596, 4
        %v8111 = vrot.slane %v7604, 4
        %v8112 = vsel %vm8103, %v8110, %v8111
        %v8113 = vrot.slane %v7597, 4
        %v8114 = vrot.slane %v7605, 4
        %v8115 = vsel %vm8103, %v8113, %v8114
        %v8116 = vrot.slane %v7598, 4
        %v8117 = vrot.slane %v7606, 4
        %v8118 = vsel %vm8103, %v8116, %v8117
        %v8119 = vrot.slane %v7599, 4
        %v8120 = vrot.slane %v7607, 4
        %v8121 = vsel %vm8103, %v8119, %v8120
        %v8122 = vrot.slane %v7600, 4
        %v8123 = vrot.slane %v7608, 4
        %v8124 = vsel %vm8103, %v8122, %v8123
        %v8125 = vrot.slane %v7601, 4
        %v8126 = vrot.slane %v7609, 4
        %v8127 = vsel %vm8103, %v8125, %v8126
        %v8152 = vrot.slane %v7786, 4
        %v8153 = vrot.slane %v7794, 4
        %v8154 = vsel %vm8103, %v8152, %v8153
        %v8155 = vrot.slane %v7787, 4
        %v8156 = vrot.slane %v7795, 4
        %v8157 = vsel %vm8103, %v8155, %v8156
        %v8158 = vrot.slane %v7788, 4
        %v8159 = vrot.slane %v7796, 4
        %v8160 = vsel %vm8103, %v8158, %v8159
        %v8161 = vrot.slane %v7789, 4
        %v8162 = vrot.slane %v7797, 4
        %v8163 = vsel %vm8103, %v8161, %v8162
        %v8164 = vrot.slane %v7790, 4
        %v8165 = vrot.slane %v7798, 4
        %v8166 = vsel %vm8103, %v8164, %v8165
        %v8167 = vrot.slane %v7791, 4
        %v8168 = vrot.slane %v7799, 4
        %v8169 = vsel %vm8103, %v8167, %v8168
        %v8170 = vrot.slane %v7792, 4
        %v8171 = vrot.slane %v7800, 4
        %v8172 = vsel %vm8103, %v8170, %v8171
        %v8173 = vrot.slane %v7793, 4
        %v8174 = vrot.slane %v7801, 4
        %v8175 = vsel %vm8103, %v8173, %v8174
        %vm8200 = vcmask 1041408
        %v8201 = vrot.slane %v7843, 6
        %v8202 = vrot.slane %v7844, 6
        %v8203 = vrot.slane %v7845, 6
        %v8204 = vrot.slane %v7846, 6
        %v8205 = vrot.slane %v7847, 6
        %v8206 = vrot.slane %v7848, 6
        %v8207 = vrot.slane %v7849, 6
        %v8208 = vrot.slane %v7850, 6
        %v8209 = vrot.slane %v7851, 6
        %v8210 = vsel %vm8200, %v8201, %v8209
        %v8211 = vrot.slane %v7852, 6
        %v8212 = vsel %vm8200, %v8202, %v8211
        %v8213 = vrot.slane %v7853, 6
        %v8214 = vsel %vm8200, %v8203, %v8213
        %v8215 = vrot.slane %v7854, 6
        %v8216 = vsel %vm8200, %v8204, %v8215
        %v8217 = vrot.slane %v7855, 6
        %v8218 = vsel %vm8200, %v8205, %v8217
        %v8219 = vrot.slane %v7856, 6
        %v8220 = vsel %vm8200, %v8206, %v8219
        %v8221 = vrot.slane %v7857, 6
        %v8222 = vsel %vm8200, %v8207, %v8221
        %v8223 = vrot.slane %v7858, 6
        %v8224 = vsel %vm8200, %v8208, %v8223
        %v8257 = vrot.slane %v7957, 2
        %v8258 = vrot.slane %v7965, 2
        %v8259 = vsel %vm8046, %v8257, %v8258
        %v8260 = vrot.slane %v7958, 2
        %v8261 = vrot.slane %v7966, 2
        %v8262 = vsel %vm8046, %v8260, %v8261
        %v8263 = vrot.slane %v7959, 2
        %v8264 = vrot.slane %v7967, 2
        %v8265 = vsel %vm8046, %v8263, %v8264
        %v8266 = vrot.slane %v7960, 2
        %v8267 = vrot.slane %v7968, 2
        %v8268 = vsel %vm8046, %v8266, %v8267
        %v8269 = vrot.slane %v7961, 2
        %v8270 = vrot.slane %v7969, 2
        %v8271 = vsel %vm8046, %v8269, %v8270
        %v8272 = vrot.slane %v7962, 2
        %v8273 = vrot.slane %v7970, 2
        %v8274 = vsel %vm8046, %v8272, %v8273
        %v8275 = vrot.slane %v7963, 2
        %v8276 = vrot.slane %v7971, 2
        %v8277 = vsel %vm8046, %v8275, %v8276
        %v8278 = vrot.slane %v7964, 2
        %v8279 = vrot.slane %v7972, 2
        %v8280 = vsel %vm8046, %v8278, %v8279
        %v8305 = vrot.slane %v8014, 4
        %v8306 = vrot.slane %v8022, 4
        %v8307 = vsel %vm8103, %v8305, %v8306
        %v8308 = vrot.slane %v8015, 4
        %v8309 = vrot.slane %v8023, 4
        %v8310 = vsel %vm8103, %v8308, %v8309
        %v8311 = vrot.slane %v8016, 4
        %v8312 = vrot.slane %v8024, 4
        %v8313 = vsel %vm8103, %v8311, %v8312
        %v8314 = vrot.slane %v8017, 4
        %v8315 = vrot.slane %v8025, 4
        %v8316 = vsel %vm8103, %v8314, %v8315
        %v8317 = vrot.slane %v8018, 4
        %v8318 = vrot.slane %v8026, 4
        %v8319 = vsel %vm8103, %v8317, %v8318
        %v8320 = vrot.slane %v8019, 4
        %v8321 = vrot.slane %v8027, 4
        %v8322 = vsel %vm8103, %v8320, %v8321
        %v8323 = vrot.slane %v8020, 4
        %v8324 = vrot.slane %v8028, 4
        %v8325 = vsel %vm8103, %v8323, %v8324
        %v8326 = vrot.slane %v8021, 4
        %v8327 = vrot.slane %v8029, 4
        %v8328 = vsel %vm8103, %v8326, %v8327
        %v8337 = vsel %vm8046, %v7251, %v7480
        %v8338 = vsel %vm8046, %v7252, %v7481
        %v8339 = vsel %vm8046, %v7253, %v7482
        %v8340 = vsel %vm8046, %v7254, %v7483
        %v8341 = vsel %vm8046, %v7255, %v7484
        %v8342 = vsel %vm8046, %v7256, %v7485
        %v8343 = vsel %vm8046, %v7257, %v7486
        %v8344 = vsel %vm8046, %v7258, %v7487
        %v8345 = vsel %vm8103, %v7488, %v8049
        %v8346 = vsel %vm8103, %v7489, %v8052
        %v8347 = vsel %vm8103, %v7490, %v8055
        %v8348 = vsel %vm8103, %v7491, %v8058
        %v8349 = vsel %vm8103, %v7492, %v8061
        %v8350 = vsel %vm8103, %v7493, %v8064
        %v8351 = vsel %vm8103, %v7494, %v8067
        %v8352 = vsel %vm8103, %v7495, %v8070
        %v8353 = vsel %vm8200, %v8048, %v8106
        %v8354 = vsel %vm8200, %v8051, %v8109
        %v8355 = vsel %vm8200, %v8054, %v8112
        %v8356 = vsel %vm8200, %v8057, %v8115
        %v8357 = vsel %vm8200, %v8060, %v8118
        %v8358 = vsel %vm8200, %v8063, %v8121
        %v8359 = vsel %vm8200, %v8066, %v8124
        %v8360 = vsel %vm8200, %v8069, %v8127
        %v8361 = vsel %vm8046, %v8154, %v8201
        %v8362 = vsel %vm8046, %v8157, %v8202
        %v8363 = vsel %vm8046, %v8160, %v8203
        %v8364 = vsel %vm8046, %v8163, %v8204
        %v8365 = vsel %vm8046, %v8166, %v8205
        %v8366 = vsel %vm8046, %v8169, %v8206
        %v8367 = vsel %vm8046, %v8172, %v8207
        %v8368 = vsel %vm8046, %v8175, %v8208
        %v8369 = vsel %vm8103, %v8210, %v7900
        %v8370 = vsel %vm8103, %v8212, %v7901
        %v8371 = vsel %vm8103, %v8214, %v7902
        %v8372 = vsel %vm8103, %v8216, %v7903
        %v8373 = vsel %vm8103, %v8218, %v7904
        %v8374 = vsel %vm8103, %v8220, %v7905
        %v8375 = vsel %vm8103, %v8222, %v7906
        %v8376 = vsel %vm8103, %v8224, %v7907
        %v8377 = vsel %vm8200, %v7908, %v8259
        %v8378 = vsel %vm8200, %v7909, %v8262
        %v8379 = vsel %vm8200, %v7910, %v8265
        %v8380 = vsel %vm8200, %v7911, %v8268
        %v8381 = vsel %vm8200, %v7912, %v8271
        %v8382 = vsel %vm8200, %v7913, %v8274
        %v8383 = vsel %vm8200, %v7914, %v8277
        %v8384 = vsel %vm8200, %v7915, %v8280
        %8385 = vst [vmem:[%s159] sm:$0xff] %v8337
        %8386 = vst [vmem:[%s159 + $0x8] sm:$0xff] %v8338
        %8387 = vst [vmem:[%s159 + $0x10] sm:$0xff] %v8339
        %8388 = vst [vmem:[%s159 + $0x18] sm:$0xff] %v8340
        %8389 = vst [vmem:[%s159 + $0x20] sm:$0xff] %v8341
        %8390 = vst [vmem:[%s159 + $0x28] sm:$0xff] %v8342
        %8391 = vst [vmem:[%s159 + $0x30] sm:$0xff] %v8343
        %8392 = vst [vmem:[%s159 + $0x38] sm:$0xff] %v8344
        %8393 = vst [vmem:[%s159 + $0x40] sm:$0xff] %v8345
        %8394 = vst [vmem:[%s159 + $0x48] sm:$0xff] %v8346
        %8395 = vst [vmem:[%s159 + $0x50] sm:$0xff] %v8347
        %8396 = vst [vmem:[%s159 + $0x58] sm:$0xff] %v8348
        %8397 = vst [vmem:[%s159 + $0x60] sm:$0xff] %v8349
        %8398 = vst [vmem:[%s159 + $0x68] sm:$0xff] %v8350
        %8399 = vst [vmem:[%s159 + $0x70] sm:$0xff] %v8351
        %8400 = vst [vmem:[%s159 + $0x78] sm:$0xff] %v8352
        %8401 = vst [vmem:[%s159 + $0x80] sm:$0xff] %v8353
        %8402 = vst [vmem:[%s159 + $0x88] sm:$0xff] %v8354
        %8403 = vst [vmem:[%s159 + $0x90] sm:$0xff] %v8355
        %8404 = vst [vmem:[%s159 + $0x98] sm:$0xff] %v8356
        %8405 = vst [vmem:[%s159 + $0xa0] sm:$0xff] %v8357
        %8406 = vst [vmem:[%s159 + $0xa8] sm:$0xff] %v8358
        %8407 = vst [vmem:[%s159 + $0xb0] sm:$0xff] %v8359
        %8408 = vst [vmem:[%s159 + $0xb8] sm:$0xff] %v8360
        %8409 = vst [vmem:[%s159 + $0xc0] sm:$0xff] %v8361
        %8410 = vst [vmem:[%s159 + $0xc8] sm:$0xff] %v8362
        %8411 = vst [vmem:[%s159 + $0xd0] sm:$0xff] %v8363
        %8412 = vst [vmem:[%s159 + $0xd8] sm:$0xff] %v8364
        %8413 = vst [vmem:[%s159 + $0xe0] sm:$0xff] %v8365
        %8414 = vst [vmem:[%s159 + $0xe8] sm:$0xff] %v8366
        %8415 = vst [vmem:[%s159 + $0xf0] sm:$0xff] %v8367
        %8416 = vst [vmem:[%s159 + $0xf8] sm:$0xff] %v8368
        %8417 = vst [vmem:[%s159 + $0x100] sm:$0xff] %v8369
        %8418 = vst [vmem:[%s159 + $0x108] sm:$0xff] %v8370
        %8419 = vst [vmem:[%s159 + $0x110] sm:$0xff] %v8371
        %8420 = vst [vmem:[%s159 + $0x118] sm:$0xff] %v8372
        %8421 = vst [vmem:[%s159 + $0x120] sm:$0xff] %v8373
        %8422 = vst [vmem:[%s159 + $0x128] sm:$0xff] %v8374
        %8423 = vst [vmem:[%s159 + $0x130] sm:$0xff] %v8375
        %8424 = vst [vmem:[%s159 + $0x138] sm:$0xff] %v8376
        %8425 = vst [vmem:[%s159 + $0x140] sm:$0xff] %v8377
        %8426 = vst [vmem:[%s159 + $0x148] sm:$0xff] %v8378
        %8427 = vst [vmem:[%s159 + $0x150] sm:$0xff] %v8379
        %8428 = vst [vmem:[%s159 + $0x158] sm:$0xff] %v8380
        %8429 = vst [vmem:[%s159 + $0x160] sm:$0xff] %v8381
        %8430 = vst [vmem:[%s159 + $0x168] sm:$0xff] %v8382
        %8431 = vst [vmem:[%s159 + $0x170] sm:$0xff] %v8383
        %8432 = vst [vmem:[%s159 + $0x178] sm:$0xff] %v8384
        %8433 = vst [vmem:[%s159 + $0x180] sm:$0x3f] %v8307
        %8434 = vst [vmem:[%s159 + $0x188] sm:$0x3f] %v8310
        %8435 = vst [vmem:[%s159 + $0x190] sm:$0x3f] %v8313
        %8436 = vst [vmem:[%s159 + $0x198] sm:$0x3f] %v8316
        %8437 = vst [vmem:[%s159 + $0x1a0] sm:$0x3f] %v8319
        %8438 = vst [vmem:[%s159 + $0x1a8] sm:$0x3f] %v8322
        %8439 = vst [vmem:[%s159 + $0x1b0] sm:$0x3f] %v8325
        %8440 = vst [vmem:[%s159 + $0x1b8] sm:$0x3f] %v8328
        %s8441 = sand.u32 %s74, 1
        %s8442 = scalar_lea.sflag [#allocation4], %s8441
        %s8443 = sand.u32 %s74, 1
        %s8444 = smul.addr %s8443, 448
        %s8445 = scalar_lea.vmem [#allocation5], %s8444
        // Predicated region
        $region33: #{tpu_custom_call.1} parent=27 // pred_check
          %p8446 = pneg %p84
        $region34: #{tpu_custom_call.1} parent=27 // pred_check_branch
          %8448 = sbr.rel (%p8446) target = $region36
        $region35: #{tpu_custom_call.1} parent=27 // pred_region
          %s8449 = smul.u32 8, %s19
          %s8451 = ssub.s32 7168, 7168
          %8452 = vsyncadd %s8442, %s8451
          %s8453 = smul.addr %s8449, 128
          %s8454 = scalar_lea.hbm %s2, %s8453
          %s8455 = sshll.u32 %s8445, 4
          %s8456 = int_to_ptr.vmem [resolvable:$true] %s8455
          %8461 = dma.vmem_to_hbm [thread:$0]  %s8456, 7168, %s8454, %s8442, 1024, 2048, 64
        $region36: #{tpu_custom_call.1} parent=27 // pred_fallthru
          _
      $region28: #{tpu_custom_call.1} parent=5 // pred_fallthru
        _
      %p8462 = scmp.le.s32.totalorder 2, %s14
      // Predicated region
      $region37: #{tpu_custom_call.1} parent=5 // pred_check
        %p8463 = pneg %p8462
      $region38: #{tpu_custom_call.1} parent=5 // pred_check_branch
        %8465 = sbr.rel (%p8463) target = $region40
      $region39: #{tpu_custom_call.1} parent=5 // pred_region
        %s8466 = ssub.s32 %s14, 2
        // Predicated region
        $region41: #{tpu_custom_call.1} parent=39 // pred_check
          %p8467 = pneg %p90
        $region42: #{tpu_custom_call.1} parent=39 // pred_check_branch
          %8469 = sbr.rel (%p8467) target = $region44
        $region43: #{tpu_custom_call.1} parent=39 // pred_region
          %s8470 = sand.u32 %s75, 1
          %s8471 = scalar_lea.sflag [#allocation4], %s8470
          %s8472 = sand.u32 %s75, 1
          %s8473 = smul.addr %s8472, 448
          %s8474 = scalar_lea.vmem [#allocation5], %s8473
          %8475 = dma.done %s8471, 7168
        $region44: #{tpu_custom_call.1} parent=39 // pred_fallthru
          _
      $region40: #{tpu_custom_call.1} parent=5 // pred_fallthru
        _
    $region6: #{tpu_custom_call.1} parent=1 // loop_footer
      %s18 = sadd.s32 1, %s14
    $region7: #{tpu_custom_call.1} parent=1 // loop_footer_branch
      %13 = sbr.rel target = $region3
    $region8: #{tpu_custom_call.1} parent=1 // loop_exit
      _
    %8476 = vsyncpa [#allocation3], 1
    %s8477 = scalar_lea.sflag [#allocation3], 1
    %8478 = vsyncpa %s8477, 1
    %8479 = vsyncpa [#allocation4], 1
    %s8480 = scalar_lea.sflag [#allocation4], 1
    %8481 = vsyncpa %s8480, 1

</llo_original>
